<compile_context>
chip_gen: v6e
topology: v6e:2x2x1
jax: 0.10.0
libtpu: 0.0.40
codegen_flags: <defaults>
</compile_context>

<pallas_src>
import jax
import jax.numpy as jnp
import numpy as np
from jax import lax
from jax.experimental import pallas as pl
from jax.experimental.pallas import tpu as pltpu

EPS = 1e-5


def bottleneck_kernel(x_ref, w1_ref, g1_ref, b1_ref,
                      w2_ref, g2_ref, b2_ref,
                      w3_ref, g3_ref, b3_ref,
                      o_ref, hp_ref, slab_ref):
    N, H, W, Cin = x_ref.shape
    Cw = w1_ref.shape[1]          # bottleneck width (128 in the demo)
    M = N * H * W

    x2d = x_ref[...].reshape(M, Cin)   # f32 activations straight into the MXU

    def bn_relu(y2d, gamma, beta, relu):
        # Training-mode BatchNorm (biased variance over N*H*W), applied as a
        # fused per-channel scale/shift:  y * s + t.
        mean = jnp.mean(y2d, axis=0, keepdims=True)                    # (1, C)
        var = jnp.mean(y2d * y2d, axis=0, keepdims=True) - mean * mean
        s = gamma * lax.rsqrt(var + EPS)
        t = beta - mean * s
        out = y2d * s + t
        return jnp.maximum(out, 0.0) if relu else out

    # ---- conv1 (1x1) + bn1 + relu : pointwise conv == channel matmul --------
    h1 = jnp.dot(x2d, w1_ref[...], preferred_element_type=jnp.float32)
    h1 = bn_relu(h1, g1_ref[...], b1_ref[...], relu=True)

    # ---- conv2 (3x3, stride=1, pad=1) via im2col + one matmul ---------------
    # Zero only the 1-pixel halo strips, then write the interior once.
    zrow = jnp.zeros((N, 1, W + 2, Cw), jnp.float32)
    zcol = jnp.zeros((N, H, 1, Cw), jnp.float32)
    hp_ref[:, 0:1, :, :] = zrow
    hp_ref[:, H + 1:H + 2, :, :] = zrow
    hp_ref[:, 1:H + 1, 0:1, :] = zcol
    hp_ref[:, 1:H + 1, W + 1:W + 2, :] = zcol
    hp_ref[:, 1:H + 1, 1:W + 1, :] = h1.reshape(N, H, W, Cw)

    # Build the (N, H, W, 9*Cw) patch slab; every column write is a 128-lane
    # aligned, unmasked store (Cw is a multiple of 128).
    for k in range(9):
        ky, kx = k // 3, k % 3
        slab_ref[:, :, :, k * Cw:(k + 1) * Cw] = hp_ref[:, ky:ky + H, kx:kx + W, :]

    h2 = jnp.dot(slab_ref[...].reshape(M, 9 * Cw), w2_ref[...],
                 preferred_element_type=jnp.float32)
    h2 = bn_relu(h2, g2_ref[...], b2_ref[...], relu=True)

    # ---- conv3 (1x1) + bn3 + residual add + relu ----------------------------
    h3 = jnp.dot(h2, w3_ref[...], preferred_element_type=jnp.float32)
    h3 = bn_relu(h3, g3_ref[...], b3_ref[...], relu=False)
    out = jnp.maximum(h3 + x2d, 0.0)
    o_ref[...] = out.reshape(N, H, W, Cin).astype(o_ref.dtype)


def bottleneck_forward_nhwc(x_nhwc, params):
    """Bottleneck forward, NHWC in / NHWC out (channels on the lane dim)."""
    N, H, W, Cin = x_nhwc.shape
    Cw = params["w1"].shape[1]
    # im2col weight layout: (ky, kx, cin) flattened -> (9*Cw, Cout)
    w2r = params["w2"].reshape(9 * Cw, Cw)

    vspec = pl.BlockSpec(memory_space=pltpu.MemorySpace.VMEM)
    return pl.pallas_call(
        bottleneck_kernel,
        out_shape=jax.ShapeDtypeStruct((N, H, W, Cin), x_nhwc.dtype),
        in_specs=[vspec] * 10,
        out_specs=vspec,
        scratch_shapes=[
            pltpu.VMEM((N, H + 2, W + 2, Cw), jnp.float32),     # padded conv2 input
            pltpu.VMEM((N, H, W, 9 * Cw), jnp.float32),         # im2col slab
        ],
        compiler_params=pltpu.CompilerParams(vmem_limit_bytes=32 * 1024 * 1024),
    )(x_nhwc,
      params["w1"], params["g1"], params["b1"],
      w2r, params["g2"], params["b2"],
      params["w3"], params["g3"], params["b3"])


def bottleneck_forward_nchw(x_nchw, params):
    """PyTorch-layout wrapper. Prefer the NHWC entry point and keep activations
    NHWC across the network to avoid these two full-tensor HBM round trips."""
    x = jnp.transpose(x_nchw, (0, 2, 3, 1))
    return jnp.transpose(bottleneck_forward_nhwc(x, params), (0, 3, 1, 2))


def bottleneck_ref_nhwc(x, params):
    """Pure-JAX reference (same math, no Pallas) for verification."""
    hi = lax.Precision.HIGHEST

    def bn(y, g, b):
        mean = jnp.mean(y, axis=(0, 1, 2), keepdims=True)
        var = jnp.mean((y - mean) ** 2, axis=(0, 1, 2), keepdims=True)
        return (y - mean) / jnp.sqrt(var + EPS) * g + b

    h = jnp.einsum('nhwc,cd->nhwd', x, params["w1"], precision=hi)
    h = jax.nn.relu(bn(h, params["g1"], params["b1"]))
    h = lax.conv_general_dilated(h, params["w2"], (1, 1), 'SAME',
                                 dimension_numbers=('NHWC', 'HWIO', 'NHWC'),
                                 precision=hi)
    h = jax.nn.relu(bn(h, params["g2"], params["b2"]))
    h = jnp.einsum('nhwc,cd->nhwd', h, params["w3"], precision=hi)
    h = bn(h, params["g3"], params["b3"])
    return jax.nn.relu(h + x)


if __name__ == "__main__":
    # Bottleneck(inplanes=256, planes=64, base_width=128):
    #   width = int(64 * 128/64) * 1 = 128, planes*expansion = 256 == inplanes,
    # so the identity add works with downsample=None, and every channel dim is a
    # multiple of the 128-lane vreg width (lane-dense).
    inplanes, planes, base_width, groups = 256, 64, 128, 1
    width = int(planes * (base_width / 64.0)) * groups   # 128
    out_c = planes * 4                                    # 256 == inplanes
    N, H, W = 2, 16, 16

    key = jax.random.PRNGKey(0)
    ks = jax.random.split(key, 10)
    params = {
        # conv weights stored as (Cin, Cout) / (kH, kW, Cin, Cout) [HWIO]
        "w1": 0.1 * jax.random.normal(ks[0], (inplanes, width), jnp.float32),
        "g1": 1.0 + 0.1 * jax.random.normal(ks[1], (1, width), jnp.float32),
        "b1": 0.05 * jax.random.normal(ks[2], (1, width), jnp.float32),
        "w2": 0.1 * jax.random.normal(ks[3], (3, 3, width, width), jnp.float32),
        "g2": 1.0 + 0.1 * jax.random.normal(ks[4], (1, width), jnp.float32),
        "b2": 0.05 * jax.random.normal(ks[5], (1, width), jnp.float32),
        "w3": 0.1 * jax.random.normal(ks[6], (width, out_c), jnp.float32),
        "g3": 1.0 + 0.1 * jax.random.normal(ks[7], (1, out_c), jnp.float32),
        "b3": 0.05 * jax.random.normal(ks[8], (1, out_c), jnp.float32),
    }
    x_nchw = jax.random.normal(ks[9], (N, inplanes, H, W), jnp.float32)  # PyTorch layout
    x_nhwc = jnp.transpose(x_nchw, (0, 2, 3, 1))

    # Native NHWC path (no boundary transposes).
    y = jax.block_until_ready(bottleneck_forward_nhwc(x_nhwc, params))
    y_ref = bottleneck_ref_nhwc(x_nhwc, params)
    assert y.shape == x_nhwc.shape
    # Tolerance covers MXU vs. XLA-conv accumulation-order / precision-pass
    # differences; structural bugs produce O(0.1-1) errors.
    np.testing.assert_allclose(np.asarray(y), np.asarray(y_ref),
                               rtol=5e-3, atol=5e-3)

    # PyTorch-layout wrapper parity check.
    y_nchw = jax.block_until_ready(bottleneck_forward_nchw(x_nchw, params))
    np.testing.assert_allclose(np.asarray(y_nchw),
                               np.asarray(jnp.transpose(y_ref, (0, 3, 1, 2))),
                               rtol=5e-3, atol=5e-3)

    print("KERNEL_OK")
</pallas_src>

<mosaic_0001>
module attributes {stable_mosaic.version = 11 : i64} {
  func.func @bottleneck_kernel(%arg0: memref<2x16x16x256xf32, #tpu.memory_space<vmem>>, %arg1: memref<256x128xf32, #tpu.memory_space<vmem>>, %arg2: memref<1x128xf32, #tpu.memory_space<vmem>>, %arg3: memref<1x128xf32, #tpu.memory_space<vmem>>, %arg4: memref<1152x128xf32, #tpu.memory_space<vmem>>, %arg5: memref<1x128xf32, #tpu.memory_space<vmem>>, %arg6: memref<1x128xf32, #tpu.memory_space<vmem>>, %arg7: memref<128x256xf32, #tpu.memory_space<vmem>>, %arg8: memref<1x256xf32, #tpu.memory_space<vmem>>, %arg9: memref<1x256xf32, #tpu.memory_space<vmem>>, %arg10: memref<2x16x16x256xf32, #tpu.memory_space<vmem>>, %arg11: memref<2x18x18x128xf32, #tpu.memory_space<vmem>>, %arg12: memref<2x16x16x1152xf32, #tpu.memory_space<vmem>>) attributes {dimension_semantics = [], scalar_prefetch = 0 : i64, scratch_operands = 2 : i64, tpu.core_type = #tpu.core_type<tc>} {
    %c0 = arith.constant 0 : index
    %c0_0 = arith.constant 0 : index
    %c0_1 = arith.constant 0 : index
    %c0_2 = arith.constant 0 : index
    %0 = vector.load %arg0[%c0, %c0_0, %c0_1, %c0_2] : memref<2x16x16x256xf32, #tpu.memory_space<vmem>>, vector<2x16x16x256xf32>
    %1 = vector.shape_cast %0 : vector<2x16x16x256xf32> to vector<512x256xf32>
    %c0_3 = arith.constant 0 : index
    %c0_4 = arith.constant 0 : index
    %2 = vector.load %arg1[%c0_3, %c0_4] : memref<256x128xf32, #tpu.memory_space<vmem>>, vector<256x128xf32>
    %cst = arith.constant dense<0.000000e+00> : vector<512x128xf32>
    %3 = tpu.matmul %1, %2, %cst {dimension_numbers = #tpu.dot_dimension_numbers<[1], [0], [0], [1], [0, 0, 1, 1], [], []>} : vector<512x256xf32>, vector<256x128xf32>, vector<512x128xf32> -> vector<512x128xf32>
    %c0_5 = arith.constant 0 : index
    %c0_6 = arith.constant 0 : index
    %4 = vector.load %arg2[%c0_5, %c0_6] : memref<1x128xf32, #tpu.memory_space<vmem>>, vector<1x128xf32>
    %c0_7 = arith.constant 0 : index
    %c0_8 = arith.constant 0 : index
    %5 = vector.load %arg3[%c0_7, %c0_8] : memref<1x128xf32, #tpu.memory_space<vmem>>, vector<1x128xf32>
    %cst_9 = arith.constant dense<0.000000e+00> : vector<128xf32>
    %6 = vector.multi_reduction <add>, %3, %cst_9 [0] : vector<512x128xf32> to vector<128xf32>
    %7 = vector.shape_cast %6 : vector<128xf32> to vector<1x128xf32>
    %cst_10 = arith.constant 5.120000e+02 : f32
    %8 = vector.broadcast %cst_10 : f32 to vector<1x128xf32>
    %9 = arith.divf %7, %8 : vector<1x128xf32>
    %10 = arith.mulf %3, %3 : vector<512x128xf32>
    %cst_11 = arith.constant dense<0.000000e+00> : vector<128xf32>
    %11 = vector.multi_reduction <add>, %10, %cst_11 [0] : vector<512x128xf32> to vector<128xf32>
    %12 = vector.shape_cast %11 : vector<128xf32> to vector<1x128xf32>
    %cst_12 = arith.constant 5.120000e+02 : f32
    %13 = vector.broadcast %cst_12 : f32 to vector<1x128xf32>
    %14 = arith.divf %12, %13 : vector<1x128xf32>
    %15 = arith.mulf %9, %9 : vector<1x128xf32>
    %16 = arith.subf %14, %15 : vector<1x128xf32>
    %cst_13 = arith.constant 9.99999974E-6 : f32
    %17 = vector.broadcast %cst_13 : f32 to vector<1x128xf32>
    %18 = arith.addf %16, %17 : vector<1x128xf32>
    %19 = math.rsqrt %18 : vector<1x128xf32>
    %20 = arith.mulf %4, %19 : vector<1x128xf32>
    %21 = arith.mulf %9, %20 : vector<1x128xf32>
    %22 = arith.subf %5, %21 : vector<1x128xf32>
    %23 = vector.broadcast %20 : vector<1x128xf32> to vector<512x128xf32>
    %24 = arith.mulf %3, %23 : vector<512x128xf32>
    %25 = vector.broadcast %22 : vector<1x128xf32> to vector<512x128xf32>
    %26 = arith.addf %24, %25 : vector<512x128xf32>
    %cst_14 = arith.constant 0.000000e+00 : f32
    %27 = vector.broadcast %cst_14 : f32 to vector<512x128xf32>
    %28 = arith.maximumf %26, %27 : vector<512x128xf32>
    %cst_15 = arith.constant 0.000000e+00 : f32
    %29 = vector.broadcast %cst_15 : f32 to vector<2x1x18x128xf32>
    %cst_16 = arith.constant 0.000000e+00 : f32
    %30 = vector.broadcast %cst_16 : f32 to vector<2x16x1x128xf32>
    %c0_17 = arith.constant 0 : index
    %c0_18 = arith.constant 0 : index
    %c0_19 = arith.constant 0 : index
    %c0_20 = arith.constant 0 : index
    %31 = vector.load %arg11[%c0_17, %c0_18, %c0_19, %c0_20] : memref<2x18x18x128xf32, #tpu.memory_space<vmem>>, vector<2x1x18x128xf32>
    tpu.vector_store %arg11[%c0_17, %c0_18, %c0_19, %c0_20], %29 {strides = array<i32>} : memref<2x18x18x128xf32, #tpu.memory_space<vmem>>, vector<2x1x18x128xf32>,
    %c0_21 = arith.constant 0 : index
    %c17 = arith.constant 17 : index
    %c0_22 = arith.constant 0 : index
    %c0_23 = arith.constant 0 : index
    %32 = vector.load %arg11[%c0_21, %c17, %c0_22, %c0_23] : memref<2x18x18x128xf32, #tpu.memory_space<vmem>>, vector<2x1x18x128xf32>
    tpu.vector_store %arg11[%c0_21, %c17, %c0_22, %c0_23], %29 {strides = array<i32>} : memref<2x18x18x128xf32, #tpu.memory_space<vmem>>, vector<2x1x18x128xf32>,
    %c0_24 = arith.constant 0 : index
    %c1 = arith.constant 1 : index
    %c0_25 = arith.constant 0 : index
    %c0_26 = arith.constant 0 : index
    %33 = vector.load %arg11[%c0_24, %c1, %c0_25, %c0_26] : memref<2x18x18x128xf32, #tpu.memory_space<vmem>>, vector<2x16x1x128xf32>
    tpu.vector_store %arg11[%c0_24, %c1, %c0_25, %c0_26], %30 {strides = array<i32>} : memref<2x18x18x128xf32, #tpu.memory_space<vmem>>, vector<2x16x1x128xf32>,
    %c0_27 = arith.constant 0 : index
    %c1_28 = arith.constant 1 : index
    %c17_29 = arith.constant 17 : index
    %c0_30 = arith.constant 0 : index
    %34 = vector.load %arg11[%c0_27, %c1_28, %c17_29, %c0_30] : memref<2x18x18x128xf32, #tpu.memory_space<vmem>>, vector<2x16x1x128xf32>
    tpu.vector_store %arg11[%c0_27, %c1_28, %c17_29, %c0_30], %30 {strides = array<i32>} : memref<2x18x18x128xf32, #tpu.memory_space<vmem>>, vector<2x16x1x128xf32>,
    %35 = vector.shape_cast %28 : vector<512x128xf32> to vector<2x16x16x128xf32>
    %c0_31 = arith.constant 0 : index
    %c1_32 = arith.constant 1 : index
    %c1_33 = arith.constant 1 : index
    %c0_34 = arith.constant 0 : index
    %36 = vector.load %arg11[%c0_31, %c1_32, %c1_33, %c0_34] : memref<2x18x18x128xf32, #tpu.memory_space<vmem>>, vector<2x16x16x128xf32>
    tpu.vector_store %arg11[%c0_31, %c1_32, %c1_33, %c0_34], %35 {strides = array<i32>} : memref<2x18x18x128xf32, #tpu.memory_space<vmem>>, vector<2x16x16x128xf32>,
    %c0_35 = arith.constant 0 : index
    %c0_36 = arith.constant 0 : index
    %c0_37 = arith.constant 0 : index
    %c0_38 = arith.constant 0 : index
    %37 = vector.load %arg11[%c0_35, %c0_36, %c0_37, %c0_38] : memref<2x18x18x128xf32, #tpu.memory_space<vmem>>, vector<2x16x16x128xf32>
    %c0_39 = arith.constant 0 : index
    %c0_40 = arith.constant 0 : index
    %c0_41 = arith.constant 0 : index
    %c0_42 = arith.constant 0 : index
    %38 = vector.load %arg12[%c0_39, %c0_40, %c0_41, %c0_42] : memref<2x16x16x1152xf32, #tpu.memory_space<vmem>>, vector<2x16x16x128xf32>
    tpu.vector_store %arg12[%c0_39, %c0_40, %c0_41, %c0_42], %37 {strides = array<i32>} : memref<2x16x16x1152xf32, #tpu.memory_space<vmem>>, vector<2x16x16x128xf32>,
    %c0_43 = arith.constant 0 : index
    %c0_44 = arith.constant 0 : index
    %c1_45 = arith.constant 1 : index
    %c0_46 = arith.constant 0 : index
    %39 = vector.load %arg11[%c0_43, %c0_44, %c1_45, %c0_46] : memref<2x18x18x128xf32, #tpu.memory_space<vmem>>, vector<2x16x16x128xf32>
    %c0_47 = arith.constant 0 : index
    %c0_48 = arith.constant 0 : index
    %c0_49 = arith.constant 0 : index
    %c128 = arith.constant 128 : index
    %40 = vector.load %arg12[%c0_47, %c0_48, %c0_49, %c128] : memref<2x16x16x1152xf32, #tpu.memory_space<vmem>>, vector<2x16x16x128xf32>
    tpu.vector_store %arg12[%c0_47, %c0_48, %c0_49, %c128], %39 {strides = array<i32>} : memref<2x16x16x1152xf32, #tpu.memory_space<vmem>>, vector<2x16x16x128xf32>,
    %c0_50 = arith.constant 0 : index
    %c0_51 = arith.constant 0 : index
    %c2 = arith.constant 2 : index
    %c0_52 = arith.constant 0 : index
    %41 = vector.load %arg11[%c0_50, %c0_51, %c2, %c0_52] : memref<2x18x18x128xf32, #tpu.memory_space<vmem>>, vector<2x16x16x128xf32>
    %c0_53 = arith.constant 0 : index
    %c0_54 = arith.constant 0 : index
    %c0_55 = arith.constant 0 : index
    %c256 = arith.constant 256 : index
    %42 = vector.load %arg12[%c0_53, %c0_54, %c0_55, %c256] : memref<2x16x16x1152xf32, #tpu.memory_space<vmem>>, vector<2x16x16x128xf32>
    tpu.vector_store %arg12[%c0_53, %c0_54, %c0_55, %c256], %41 {strides = array<i32>} : memref<2x16x16x1152xf32, #tpu.memory_space<vmem>>, vector<2x16x16x128xf32>,
    %c0_56 = arith.constant 0 : index
    %c1_57 = arith.constant 1 : index
    %c0_58 = arith.constant 0 : index
    %c0_59 = arith.constant 0 : index
    %43 = vector.load %arg11[%c0_56, %c1_57, %c0_58, %c0_59] : memref<2x18x18x128xf32, #tpu.memory_space<vmem>>, vector<2x16x16x128xf32>
    %c0_60 = arith.constant 0 : index
    %c0_61 = arith.constant 0 : index
    %c0_62 = arith.constant 0 : index
    %c384 = arith.constant 384 : index
    %44 = vector.load %arg12[%c0_60, %c0_61, %c0_62, %c384] : memref<2x16x16x1152xf32, #tpu.memory_space<vmem>>, vector<2x16x16x128xf32>
    tpu.vector_store %arg12[%c0_60, %c0_61, %c0_62, %c384], %43 {strides = array<i32>} : memref<2x16x16x1152xf32, #tpu.memory_space<vmem>>, vector<2x16x16x128xf32>,
    %c0_63 = arith.constant 0 : index
    %c1_64 = arith.constant 1 : index
    %c1_65 = arith.constant 1 : index
    %c0_66 = arith.constant 0 : index
    %45 = vector.load %arg11[%c0_63, %c1_64, %c1_65, %c0_66] : memref<2x18x18x128xf32, #tpu.memory_space<vmem>>, vector<2x16x16x128xf32>
    %c0_67 = arith.constant 0 : index
    %c0_68 = arith.constant 0 : index
    %c0_69 = arith.constant 0 : index
    %c512 = arith.constant 512 : index
    %46 = vector.load %arg12[%c0_67, %c0_68, %c0_69, %c512] : memref<2x16x16x1152xf32, #tpu.memory_space<vmem>>, vector<2x16x16x128xf32>
    tpu.vector_store %arg12[%c0_67, %c0_68, %c0_69, %c512], %45 {strides = array<i32>} : memref<2x16x16x1152xf32, #tpu.memory_space<vmem>>, vector<2x16x16x128xf32>,
    %c0_70 = arith.constant 0 : index
    %c1_71 = arith.constant 1 : index
    %c2_72 = arith.constant 2 : index
    %c0_73 = arith.constant 0 : index
    %47 = vector.load %arg11[%c0_70, %c1_71, %c2_72, %c0_73] : memref<2x18x18x128xf32, #tpu.memory_space<vmem>>, vector<2x16x16x128xf32>
    %c0_74 = arith.constant 0 : index
    %c0_75 = arith.constant 0 : index
    %c0_76 = arith.constant 0 : index
    %c640 = arith.constant 640 : index
    %48 = vector.load %arg12[%c0_74, %c0_75, %c0_76, %c640] : memref<2x16x16x1152xf32, #tpu.memory_space<vmem>>, vector<2x16x16x128xf32>
    tpu.vector_store %arg12[%c0_74, %c0_75, %c0_76, %c640], %47 {strides = array<i32>} : memref<2x16x16x1152xf32, #tpu.memory_space<vmem>>, vector<2x16x16x128xf32>,
    %c0_77 = arith.constant 0 : index
    %c2_78 = arith.constant 2 : index
    %c0_79 = arith.constant 0 : index
    %c0_80 = arith.constant 0 : index
    %49 = vector.load %arg11[%c0_77, %c2_78, %c0_79, %c0_80] : memref<2x18x18x128xf32, #tpu.memory_space<vmem>>, vector<2x16x16x128xf32>
    %c0_81 = arith.constant 0 : index
    %c0_82 = arith.constant 0 : index
    %c0_83 = arith.constant 0 : index
    %c768 = arith.constant 768 : index
    %50 = vector.load %arg12[%c0_81, %c0_82, %c0_83, %c768] : memref<2x16x16x1152xf32, #tpu.memory_space<vmem>>, vector<2x16x16x128xf32>
    tpu.vector_store %arg12[%c0_81, %c0_82, %c0_83, %c768], %49 {strides = array<i32>} : memref<2x16x16x1152xf32, #tpu.memory_space<vmem>>, vector<2x16x16x128xf32>,
    %c0_84 = arith.constant 0 : index
    %c2_85 = arith.constant 2 : index
    %c1_86 = arith.constant 1 : index
    %c0_87 = arith.constant 0 : index
    %51 = vector.load %arg11[%c0_84, %c2_85, %c1_86, %c0_87] : memref<2x18x18x128xf32, #tpu.memory_space<vmem>>, vector<2x16x16x128xf32>
    %c0_88 = arith.constant 0 : index
    %c0_89 = arith.constant 0 : index
    %c0_90 = arith.constant 0 : index
    %c896 = arith.constant 896 : index
    %52 = vector.load %arg12[%c0_88, %c0_89, %c0_90, %c896] : memref<2x16x16x1152xf32, #tpu.memory_space<vmem>>, vector<2x16x16x128xf32>
    tpu.vector_store %arg12[%c0_88, %c0_89, %c0_90, %c896], %51 {strides = array<i32>} : memref<2x16x16x1152xf32, #tpu.memory_space<vmem>>, vector<2x16x16x128xf32>,
    %c0_91 = arith.constant 0 : index
    %c2_92 = arith.constant 2 : index
    %c2_93 = arith.constant 2 : index
    %c0_94 = arith.constant 0 : index
    %53 = vector.load %arg11[%c0_91, %c2_92, %c2_93, %c0_94] : memref<2x18x18x128xf32, #tpu.memory_space<vmem>>, vector<2x16x16x128xf32>
    %c0_95 = arith.constant 0 : index
    %c0_96 = arith.constant 0 : index
    %c0_97 = arith.constant 0 : index
    %c1024 = arith.constant 1024 : index
    %54 = vector.load %arg12[%c0_95, %c0_96, %c0_97, %c1024] : memref<2x16x16x1152xf32, #tpu.memory_space<vmem>>, vector<2x16x16x128xf32>
    tpu.vector_store %arg12[%c0_95, %c0_96, %c0_97, %c1024], %53 {strides = array<i32>} : memref<2x16x16x1152xf32, #tpu.memory_space<vmem>>, vector<2x16x16x128xf32>,
    %c0_98 = arith.constant 0 : index
    %c0_99 = arith.constant 0 : index
    %c0_100 = arith.constant 0 : index
    %c0_101 = arith.constant 0 : index
    %55 = vector.load %arg12[%c0_98, %c0_99, %c0_100, %c0_101] : memref<2x16x16x1152xf32, #tpu.memory_space<vmem>>, vector<2x16x16x1152xf32>
    %56 = vector.shape_cast %55 : vector<2x16x16x1152xf32> to vector<512x1152xf32>
    %c0_102 = arith.constant 0 : index
    %c0_103 = arith.constant 0 : index
    %57 = vector.load %arg4[%c0_102, %c0_103] : memref<1152x128xf32, #tpu.memory_space<vmem>>, vector<1152x128xf32>
    %cst_104 = arith.constant dense<0.000000e+00> : vector<512x128xf32>
    %58 = tpu.matmul %56, %57, %cst_104 {dimension_numbers = #tpu.dot_dimension_numbers<[1], [0], [0], [1], [0, 0, 1, 1], [], []>} : vector<512x1152xf32>, vector<1152x128xf32>, vector<512x128xf32> -> vector<512x128xf32>
    %c0_105 = arith.constant 0 : index
    %c0_106 = arith.constant 0 : index
    %59 = vector.load %arg5[%c0_105, %c0_106] : memref<1x128xf32, #tpu.memory_space<vmem>>, vector<1x128xf32>
    %c0_107 = arith.constant 0 : index
    %c0_108 = arith.constant 0 : index
    %60 = vector.load %arg6[%c0_107, %c0_108] : memref<1x128xf32, #tpu.memory_space<vmem>>, vector<1x128xf32>
    %cst_109 = arith.constant dense<0.000000e+00> : vector<128xf32>
    %61 = vector.multi_reduction <add>, %58, %cst_109 [0] : vector<512x128xf32> to vector<128xf32>
    %62 = vector.shape_cast %61 : vector<128xf32> to vector<1x128xf32>
    %cst_110 = arith.constant 5.120000e+02 : f32
    %63 = vector.broadcast %cst_110 : f32 to vector<1x128xf32>
    %64 = arith.divf %62, %63 : vector<1x128xf32>
    %65 = arith.mulf %58, %58 : vector<512x128xf32>
    %cst_111 = arith.constant dense<0.000000e+00> : vector<128xf32>
    %66 = vector.multi_reduction <add>, %65, %cst_111 [0] : vector<512x128xf32> to vector<128xf32>
    %67 = vector.shape_cast %66 : vector<128xf32> to vector<1x128xf32>
    %cst_112 = arith.constant 5.120000e+02 : f32
    %68 = vector.broadcast %cst_112 : f32 to vector<1x128xf32>
    %69 = arith.divf %67, %68 : vector<1x128xf32>
    %70 = arith.mulf %64, %64 : vector<1x128xf32>
    %71 = arith.subf %69, %70 : vector<1x128xf32>
    %cst_113 = arith.constant 9.99999974E-6 : f32
    %72 = vector.broadcast %cst_113 : f32 to vector<1x128xf32>
    %73 = arith.addf %71, %72 : vector<1x128xf32>
    %74 = math.rsqrt %73 : vector<1x128xf32>
    %75 = arith.mulf %59, %74 : vector<1x128xf32>
    %76 = arith.mulf %64, %75 : vector<1x128xf32>
    %77 = arith.subf %60, %76 : vector<1x128xf32>
    %78 = vector.broadcast %75 : vector<1x128xf32> to vector<512x128xf32>
    %79 = arith.mulf %58, %78 : vector<512x128xf32>
    %80 = vector.broadcast %77 : vector<1x128xf32> to vector<512x128xf32>
    %81 = arith.addf %79, %80 : vector<512x128xf32>
    %cst_114 = arith.constant 0.000000e+00 : f32
    %82 = vector.broadcast %cst_114 : f32 to vector<512x128xf32>
    %83 = arith.maximumf %81, %82 : vector<512x128xf32>
    %c0_115 = arith.constant 0 : index
    %c0_116 = arith.constant 0 : index
    %84 = vector.load %arg7[%c0_115, %c0_116] : memref<128x256xf32, #tpu.memory_space<vmem>>, vector<128x256xf32>
    %cst_117 = arith.constant dense<0.000000e+00> : vector<512x256xf32>
    %85 = tpu.matmul %83, %84, %cst_117 {dimension_numbers = #tpu.dot_dimension_numbers<[1], [0], [0], [1], [0, 0, 1, 1], [], []>} : vector<512x128xf32>, vector<128x256xf32>, vector<512x256xf32> -> vector<512x256xf32>
    %c0_118 = arith.constant 0 : index
    %c0_119 = arith.constant 0 : index
    %86 = vector.load %arg8[%c0_118, %c0_119] : memref<1x256xf32, #tpu.memory_space<vmem>>, vector<1x256xf32>
    %c0_120 = arith.constant 0 : index
    %c0_121 = arith.constant 0 : index
    %87 = vector.load %arg9[%c0_120, %c0_121] : memref<1x256xf32, #tpu.memory_space<vmem>>, vector<1x256xf32>
    %cst_122 = arith.constant dense<0.000000e+00> : vector<256xf32>
    %88 = vector.multi_reduction <add>, %85, %cst_122 [0] : vector<512x256xf32> to vector<256xf32>
    %89 = vector.shape_cast %88 : vector<256xf32> to vector<1x256xf32>
    %cst_123 = arith.constant 5.120000e+02 : f32
    %90 = vector.broadcast %cst_123 : f32 to vector<1x256xf32>
    %91 = arith.divf %89, %90 : vector<1x256xf32>
    %92 = arith.mulf %85, %85 : vector<512x256xf32>
    %cst_124 = arith.constant dense<0.000000e+00> : vector<256xf32>
    %93 = vector.multi_reduction <add>, %92, %cst_124 [0] : vector<512x256xf32> to vector<256xf32>
    %94 = vector.shape_cast %93 : vector<256xf32> to vector<1x256xf32>
    %cst_125 = arith.constant 5.120000e+02 : f32
    %95 = vector.broadcast %cst_125 : f32 to vector<1x256xf32>
    %96 = arith.divf %94, %95 : vector<1x256xf32>
    %97 = arith.mulf %91, %91 : vector<1x256xf32>
    %98 = arith.subf %96, %97 : vector<1x256xf32>
    %cst_126 = arith.constant 9.99999974E-6 : f32
    %99 = vector.broadcast %cst_126 : f32 to vector<1x256xf32>
    %100 = arith.addf %98, %99 : vector<1x256xf32>
    %101 = math.rsqrt %100 : vector<1x256xf32>
    %102 = arith.mulf %86, %101 : vector<1x256xf32>
    %103 = arith.mulf %91, %102 : vector<1x256xf32>
    %104 = arith.subf %87, %103 : vector<1x256xf32>
    %105 = vector.broadcast %102 : vector<1x256xf32> to vector<512x256xf32>
    %106 = arith.mulf %85, %105 : vector<512x256xf32>
    %107 = vector.broadcast %104 : vector<1x256xf32> to vector<512x256xf32>
    %108 = arith.addf %106, %107 : vector<512x256xf32>
    %109 = arith.addf %108, %1 : vector<512x256xf32>
    %cst_127 = arith.constant 0.000000e+00 : f32
    %110 = vector.broadcast %cst_127 : f32 to vector<512x256xf32>
    %111 = arith.maximumf %109, %110 : vector<512x256xf32>
    %112 = vector.shape_cast %111 : vector<512x256xf32> to vector<2x16x16x256xf32>
    %c0_128 = arith.constant 0 : index
    %c0_129 = arith.constant 0 : index
    %c0_130 = arith.constant 0 : index
    %c0_131 = arith.constant 0 : index
    %113 = vector.load %arg10[%c0_128, %c0_129, %c0_130, %c0_131] : memref<2x16x16x256xf32, #tpu.memory_space<vmem>>, vector<2x16x16x256xf32>
    tpu.vector_store %arg10[%c0_128, %c0_129, %c0_130, %c0_131], %112 {strides = array<i32>} : memref<2x16x16x256xf32, #tpu.memory_space<vmem>>, vector<2x16x16x256xf32>,
    return
  }
}

</mosaic_0001>

<llo_original>
// kernel: tpu_custom_call.1
$region0: #{tpu_custom_call.1}
  #allocation0 [shape = 'u32[]', space=smem, size = 0x4, offset = 0x4, fixed_abs, tag = 'smem constant byte address 0x4 - core index']
  #allocation1 [shape = 'u32[144,128]{1,0:T(1,128)}', space=vmem, size = 0x12000, scoped, tag = 'internal scratch']
  #allocation2 [shape = 'f32[2,18,18,128]{3,2,1,0:T(8,128)}', space=vmem, size = 0x6c000, scoped, tag = 'scratch operand']
  #allocation3 [shape = 'f32[2,16,16,1152]{3,2,1,0:T(8,128)}', space=vmem, size = 0x240000, scoped, tag = 'scratch operand']
  %s0 = inlined_call_operand.hbm [shape: f32[2,16,16,256], index: 0, kind: input, shape index: {}]
  %s1 = inlined_call_operand.hbm [shape: f32[256,128], index: 1, kind: input, shape index: {}]
  %s2 = inlined_call_operand.vmem [shape: f32[1,128], index: 2, kind: input, shape index: {}]
  %s3 = inlined_call_operand.hbm [shape: f32[1,128], index: 3, kind: input, shape index: {}]
  %s4 = inlined_call_operand.hbm [shape: f32[1152,128], index: 4, kind: input, shape index: {}]
  %s5 = inlined_call_operand.vmem [shape: f32[1,128], index: 5, kind: input, shape index: {}]
  %s6 = inlined_call_operand.vmem [shape: f32[1,128], index: 6, kind: input, shape index: {}]
  %s7 = inlined_call_operand.hbm [shape: f32[128,256], index: 7, kind: input, shape index: {}]
  %s8 = inlined_call_operand.vmem [shape: f32[1,256], index: 8, kind: input, shape index: {}]
  %s9 = inlined_call_operand.vmem [shape: f32[1,256], index: 9, kind: input, shape index: {}]
  %s10 = inlined_call_operand.hbm [shape: f32[2,16,16,256], index: 10, kind: output, shape index: {}]
  %s11 = sld [smem:[#allocation0]]
  $region70: #{tpu_custom_call.1} parent=0
    _
  %s13 = ssub.s32 1, %s11
  %s14 = scalar_select 0, %s13, %s11
  $region1: #{tpu_custom_call.1} parent=0
    #allocation4 [shape = 'u8[524288]{0}', space=vmem, size = 0x80000, scoped, tag = 'input window, operand 0, single buffered']
    #allocation5 [shape = 's32[1]{0}', space=sflag, size = 0x4, scoped, tag = 'scoped memory for tpu_custom_call.1']
    #allocation6 [shape = 's32[1]{0}', space=sflag, size = 0x4, scoped, tag = 'scoped memory for tpu_custom_call.1']
    #allocation7 [shape = 'u8[131072]{0}', space=vmem, size = 0x20000, scoped, tag = 'input window, operand 1, single buffered']
    #allocation8 [shape = 's32[1]{0}', space=sflag, size = 0x4, scoped, tag = 'scoped memory for tpu_custom_call.1']
    #allocation9 [shape = 'u8[512]{0}', space=vmem, size = 0x400, scoped, tag = 'input window, operand 3, single buffered']
    #allocation10 [shape = 'u8[589824]{0}', space=vmem, size = 0x90000, scoped, tag = 'input window, operand 4, single buffered']
    #allocation11 [shape = 's32[1]{0}', space=sflag, size = 0x4, scoped, tag = 'scoped memory for tpu_custom_call.1']
    #allocation12 [shape = 'u8[131072]{0}', space=vmem, size = 0x20000, scoped, tag = 'input window, operand 7, single buffered']
    #allocation13 [shape = 'u8[524288]{0}', space=vmem, size = 0x80000, scoped, tag = 'output window, operand 0, single buffered']
    %15 = vsyncpa [#allocation5], 0
    %16 = vsyncpa [#allocation8], 0
    %17 = vsyncpa [#allocation11], 0
    %18 = vsyncpa [#allocation6], 0
    // Predicated region
    $region2: #{tpu_custom_call.1} parent=1 // pred_check
      _
    $region3: #{tpu_custom_call.1} parent=1 // pred_check_branch
      %20 = sbr.rel (0) target = $region5
    $region4: #{tpu_custom_call.1} parent=1 // pred_region
      %s22 = ssub.s32 16384, 16384
      %23 = vsyncadd [#allocation5], %s22
      %s24 = sshll.u32 [#allocation4], 4
      %s25 = int_to_ptr.vmem [resolvable:$true] %s24
      %30 = dma.hbm_to_vmem [thread:$0]  %s0, 16384, %s25, [#allocation5], 256, 256, 16
    $region5: #{tpu_custom_call.1} parent=1 // pred_fallthru
      _
    // Predicated region
    $region6: #{tpu_custom_call.1} parent=1 // pred_check
      _
    $region7: #{tpu_custom_call.1} parent=1 // pred_check_branch
      %32 = sbr.rel (0) target = $region9
    $region8: #{tpu_custom_call.1} parent=1 // pred_region
      %s34 = ssub.s32 4096, 4096
      %35 = vsyncadd [#allocation8], %s34
      %s36 = sshll.u32 [#allocation7], 4
      %s37 = int_to_ptr.vmem [resolvable:$true] %s36
      %42 = dma.hbm_to_vmem [thread:$0]  %s1, 4096, %s37, [#allocation8], 128, 128, 8
    $region9: #{tpu_custom_call.1} parent=1 // pred_fallthru
      _
    // Predicated region
    $region10: #{tpu_custom_call.1} parent=1 // pred_check
      _
    $region11: #{tpu_custom_call.1} parent=1 // pred_check_branch
      %44 = sbr.rel (0) target = $region13
    $region12: #{tpu_custom_call.1} parent=1 // pred_region
      _
    $region13: #{tpu_custom_call.1} parent=1 // pred_fallthru
      _
    // Predicated region
    $region14: #{tpu_custom_call.1} parent=1 // pred_check
      _
    $region15: #{tpu_custom_call.1} parent=1 // pred_check_branch
      %46 = sbr.rel (0) target = $region17
    $region16: #{tpu_custom_call.1} parent=1 // pred_region
      %s48 = ssub.s32 16, 16
      %49 = vsyncadd [#allocation8], %s48
      %s51 = sshll.u32 [#allocation9], 4
      %s52 = int_to_ptr.vmem [resolvable:$true] %s51
      %54 = dma.hbm_to_vmem [thread:$0]  %s3, 16, %s52, [#allocation8]
    $region17: #{tpu_custom_call.1} parent=1 // pred_fallthru
      _
    // Predicated region
    $region18: #{tpu_custom_call.1} parent=1 // pred_check
      _
    $region19: #{tpu_custom_call.1} parent=1 // pred_check_branch
      %56 = sbr.rel (0) target = $region21
    $region20: #{tpu_custom_call.1} parent=1 // pred_region
      %s58 = ssub.s32 18432, 18432
      %59 = vsyncadd [#allocation11], %s58
      %s60 = sshll.u32 [#allocation10], 4
      %s61 = int_to_ptr.vmem [resolvable:$true] %s60
      %66 = dma.hbm_to_vmem [thread:$0]  %s4, 18432, %s61, [#allocation11], 128, 128, 8
    $region21: #{tpu_custom_call.1} parent=1 // pred_fallthru
      _
    // Predicated region
    $region22: #{tpu_custom_call.1} parent=1 // pred_check
      _
    $region23: #{tpu_custom_call.1} parent=1 // pred_check_branch
      %68 = sbr.rel (0) target = $region25
    $region24: #{tpu_custom_call.1} parent=1 // pred_region
      _
    $region25: #{tpu_custom_call.1} parent=1 // pred_fallthru
      _
    // Predicated region
    $region26: #{tpu_custom_call.1} parent=1 // pred_check
      _
    $region27: #{tpu_custom_call.1} parent=1 // pred_check_branch
      %70 = sbr.rel (0) target = $region29
    $region28: #{tpu_custom_call.1} parent=1 // pred_region
      _
    $region29: #{tpu_custom_call.1} parent=1 // pred_fallthru
      _
    // Predicated region
    $region30: #{tpu_custom_call.1} parent=1 // pred_check
      _
    $region31: #{tpu_custom_call.1} parent=1 // pred_check_branch
      %72 = sbr.rel (0) target = $region33
    $region32: #{tpu_custom_call.1} parent=1 // pred_region
      %s74 = ssub.s32 4096, 4096
      %75 = vsyncadd [#allocation11], %s74
      %s76 = sshll.u32 [#allocation12], 4
      %s77 = int_to_ptr.vmem [resolvable:$true] %s76
      %82 = dma.hbm_to_vmem [thread:$0]  %s7, 4096, %s77, [#allocation11], 256, 256, 16
    $region33: #{tpu_custom_call.1} parent=1 // pred_fallthru
      _
    // Predicated region
    $region34: #{tpu_custom_call.1} parent=1 // pred_check
      _
    $region35: #{tpu_custom_call.1} parent=1 // pred_check_branch
      %84 = sbr.rel (0) target = $region37
    $region36: #{tpu_custom_call.1} parent=1 // pred_region
      _
    $region37: #{tpu_custom_call.1} parent=1 // pred_fallthru
      _
    // Predicated region
    $region38: #{tpu_custom_call.1} parent=1 // pred_check
      _
    $region39: #{tpu_custom_call.1} parent=1 // pred_check_branch
      %86 = sbr.rel (0) target = $region41
    $region40: #{tpu_custom_call.1} parent=1 // pred_region
      _
    $region41: #{tpu_custom_call.1} parent=1 // pred_fallthru
      _
    // Predicated region
    $region42: #{tpu_custom_call.1} parent=1 // pred_check
      _
    $region43: #{tpu_custom_call.1} parent=1 // pred_check_branch
      %88 = sbr.rel (0) target = $region45
    $region44: #{tpu_custom_call.1} parent=1 // pred_region
      %89 = dma.done [#allocation5], 16384
    $region45: #{tpu_custom_call.1} parent=1 // pred_fallthru
      _
    // Predicated region
    $region46: #{tpu_custom_call.1} parent=1 // pred_check
      _
    $region47: #{tpu_custom_call.1} parent=1 // pred_check_branch
      %91 = sbr.rel (0) target = $region49
    $region48: #{tpu_custom_call.1} parent=1 // pred_region
      %92 = dma.done [#allocation8], 4096
    $region49: #{tpu_custom_call.1} parent=1 // pred_fallthru
      _
    // Predicated region
    $region50: #{tpu_custom_call.1} parent=1 // pred_check
      _
    $region51: #{tpu_custom_call.1} parent=1 // pred_check_branch
      %94 = sbr.rel (0) target = $region53
    $region52: #{tpu_custom_call.1} parent=1 // pred_region
      %95 = dma.done [#allocation8], 16
    $region53: #{tpu_custom_call.1} parent=1 // pred_fallthru
      _
    // Predicated region
    $region54: #{tpu_custom_call.1} parent=1 // pred_check
      _
    $region55: #{tpu_custom_call.1} parent=1 // pred_check_branch
      %97 = sbr.rel (0) target = $region57
    $region56: #{tpu_custom_call.1} parent=1 // pred_region
      %98 = dma.done [#allocation11], 18432
    $region57: #{tpu_custom_call.1} parent=1 // pred_fallthru
      _
    // Predicated region
    $region58: #{tpu_custom_call.1} parent=1 // pred_check
      _
    $region59: #{tpu_custom_call.1} parent=1 // pred_check_branch
      %100 = sbr.rel (0) target = $region61
    $region60: #{tpu_custom_call.1} parent=1 // pred_region
      %101 = dma.done [#allocation11], 4096
    $region61: #{tpu_custom_call.1} parent=1 // pred_fallthru
      _
    %v102 = vld [vmem:[#allocation4] sm:$0xff]
    %v103 = vld [vmem:[#allocation4 + $0x8] sm:$0xff]
    %v104 = vld [vmem:[#allocation4 + $0x10] sm:$0xff]
    %v105 = vld [vmem:[#allocation4 + $0x18] sm:$0xff]
    %v106 = vld [vmem:[#allocation4 + $0x20] sm:$0xff]
    %v107 = vld [vmem:[#allocation4 + $0x28] sm:$0xff]
    %v108 = vld [vmem:[#allocation4 + $0x30] sm:$0xff]
    %v109 = vld [vmem:[#allocation4 + $0x38] sm:$0xff]
    %v110 = vld [vmem:[#allocation4 + $0x40] sm:$0xff]
    %v111 = vld [vmem:[#allocation4 + $0x48] sm:$0xff]
    %v112 = vld [vmem:[#allocation4 + $0x50] sm:$0xff]
    %v113 = vld [vmem:[#allocation4 + $0x58] sm:$0xff]
    %v114 = vld [vmem:[#allocation4 + $0x60] sm:$0xff]
    %v115 = vld [vmem:[#allocation4 + $0x68] sm:$0xff]
    %v116 = vld [vmem:[#allocation4 + $0x70] sm:$0xff]
    %v117 = vld [vmem:[#allocation4 + $0x78] sm:$0xff]
    %v118 = vld [vmem:[#allocation4 + $0x80] sm:$0xff]
    %v119 = vld [vmem:[#allocation4 + $0x88] sm:$0xff]
    %v120 = vld [vmem:[#allocation4 + $0x90] sm:$0xff]
    %v121 = vld [vmem:[#allocation4 + $0x98] sm:$0xff]
    %v122 = vld [vmem:[#allocation4 + $0xa0] sm:$0xff]
    %v123 = vld [vmem:[#allocation4 + $0xa8] sm:$0xff]
    %v124 = vld [vmem:[#allocation4 + $0xb0] sm:$0xff]
    %v125 = vld [vmem:[#allocation4 + $0xb8] sm:$0xff]
    %v126 = vld [vmem:[#allocation4 + $0xc0] sm:$0xff]
    %v127 = vld [vmem:[#allocation4 + $0xc8] sm:$0xff]
    %v128 = vld [vmem:[#allocation4 + $0xd0] sm:$0xff]
    %v129 = vld [vmem:[#allocation4 + $0xd8] sm:$0xff]
    %v130 = vld [vmem:[#allocation4 + $0xe0] sm:$0xff]
    %v131 = vld [vmem:[#allocation4 + $0xe8] sm:$0xff]
    %v132 = vld [vmem:[#allocation4 + $0xf0] sm:$0xff]
    %v133 = vld [vmem:[#allocation4 + $0xf8] sm:$0xff]
    %v134 = vld [vmem:[#allocation4 + $0x100] sm:$0xff]
    %v135 = vld [vmem:[#allocation4 + $0x108] sm:$0xff]
    %v136 = vld [vmem:[#allocation4 + $0x110] sm:$0xff]
    %v137 = vld [vmem:[#allocation4 + $0x118] sm:$0xff]
    %v138 = vld [vmem:[#allocation4 + $0x120] sm:$0xff]
    %v139 = vld [vmem:[#allocation4 + $0x128] sm:$0xff]
    %v140 = vld [vmem:[#allocation4 + $0x130] sm:$0xff]
    %v141 = vld [vmem:[#allocation4 + $0x138] sm:$0xff]
    %v142 = vld [vmem:[#allocation4 + $0x140] sm:$0xff]
    %v143 = vld [vmem:[#allocation4 + $0x148] sm:$0xff]
    %v144 = vld [vmem:[#allocation4 + $0x150] sm:$0xff]
    %v145 = vld [vmem:[#allocation4 + $0x158] sm:$0xff]
    %v146 = vld [vmem:[#allocation4 + $0x160] sm:$0xff]
    %v147 = vld [vmem:[#allocation4 + $0x168] sm:$0xff]
    %v148 = vld [vmem:[#allocation4 + $0x170] sm:$0xff]
    %v149 = vld [vmem:[#allocation4 + $0x178] sm:$0xff]
    %v150 = vld [vmem:[#allocation4 + $0x180] sm:$0xff]
    %v151 = vld [vmem:[#allocation4 + $0x188] sm:$0xff]
    %v152 = vld [vmem:[#allocation4 + $0x190] sm:$0xff]
    %v153 = vld [vmem:[#allocation4 + $0x198] sm:$0xff]
    %v154 = vld [vmem:[#allocation4 + $0x1a0] sm:$0xff]
    %v155 = vld [vmem:[#allocation4 + $0x1a8] sm:$0xff]
    %v156 = vld [vmem:[#allocation4 + $0x1b0] sm:$0xff]
    %v157 = vld [vmem:[#allocation4 + $0x1b8] sm:$0xff]
    %v158 = vld [vmem:[#allocation4 + $0x1c0] sm:$0xff]
    %v159 = vld [vmem:[#allocation4 + $0x1c8] sm:$0xff]
    %v160 = vld [vmem:[#allocation4 + $0x1d0] sm:$0xff]
    %v161 = vld [vmem:[#allocation4 + $0x1d8] sm:$0xff]
    %v162 = vld [vmem:[#allocation4 + $0x1e0] sm:$0xff]
    %v163 = vld [vmem:[#allocation4 + $0x1e8] sm:$0xff]
    %v164 = vld [vmem:[#allocation4 + $0x1f0] sm:$0xff]
    %v165 = vld [vmem:[#allocation4 + $0x1f8] sm:$0xff]
    %v166 = vld [vmem:[#allocation4 + $0x200] sm:$0xff]
    %v167 = vld [vmem:[#allocation4 + $0x208] sm:$0xff]
    %v168 = vld [vmem:[#allocation4 + $0x210] sm:$0xff]
    %v169 = vld [vmem:[#allocation4 + $0x218] sm:$0xff]
    %v170 = vld [vmem:[#allocation4 + $0x220] sm:$0xff]
    %v171 = vld [vmem:[#allocation4 + $0x228] sm:$0xff]
    %v172 = vld [vmem:[#allocation4 + $0x230] sm:$0xff]
    %v173 = vld [vmem:[#allocation4 + $0x238] sm:$0xff]
    %v174 = vld [vmem:[#allocation4 + $0x240] sm:$0xff]
    %v175 = vld [vmem:[#allocation4 + $0x248] sm:$0xff]
    %v176 = vld [vmem:[#allocation4 + $0x250] sm:$0xff]
    %v177 = vld [vmem:[#allocation4 + $0x258] sm:$0xff]
    %v178 = vld [vmem:[#allocation4 + $0x260] sm:$0xff]
    %v179 = vld [vmem:[#allocation4 + $0x268] sm:$0xff]
    %v180 = vld [vmem:[#allocation4 + $0x270] sm:$0xff]
    %v181 = vld [vmem:[#allocation4 + $0x278] sm:$0xff]
    %v182 = vld [vmem:[#allocation4 + $0x280] sm:$0xff]
    %v183 = vld [vmem:[#allocation4 + $0x288] sm:$0xff]
    %v184 = vld [vmem:[#allocation4 + $0x290] sm:$0xff]
    %v185 = vld [vmem:[#allocation4 + $0x298] sm:$0xff]
    %v186 = vld [vmem:[#allocation4 + $0x2a0] sm:$0xff]
    %v187 = vld [vmem:[#allocation4 + $0x2a8] sm:$0xff]
    %v188 = vld [vmem:[#allocation4 + $0x2b0] sm:$0xff]
    %v189 = vld [vmem:[#allocation4 + $0x2b8] sm:$0xff]
    %v190 = vld [vmem:[#allocation4 + $0x2c0] sm:$0xff]
    %v191 = vld [vmem:[#allocation4 + $0x2c8] sm:$0xff]
    %v192 = vld [vmem:[#allocation4 + $0x2d0] sm:$0xff]
    %v193 = vld [vmem:[#allocation4 + $0x2d8] sm:$0xff]
    %v194 = vld [vmem:[#allocation4 + $0x2e0] sm:$0xff]
    %v195 = vld [vmem:[#allocation4 + $0x2e8] sm:$0xff]
    %v196 = vld [vmem:[#allocation4 + $0x2f0] sm:$0xff]
    %v197 = vld [vmem:[#allocation4 + $0x2f8] sm:$0xff]
    %v198 = vld [vmem:[#allocation4 + $0x300] sm:$0xff]
    %v199 = vld [vmem:[#allocation4 + $0x308] sm:$0xff]
    %v200 = vld [vmem:[#allocation4 + $0x310] sm:$0xff]
    %v201 = vld [vmem:[#allocation4 + $0x318] sm:$0xff]
    %v202 = vld [vmem:[#allocation4 + $0x320] sm:$0xff]
    %v203 = vld [vmem:[#allocation4 + $0x328] sm:$0xff]
    %v204 = vld [vmem:[#allocation4 + $0x330] sm:$0xff]
    %v205 = vld [vmem:[#allocation4 + $0x338] sm:$0xff]
    %v206 = vld [vmem:[#allocation4 + $0x340] sm:$0xff]
    %v207 = vld [vmem:[#allocation4 + $0x348] sm:$0xff]
    %v208 = vld [vmem:[#allocation4 + $0x350] sm:$0xff]
    %v209 = vld [vmem:[#allocation4 + $0x358] sm:$0xff]
    %v210 = vld [vmem:[#allocation4 + $0x360] sm:$0xff]
    %v211 = vld [vmem:[#allocation4 + $0x368] sm:$0xff]
    %v212 = vld [vmem:[#allocation4 + $0x370] sm:$0xff]
    %v213 = vld [vmem:[#allocation4 + $0x378] sm:$0xff]
    %v214 = vld [vmem:[#allocation4 + $0x380] sm:$0xff]
    %v215 = vld [vmem:[#allocation4 + $0x388] sm:$0xff]
    %v216 = vld [vmem:[#allocation4 + $0x390] sm:$0xff]
    %v217 = vld [vmem:[#allocation4 + $0x398] sm:$0xff]
    %v218 = vld [vmem:[#allocation4 + $0x3a0] sm:$0xff]
    %v219 = vld [vmem:[#allocation4 + $0x3a8] sm:$0xff]
    %v220 = vld [vmem:[#allocation4 + $0x3b0] sm:$0xff]
    %v221 = vld [vmem:[#allocation4 + $0x3b8] sm:$0xff]
    %v222 = vld [vmem:[#allocation4 + $0x3c0] sm:$0xff]
    %v223 = vld [vmem:[#allocation4 + $0x3c8] sm:$0xff]
    %v224 = vld [vmem:[#allocation4 + $0x3d0] sm:$0xff]
    %v225 = vld [vmem:[#allocation4 + $0x3d8] sm:$0xff]
    %v226 = vld [vmem:[#allocation4 + $0x3e0] sm:$0xff]
    %v227 = vld [vmem:[#allocation4 + $0x3e8] sm:$0xff]
    %v228 = vld [vmem:[#allocation4 + $0x3f0] sm:$0xff]
    %v229 = vld [vmem:[#allocation4 + $0x3f8] sm:$0xff]
    %v230 = vld [vmem:[#allocation7] sm:$0xff]
    %v231 = vld [vmem:[#allocation7 + $0x8] sm:$0xff]
    %v232 = vld [vmem:[#allocation7 + $0x10] sm:$0xff]
    %v233 = vld [vmem:[#allocation7 + $0x18] sm:$0xff]
    %v234 = vld [vmem:[#allocation7 + $0x20] sm:$0xff]
    %v235 = vld [vmem:[#allocation7 + $0x28] sm:$0xff]
    %v236 = vld [vmem:[#allocation7 + $0x30] sm:$0xff]
    %v237 = vld [vmem:[#allocation7 + $0x38] sm:$0xff]
    %v238 = vld [vmem:[#allocation7 + $0x40] sm:$0xff]
    %v239 = vld [vmem:[#allocation7 + $0x48] sm:$0xff]
    %v240 = vld [vmem:[#allocation7 + $0x50] sm:$0xff]
    %v241 = vld [vmem:[#allocation7 + $0x58] sm:$0xff]
    %v242 = vld [vmem:[#allocation7 + $0x60] sm:$0xff]
    %v243 = vld [vmem:[#allocation7 + $0x68] sm:$0xff]
    %v244 = vld [vmem:[#allocation7 + $0x70] sm:$0xff]
    %v245 = vld [vmem:[#allocation7 + $0x78] sm:$0xff]
    %v246 = vld [vmem:[#allocation7 + $0x80] sm:$0xff]
    %v247 = vld [vmem:[#allocation7 + $0x88] sm:$0xff]
    %v248 = vld [vmem:[#allocation7 + $0x90] sm:$0xff]
    %v249 = vld [vmem:[#allocation7 + $0x98] sm:$0xff]
    %v250 = vld [vmem:[#allocation7 + $0xa0] sm:$0xff]
    %v251 = vld [vmem:[#allocation7 + $0xa8] sm:$0xff]
    %v252 = vld [vmem:[#allocation7 + $0xb0] sm:$0xff]
    %v253 = vld [vmem:[#allocation7 + $0xb8] sm:$0xff]
    %v254 = vld [vmem:[#allocation7 + $0xc0] sm:$0xff]
    %v255 = vld [vmem:[#allocation7 + $0xc8] sm:$0xff]
    %v256 = vld [vmem:[#allocation7 + $0xd0] sm:$0xff]
    %v257 = vld [vmem:[#allocation7 + $0xd8] sm:$0xff]
    %v258 = vld [vmem:[#allocation7 + $0xe0] sm:$0xff]
    %v259 = vld [vmem:[#allocation7 + $0xe8] sm:$0xff]
    %v260 = vld [vmem:[#allocation7 + $0xf0] sm:$0xff]
    %v261 = vld [vmem:[#allocation7 + $0xf8] sm:$0xff]
    %262 = vmatprep.subr.mxu0 0.0
    %263 = vmatpush1.msra.mxu0 %v245
    %264 = vmatprep.subr.mxu0 0.0
    %265 = vmatpush1.msra.mxu0 %v244
    %266 = vmatprep.subr.mxu0 0.0
    %267 = vmatpush1.msra.mxu0 %v243
    %268 = vmatprep.subr.mxu0 0.0
    %269 = vmatpush1.msra.mxu0 %v242
    %270 = vmatprep.subr.mxu0 0.0
    %271 = vmatpush1.msra.mxu0 %v241
    %272 = vmatprep.subr.mxu0 0.0
    %273 = vmatpush1.msra.mxu0 %v240
    %274 = vmatprep.subr.mxu0 0.0
    %275 = vmatpush1.msra.mxu0 %v239
    %276 = vmatprep.subr.mxu0 0.0
    %277 = vmatpush1.msra.mxu0 %v238
    %278 = vmatprep.subr.mxu0 0.0
    %279 = vmatpush1.msra.mxu0 %v237
    %280 = vmatprep.subr.mxu0 0.0
    %281 = vmatpush1.msra.mxu0 %v236
    %282 = vmatprep.subr.mxu0 0.0
    %283 = vmatpush1.msra.mxu0 %v235
    %284 = vmatprep.subr.mxu0 0.0
    %285 = vmatpush1.msra.mxu0 %v234
    %286 = vmatprep.subr.mxu0 0.0
    %287 = vmatpush1.msra.mxu0 %v233
    %288 = vmatprep.subr.mxu0 0.0
    %289 = vmatpush1.msra.mxu0 %v232
    %290 = vmatprep.subr.mxu0 0.0
    %291 = vmatpush1.msra.mxu0 %v231
    %292 = vmatprep.subr.mxu0 0.0
    %293 = vmatpush1.msra.mxu0 %v230
    %294 = vmatprep.subr.mxu0 0.0
    %295 = vmatpush2.msra.mxu0 %v261
    %296 = vmatprep.subr.mxu0 0.0
    %297 = vmatpush2.msra.mxu0 %v260
    %298 = vmatprep.subr.mxu0 0.0
    %299 = vmatpush2.msra.mxu0 %v259
    %300 = vmatprep.subr.mxu0 0.0
    %301 = vmatpush2.msra.mxu0 %v258
    %302 = vmatprep.subr.mxu0 0.0
    %303 = vmatpush2.msra.mxu0 %v257
    %304 = vmatprep.subr.mxu0 0.0
    %305 = vmatpush2.msra.mxu0 %v256
    %306 = vmatprep.subr.mxu0 0.0
    %307 = vmatpush2.msra.mxu0 %v255
    %308 = vmatprep.subr.mxu0 0.0
    %309 = vmatpush2.msra.mxu0 %v254
    %310 = vmatprep.subr.mxu0 0.0
    %311 = vmatpush2.msra.mxu0 %v253
    %312 = vmatprep.subr.mxu0 0.0
    %313 = vmatpush2.msra.mxu0 %v252
    %314 = vmatprep.subr.mxu0 0.0
    %315 = vmatpush2.msra.mxu0 %v251
    %316 = vmatprep.subr.mxu0 0.0
    %317 = vmatpush2.msra.mxu0 %v250
    %318 = vmatprep.subr.mxu0 0.0
    %319 = vmatpush2.msra.mxu0 %v249
    %320 = vmatprep.subr.mxu0 0.0
    %321 = vmatpush2.msra.mxu0 %v248
    %322 = vmatprep.subr.mxu0 0.0
    %323 = vmatpush2.msra.mxu0 %v247
    %324 = vmatprep.subr.mxu0 0.0
    %325 = vmatpush2.msra.mxu0 %v246
    %326 = vmatprep.mubr.f32.mxu0 %v103
    %327 = vmatmul.mubr.f32.gmra.mxu0 %v102
    %v328 = vpop.f32.mrf.mxu0
    %v329 = vadd.f32 0.0, %v328
    %v330 = vpop.f32.mrf.mxu0
    %331 = vmatprep.mubr.f32.mxu0 %v105
    %332 = vmatmul.mubr.f32.gmra.mxu0 %v104
    %v333 = vpop.f32.mrf.mxu0
    %v334 = vadd.f32 0.0, %v333
    %v335 = vpop.f32.mrf.mxu0
    %336 = vmatprep.mubr.f32.mxu0 %v107
    %337 = vmatmul.mubr.f32.gmra.mxu0 %v106
    %v338 = vpop.f32.mrf.mxu0
    %v339 = vadd.f32 0.0, %v338
    %v340 = vpop.f32.mrf.mxu0
    %341 = vmatprep.mubr.f32.mxu0 %v109
    %342 = vmatmul.mubr.f32.gmra.mxu0 %v108
    %v343 = vpop.f32.mrf.mxu0
    %v344 = vadd.f32 0.0, %v343
    %v345 = vpop.f32.mrf.mxu0
    %346 = vmatprep.mubr.f32.mxu0 %v111
    %347 = vmatmul.mubr.f32.gmra.mxu0 %v110
    %v348 = vpop.f32.mrf.mxu0
    %v349 = vadd.f32 0.0, %v348
    %v350 = vpop.f32.mrf.mxu0
    %351 = vmatprep.mubr.f32.mxu0 %v113
    %352 = vmatmul.mubr.f32.gmra.mxu0 %v112
    %v353 = vpop.f32.mrf.mxu0
    %v354 = vadd.f32 0.0, %v353
    %v355 = vpop.f32.mrf.mxu0
    %356 = vmatprep.mubr.f32.mxu0 %v115
    %357 = vmatmul.mubr.f32.gmra.mxu0 %v114
    %v358 = vpop.f32.mrf.mxu0
    %v359 = vadd.f32 0.0, %v358
    %v360 = vpop.f32.mrf.mxu0
    %361 = vmatprep.mubr.f32.mxu0 %v117
    %362 = vmatmul.mubr.f32.gmra.mxu0 %v116
    %v363 = vpop.f32.mrf.mxu0
    %v364 = vadd.f32 0.0, %v363
    %v365 = vpop.f32.mrf.mxu0
    %366 = vmatprep.mubr.f32.mxu0 %v119
    %367 = vmatmul.mubr.f32.gmra.mxu0 %v118
    %v368 = vpop.f32.mrf.mxu0
    %v369 = vadd.f32 0.0, %v368
    %v370 = vpop.f32.mrf.mxu0
    %371 = vmatprep.mubr.f32.mxu0 %v121
    %372 = vmatmul.mubr.f32.gmra.mxu0 %v120
    %v373 = vpop.f32.mrf.mxu0
    %v374 = vadd.f32 0.0, %v373
    %v375 = vpop.f32.mrf.mxu0
    %376 = vmatprep.mubr.f32.mxu0 %v123
    %377 = vmatmul.mubr.f32.gmra.mxu0 %v122
    %v378 = vpop.f32.mrf.mxu0
    %v379 = vadd.f32 0.0, %v378
    %v380 = vpop.f32.mrf.mxu0
    %381 = vmatprep.mubr.f32.mxu0 %v125
    %382 = vmatmul.mubr.f32.gmra.mxu0 %v124
    %v383 = vpop.f32.mrf.mxu0
    %v384 = vadd.f32 0.0, %v383
    %v385 = vpop.f32.mrf.mxu0
    %386 = vmatprep.mubr.f32.mxu0 %v127
    %387 = vmatmul.mubr.f32.gmra.mxu0 %v126
    %v388 = vpop.f32.mrf.mxu0
    %v389 = vadd.f32 0.0, %v388
    %v390 = vpop.f32.mrf.mxu0
    %391 = vmatprep.mubr.f32.mxu0 %v129
    %392 = vmatmul.mubr.f32.gmra.mxu0 %v128
    %v393 = vpop.f32.mrf.mxu0
    %v394 = vadd.f32 0.0, %v393
    %v395 = vpop.f32.mrf.mxu0
    %396 = vmatprep.mubr.f32.mxu0 %v131
    %397 = vmatmul.mubr.f32.gmra.mxu0 %v130
    %v398 = vpop.f32.mrf.mxu0
    %v399 = vadd.f32 0.0, %v398
    %v400 = vpop.f32.mrf.mxu0
    %401 = vmatprep.mubr.f32.mxu0 %v133
    %402 = vmatmul.mubr.f32.gmra.mxu0 %v132
    %v403 = vpop.f32.mrf.mxu0
    %v404 = vadd.f32 0.0, %v403
    %v405 = vpop.f32.mrf.mxu0
    %406 = vmatprep.mubr.f32.mxu0 %v135
    %407 = vmatmul.mubr.f32.gmra.mxu0 %v134
    %v408 = vpop.f32.mrf.mxu0
    %v409 = vadd.f32 0.0, %v408
    %v410 = vpop.f32.mrf.mxu0
    %411 = vmatprep.mubr.f32.mxu0 %v137
    %412 = vmatmul.mubr.f32.gmra.mxu0 %v136
    %v413 = vpop.f32.mrf.mxu0
    %v414 = vadd.f32 0.0, %v413
    %v415 = vpop.f32.mrf.mxu0
    %416 = vmatprep.mubr.f32.mxu0 %v139
    %417 = vmatmul.mubr.f32.gmra.mxu0 %v138
    %v418 = vpop.f32.mrf.mxu0
    %v419 = vadd.f32 0.0, %v418
    %v420 = vpop.f32.mrf.mxu0
    %421 = vmatprep.mubr.f32.mxu0 %v141
    %422 = vmatmul.mubr.f32.gmra.mxu0 %v140
    %v423 = vpop.f32.mrf.mxu0
    %v424 = vadd.f32 0.0, %v423
    %v425 = vpop.f32.mrf.mxu0
    %426 = vmatprep.mubr.f32.mxu0 %v143
    %427 = vmatmul.mubr.f32.gmra.mxu0 %v142
    %v428 = vpop.f32.mrf.mxu0
    %v429 = vadd.f32 0.0, %v428
    %v430 = vpop.f32.mrf.mxu0
    %431 = vmatprep.mubr.f32.mxu0 %v145
    %432 = vmatmul.mubr.f32.gmra.mxu0 %v144
    %v433 = vpop.f32.mrf.mxu0
    %v434 = vadd.f32 0.0, %v433
    %v435 = vpop.f32.mrf.mxu0
    %436 = vmatprep.mubr.f32.mxu0 %v147
    %437 = vmatmul.mubr.f32.gmra.mxu0 %v146
    %v438 = vpop.f32.mrf.mxu0
    %v439 = vadd.f32 0.0, %v438
    %v440 = vpop.f32.mrf.mxu0
    %441 = vmatprep.mubr.f32.mxu0 %v149
    %442 = vmatmul.mubr.f32.gmra.mxu0 %v148
    %v443 = vpop.f32.mrf.mxu0
    %v444 = vadd.f32 0.0, %v443
    %v445 = vpop.f32.mrf.mxu0
    %446 = vmatprep.mubr.f32.mxu0 %v151
    %447 = vmatmul.mubr.f32.gmra.mxu0 %v150
    %v448 = vpop.f32.mrf.mxu0
    %v449 = vadd.f32 0.0, %v448
    %v450 = vpop.f32.mrf.mxu0
    %451 = vmatprep.mubr.f32.mxu0 %v153
    %452 = vmatmul.mubr.f32.gmra.mxu0 %v152
    %v453 = vpop.f32.mrf.mxu0
    %v454 = vadd.f32 0.0, %v453
    %v455 = vpop.f32.mrf.mxu0
    %456 = vmatprep.mubr.f32.mxu0 %v155
    %457 = vmatmul.mubr.f32.gmra.mxu0 %v154
    %v458 = vpop.f32.mrf.mxu0
    %v459 = vadd.f32 0.0, %v458
    %v460 = vpop.f32.mrf.mxu0
    %461 = vmatprep.mubr.f32.mxu0 %v157
    %462 = vmatmul.mubr.f32.gmra.mxu0 %v156
    %v463 = vpop.f32.mrf.mxu0
    %v464 = vadd.f32 0.0, %v463
    %v465 = vpop.f32.mrf.mxu0
    %466 = vmatprep.mubr.f32.mxu0 %v159
    %467 = vmatmul.mubr.f32.gmra.mxu0 %v158
    %v468 = vpop.f32.mrf.mxu0
    %v469 = vadd.f32 0.0, %v468
    %v470 = vpop.f32.mrf.mxu0
    %471 = vmatprep.mubr.f32.mxu0 %v161
    %472 = vmatmul.mubr.f32.gmra.mxu0 %v160
    %v473 = vpop.f32.mrf.mxu0
    %v474 = vadd.f32 0.0, %v473
    %v475 = vpop.f32.mrf.mxu0
    %476 = vmatprep.mubr.f32.mxu0 %v163
    %477 = vmatmul.mubr.f32.gmra.mxu0 %v162
    %v478 = vpop.f32.mrf.mxu0
    %v479 = vadd.f32 0.0, %v478
    %v480 = vpop.f32.mrf.mxu0
    %481 = vmatprep.mubr.f32.mxu0 %v165
    %482 = vmatmul.mubr.f32.gmra.mxu0 %v164
    %v483 = vpop.f32.mrf.mxu0
    %v484 = vadd.f32 0.0, %v483
    %v485 = vpop.f32.mrf.mxu0
    %486 = vmatprep.mubr.f32.mxu0 %v167
    %487 = vmatmul.mubr.f32.gmra.mxu0 %v166
    %v488 = vpop.f32.mrf.mxu0
    %v489 = vadd.f32 0.0, %v488
    %v490 = vpop.f32.mrf.mxu0
    %491 = vmatprep.mubr.f32.mxu0 %v169
    %492 = vmatmul.mubr.f32.gmra.mxu0 %v168
    %v493 = vpop.f32.mrf.mxu0
    %v494 = vadd.f32 0.0, %v493
    %v495 = vpop.f32.mrf.mxu0
    %496 = vmatprep.mubr.f32.mxu0 %v171
    %497 = vmatmul.mubr.f32.gmra.mxu0 %v170
    %v498 = vpop.f32.mrf.mxu0
    %v499 = vadd.f32 0.0, %v498
    %v500 = vpop.f32.mrf.mxu0
    %501 = vmatprep.mubr.f32.mxu0 %v173
    %502 = vmatmul.mubr.f32.gmra.mxu0 %v172
    %v503 = vpop.f32.mrf.mxu0
    %v504 = vadd.f32 0.0, %v503
    %v505 = vpop.f32.mrf.mxu0
    %506 = vmatprep.mubr.f32.mxu0 %v175
    %507 = vmatmul.mubr.f32.gmra.mxu0 %v174
    %v508 = vpop.f32.mrf.mxu0
    %v509 = vadd.f32 0.0, %v508
    %v510 = vpop.f32.mrf.mxu0
    %511 = vmatprep.mubr.f32.mxu0 %v177
    %512 = vmatmul.mubr.f32.gmra.mxu0 %v176
    %v513 = vpop.f32.mrf.mxu0
    %v514 = vadd.f32 0.0, %v513
    %v515 = vpop.f32.mrf.mxu0
    %516 = vmatprep.mubr.f32.mxu0 %v179
    %517 = vmatmul.mubr.f32.gmra.mxu0 %v178
    %v518 = vpop.f32.mrf.mxu0
    %v519 = vadd.f32 0.0, %v518
    %v520 = vpop.f32.mrf.mxu0
    %521 = vmatprep.mubr.f32.mxu0 %v181
    %522 = vmatmul.mubr.f32.gmra.mxu0 %v180
    %v523 = vpop.f32.mrf.mxu0
    %v524 = vadd.f32 0.0, %v523
    %v525 = vpop.f32.mrf.mxu0
    %526 = vmatprep.mubr.f32.mxu0 %v183
    %527 = vmatmul.mubr.f32.gmra.mxu0 %v182
    %v528 = vpop.f32.mrf.mxu0
    %v529 = vadd.f32 0.0, %v528
    %v530 = vpop.f32.mrf.mxu0
    %531 = vmatprep.mubr.f32.mxu0 %v185
    %532 = vmatmul.mubr.f32.gmra.mxu0 %v184
    %v533 = vpop.f32.mrf.mxu0
    %v534 = vadd.f32 0.0, %v533
    %v535 = vpop.f32.mrf.mxu0
    %536 = vmatprep.mubr.f32.mxu0 %v187
    %537 = vmatmul.mubr.f32.gmra.mxu0 %v186
    %v538 = vpop.f32.mrf.mxu0
    %v539 = vadd.f32 0.0, %v538
    %v540 = vpop.f32.mrf.mxu0
    %541 = vmatprep.mubr.f32.mxu0 %v189
    %542 = vmatmul.mubr.f32.gmra.mxu0 %v188
    %v543 = vpop.f32.mrf.mxu0
    %v544 = vadd.f32 0.0, %v543
    %v545 = vpop.f32.mrf.mxu0
    %546 = vmatprep.mubr.f32.mxu0 %v191
    %547 = vmatmul.mubr.f32.gmra.mxu0 %v190
    %v548 = vpop.f32.mrf.mxu0
    %v549 = vadd.f32 0.0, %v548
    %v550 = vpop.f32.mrf.mxu0
    %551 = vmatprep.mubr.f32.mxu0 %v193
    %552 = vmatmul.mubr.f32.gmra.mxu0 %v192
    %v553 = vpop.f32.mrf.mxu0
    %v554 = vadd.f32 0.0, %v553
    %v555 = vpop.f32.mrf.mxu0
    %556 = vmatprep.mubr.f32.mxu0 %v195
    %557 = vmatmul.mubr.f32.gmra.mxu0 %v194
    %v558 = vpop.f32.mrf.mxu0
    %v559 = vadd.f32 0.0, %v558
    %v560 = vpop.f32.mrf.mxu0
    %561 = vmatprep.mubr.f32.mxu0 %v197
    %562 = vmatmul.mubr.f32.gmra.mxu0 %v196
    %v563 = vpop.f32.mrf.mxu0
    %v564 = vadd.f32 0.0, %v563
    %v565 = vpop.f32.mrf.mxu0
    %566 = vmatprep.mubr.f32.mxu0 %v199
    %567 = vmatmul.mubr.f32.gmra.mxu0 %v198
    %v568 = vpop.f32.mrf.mxu0
    %v569 = vadd.f32 0.0, %v568
    %v570 = vpop.f32.mrf.mxu0
    %571 = vmatprep.mubr.f32.mxu0 %v201
    %572 = vmatmul.mubr.f32.gmra.mxu0 %v200
    %v573 = vpop.f32.mrf.mxu0
    %v574 = vadd.f32 0.0, %v573
    %v575 = vpop.f32.mrf.mxu0
    %576 = vmatprep.mubr.f32.mxu0 %v203
    %577 = vmatmul.mubr.f32.gmra.mxu0 %v202
    %v578 = vpop.f32.mrf.mxu0
    %v579 = vadd.f32 0.0, %v578
    %v580 = vpop.f32.mrf.mxu0
    %581 = vmatprep.mubr.f32.mxu0 %v205
    %582 = vmatmul.mubr.f32.gmra.mxu0 %v204
    %v583 = vpop.f32.mrf.mxu0
    %v584 = vadd.f32 0.0, %v583
    %v585 = vpop.f32.mrf.mxu0
    %586 = vmatprep.mubr.f32.mxu0 %v207
    %587 = vmatmul.mubr.f32.gmra.mxu0 %v206
    %v588 = vpop.f32.mrf.mxu0
    %v589 = vadd.f32 0.0, %v588
    %v590 = vpop.f32.mrf.mxu0
    %591 = vmatprep.mubr.f32.mxu0 %v209
    %592 = vmatmul.mubr.f32.gmra.mxu0 %v208
    %v593 = vpop.f32.mrf.mxu0
    %v594 = vadd.f32 0.0, %v593
    %v595 = vpop.f32.mrf.mxu0
    %596 = vmatprep.mubr.f32.mxu0 %v211
    %597 = vmatmul.mubr.f32.gmra.mxu0 %v210
    %v598 = vpop.f32.mrf.mxu0
    %v599 = vadd.f32 0.0, %v598
    %v600 = vpop.f32.mrf.mxu0
    %601 = vmatprep.mubr.f32.mxu0 %v213
    %602 = vmatmul.mubr.f32.gmra.mxu0 %v212
    %v603 = vpop.f32.mrf.mxu0
    %v604 = vadd.f32 0.0, %v603
    %v605 = vpop.f32.mrf.mxu0
    %606 = vmatprep.mubr.f32.mxu0 %v215
    %607 = vmatmul.mubr.f32.gmra.mxu0 %v214
    %v608 = vpop.f32.mrf.mxu0
    %v609 = vadd.f32 0.0, %v608
    %v610 = vpop.f32.mrf.mxu0
    %611 = vmatprep.mubr.f32.mxu0 %v217
    %612 = vmatmul.mubr.f32.gmra.mxu0 %v216
    %v613 = vpop.f32.mrf.mxu0
    %v614 = vadd.f32 0.0, %v613
    %v615 = vpop.f32.mrf.mxu0
    %616 = vmatprep.mubr.f32.mxu0 %v219
    %617 = vmatmul.mubr.f32.gmra.mxu0 %v218
    %v618 = vpop.f32.mrf.mxu0
    %v619 = vadd.f32 0.0, %v618
    %v620 = vpop.f32.mrf.mxu0
    %621 = vmatprep.mubr.f32.mxu0 %v221
    %622 = vmatmul.mubr.f32.gmra.mxu0 %v220
    %v623 = vpop.f32.mrf.mxu0
    %v624 = vadd.f32 0.0, %v623
    %v625 = vpop.f32.mrf.mxu0
    %626 = vmatprep.mubr.f32.mxu0 %v223
    %627 = vmatmul.mubr.f32.gmra.mxu0 %v222
    %v628 = vpop.f32.mrf.mxu0
    %v629 = vadd.f32 0.0, %v628
    %v630 = vpop.f32.mrf.mxu0
    %631 = vmatprep.mubr.f32.mxu0 %v225
    %632 = vmatmul.mubr.f32.gmra.mxu0 %v224
    %v633 = vpop.f32.mrf.mxu0
    %v634 = vadd.f32 0.0, %v633
    %v635 = vpop.f32.mrf.mxu0
    %636 = vmatprep.mubr.f32.mxu0 %v227
    %637 = vmatmul.mubr.f32.gmra.mxu0 %v226
    %v638 = vpop.f32.mrf.mxu0
    %v639 = vadd.f32 0.0, %v638
    %v640 = vpop.f32.mrf.mxu0
    %641 = vmatprep.mubr.f32.mxu0 %v229
    %642 = vmatmul.mubr.f32.gmra.mxu0 %v228
    %v643 = vpop.f32.mrf.mxu0
    %v644 = vadd.f32 0.0, %v643
    %v645 = vpop.f32.mrf.mxu0
    %646 = vdwg.mxu0
    %v647 = vld [vmem:[%s2] sm:$0x1]
    %v648 = vld [vmem:[#allocation9] sm:$0x1]
    %v649 = vadd.f32 %v329, %v334
    %v650 = vadd.f32 %v649, %v339
    %v651 = vadd.f32 %v650, %v344
    %v652 = vadd.f32 %v651, %v349
    %v653 = vadd.f32 %v652, %v354
    %v654 = vadd.f32 %v653, %v359
    %v655 = vadd.f32 %v654, %v364
    %v656 = vadd.f32 %v655, %v369
    %v657 = vadd.f32 %v656, %v374
    %v658 = vadd.f32 %v657, %v379
    %v659 = vadd.f32 %v658, %v384
    %v660 = vadd.f32 %v659, %v389
    %v661 = vadd.f32 %v660, %v394
    %v662 = vadd.f32 %v661, %v399
    %v663 = vadd.f32 %v662, %v404
    %v664 = vadd.f32 %v663, %v409
    %v665 = vadd.f32 %v664, %v414
    %v666 = vadd.f32 %v665, %v419
    %v667 = vadd.f32 %v666, %v424
    %v668 = vadd.f32 %v667, %v429
    %v669 = vadd.f32 %v668, %v434
    %v670 = vadd.f32 %v669, %v439
    %v671 = vadd.f32 %v670, %v444
    %v672 = vadd.f32 %v671, %v449
    %v673 = vadd.f32 %v672, %v454
    %v674 = vadd.f32 %v673, %v459
    %v675 = vadd.f32 %v674, %v464
    %v676 = vadd.f32 %v675, %v469
    %v677 = vadd.f32 %v676, %v474
    %v678 = vadd.f32 %v677, %v479
    %v679 = vadd.f32 %v678, %v484
    %v680 = vadd.f32 %v679, %v489
    %v681 = vadd.f32 %v680, %v494
    %v682 = vadd.f32 %v681, %v499
    %v683 = vadd.f32 %v682, %v504
    %v684 = vadd.f32 %v683, %v509
    %v685 = vadd.f32 %v684, %v514
    %v686 = vadd.f32 %v685, %v519
    %v687 = vadd.f32 %v686, %v524
    %v688 = vadd.f32 %v687, %v529
    %v689 = vadd.f32 %v688, %v534
    %v690 = vadd.f32 %v689, %v539
    %v691 = vadd.f32 %v690, %v544
    %v692 = vadd.f32 %v691, %v549
    %v693 = vadd.f32 %v692, %v554
    %v694 = vadd.f32 %v693, %v559
    %v695 = vadd.f32 %v694, %v564
    %v696 = vadd.f32 %v695, %v569
    %v697 = vadd.f32 %v696, %v574
    %v698 = vadd.f32 %v697, %v579
    %v699 = vadd.f32 %v698, %v584
    %v700 = vadd.f32 %v699, %v589
    %v701 = vadd.f32 %v700, %v594
    %v702 = vadd.f32 %v701, %v599
    %v703 = vadd.f32 %v702, %v604
    %v704 = vadd.f32 %v703, %v609
    %v705 = vadd.f32 %v704, %v614
    %v706 = vadd.f32 %v705, %v619
    %v707 = vadd.f32 %v706, %v624
    %v708 = vadd.f32 %v707, %v629
    %v709 = vadd.f32 %v708, %v634
    %v710 = vadd.f32 %v709, %v639
    %v711 = vadd.f32 %v710, %v644
    %v712 = vrot.slane %v711, 4
    %v713 = vadd.f32 %v711, %v712
    %v714 = vrot.slane %v713, 2
    %v715 = vadd.f32 %v713, %v714
    %v716 = vrot.slane %v715, 1
    %v717 = vadd.f32 %v715, %v716
    %v718 = vrcp.pop 512.0
    %v719 = vmul.f32 %v717, %v718
    %v720 = vmul.f32 %v329, %v329
    %v721 = vmul.f32 %v334, %v334
    %v722 = vmul.f32 %v339, %v339
    %v723 = vmul.f32 %v344, %v344
    %v724 = vmul.f32 %v349, %v349
    %v725 = vmul.f32 %v354, %v354
    %v726 = vmul.f32 %v359, %v359
    %v727 = vmul.f32 %v364, %v364
    %v728 = vmul.f32 %v369, %v369
    %v729 = vmul.f32 %v374, %v374
    %v730 = vmul.f32 %v379, %v379
    %v731 = vmul.f32 %v384, %v384
    %v732 = vmul.f32 %v389, %v389
    %v733 = vmul.f32 %v394, %v394
    %v734 = vmul.f32 %v399, %v399
    %v735 = vmul.f32 %v404, %v404
    %v736 = vmul.f32 %v409, %v409
    %v737 = vmul.f32 %v414, %v414
    %v738 = vmul.f32 %v419, %v419
    %v739 = vmul.f32 %v424, %v424
    %v740 = vmul.f32 %v429, %v429
    %v741 = vmul.f32 %v434, %v434
    %v742 = vmul.f32 %v439, %v439
    %v743 = vmul.f32 %v444, %v444
    %v744 = vmul.f32 %v449, %v449
    %v745 = vmul.f32 %v454, %v454
    %v746 = vmul.f32 %v459, %v459
    %v747 = vmul.f32 %v464, %v464
    %v748 = vmul.f32 %v469, %v469
    %v749 = vmul.f32 %v474, %v474
    %v750 = vmul.f32 %v479, %v479
    %v751 = vmul.f32 %v484, %v484
    %v752 = vmul.f32 %v489, %v489
    %v753 = vmul.f32 %v494, %v494
    %v754 = vmul.f32 %v499, %v499
    %v755 = vmul.f32 %v504, %v504
    %v756 = vmul.f32 %v509, %v509
    %v757 = vmul.f32 %v514, %v514
    %v758 = vmul.f32 %v519, %v519
    %v759 = vmul.f32 %v524, %v524
    %v760 = vmul.f32 %v529, %v529
    %v761 = vmul.f32 %v534, %v534
    %v762 = vmul.f32 %v539, %v539
    %v763 = vmul.f32 %v544, %v544
    %v764 = vmul.f32 %v549, %v549
    %v765 = vmul.f32 %v554, %v554
    %v766 = vmul.f32 %v559, %v559
    %v767 = vmul.f32 %v564, %v564
    %v768 = vmul.f32 %v569, %v569
    %v769 = vmul.f32 %v574, %v574
    %v770 = vmul.f32 %v579, %v579
    %v771 = vmul.f32 %v584, %v584
    %v772 = vmul.f32 %v589, %v589
    %v773 = vmul.f32 %v594, %v594
    %v774 = vmul.f32 %v599, %v599
    %v775 = vmul.f32 %v604, %v604
    %v776 = vmul.f32 %v609, %v609
    %v777 = vmul.f32 %v614, %v614
    %v778 = vmul.f32 %v619, %v619
    %v779 = vmul.f32 %v624, %v624
    %v780 = vmul.f32 %v629, %v629
    %v781 = vmul.f32 %v634, %v634
    %v782 = vmul.f32 %v639, %v639
    %v783 = vmul.f32 %v644, %v644
    %v784 = vadd.f32 %v720, %v721
    %v785 = vadd.f32 %v784, %v722
    %v786 = vadd.f32 %v785, %v723
    %v787 = vadd.f32 %v786, %v724
    %v788 = vadd.f32 %v787, %v725
    %v789 = vadd.f32 %v788, %v726
    %v790 = vadd.f32 %v789, %v727
    %v791 = vadd.f32 %v790, %v728
    %v792 = vadd.f32 %v791, %v729
    %v793 = vadd.f32 %v792, %v730
    %v794 = vadd.f32 %v793, %v731
    %v795 = vadd.f32 %v794, %v732
    %v796 = vadd.f32 %v795, %v733
    %v797 = vadd.f32 %v796, %v734
    %v798 = vadd.f32 %v797, %v735
    %v799 = vadd.f32 %v798, %v736
    %v800 = vadd.f32 %v799, %v737
    %v801 = vadd.f32 %v800, %v738
    %v802 = vadd.f32 %v801, %v739
    %v803 = vadd.f32 %v802, %v740
    %v804 = vadd.f32 %v803, %v741
    %v805 = vadd.f32 %v804, %v742
    %v806 = vadd.f32 %v805, %v743
    %v807 = vadd.f32 %v806, %v744
    %v808 = vadd.f32 %v807, %v745
    %v809 = vadd.f32 %v808, %v746
    %v810 = vadd.f32 %v809, %v747
    %v811 = vadd.f32 %v810, %v748
    %v812 = vadd.f32 %v811, %v749
    %v813 = vadd.f32 %v812, %v750
    %v814 = vadd.f32 %v813, %v751
    %v815 = vadd.f32 %v814, %v752
    %v816 = vadd.f32 %v815, %v753
    %v817 = vadd.f32 %v816, %v754
    %v818 = vadd.f32 %v817, %v755
    %v819 = vadd.f32 %v818, %v756
    %v820 = vadd.f32 %v819, %v757
    %v821 = vadd.f32 %v820, %v758
    %v822 = vadd.f32 %v821, %v759
    %v823 = vadd.f32 %v822, %v760
    %v824 = vadd.f32 %v823, %v761
    %v825 = vadd.f32 %v824, %v762
    %v826 = vadd.f32 %v825, %v763
    %v827 = vadd.f32 %v826, %v764
    %v828 = vadd.f32 %v827, %v765
    %v829 = vadd.f32 %v828, %v766
    %v830 = vadd.f32 %v829, %v767
    %v831 = vadd.f32 %v830, %v768
    %v832 = vadd.f32 %v831, %v769
    %v833 = vadd.f32 %v832, %v770
    %v834 = vadd.f32 %v833, %v771
    %v835 = vadd.f32 %v834, %v772
    %v836 = vadd.f32 %v835, %v773
    %v837 = vadd.f32 %v836, %v774
    %v838 = vadd.f32 %v837, %v775
    %v839 = vadd.f32 %v838, %v776
    %v840 = vadd.f32 %v839, %v777
    %v841 = vadd.f32 %v840, %v778
    %v842 = vadd.f32 %v841, %v779
    %v843 = vadd.f32 %v842, %v780
    %v844 = vadd.f32 %v843, %v781
    %v845 = vadd.f32 %v844, %v782
    %v846 = vadd.f32 %v845, %v783
    %v847 = vrot.slane %v846, 4
    %v848 = vadd.f32 %v846, %v847
    %v849 = vrot.slane %v848, 2
    %v850 = vadd.f32 %v848, %v849
    %v851 = vrot.slane %v850, 1
    %v852 = vadd.f32 %v850, %v851
    %v853 = vmul.f32 %v852, %v718
    %v854 = vmul.f32 %v719, %v719
    %v855 = vsub.f32 %v853, %v854
    %v856 = vadd.f32 %v855, 1e-05
    %v857 = vrsqrt.pop %v856
    %v858 = vmul.f32 %v647, %v857
    %v859 = vmul.f32 %v719, %v858
    %v860 = vsub.f32 %v648, %v859
    %v862 = vlaneseq
    %v863 = vshrl.u32 %v862, 7
    %v864 = vsub.s32 0, %v863
    %v865 = vrot.slane %v858, %v864
    %v867 = vmul.f32 %v329, %v865
    %v868 = vmul.f32 %v334, %v865
    %v869 = vmul.f32 %v339, %v865
    %v870 = vmul.f32 %v344, %v865
    %v871 = vmul.f32 %v349, %v865
    %v872 = vmul.f32 %v354, %v865
    %v873 = vmul.f32 %v359, %v865
    %v874 = vmul.f32 %v364, %v865
    %v875 = vmul.f32 %v369, %v865
    %v876 = vmul.f32 %v374, %v865
    %v877 = vmul.f32 %v379, %v865
    %v878 = vmul.f32 %v384, %v865
    %v879 = vmul.f32 %v389, %v865
    %v880 = vmul.f32 %v394, %v865
    %v881 = vmul.f32 %v399, %v865
    %v882 = vmul.f32 %v404, %v865
    %v883 = vmul.f32 %v409, %v865
    %v884 = vmul.f32 %v414, %v865
    %v885 = vmul.f32 %v419, %v865
    %v886 = vmul.f32 %v424, %v865
    %v887 = vmul.f32 %v429, %v865
    %v888 = vmul.f32 %v434, %v865
    %v889 = vmul.f32 %v439, %v865
    %v890 = vmul.f32 %v444, %v865
    %v891 = vmul.f32 %v449, %v865
    %v892 = vmul.f32 %v454, %v865
    %v893 = vmul.f32 %v459, %v865
    %v894 = vmul.f32 %v464, %v865
    %v895 = vmul.f32 %v469, %v865
    %v896 = vmul.f32 %v474, %v865
    %v897 = vmul.f32 %v479, %v865
    %v898 = vmul.f32 %v484, %v865
    %v899 = vmul.f32 %v489, %v865
    %v900 = vmul.f32 %v494, %v865
    %v901 = vmul.f32 %v499, %v865
    %v902 = vmul.f32 %v504, %v865
    %v903 = vmul.f32 %v509, %v865
    %v904 = vmul.f32 %v514, %v865
    %v905 = vmul.f32 %v519, %v865
    %v906 = vmul.f32 %v524, %v865
    %v907 = vmul.f32 %v529, %v865
    %v908 = vmul.f32 %v534, %v865
    %v909 = vmul.f32 %v539, %v865
    %v910 = vmul.f32 %v544, %v865
    %v911 = vmul.f32 %v549, %v865
    %v912 = vmul.f32 %v554, %v865
    %v913 = vmul.f32 %v559, %v865
    %v914 = vmul.f32 %v564, %v865
    %v915 = vmul.f32 %v569, %v865
    %v916 = vmul.f32 %v574, %v865
    %v917 = vmul.f32 %v579, %v865
    %v918 = vmul.f32 %v584, %v865
    %v919 = vmul.f32 %v589, %v865
    %v920 = vmul.f32 %v594, %v865
    %v921 = vmul.f32 %v599, %v865
    %v922 = vmul.f32 %v604, %v865
    %v923 = vmul.f32 %v609, %v865
    %v924 = vmul.f32 %v614, %v865
    %v925 = vmul.f32 %v619, %v865
    %v926 = vmul.f32 %v624, %v865
    %v927 = vmul.f32 %v629, %v865
    %v928 = vmul.f32 %v634, %v865
    %v929 = vmul.f32 %v639, %v865
    %v930 = vmul.f32 %v644, %v865
    %v932 = vlaneseq
    %v933 = vshrl.u32 %v932, 7
    %v934 = vsub.s32 0, %v933
    %v935 = vrot.slane %v860, %v934
    %v937 = vadd.f32 %v867, %v935
    %v938 = vadd.f32 %v868, %v935
    %v939 = vadd.f32 %v869, %v935
    %v940 = vadd.f32 %v870, %v935
    %v941 = vadd.f32 %v871, %v935
    %v942 = vadd.f32 %v872, %v935
    %v943 = vadd.f32 %v873, %v935
    %v944 = vadd.f32 %v874, %v935
    %v945 = vadd.f32 %v875, %v935
    %v946 = vadd.f32 %v876, %v935
    %v947 = vadd.f32 %v877, %v935
    %v948 = vadd.f32 %v878, %v935
    %v949 = vadd.f32 %v879, %v935
    %v950 = vadd.f32 %v880, %v935
    %v951 = vadd.f32 %v881, %v935
    %v952 = vadd.f32 %v882, %v935
    %v953 = vadd.f32 %v883, %v935
    %v954 = vadd.f32 %v884, %v935
    %v955 = vadd.f32 %v885, %v935
    %v956 = vadd.f32 %v886, %v935
    %v957 = vadd.f32 %v887, %v935
    %v958 = vadd.f32 %v888, %v935
    %v959 = vadd.f32 %v889, %v935
    %v960 = vadd.f32 %v890, %v935
    %v961 = vadd.f32 %v891, %v935
    %v962 = vadd.f32 %v892, %v935
    %v963 = vadd.f32 %v893, %v935
    %v964 = vadd.f32 %v894, %v935
    %v965 = vadd.f32 %v895, %v935
    %v966 = vadd.f32 %v896, %v935
    %v967 = vadd.f32 %v897, %v935
    %v968 = vadd.f32 %v898, %v935
    %v969 = vadd.f32 %v899, %v935
    %v970 = vadd.f32 %v900, %v935
    %v971 = vadd.f32 %v901, %v935
    %v972 = vadd.f32 %v902, %v935
    %v973 = vadd.f32 %v903, %v935
    %v974 = vadd.f32 %v904, %v935
    %v975 = vadd.f32 %v905, %v935
    %v976 = vadd.f32 %v906, %v935
    %v977 = vadd.f32 %v907, %v935
    %v978 = vadd.f32 %v908, %v935
    %v979 = vadd.f32 %v909, %v935
    %v980 = vadd.f32 %v910, %v935
    %v981 = vadd.f32 %v911, %v935
    %v982 = vadd.f32 %v912, %v935
    %v983 = vadd.f32 %v913, %v935
    %v984 = vadd.f32 %v914, %v935
    %v985 = vadd.f32 %v915, %v935
    %v986 = vadd.f32 %v916, %v935
    %v987 = vadd.f32 %v917, %v935
    %v988 = vadd.f32 %v918, %v935
    %v989 = vadd.f32 %v919, %v935
    %v990 = vadd.f32 %v920, %v935
    %v991 = vadd.f32 %v921, %v935
    %v992 = vadd.f32 %v922, %v935
    %v993 = vadd.f32 %v923, %v935
    %v994 = vadd.f32 %v924, %v935
    %v995 = vadd.f32 %v925, %v935
    %v996 = vadd.f32 %v926, %v935
    %v997 = vadd.f32 %v927, %v935
    %v998 = vadd.f32 %v928, %v935
    %v999 = vadd.f32 %v929, %v935
    %v1000 = vadd.f32 %v930, %v935
    %v1001 = vmax.f32 %v937, 0.0
    %v1002 = vmax.f32 %v938, 0.0
    %v1003 = vmax.f32 %v939, 0.0
    %v1004 = vmax.f32 %v940, 0.0
    %v1005 = vmax.f32 %v941, 0.0
    %v1006 = vmax.f32 %v942, 0.0
    %v1007 = vmax.f32 %v943, 0.0
    %v1008 = vmax.f32 %v944, 0.0
    %v1009 = vmax.f32 %v945, 0.0
    %v1010 = vmax.f32 %v946, 0.0
    %v1011 = vmax.f32 %v947, 0.0
    %v1012 = vmax.f32 %v948, 0.0
    %v1013 = vmax.f32 %v949, 0.0
    %v1014 = vmax.f32 %v950, 0.0
    %v1015 = vmax.f32 %v951, 0.0
    %v1016 = vmax.f32 %v952, 0.0
    %v1017 = vmax.f32 %v953, 0.0
    %v1018 = vmax.f32 %v954, 0.0
    %v1019 = vmax.f32 %v955, 0.0
    %v1020 = vmax.f32 %v956, 0.0
    %v1021 = vmax.f32 %v957, 0.0
    %v1022 = vmax.f32 %v958, 0.0
    %v1023 = vmax.f32 %v959, 0.0
    %v1024 = vmax.f32 %v960, 0.0
    %v1025 = vmax.f32 %v961, 0.0
    %v1026 = vmax.f32 %v962, 0.0
    %v1027 = vmax.f32 %v963, 0.0
    %v1028 = vmax.f32 %v964, 0.0
    %v1029 = vmax.f32 %v965, 0.0
    %v1030 = vmax.f32 %v966, 0.0
    %v1031 = vmax.f32 %v967, 0.0
    %v1032 = vmax.f32 %v968, 0.0
    %v1033 = vmax.f32 %v969, 0.0
    %v1034 = vmax.f32 %v970, 0.0
    %v1035 = vmax.f32 %v971, 0.0
    %v1036 = vmax.f32 %v972, 0.0
    %v1037 = vmax.f32 %v973, 0.0
    %v1038 = vmax.f32 %v974, 0.0
    %v1039 = vmax.f32 %v975, 0.0
    %v1040 = vmax.f32 %v976, 0.0
    %v1041 = vmax.f32 %v977, 0.0
    %v1042 = vmax.f32 %v978, 0.0
    %v1043 = vmax.f32 %v979, 0.0
    %v1044 = vmax.f32 %v980, 0.0
    %v1045 = vmax.f32 %v981, 0.0
    %v1046 = vmax.f32 %v982, 0.0
    %v1047 = vmax.f32 %v983, 0.0
    %v1048 = vmax.f32 %v984, 0.0
    %v1049 = vmax.f32 %v985, 0.0
    %v1050 = vmax.f32 %v986, 0.0
    %v1051 = vmax.f32 %v987, 0.0
    %v1052 = vmax.f32 %v988, 0.0
    %v1053 = vmax.f32 %v989, 0.0
    %v1054 = vmax.f32 %v990, 0.0
    %v1055 = vmax.f32 %v991, 0.0
    %v1056 = vmax.f32 %v992, 0.0
    %v1057 = vmax.f32 %v993, 0.0
    %v1058 = vmax.f32 %v994, 0.0
    %v1059 = vmax.f32 %v995, 0.0
    %v1060 = vmax.f32 %v996, 0.0
    %v1061 = vmax.f32 %v997, 0.0
    %v1062 = vmax.f32 %v998, 0.0
    %v1063 = vmax.f32 %v999, 0.0
    %v1064 = vmax.f32 %v1000, 0.0
    %1065 = vst [vmem:[#allocation2] sm:$0xff] 0.0
    %1066 = vst [vmem:[#allocation2 + $0x8] sm:$0xff] 0.0
    %1067 = vst [vmem:[#allocation2 + $0x10] sm:$0x3] 0.0
    %1068 = vst [vmem:[#allocation2 + $0x1b0] sm:$0xff] 0.0
    %1069 = vst [vmem:[#allocation2 + $0x1b8] sm:$0xff] 0.0
    %1070 = vst [vmem:[#allocation2 + $0x1c0] sm:$0x3] 0.0
    %s1071 = scalar_lea.vmem [#allocation2], 408
    %1072 = vst [vmem:[%s1071] sm:$0xff] 0.0
    %1073 = vst [vmem:[%s1071 + $0x8] sm:$0xff] 0.0
    %1074 = vst [vmem:[%s1071 + $0x10] sm:$0x3] 0.0
    %1075 = vst [vmem:[%s1071 + $0x1b0] sm:$0xff] 0.0
    %1076 = vst [vmem:[%s1071 + $0x1b8] sm:$0xff] 0.0
    %1077 = vst [vmem:[%s1071 + $0x1c0] sm:$0x3] 0.0
    %s1078 = scalar_lea.vmem [#allocation2], 24
    %1079 = vst [vmem:[%s1078] sm:$0x1] 0.0
    %1080 = vst [vmem:[%s1078 + $0x18] sm:$0x1] 0.0
    %1081 = vst [vmem:[%s1078 + $0x30] sm:$0x1] 0.0
    %1082 = vst [vmem:[%s1078 + $0x48] sm:$0x1] 0.0
    %1083 = vst [vmem:[%s1078 + $0x60] sm:$0x1] 0.0
    %1084 = vst [vmem:[%s1078 + $0x78] sm:$0x1] 0.0
    %1085 = vst [vmem:[%s1078 + $0x90] sm:$0x1] 0.0
    %1086 = vst [vmem:[%s1078 + $0xa8] sm:$0x1] 0.0
    %1087 = vst [vmem:[%s1078 + $0xc0] sm:$0x1] 0.0
    %1088 = vst [vmem:[%s1078 + $0xd8] sm:$0x1] 0.0
    %1089 = vst [vmem:[%s1078 + $0xf0] sm:$0x1] 0.0
    %1090 = vst [vmem:[%s1078 + $0x108] sm:$0x1] 0.0
    %1091 = vst [vmem:[%s1078 + $0x120] sm:$0x1] 0.0
    %1092 = vst [vmem:[%s1078 + $0x138] sm:$0x1] 0.0
    %1093 = vst [vmem:[%s1078 + $0x150] sm:$0x1] 0.0
    %1094 = vst [vmem:[%s1078 + $0x168] sm:$0x1] 0.0
    %1095 = vst [vmem:[%s1078 + $0x1b0] sm:$0x1] 0.0
    %1096 = vst [vmem:[%s1078 + $0x1c8] sm:$0x1] 0.0
    %1097 = vst [vmem:[%s1078 + $0x1e0] sm:$0x1] 0.0
    %1098 = vst [vmem:[%s1078 + $0x1f8] sm:$0x1] 0.0
    %1099 = vst [vmem:[%s1078 + $0x210] sm:$0x1] 0.0
    %1100 = vst [vmem:[%s1078 + $0x228] sm:$0x1] 0.0
    %1101 = vst [vmem:[%s1078 + $0x240] sm:$0x1] 0.0
    %1102 = vst [vmem:[%s1078 + $0x258] sm:$0x1] 0.0
    %1103 = vst [vmem:[%s1078 + $0x270] sm:$0x1] 0.0
    %1104 = vst [vmem:[%s1078 + $0x288] sm:$0x1] 0.0
    %1105 = vst [vmem:[%s1078 + $0x2a0] sm:$0x1] 0.0
    %1106 = vst [vmem:[%s1078 + $0x2b8] sm:$0x1] 0.0
    %1107 = vst [vmem:[%s1078 + $0x2d0] sm:$0x1] 0.0
    %1108 = vst [vmem:[%s1078 + $0x2e8] sm:$0x1] 0.0
    %1109 = vst [vmem:[%s1078 + $0x300] sm:$0x1] 0.0
    %1110 = vst [vmem:[%s1078 + $0x318] sm:$0x1] 0.0
    %1111 = vst [vmem:[%s1078 + $0x11] sm:$0x1] 0.0
    %1112 = vst [vmem:[%s1078 + $0x29] sm:$0x1] 0.0
    %1113 = vst [vmem:[%s1078 + $0x41] sm:$0x1] 0.0
    %1114 = vst [vmem:[%s1078 + $0x59] sm:$0x1] 0.0
    %1115 = vst [vmem:[%s1078 + $0x71] sm:$0x1] 0.0
    %1116 = vst [vmem:[%s1078 + $0x89] sm:$0x1] 0.0
    %1117 = vst [vmem:[%s1078 + $0xa1] sm:$0x1] 0.0
    %1118 = vst [vmem:[%s1078 + $0xb9] sm:$0x1] 0.0
    %1119 = vst [vmem:[%s1078 + $0xd1] sm:$0x1] 0.0
    %1120 = vst [vmem:[%s1078 + $0xe9] sm:$0x1] 0.0
    %1121 = vst [vmem:[%s1078 + $0x101] sm:$0x1] 0.0
    %1122 = vst [vmem:[%s1078 + $0x119] sm:$0x1] 0.0
    %1123 = vst [vmem:[%s1078 + $0x131] sm:$0x1] 0.0
    %1124 = vst [vmem:[%s1078 + $0x149] sm:$0x1] 0.0
    %1125 = vst [vmem:[%s1078 + $0x161] sm:$0x1] 0.0
    %1126 = vst [vmem:[%s1078 + $0x179] sm:$0x1] 0.0
    %1127 = vst [vmem:[%s1078 + $0x1c1] sm:$0x1] 0.0
    %1128 = vst [vmem:[%s1078 + $0x1d9] sm:$0x1] 0.0
    %1129 = vst [vmem:[%s1078 + $0x1f1] sm:$0x1] 0.0
    %1130 = vst [vmem:[%s1078 + $0x209] sm:$0x1] 0.0
    %1131 = vst [vmem:[%s1078 + $0x221] sm:$0x1] 0.0
    %1132 = vst [vmem:[%s1078 + $0x239] sm:$0x1] 0.0
    %1133 = vst [vmem:[%s1078 + $0x251] sm:$0x1] 0.0
    %1134 = vst [vmem:[%s1078 + $0x269] sm:$0x1] 0.0
    %1135 = vst [vmem:[%s1078 + $0x281] sm:$0x1] 0.0
    %1136 = vst [vmem:[%s1078 + $0x299] sm:$0x1] 0.0
    %1137 = vst [vmem:[%s1078 + $0x2b1] sm:$0x1] 0.0
    %1138 = vst [vmem:[%s1078 + $0x2c9] sm:$0x1] 0.0
    %1139 = vst [vmem:[%s1078 + $0x2e1] sm:$0x1] 0.0
    %1140 = vst [vmem:[%s1078 + $0x2f9] sm:$0x1] 0.0
    %1141 = vst [vmem:[%s1078 + $0x311] sm:$0x1] 0.0
    %1142 = vst [vmem:[%s1078 + $0x329] sm:$0x1] 0.0
    %1143 = vst [vmem:[%s1078 + $0x1] sm:$0xff] %v1001
    %1144 = vst [vmem:[%s1078 + $0x9] sm:$0xff] %v1002
    %1145 = vst [vmem:[%s1078 + $0x19] sm:$0xff] %v1003
    %1146 = vst [vmem:[%s1078 + $0x21] sm:$0xff] %v1004
    %1147 = vst [vmem:[%s1078 + $0x31] sm:$0xff] %v1005
    %1148 = vst [vmem:[%s1078 + $0x39] sm:$0xff] %v1006
    %1149 = vst [vmem:[%s1078 + $0x49] sm:$0xff] %v1007
    %1150 = vst [vmem:[%s1078 + $0x51] sm:$0xff] %v1008
    %1151 = vst [vmem:[%s1078 + $0x61] sm:$0xff] %v1009
    %1152 = vst [vmem:[%s1078 + $0x69] sm:$0xff] %v1010
    %1153 = vst [vmem:[%s1078 + $0x79] sm:$0xff] %v1011
    %1154 = vst [vmem:[%s1078 + $0x81] sm:$0xff] %v1012
    %1155 = vst [vmem:[%s1078 + $0x91] sm:$0xff] %v1013
    %1156 = vst [vmem:[%s1078 + $0x99] sm:$0xff] %v1014
    %1157 = vst [vmem:[%s1078 + $0xa9] sm:$0xff] %v1015
    %1158 = vst [vmem:[%s1078 + $0xb1] sm:$0xff] %v1016
    %1159 = vst [vmem:[%s1078 + $0xc1] sm:$0xff] %v1017
    %1160 = vst [vmem:[%s1078 + $0xc9] sm:$0xff] %v1018
    %1161 = vst [vmem:[%s1078 + $0xd9] sm:$0xff] %v1019
    %1162 = vst [vmem:[%s1078 + $0xe1] sm:$0xff] %v1020
    %1163 = vst [vmem:[%s1078 + $0xf1] sm:$0xff] %v1021
    %1164 = vst [vmem:[%s1078 + $0xf9] sm:$0xff] %v1022
    %1165 = vst [vmem:[%s1078 + $0x109] sm:$0xff] %v1023
    %1166 = vst [vmem:[%s1078 + $0x111] sm:$0xff] %v1024
    %1167 = vst [vmem:[%s1078 + $0x121] sm:$0xff] %v1025
    %1168 = vst [vmem:[%s1078 + $0x129] sm:$0xff] %v1026
    %1169 = vst [vmem:[%s1078 + $0x139] sm:$0xff] %v1027
    %1170 = vst [vmem:[%s1078 + $0x141] sm:$0xff] %v1028
    %1171 = vst [vmem:[%s1078 + $0x151] sm:$0xff] %v1029
    %1172 = vst [vmem:[%s1078 + $0x159] sm:$0xff] %v1030
    %1173 = vst [vmem:[%s1078 + $0x169] sm:$0xff] %v1031
    %1174 = vst [vmem:[%s1078 + $0x171] sm:$0xff] %v1032
    %1175 = vst [vmem:[%s1078 + $0x1b1] sm:$0xff] %v1033
    %1176 = vst [vmem:[%s1078 + $0x1b9] sm:$0xff] %v1034
    %1177 = vst [vmem:[%s1078 + $0x1c9] sm:$0xff] %v1035
    %1178 = vst [vmem:[%s1078 + $0x1d1] sm:$0xff] %v1036
    %1179 = vst [vmem:[%s1078 + $0x1e1] sm:$0xff] %v1037
    %1180 = vst [vmem:[%s1078 + $0x1e9] sm:$0xff] %v1038
    %1181 = vst [vmem:[%s1078 + $0x1f9] sm:$0xff] %v1039
    %1182 = vst [vmem:[%s1078 + $0x201] sm:$0xff] %v1040
    %1183 = vst [vmem:[%s1078 + $0x211] sm:$0xff] %v1041
    %1184 = vst [vmem:[%s1078 + $0x219] sm:$0xff] %v1042
    %1185 = vst [vmem:[%s1078 + $0x229] sm:$0xff] %v1043
    %1186 = vst [vmem:[%s1078 + $0x231] sm:$0xff] %v1044
    %1187 = vst [vmem:[%s1078 + $0x241] sm:$0xff] %v1045
    %1188 = vst [vmem:[%s1078 + $0x249] sm:$0xff] %v1046
    %1189 = vst [vmem:[%s1078 + $0x259] sm:$0xff] %v1047
    %1190 = vst [vmem:[%s1078 + $0x261] sm:$0xff] %v1048
    %1191 = vst [vmem:[%s1078 + $0x271] sm:$0xff] %v1049
    %1192 = vst [vmem:[%s1078 + $0x279] sm:$0xff] %v1050
    %1193 = vst [vmem:[%s1078 + $0x289] sm:$0xff] %v1051
    %1194 = vst [vmem:[%s1078 + $0x291] sm:$0xff] %v1052
    %1195 = vst [vmem:[%s1078 + $0x2a1] sm:$0xff] %v1053
    %1196 = vst [vmem:[%s1078 + $0x2a9] sm:$0xff] %v1054
    %1197 = vst [vmem:[%s1078 + $0x2b9] sm:$0xff] %v1055
    %1198 = vst [vmem:[%s1078 + $0x2c1] sm:$0xff] %v1056
    %1199 = vst [vmem:[%s1078 + $0x2d1] sm:$0xff] %v1057
    %1200 = vst [vmem:[%s1078 + $0x2d9] sm:$0xff] %v1058
    %1201 = vst [vmem:[%s1078 + $0x2e9] sm:$0xff] %v1059
    %1202 = vst [vmem:[%s1078 + $0x2f1] sm:$0xff] %v1060
    %1203 = vst [vmem:[%s1078 + $0x301] sm:$0xff] %v1061
    %1204 = vst [vmem:[%s1078 + $0x309] sm:$0xff] %v1062
    %1205 = vst [vmem:[%s1078 + $0x319] sm:$0xff] %v1063
    %1206 = vst [vmem:[%s1078 + $0x321] sm:$0xff] %v1064
    %v1207 = vld [vmem:[#allocation2] sm:$0xff]
    %v1208 = vld [vmem:[#allocation2 + $0x8] sm:$0xff]
    %v1209 = vld [vmem:[#allocation2 + $0x18] sm:$0xff]
    %v1210 = vld [vmem:[#allocation2 + $0x20] sm:$0xff]
    %v1211 = vld [vmem:[#allocation2 + $0x30] sm:$0xff]
    %v1212 = vld [vmem:[#allocation2 + $0x38] sm:$0xff]
    %v1213 = vld [vmem:[#allocation2 + $0x48] sm:$0xff]
    %v1214 = vld [vmem:[#allocation2 + $0x50] sm:$0xff]
    %v1215 = vld [vmem:[#allocation2 + $0x60] sm:$0xff]
    %v1216 = vld [vmem:[#allocation2 + $0x68] sm:$0xff]
    %v1217 = vld [vmem:[#allocation2 + $0x78] sm:$0xff]
    %v1218 = vld [vmem:[#allocation2 + $0x80] sm:$0xff]
    %v1219 = vld [vmem:[#allocation2 + $0x90] sm:$0xff]
    %v1220 = vld [vmem:[#allocation2 + $0x98] sm:$0xff]
    %v1221 = vld [vmem:[#allocation2 + $0xa8] sm:$0xff]
    %v1222 = vld [vmem:[#allocation2 + $0xb0] sm:$0xff]
    %v1223 = vld [vmem:[#allocation2 + $0xc0] sm:$0xff]
    %v1224 = vld [vmem:[#allocation2 + $0xc8] sm:$0xff]
    %v1225 = vld [vmem:[#allocation2 + $0xd8] sm:$0xff]
    %v1226 = vld [vmem:[#allocation2 + $0xe0] sm:$0xff]
    %v1227 = vld [vmem:[#allocation2 + $0xf0] sm:$0xff]
    %v1228 = vld [vmem:[#allocation2 + $0xf8] sm:$0xff]
    %v1229 = vld [vmem:[#allocation2 + $0x108] sm:$0xff]
    %v1230 = vld [vmem:[#allocation2 + $0x110] sm:$0xff]
    %v1231 = vld [vmem:[#allocation2 + $0x120] sm:$0xff]
    %v1232 = vld [vmem:[#allocation2 + $0x128] sm:$0xff]
    %v1233 = vld [vmem:[#allocation2 + $0x138] sm:$0xff]
    %v1234 = vld [vmem:[#allocation2 + $0x140] sm:$0xff]
    %v1235 = vld [vmem:[#allocation2 + $0x150] sm:$0xff]
    %v1236 = vld [vmem:[#allocation2 + $0x158] sm:$0xff]
    %v1237 = vld [vmem:[#allocation2 + $0x168] sm:$0xff]
    %v1238 = vld [vmem:[#allocation2 + $0x170] sm:$0xff]
    %v1239 = vld [vmem:[#allocation2 + $0x1b0] sm:$0xff]
    %v1240 = vld [vmem:[#allocation2 + $0x1b8] sm:$0xff]
    %v1241 = vld [vmem:[#allocation2 + $0x1c8] sm:$0xff]
    %v1242 = vld [vmem:[#allocation2 + $0x1d0] sm:$0xff]
    %v1243 = vld [vmem:[#allocation2 + $0x1e0] sm:$0xff]
    %v1244 = vld [vmem:[#allocation2 + $0x1e8] sm:$0xff]
    %v1245 = vld [vmem:[#allocation2 + $0x1f8] sm:$0xff]
    %v1246 = vld [vmem:[#allocation2 + $0x200] sm:$0xff]
    %v1247 = vld [vmem:[#allocation2 + $0x210] sm:$0xff]
    %v1248 = vld [vmem:[#allocation2 + $0x218] sm:$0xff]
    %v1249 = vld [vmem:[#allocation2 + $0x228] sm:$0xff]
    %v1250 = vld [vmem:[#allocation2 + $0x230] sm:$0xff]
    %v1251 = vld [vmem:[#allocation2 + $0x240] sm:$0xff]
    %v1252 = vld [vmem:[#allocation2 + $0x248] sm:$0xff]
    %v1253 = vld [vmem:[#allocation2 + $0x258] sm:$0xff]
    %v1254 = vld [vmem:[#allocation2 + $0x260] sm:$0xff]
    %v1255 = vld [vmem:[#allocation2 + $0x270] sm:$0xff]
    %v1256 = vld [vmem:[#allocation2 + $0x278] sm:$0xff]
    %v1257 = vld [vmem:[#allocation2 + $0x288] sm:$0xff]
    %v1258 = vld [vmem:[#allocation2 + $0x290] sm:$0xff]
    %v1259 = vld [vmem:[#allocation2 + $0x2a0] sm:$0xff]
    %v1260 = vld [vmem:[#allocation2 + $0x2a8] sm:$0xff]
    %v1261 = vld [vmem:[#allocation2 + $0x2b8] sm:$0xff]
    %v1262 = vld [vmem:[#allocation2 + $0x2c0] sm:$0xff]
    %v1263 = vld [vmem:[#allocation2 + $0x2d0] sm:$0xff]
    %v1264 = vld [vmem:[#allocation2 + $0x2d8] sm:$0xff]
    %v1265 = vld [vmem:[#allocation2 + $0x2e8] sm:$0xff]
    %v1266 = vld [vmem:[#allocation2 + $0x2f0] sm:$0xff]
    %v1267 = vld [vmem:[#allocation2 + $0x300] sm:$0xff]
    %v1268 = vld [vmem:[#allocation2 + $0x308] sm:$0xff]
    %v1269 = vld [vmem:[#allocation2 + $0x318] sm:$0xff]
    %v1270 = vld [vmem:[#allocation2 + $0x320] sm:$0xff]
    %1271 = vst [vmem:[#allocation3] sm:$0xff] %v1207
    %1272 = vst [vmem:[#allocation3 + $0x48] sm:$0xff] %v1208
    %1273 = vst [vmem:[#allocation3 + $0x90] sm:$0xff] %v1209
    %1274 = vst [vmem:[#allocation3 + $0xd8] sm:$0xff] %v1210
    %1275 = vst [vmem:[#allocation3 + $0x120] sm:$0xff] %v1211
    %1276 = vst [vmem:[#allocation3 + $0x168] sm:$0xff] %v1212
    %1277 = vst [vmem:[#allocation3 + $0x1b0] sm:$0xff] %v1213
    %1278 = vst [vmem:[#allocation3 + $0x1f8] sm:$0xff] %v1214
    %1279 = vst [vmem:[#allocation3 + $0x240] sm:$0xff] %v1215
    %1280 = vst [vmem:[#allocation3 + $0x288] sm:$0xff] %v1216
    %1281 = vst [vmem:[#allocation3 + $0x2d0] sm:$0xff] %v1217
    %1282 = vst [vmem:[#allocation3 + $0x318] sm:$0xff] %v1218
    %1283 = vst [vmem:[#allocation3 + $0x360] sm:$0xff] %v1219
    %1284 = vst [vmem:[#allocation3 + $0x3a8] sm:$0xff] %v1220
    %1285 = vst [vmem:[#allocation3 + $0x3f0] sm:$0xff] %v1221
    %1286 = vst [vmem:[#allocation3 + $0x438] sm:$0xff] %v1222
    %1287 = vst [vmem:[#allocation3 + $0x480] sm:$0xff] %v1223
    %1288 = vst [vmem:[#allocation3 + $0x4c8] sm:$0xff] %v1224
    %1289 = vst [vmem:[#allocation3 + $0x510] sm:$0xff] %v1225
    %1290 = vst [vmem:[#allocation3 + $0x558] sm:$0xff] %v1226
    %1291 = vst [vmem:[#allocation3 + $0x5a0] sm:$0xff] %v1227
    %1292 = vst [vmem:[#allocation3 + $0x5e8] sm:$0xff] %v1228
    %1293 = vst [vmem:[#allocation3 + $0x630] sm:$0xff] %v1229
    %1294 = vst [vmem:[#allocation3 + $0x678] sm:$0xff] %v1230
    %1295 = vst [vmem:[#allocation3 + $0x6c0] sm:$0xff] %v1231
    %1296 = vst [vmem:[#allocation3 + $0x708] sm:$0xff] %v1232
    %1297 = vst [vmem:[#allocation3 + $0x750] sm:$0xff] %v1233
    %1298 = vst [vmem:[#allocation3 + $0x798] sm:$0xff] %v1234
    %1299 = vst [vmem:[#allocation3 + $0x7e0] sm:$0xff] %v1235
    %1300 = vst [vmem:[#allocation3 + $0x828] sm:$0xff] %v1236
    %1301 = vst [vmem:[#allocation3 + $0x870] sm:$0xff] %v1237
    %1302 = vst [vmem:[#allocation3 + $0x8b8] sm:$0xff] %v1238
    %1303 = vst [vmem:[#allocation3 + $0x900] sm:$0xff] %v1239
    %1304 = vst [vmem:[#allocation3 + $0x948] sm:$0xff] %v1240
    %1305 = vst [vmem:[#allocation3 + $0x990] sm:$0xff] %v1241
    %1306 = vst [vmem:[#allocation3 + $0x9d8] sm:$0xff] %v1242
    %1307 = vst [vmem:[#allocation3 + $0xa20] sm:$0xff] %v1243
    %1308 = vst [vmem:[#allocation3 + $0xa68] sm:$0xff] %v1244
    %1309 = vst [vmem:[#allocation3 + $0xab0] sm:$0xff] %v1245
    %1310 = vst [vmem:[#allocation3 + $0xaf8] sm:$0xff] %v1246
    %1311 = vst [vmem:[#allocation3 + $0xb40] sm:$0xff] %v1247
    %1312 = vst [vmem:[#allocation3 + $0xb88] sm:$0xff] %v1248
    %1313 = vst [vmem:[#allocation3 + $0xbd0] sm:$0xff] %v1249
    %1314 = vst [vmem:[#allocation3 + $0xc18] sm:$0xff] %v1250
    %1315 = vst [vmem:[#allocation3 + $0xc60] sm:$0xff] %v1251
    %1316 = vst [vmem:[#allocation3 + $0xca8] sm:$0xff] %v1252
    %1317 = vst [vmem:[#allocation3 + $0xcf0] sm:$0xff] %v1253
    %1318 = vst [vmem:[#allocation3 + $0xd38] sm:$0xff] %v1254
    %1319 = vst [vmem:[#allocation3 + $0xd80] sm:$0xff] %v1255
    %1320 = vst [vmem:[#allocation3 + $0xdc8] sm:$0xff] %v1256
    %1321 = vst [vmem:[#allocation3 + $0xe10] sm:$0xff] %v1257
    %1322 = vst [vmem:[#allocation3 + $0xe58] sm:$0xff] %v1258
    %1323 = vst [vmem:[#allocation3 + $0xea0] sm:$0xff] %v1259
    %1324 = vst [vmem:[#allocation3 + $0xee8] sm:$0xff] %v1260
    %1325 = vst [vmem:[#allocation3 + $0xf30] sm:$0xff] %v1261
    %1326 = vst [vmem:[#allocation3 + $0xf78] sm:$0xff] %v1262
    %1327 = vst [vmem:[#allocation3 + $0xfc0] sm:$0xff] %v1263
    %1328 = vst [vmem:[#allocation3 + $0x1008] sm:$0xff] %v1264
    %1329 = vst [vmem:[#allocation3 + $0x1050] sm:$0xff] %v1265
    %1330 = vst [vmem:[#allocation3 + $0x1098] sm:$0xff] %v1266
    %1331 = vst [vmem:[#allocation3 + $0x10e0] sm:$0xff] %v1267
    %1332 = vst [vmem:[#allocation3 + $0x1128] sm:$0xff] %v1268
    %1333 = vst [vmem:[#allocation3 + $0x1170] sm:$0xff] %v1269
    %1334 = vst [vmem:[#allocation3 + $0x11b8] sm:$0xff] %v1270
    %v1335 = vld [vmem:[#allocation2 + $0x1] sm:$0xff]
    %v1336 = vld [vmem:[#allocation2 + $0x9] sm:$0xff]
    %v1337 = vld [vmem:[#allocation2 + $0x19] sm:$0xff]
    %v1338 = vld [vmem:[#allocation2 + $0x21] sm:$0xff]
    %v1339 = vld [vmem:[#allocation2 + $0x31] sm:$0xff]
    %v1340 = vld [vmem:[#allocation2 + $0x39] sm:$0xff]
    %v1341 = vld [vmem:[#allocation2 + $0x49] sm:$0xff]
    %v1342 = vld [vmem:[#allocation2 + $0x51] sm:$0xff]
    %v1343 = vld [vmem:[#allocation2 + $0x61] sm:$0xff]
    %v1344 = vld [vmem:[#allocation2 + $0x69] sm:$0xff]
    %v1345 = vld [vmem:[#allocation2 + $0x79] sm:$0xff]
    %v1346 = vld [vmem:[#allocation2 + $0x81] sm:$0xff]
    %v1347 = vld [vmem:[#allocation2 + $0x91] sm:$0xff]
    %v1348 = vld [vmem:[#allocation2 + $0x99] sm:$0xff]
    %v1349 = vld [vmem:[#allocation2 + $0xa9] sm:$0xff]
    %v1350 = vld [vmem:[#allocation2 + $0xb1] sm:$0xff]
    %v1351 = vld [vmem:[#allocation2 + $0xc1] sm:$0xff]
    %v1352 = vld [vmem:[#allocation2 + $0xc9] sm:$0xff]
    %v1353 = vld [vmem:[#allocation2 + $0xd9] sm:$0xff]
    %v1354 = vld [vmem:[#allocation2 + $0xe1] sm:$0xff]
    %v1355 = vld [vmem:[#allocation2 + $0xf1] sm:$0xff]
    %v1356 = vld [vmem:[#allocation2 + $0xf9] sm:$0xff]
    %v1357 = vld [vmem:[#allocation2 + $0x109] sm:$0xff]
    %v1358 = vld [vmem:[#allocation2 + $0x111] sm:$0xff]
    %v1359 = vld [vmem:[#allocation2 + $0x121] sm:$0xff]
    %v1360 = vld [vmem:[#allocation2 + $0x129] sm:$0xff]
    %v1361 = vld [vmem:[#allocation2 + $0x139] sm:$0xff]
    %v1362 = vld [vmem:[#allocation2 + $0x141] sm:$0xff]
    %v1363 = vld [vmem:[#allocation2 + $0x151] sm:$0xff]
    %v1364 = vld [vmem:[#allocation2 + $0x159] sm:$0xff]
    %v1365 = vld [vmem:[#allocation2 + $0x169] sm:$0xff]
    %v1366 = vld [vmem:[#allocation2 + $0x171] sm:$0xff]
    %v1367 = vld [vmem:[#allocation2 + $0x1b1] sm:$0xff]
    %v1368 = vld [vmem:[#allocation2 + $0x1b9] sm:$0xff]
    %v1369 = vld [vmem:[#allocation2 + $0x1c9] sm:$0xff]
    %v1370 = vld [vmem:[#allocation2 + $0x1d1] sm:$0xff]
    %v1371 = vld [vmem:[#allocation2 + $0x1e1] sm:$0xff]
    %v1372 = vld [vmem:[#allocation2 + $0x1e9] sm:$0xff]
    %v1373 = vld [vmem:[#allocation2 + $0x1f9] sm:$0xff]
    %v1374 = vld [vmem:[#allocation2 + $0x201] sm:$0xff]
    %v1375 = vld [vmem:[#allocation2 + $0x211] sm:$0xff]
    %v1376 = vld [vmem:[#allocation2 + $0x219] sm:$0xff]
    %v1377 = vld [vmem:[#allocation2 + $0x229] sm:$0xff]
    %v1378 = vld [vmem:[#allocation2 + $0x231] sm:$0xff]
    %v1379 = vld [vmem:[#allocation2 + $0x241] sm:$0xff]
    %v1380 = vld [vmem:[#allocation2 + $0x249] sm:$0xff]
    %v1381 = vld [vmem:[#allocation2 + $0x259] sm:$0xff]
    %v1382 = vld [vmem:[#allocation2 + $0x261] sm:$0xff]
    %v1383 = vld [vmem:[#allocation2 + $0x271] sm:$0xff]
    %v1384 = vld [vmem:[#allocation2 + $0x279] sm:$0xff]
    %v1385 = vld [vmem:[#allocation2 + $0x289] sm:$0xff]
    %v1386 = vld [vmem:[#allocation2 + $0x291] sm:$0xff]
    %v1387 = vld [vmem:[#allocation2 + $0x2a1] sm:$0xff]
    %v1388 = vld [vmem:[#allocation2 + $0x2a9] sm:$0xff]
    %v1389 = vld [vmem:[#allocation2 + $0x2b9] sm:$0xff]
    %v1390 = vld [vmem:[#allocation2 + $0x2c1] sm:$0xff]
    %v1391 = vld [vmem:[#allocation2 + $0x2d1] sm:$0xff]
    %v1392 = vld [vmem:[#allocation2 + $0x2d9] sm:$0xff]
    %v1393 = vld [vmem:[#allocation2 + $0x2e9] sm:$0xff]
    %v1394 = vld [vmem:[#allocation2 + $0x2f1] sm:$0xff]
    %v1395 = vld [vmem:[#allocation2 + $0x301] sm:$0xff]
    %v1396 = vld [vmem:[#allocation2 + $0x309] sm:$0xff]
    %v1397 = vld [vmem:[#allocation2 + $0x319] sm:$0xff]
    %v1398 = vld [vmem:[#allocation2 + $0x321] sm:$0xff]
    %1399 = vst [vmem:[#allocation3 + $0x8] sm:$0xff] %v1335
    %1400 = vst [vmem:[#allocation3 + $0x50] sm:$0xff] %v1336
    %1401 = vst [vmem:[#allocation3 + $0x98] sm:$0xff] %v1337
    %1402 = vst [vmem:[#allocation3 + $0xe0] sm:$0xff] %v1338
    %1403 = vst [vmem:[#allocation3 + $0x128] sm:$0xff] %v1339
    %1404 = vst [vmem:[#allocation3 + $0x170] sm:$0xff] %v1340
    %1405 = vst [vmem:[#allocation3 + $0x1b8] sm:$0xff] %v1341
    %1406 = vst [vmem:[#allocation3 + $0x200] sm:$0xff] %v1342
    %1407 = vst [vmem:[#allocation3 + $0x248] sm:$0xff] %v1343
    %1408 = vst [vmem:[#allocation3 + $0x290] sm:$0xff] %v1344
    %1409 = vst [vmem:[#allocation3 + $0x2d8] sm:$0xff] %v1345
    %1410 = vst [vmem:[#allocation3 + $0x320] sm:$0xff] %v1346
    %1411 = vst [vmem:[#allocation3 + $0x368] sm:$0xff] %v1347
    %1412 = vst [vmem:[#allocation3 + $0x3b0] sm:$0xff] %v1348
    %1413 = vst [vmem:[#allocation3 + $0x3f8] sm:$0xff] %v1349
    %1414 = vst [vmem:[#allocation3 + $0x440] sm:$0xff] %v1350
    %1415 = vst [vmem:[#allocation3 + $0x488] sm:$0xff] %v1351
    %1416 = vst [vmem:[#allocation3 + $0x4d0] sm:$0xff] %v1352
    %1417 = vst [vmem:[#allocation3 + $0x518] sm:$0xff] %v1353
    %1418 = vst [vmem:[#allocation3 + $0x560] sm:$0xff] %v1354
    %1419 = vst [vmem:[#allocation3 + $0x5a8] sm:$0xff] %v1355
    %1420 = vst [vmem:[#allocation3 + $0x5f0] sm:$0xff] %v1356
    %1421 = vst [vmem:[#allocation3 + $0x638] sm:$0xff] %v1357
    %1422 = vst [vmem:[#allocation3 + $0x680] sm:$0xff] %v1358
    %1423 = vst [vmem:[#allocation3 + $0x6c8] sm:$0xff] %v1359
    %1424 = vst [vmem:[#allocation3 + $0x710] sm:$0xff] %v1360
    %1425 = vst [vmem:[#allocation3 + $0x758] sm:$0xff] %v1361
    %1426 = vst [vmem:[#allocation3 + $0x7a0] sm:$0xff] %v1362
    %1427 = vst [vmem:[#allocation3 + $0x7e8] sm:$0xff] %v1363
    %1428 = vst [vmem:[#allocation3 + $0x830] sm:$0xff] %v1364
    %1429 = vst [vmem:[#allocation3 + $0x878] sm:$0xff] %v1365
    %1430 = vst [vmem:[#allocation3 + $0x8c0] sm:$0xff] %v1366
    %1431 = vst [vmem:[#allocation3 + $0x908] sm:$0xff] %v1367
    %1432 = vst [vmem:[#allocation3 + $0x950] sm:$0xff] %v1368
    %1433 = vst [vmem:[#allocation3 + $0x998] sm:$0xff] %v1369
    %1434 = vst [vmem:[#allocation3 + $0x9e0] sm:$0xff] %v1370
    %1435 = vst [vmem:[#allocation3 + $0xa28] sm:$0xff] %v1371
    %1436 = vst [vmem:[#allocation3 + $0xa70] sm:$0xff] %v1372
    %1437 = vst [vmem:[#allocation3 + $0xab8] sm:$0xff] %v1373
    %1438 = vst [vmem:[#allocation3 + $0xb00] sm:$0xff] %v1374
    %1439 = vst [vmem:[#allocation3 + $0xb48] sm:$0xff] %v1375
    %1440 = vst [vmem:[#allocation3 + $0xb90] sm:$0xff] %v1376
    %1441 = vst [vmem:[#allocation3 + $0xbd8] sm:$0xff] %v1377
    %1442 = vst [vmem:[#allocation3 + $0xc20] sm:$0xff] %v1378
    %1443 = vst [vmem:[#allocation3 + $0xc68] sm:$0xff] %v1379
    %1444 = vst [vmem:[#allocation3 + $0xcb0] sm:$0xff] %v1380
    %1445 = vst [vmem:[#allocation3 + $0xcf8] sm:$0xff] %v1381
    %1446 = vst [vmem:[#allocation3 + $0xd40] sm:$0xff] %v1382
    %1447 = vst [vmem:[#allocation3 + $0xd88] sm:$0xff] %v1383
    %1448 = vst [vmem:[#allocation3 + $0xdd0] sm:$0xff] %v1384
    %1449 = vst [vmem:[#allocation3 + $0xe18] sm:$0xff] %v1385
    %1450 = vst [vmem:[#allocation3 + $0xe60] sm:$0xff] %v1386
    %1451 = vst [vmem:[#allocation3 + $0xea8] sm:$0xff] %v1387
    %1452 = vst [vmem:[#allocation3 + $0xef0] sm:$0xff] %v1388
    %1453 = vst [vmem:[#allocation3 + $0xf38] sm:$0xff] %v1389
    %1454 = vst [vmem:[#allocation3 + $0xf80] sm:$0xff] %v1390
    %1455 = vst [vmem:[#allocation3 + $0xfc8] sm:$0xff] %v1391
    %1456 = vst [vmem:[#allocation3 + $0x1010] sm:$0xff] %v1392
    %1457 = vst [vmem:[#allocation3 + $0x1058] sm:$0xff] %v1393
    %1458 = vst [vmem:[#allocation3 + $0x10a0] sm:$0xff] %v1394
    %1459 = vst [vmem:[#allocation3 + $0x10e8] sm:$0xff] %v1395
    %1460 = vst [vmem:[#allocation3 + $0x1130] sm:$0xff] %v1396
    %1461 = vst [vmem:[#allocation3 + $0x1178] sm:$0xff] %v1397
    %1462 = vst [vmem:[#allocation3 + $0x11c0] sm:$0xff] %v1398
    %v1463 = vld [vmem:[#allocation2 + $0x2] sm:$0xff]
    %v1464 = vld [vmem:[#allocation2 + $0xa] sm:$0xff]
    %v1465 = vld [vmem:[#allocation2 + $0x1a] sm:$0xff]
    %v1466 = vld [vmem:[#allocation2 + $0x22] sm:$0xff]
    %v1467 = vld [vmem:[#allocation2 + $0x32] sm:$0xff]
    %v1468 = vld [vmem:[#allocation2 + $0x3a] sm:$0xff]
    %v1469 = vld [vmem:[#allocation2 + $0x4a] sm:$0xff]
    %v1470 = vld [vmem:[#allocation2 + $0x52] sm:$0xff]
    %v1471 = vld [vmem:[#allocation2 + $0x62] sm:$0xff]
    %v1472 = vld [vmem:[#allocation2 + $0x6a] sm:$0xff]
    %v1473 = vld [vmem:[#allocation2 + $0x7a] sm:$0xff]
    %v1474 = vld [vmem:[#allocation2 + $0x82] sm:$0xff]
    %v1475 = vld [vmem:[#allocation2 + $0x92] sm:$0xff]
    %v1476 = vld [vmem:[#allocation2 + $0x9a] sm:$0xff]
    %v1477 = vld [vmem:[#allocation2 + $0xaa] sm:$0xff]
    %v1478 = vld [vmem:[#allocation2 + $0xb2] sm:$0xff]
    %v1479 = vld [vmem:[#allocation2 + $0xc2] sm:$0xff]
    %v1480 = vld [vmem:[#allocation2 + $0xca] sm:$0xff]
    %v1481 = vld [vmem:[#allocation2 + $0xda] sm:$0xff]
    %v1482 = vld [vmem:[#allocation2 + $0xe2] sm:$0xff]
    %v1483 = vld [vmem:[#allocation2 + $0xf2] sm:$0xff]
    %v1484 = vld [vmem:[#allocation2 + $0xfa] sm:$0xff]
    %v1485 = vld [vmem:[#allocation2 + $0x10a] sm:$0xff]
    %v1486 = vld [vmem:[#allocation2 + $0x112] sm:$0xff]
    %v1487 = vld [vmem:[#allocation2 + $0x122] sm:$0xff]
    %v1488 = vld [vmem:[#allocation2 + $0x12a] sm:$0xff]
    %v1489 = vld [vmem:[#allocation2 + $0x13a] sm:$0xff]
    %v1490 = vld [vmem:[#allocation2 + $0x142] sm:$0xff]
    %v1491 = vld [vmem:[#allocation2 + $0x152] sm:$0xff]
    %v1492 = vld [vmem:[#allocation2 + $0x15a] sm:$0xff]
    %v1493 = vld [vmem:[#allocation2 + $0x16a] sm:$0xff]
    %v1494 = vld [vmem:[#allocation2 + $0x172] sm:$0xff]
    %v1495 = vld [vmem:[#allocation2 + $0x1b2] sm:$0xff]
    %v1496 = vld [vmem:[#allocation2 + $0x1ba] sm:$0xff]
    %v1497 = vld [vmem:[#allocation2 + $0x1ca] sm:$0xff]
    %v1498 = vld [vmem:[#allocation2 + $0x1d2] sm:$0xff]
    %v1499 = vld [vmem:[#allocation2 + $0x1e2] sm:$0xff]
    %v1500 = vld [vmem:[#allocation2 + $0x1ea] sm:$0xff]
    %v1501 = vld [vmem:[#allocation2 + $0x1fa] sm:$0xff]
    %v1502 = vld [vmem:[#allocation2 + $0x202] sm:$0xff]
    %v1503 = vld [vmem:[#allocation2 + $0x212] sm:$0xff]
    %v1504 = vld [vmem:[#allocation2 + $0x21a] sm:$0xff]
    %v1505 = vld [vmem:[#allocation2 + $0x22a] sm:$0xff]
    %v1506 = vld [vmem:[#allocation2 + $0x232] sm:$0xff]
    %v1507 = vld [vmem:[#allocation2 + $0x242] sm:$0xff]
    %v1508 = vld [vmem:[#allocation2 + $0x24a] sm:$0xff]
    %v1509 = vld [vmem:[#allocation2 + $0x25a] sm:$0xff]
    %v1510 = vld [vmem:[#allocation2 + $0x262] sm:$0xff]
    %v1511 = vld [vmem:[#allocation2 + $0x272] sm:$0xff]
    %v1512 = vld [vmem:[#allocation2 + $0x27a] sm:$0xff]
    %v1513 = vld [vmem:[#allocation2 + $0x28a] sm:$0xff]
    %v1514 = vld [vmem:[#allocation2 + $0x292] sm:$0xff]
    %v1515 = vld [vmem:[#allocation2 + $0x2a2] sm:$0xff]
    %v1516 = vld [vmem:[#allocation2 + $0x2aa] sm:$0xff]
    %v1517 = vld [vmem:[#allocation2 + $0x2ba] sm:$0xff]
    %v1518 = vld [vmem:[#allocation2 + $0x2c2] sm:$0xff]
    %v1519 = vld [vmem:[#allocation2 + $0x2d2] sm:$0xff]
    %v1520 = vld [vmem:[#allocation2 + $0x2da] sm:$0xff]
    %v1521 = vld [vmem:[#allocation2 + $0x2ea] sm:$0xff]
    %v1522 = vld [vmem:[#allocation2 + $0x2f2] sm:$0xff]
    %v1523 = vld [vmem:[#allocation2 + $0x302] sm:$0xff]
    %v1524 = vld [vmem:[#allocation2 + $0x30a] sm:$0xff]
    %v1525 = vld [vmem:[#allocation2 + $0x31a] sm:$0xff]
    %v1526 = vld [vmem:[#allocation2 + $0x322] sm:$0xff]
    %1527 = vst [vmem:[#allocation3 + $0x10] sm:$0xff] %v1463
    %1528 = vst [vmem:[#allocation3 + $0x58] sm:$0xff] %v1464
    %1529 = vst [vmem:[#allocation3 + $0xa0] sm:$0xff] %v1465
    %1530 = vst [vmem:[#allocation3 + $0xe8] sm:$0xff] %v1466
    %1531 = vst [vmem:[#allocation3 + $0x130] sm:$0xff] %v1467
    %1532 = vst [vmem:[#allocation3 + $0x178] sm:$0xff] %v1468
    %1533 = vst [vmem:[#allocation3 + $0x1c0] sm:$0xff] %v1469
    %1534 = vst [vmem:[#allocation3 + $0x208] sm:$0xff] %v1470
    %1535 = vst [vmem:[#allocation3 + $0x250] sm:$0xff] %v1471
    %1536 = vst [vmem:[#allocation3 + $0x298] sm:$0xff] %v1472
    %1537 = vst [vmem:[#allocation3 + $0x2e0] sm:$0xff] %v1473
    %1538 = vst [vmem:[#allocation3 + $0x328] sm:$0xff] %v1474
    %1539 = vst [vmem:[#allocation3 + $0x370] sm:$0xff] %v1475
    %1540 = vst [vmem:[#allocation3 + $0x3b8] sm:$0xff] %v1476
    %1541 = vst [vmem:[#allocation3 + $0x400] sm:$0xff] %v1477
    %1542 = vst [vmem:[#allocation3 + $0x448] sm:$0xff] %v1478
    %1543 = vst [vmem:[#allocation3 + $0x490] sm:$0xff] %v1479
    %1544 = vst [vmem:[#allocation3 + $0x4d8] sm:$0xff] %v1480
    %1545 = vst [vmem:[#allocation3 + $0x520] sm:$0xff] %v1481
    %1546 = vst [vmem:[#allocation3 + $0x568] sm:$0xff] %v1482
    %1547 = vst [vmem:[#allocation3 + $0x5b0] sm:$0xff] %v1483
    %1548 = vst [vmem:[#allocation3 + $0x5f8] sm:$0xff] %v1484
    %1549 = vst [vmem:[#allocation3 + $0x640] sm:$0xff] %v1485
    %1550 = vst [vmem:[#allocation3 + $0x688] sm:$0xff] %v1486
    %1551 = vst [vmem:[#allocation3 + $0x6d0] sm:$0xff] %v1487
    %1552 = vst [vmem:[#allocation3 + $0x718] sm:$0xff] %v1488
    %1553 = vst [vmem:[#allocation3 + $0x760] sm:$0xff] %v1489
    %1554 = vst [vmem:[#allocation3 + $0x7a8] sm:$0xff] %v1490
    %1555 = vst [vmem:[#allocation3 + $0x7f0] sm:$0xff] %v1491
    %1556 = vst [vmem:[#allocation3 + $0x838] sm:$0xff] %v1492
    %1557 = vst [vmem:[#allocation3 + $0x880] sm:$0xff] %v1493
    %1558 = vst [vmem:[#allocation3 + $0x8c8] sm:$0xff] %v1494
    %1559 = vst [vmem:[#allocation3 + $0x910] sm:$0xff] %v1495
    %1560 = vst [vmem:[#allocation3 + $0x958] sm:$0xff] %v1496
    %1561 = vst [vmem:[#allocation3 + $0x9a0] sm:$0xff] %v1497
    %1562 = vst [vmem:[#allocation3 + $0x9e8] sm:$0xff] %v1498
    %1563 = vst [vmem:[#allocation3 + $0xa30] sm:$0xff] %v1499
    %1564 = vst [vmem:[#allocation3 + $0xa78] sm:$0xff] %v1500
    %1565 = vst [vmem:[#allocation3 + $0xac0] sm:$0xff] %v1501
    %1566 = vst [vmem:[#allocation3 + $0xb08] sm:$0xff] %v1502
    %1567 = vst [vmem:[#allocation3 + $0xb50] sm:$0xff] %v1503
    %1568 = vst [vmem:[#allocation3 + $0xb98] sm:$0xff] %v1504
    %1569 = vst [vmem:[#allocation3 + $0xbe0] sm:$0xff] %v1505
    %1570 = vst [vmem:[#allocation3 + $0xc28] sm:$0xff] %v1506
    %1571 = vst [vmem:[#allocation3 + $0xc70] sm:$0xff] %v1507
    %1572 = vst [vmem:[#allocation3 + $0xcb8] sm:$0xff] %v1508
    %1573 = vst [vmem:[#allocation3 + $0xd00] sm:$0xff] %v1509
    %1574 = vst [vmem:[#allocation3 + $0xd48] sm:$0xff] %v1510
    %1575 = vst [vmem:[#allocation3 + $0xd90] sm:$0xff] %v1511
    %1576 = vst [vmem:[#allocation3 + $0xdd8] sm:$0xff] %v1512
    %1577 = vst [vmem:[#allocation3 + $0xe20] sm:$0xff] %v1513
    %1578 = vst [vmem:[#allocation3 + $0xe68] sm:$0xff] %v1514
    %1579 = vst [vmem:[#allocation3 + $0xeb0] sm:$0xff] %v1515
    %1580 = vst [vmem:[#allocation3 + $0xef8] sm:$0xff] %v1516
    %1581 = vst [vmem:[#allocation3 + $0xf40] sm:$0xff] %v1517
    %1582 = vst [vmem:[#allocation3 + $0xf88] sm:$0xff] %v1518
    %1583 = vst [vmem:[#allocation3 + $0xfd0] sm:$0xff] %v1519
    %1584 = vst [vmem:[#allocation3 + $0x1018] sm:$0xff] %v1520
    %1585 = vst [vmem:[#allocation3 + $0x1060] sm:$0xff] %v1521
    %1586 = vst [vmem:[#allocation3 + $0x10a8] sm:$0xff] %v1522
    %1587 = vst [vmem:[#allocation3 + $0x10f0] sm:$0xff] %v1523
    %1588 = vst [vmem:[#allocation3 + $0x1138] sm:$0xff] %v1524
    %1589 = vst [vmem:[#allocation3 + $0x1180] sm:$0xff] %v1525
    %1590 = vst [vmem:[#allocation3 + $0x11c8] sm:$0xff] %v1526
    %v1591 = vld [vmem:[%s1078] sm:$0xff]
    %v1592 = vld [vmem:[%s1078 + $0x8] sm:$0xff]
    %v1593 = vld [vmem:[%s1078 + $0x18] sm:$0xff]
    %v1594 = vld [vmem:[%s1078 + $0x20] sm:$0xff]
    %v1595 = vld [vmem:[%s1078 + $0x30] sm:$0xff]
    %v1596 = vld [vmem:[%s1078 + $0x38] sm:$0xff]
    %v1597 = vld [vmem:[%s1078 + $0x48] sm:$0xff]
    %v1598 = vld [vmem:[%s1078 + $0x50] sm:$0xff]
    %v1599 = vld [vmem:[%s1078 + $0x60] sm:$0xff]
    %v1600 = vld [vmem:[%s1078 + $0x68] sm:$0xff]
    %v1601 = vld [vmem:[%s1078 + $0x78] sm:$0xff]
    %v1602 = vld [vmem:[%s1078 + $0x80] sm:$0xff]
    %v1603 = vld [vmem:[%s1078 + $0x90] sm:$0xff]
    %v1604 = vld [vmem:[%s1078 + $0x98] sm:$0xff]
    %v1605 = vld [vmem:[%s1078 + $0xa8] sm:$0xff]
    %v1606 = vld [vmem:[%s1078 + $0xb0] sm:$0xff]
    %v1607 = vld [vmem:[%s1078 + $0xc0] sm:$0xff]
    %v1608 = vld [vmem:[%s1078 + $0xc8] sm:$0xff]
    %v1609 = vld [vmem:[%s1078 + $0xd8] sm:$0xff]
    %v1610 = vld [vmem:[%s1078 + $0xe0] sm:$0xff]
    %v1611 = vld [vmem:[%s1078 + $0xf0] sm:$0xff]
    %v1612 = vld [vmem:[%s1078 + $0xf8] sm:$0xff]
    %v1613 = vld [vmem:[%s1078 + $0x108] sm:$0xff]
    %v1614 = vld [vmem:[%s1078 + $0x110] sm:$0xff]
    %v1615 = vld [vmem:[%s1078 + $0x120] sm:$0xff]
    %v1616 = vld [vmem:[%s1078 + $0x128] sm:$0xff]
    %v1617 = vld [vmem:[%s1078 + $0x138] sm:$0xff]
    %v1618 = vld [vmem:[%s1078 + $0x140] sm:$0xff]
    %v1619 = vld [vmem:[%s1078 + $0x150] sm:$0xff]
    %v1620 = vld [vmem:[%s1078 + $0x158] sm:$0xff]
    %v1621 = vld [vmem:[%s1078 + $0x168] sm:$0xff]
    %v1622 = vld [vmem:[%s1078 + $0x170] sm:$0xff]
    %v1623 = vld [vmem:[%s1078 + $0x1b0] sm:$0xff]
    %v1624 = vld [vmem:[%s1078 + $0x1b8] sm:$0xff]
    %v1625 = vld [vmem:[%s1078 + $0x1c8] sm:$0xff]
    %v1626 = vld [vmem:[%s1078 + $0x1d0] sm:$0xff]
    %v1627 = vld [vmem:[%s1078 + $0x1e0] sm:$0xff]
    %v1628 = vld [vmem:[%s1078 + $0x1e8] sm:$0xff]
    %v1629 = vld [vmem:[%s1078 + $0x1f8] sm:$0xff]
    %v1630 = vld [vmem:[%s1078 + $0x200] sm:$0xff]
    %v1631 = vld [vmem:[%s1078 + $0x210] sm:$0xff]
    %v1632 = vld [vmem:[%s1078 + $0x218] sm:$0xff]
    %v1633 = vld [vmem:[%s1078 + $0x228] sm:$0xff]
    %v1634 = vld [vmem:[%s1078 + $0x230] sm:$0xff]
    %v1635 = vld [vmem:[%s1078 + $0x240] sm:$0xff]
    %v1636 = vld [vmem:[%s1078 + $0x248] sm:$0xff]
    %v1637 = vld [vmem:[%s1078 + $0x258] sm:$0xff]
    %v1638 = vld [vmem:[%s1078 + $0x260] sm:$0xff]
    %v1639 = vld [vmem:[%s1078 + $0x270] sm:$0xff]
    %v1640 = vld [vmem:[%s1078 + $0x278] sm:$0xff]
    %v1641 = vld [vmem:[%s1078 + $0x288] sm:$0xff]
    %v1642 = vld [vmem:[%s1078 + $0x290] sm:$0xff]
    %v1643 = vld [vmem:[%s1078 + $0x2a0] sm:$0xff]
    %v1644 = vld [vmem:[%s1078 + $0x2a8] sm:$0xff]
    %v1645 = vld [vmem:[%s1078 + $0x2b8] sm:$0xff]
    %v1646 = vld [vmem:[%s1078 + $0x2c0] sm:$0xff]
    %v1647 = vld [vmem:[%s1078 + $0x2d0] sm:$0xff]
    %v1648 = vld [vmem:[%s1078 + $0x2d8] sm:$0xff]
    %v1649 = vld [vmem:[%s1078 + $0x2e8] sm:$0xff]
    %v1650 = vld [vmem:[%s1078 + $0x2f0] sm:$0xff]
    %v1651 = vld [vmem:[%s1078 + $0x300] sm:$0xff]
    %v1652 = vld [vmem:[%s1078 + $0x308] sm:$0xff]
    %v1653 = vld [vmem:[%s1078 + $0x318] sm:$0xff]
    %v1654 = vld [vmem:[%s1078 + $0x320] sm:$0xff]
    %1655 = vst [vmem:[#allocation3 + $0x18] sm:$0xff] %v1591
    %1656 = vst [vmem:[#allocation3 + $0x60] sm:$0xff] %v1592
    %1657 = vst [vmem:[#allocation3 + $0xa8] sm:$0xff] %v1593
    %1658 = vst [vmem:[#allocation3 + $0xf0] sm:$0xff] %v1594
    %1659 = vst [vmem:[#allocation3 + $0x138] sm:$0xff] %v1595
    %1660 = vst [vmem:[#allocation3 + $0x180] sm:$0xff] %v1596
    %1661 = vst [vmem:[#allocation3 + $0x1c8] sm:$0xff] %v1597
    %1662 = vst [vmem:[#allocation3 + $0x210] sm:$0xff] %v1598
    %1663 = vst [vmem:[#allocation3 + $0x258] sm:$0xff] %v1599
    %1664 = vst [vmem:[#allocation3 + $0x2a0] sm:$0xff] %v1600
    %1665 = vst [vmem:[#allocation3 + $0x2e8] sm:$0xff] %v1601
    %1666 = vst [vmem:[#allocation3 + $0x330] sm:$0xff] %v1602
    %1667 = vst [vmem:[#allocation3 + $0x378] sm:$0xff] %v1603
    %1668 = vst [vmem:[#allocation3 + $0x3c0] sm:$0xff] %v1604
    %1669 = vst [vmem:[#allocation3 + $0x408] sm:$0xff] %v1605
    %1670 = vst [vmem:[#allocation3 + $0x450] sm:$0xff] %v1606
    %1671 = vst [vmem:[#allocation3 + $0x498] sm:$0xff] %v1607
    %1672 = vst [vmem:[#allocation3 + $0x4e0] sm:$0xff] %v1608
    %1673 = vst [vmem:[#allocation3 + $0x528] sm:$0xff] %v1609
    %1674 = vst [vmem:[#allocation3 + $0x570] sm:$0xff] %v1610
    %1675 = vst [vmem:[#allocation3 + $0x5b8] sm:$0xff] %v1611
    %1676 = vst [vmem:[#allocation3 + $0x600] sm:$0xff] %v1612
    %1677 = vst [vmem:[#allocation3 + $0x648] sm:$0xff] %v1613
    %1678 = vst [vmem:[#allocation3 + $0x690] sm:$0xff] %v1614
    %1679 = vst [vmem:[#allocation3 + $0x6d8] sm:$0xff] %v1615
    %1680 = vst [vmem:[#allocation3 + $0x720] sm:$0xff] %v1616
    %1681 = vst [vmem:[#allocation3 + $0x768] sm:$0xff] %v1617
    %1682 = vst [vmem:[#allocation3 + $0x7b0] sm:$0xff] %v1618
    %1683 = vst [vmem:[#allocation3 + $0x7f8] sm:$0xff] %v1619
    %1684 = vst [vmem:[#allocation3 + $0x840] sm:$0xff] %v1620
    %1685 = vst [vmem:[#allocation3 + $0x888] sm:$0xff] %v1621
    %1686 = vst [vmem:[#allocation3 + $0x8d0] sm:$0xff] %v1622
    %1687 = vst [vmem:[#allocation3 + $0x918] sm:$0xff] %v1623
    %1688 = vst [vmem:[#allocation3 + $0x960] sm:$0xff] %v1624
    %1689 = vst [vmem:[#allocation3 + $0x9a8] sm:$0xff] %v1625
    %1690 = vst [vmem:[#allocation3 + $0x9f0] sm:$0xff] %v1626
    %1691 = vst [vmem:[#allocation3 + $0xa38] sm:$0xff] %v1627
    %1692 = vst [vmem:[#allocation3 + $0xa80] sm:$0xff] %v1628
    %1693 = vst [vmem:[#allocation3 + $0xac8] sm:$0xff] %v1629
    %1694 = vst [vmem:[#allocation3 + $0xb10] sm:$0xff] %v1630
    %1695 = vst [vmem:[#allocation3 + $0xb58] sm:$0xff] %v1631
    %1696 = vst [vmem:[#allocation3 + $0xba0] sm:$0xff] %v1632
    %1697 = vst [vmem:[#allocation3 + $0xbe8] sm:$0xff] %v1633
    %1698 = vst [vmem:[#allocation3 + $0xc30] sm:$0xff] %v1634
    %1699 = vst [vmem:[#allocation3 + $0xc78] sm:$0xff] %v1635
    %1700 = vst [vmem:[#allocation3 + $0xcc0] sm:$0xff] %v1636
    %1701 = vst [vmem:[#allocation3 + $0xd08] sm:$0xff] %v1637
    %1702 = vst [vmem:[#allocation3 + $0xd50] sm:$0xff] %v1638
    %1703 = vst [vmem:[#allocation3 + $0xd98] sm:$0xff] %v1639
    %1704 = vst [vmem:[#allocation3 + $0xde0] sm:$0xff] %v1640
    %1705 = vst [vmem:[#allocation3 + $0xe28] sm:$0xff] %v1641
    %1706 = vst [vmem:[#allocation3 + $0xe70] sm:$0xff] %v1642
    %1707 = vst [vmem:[#allocation3 + $0xeb8] sm:$0xff] %v1643
    %1708 = vst [vmem:[#allocation3 + $0xf00] sm:$0xff] %v1644
    %1709 = vst [vmem:[#allocation3 + $0xf48] sm:$0xff] %v1645
    %1710 = vst [vmem:[#allocation3 + $0xf90] sm:$0xff] %v1646
    %1711 = vst [vmem:[#allocation3 + $0xfd8] sm:$0xff] %v1647
    %1712 = vst [vmem:[#allocation3 + $0x1020] sm:$0xff] %v1648
    %1713 = vst [vmem:[#allocation3 + $0x1068] sm:$0xff] %v1649
    %1714 = vst [vmem:[#allocation3 + $0x10b0] sm:$0xff] %v1650
    %1715 = vst [vmem:[#allocation3 + $0x10f8] sm:$0xff] %v1651
    %1716 = vst [vmem:[#allocation3 + $0x1140] sm:$0xff] %v1652
    %1717 = vst [vmem:[#allocation3 + $0x1188] sm:$0xff] %v1653
    %1718 = vst [vmem:[#allocation3 + $0x11d0] sm:$0xff] %v1654
    %v1719 = vld [vmem:[%s1078 + $0x1] sm:$0xff]
    %v1720 = vld [vmem:[%s1078 + $0x9] sm:$0xff]
    %v1721 = vld [vmem:[%s1078 + $0x19] sm:$0xff]
    %v1722 = vld [vmem:[%s1078 + $0x21] sm:$0xff]
    %v1723 = vld [vmem:[%s1078 + $0x31] sm:$0xff]
    %v1724 = vld [vmem:[%s1078 + $0x39] sm:$0xff]
    %v1725 = vld [vmem:[%s1078 + $0x49] sm:$0xff]
    %v1726 = vld [vmem:[%s1078 + $0x51] sm:$0xff]
    %v1727 = vld [vmem:[%s1078 + $0x61] sm:$0xff]
    %v1728 = vld [vmem:[%s1078 + $0x69] sm:$0xff]
    %v1729 = vld [vmem:[%s1078 + $0x79] sm:$0xff]
    %v1730 = vld [vmem:[%s1078 + $0x81] sm:$0xff]
    %v1731 = vld [vmem:[%s1078 + $0x91] sm:$0xff]
    %v1732 = vld [vmem:[%s1078 + $0x99] sm:$0xff]
    %v1733 = vld [vmem:[%s1078 + $0xa9] sm:$0xff]
    %v1734 = vld [vmem:[%s1078 + $0xb1] sm:$0xff]
    %v1735 = vld [vmem:[%s1078 + $0xc1] sm:$0xff]
    %v1736 = vld [vmem:[%s1078 + $0xc9] sm:$0xff]
    %v1737 = vld [vmem:[%s1078 + $0xd9] sm:$0xff]
    %v1738 = vld [vmem:[%s1078 + $0xe1] sm:$0xff]
    %v1739 = vld [vmem:[%s1078 + $0xf1] sm:$0xff]
    %v1740 = vld [vmem:[%s1078 + $0xf9] sm:$0xff]
    %v1741 = vld [vmem:[%s1078 + $0x109] sm:$0xff]
    %v1742 = vld [vmem:[%s1078 + $0x111] sm:$0xff]
    %v1743 = vld [vmem:[%s1078 + $0x121] sm:$0xff]
    %v1744 = vld [vmem:[%s1078 + $0x129] sm:$0xff]
    %v1745 = vld [vmem:[%s1078 + $0x139] sm:$0xff]
    %v1746 = vld [vmem:[%s1078 + $0x141] sm:$0xff]
    %v1747 = vld [vmem:[%s1078 + $0x151] sm:$0xff]
    %v1748 = vld [vmem:[%s1078 + $0x159] sm:$0xff]
    %v1749 = vld [vmem:[%s1078 + $0x169] sm:$0xff]
    %v1750 = vld [vmem:[%s1078 + $0x171] sm:$0xff]
    %v1751 = vld [vmem:[%s1078 + $0x1b1] sm:$0xff]
    %v1752 = vld [vmem:[%s1078 + $0x1b9] sm:$0xff]
    %v1753 = vld [vmem:[%s1078 + $0x1c9] sm:$0xff]
    %v1754 = vld [vmem:[%s1078 + $0x1d1] sm:$0xff]
    %v1755 = vld [vmem:[%s1078 + $0x1e1] sm:$0xff]
    %v1756 = vld [vmem:[%s1078 + $0x1e9] sm:$0xff]
    %v1757 = vld [vmem:[%s1078 + $0x1f9] sm:$0xff]
    %v1758 = vld [vmem:[%s1078 + $0x201] sm:$0xff]
    %v1759 = vld [vmem:[%s1078 + $0x211] sm:$0xff]
    %v1760 = vld [vmem:[%s1078 + $0x219] sm:$0xff]
    %v1761 = vld [vmem:[%s1078 + $0x229] sm:$0xff]
    %v1762 = vld [vmem:[%s1078 + $0x231] sm:$0xff]
    %v1763 = vld [vmem:[%s1078 + $0x241] sm:$0xff]
    %v1764 = vld [vmem:[%s1078 + $0x249] sm:$0xff]
    %v1765 = vld [vmem:[%s1078 + $0x259] sm:$0xff]
    %v1766 = vld [vmem:[%s1078 + $0x261] sm:$0xff]
    %v1767 = vld [vmem:[%s1078 + $0x271] sm:$0xff]
    %v1768 = vld [vmem:[%s1078 + $0x279] sm:$0xff]
    %v1769 = vld [vmem:[%s1078 + $0x289] sm:$0xff]
    %v1770 = vld [vmem:[%s1078 + $0x291] sm:$0xff]
    %v1771 = vld [vmem:[%s1078 + $0x2a1] sm:$0xff]
    %v1772 = vld [vmem:[%s1078 + $0x2a9] sm:$0xff]
    %v1773 = vld [vmem:[%s1078 + $0x2b9] sm:$0xff]
    %v1774 = vld [vmem:[%s1078 + $0x2c1] sm:$0xff]
    %v1775 = vld [vmem:[%s1078 + $0x2d1] sm:$0xff]
    %v1776 = vld [vmem:[%s1078 + $0x2d9] sm:$0xff]
    %v1777 = vld [vmem:[%s1078 + $0x2e9] sm:$0xff]
    %v1778 = vld [vmem:[%s1078 + $0x2f1] sm:$0xff]
    %v1779 = vld [vmem:[%s1078 + $0x301] sm:$0xff]
    %v1780 = vld [vmem:[%s1078 + $0x309] sm:$0xff]
    %v1781 = vld [vmem:[%s1078 + $0x319] sm:$0xff]
    %v1782 = vld [vmem:[%s1078 + $0x321] sm:$0xff]
    %1783 = vst [vmem:[#allocation3 + $0x20] sm:$0xff] %v1719
    %1784 = vst [vmem:[#allocation3 + $0x68] sm:$0xff] %v1720
    %1785 = vst [vmem:[#allocation3 + $0xb0] sm:$0xff] %v1721
    %1786 = vst [vmem:[#allocation3 + $0xf8] sm:$0xff] %v1722
    %1787 = vst [vmem:[#allocation3 + $0x140] sm:$0xff] %v1723
    %1788 = vst [vmem:[#allocation3 + $0x188] sm:$0xff] %v1724
    %1789 = vst [vmem:[#allocation3 + $0x1d0] sm:$0xff] %v1725
    %1790 = vst [vmem:[#allocation3 + $0x218] sm:$0xff] %v1726
    %1791 = vst [vmem:[#allocation3 + $0x260] sm:$0xff] %v1727
    %1792 = vst [vmem:[#allocation3 + $0x2a8] sm:$0xff] %v1728
    %1793 = vst [vmem:[#allocation3 + $0x2f0] sm:$0xff] %v1729
    %1794 = vst [vmem:[#allocation3 + $0x338] sm:$0xff] %v1730
    %1795 = vst [vmem:[#allocation3 + $0x380] sm:$0xff] %v1731
    %1796 = vst [vmem:[#allocation3 + $0x3c8] sm:$0xff] %v1732
    %1797 = vst [vmem:[#allocation3 + $0x410] sm:$0xff] %v1733
    %1798 = vst [vmem:[#allocation3 + $0x458] sm:$0xff] %v1734
    %1799 = vst [vmem:[#allocation3 + $0x4a0] sm:$0xff] %v1735
    %1800 = vst [vmem:[#allocation3 + $0x4e8] sm:$0xff] %v1736
    %1801 = vst [vmem:[#allocation3 + $0x530] sm:$0xff] %v1737
    %1802 = vst [vmem:[#allocation3 + $0x578] sm:$0xff] %v1738
    %1803 = vst [vmem:[#allocation3 + $0x5c0] sm:$0xff] %v1739
    %1804 = vst [vmem:[#allocation3 + $0x608] sm:$0xff] %v1740
    %1805 = vst [vmem:[#allocation3 + $0x650] sm:$0xff] %v1741
    %1806 = vst [vmem:[#allocation3 + $0x698] sm:$0xff] %v1742
    %1807 = vst [vmem:[#allocation3 + $0x6e0] sm:$0xff] %v1743
    %1808 = vst [vmem:[#allocation3 + $0x728] sm:$0xff] %v1744
    %1809 = vst [vmem:[#allocation3 + $0x770] sm:$0xff] %v1745
    %1810 = vst [vmem:[#allocation3 + $0x7b8] sm:$0xff] %v1746
    %1811 = vst [vmem:[#allocation3 + $0x800] sm:$0xff] %v1747
    %1812 = vst [vmem:[#allocation3 + $0x848] sm:$0xff] %v1748
    %1813 = vst [vmem:[#allocation3 + $0x890] sm:$0xff] %v1749
    %1814 = vst [vmem:[#allocation3 + $0x8d8] sm:$0xff] %v1750
    %1815 = vst [vmem:[#allocation3 + $0x920] sm:$0xff] %v1751
    %1816 = vst [vmem:[#allocation3 + $0x968] sm:$0xff] %v1752
    %1817 = vst [vmem:[#allocation3 + $0x9b0] sm:$0xff] %v1753
    %1818 = vst [vmem:[#allocation3 + $0x9f8] sm:$0xff] %v1754
    %1819 = vst [vmem:[#allocation3 + $0xa40] sm:$0xff] %v1755
    %1820 = vst [vmem:[#allocation3 + $0xa88] sm:$0xff] %v1756
    %1821 = vst [vmem:[#allocation3 + $0xad0] sm:$0xff] %v1757
    %1822 = vst [vmem:[#allocation3 + $0xb18] sm:$0xff] %v1758
    %1823 = vst [vmem:[#allocation3 + $0xb60] sm:$0xff] %v1759
    %1824 = vst [vmem:[#allocation3 + $0xba8] sm:$0xff] %v1760
    %1825 = vst [vmem:[#allocation3 + $0xbf0] sm:$0xff] %v1761
    %1826 = vst [vmem:[#allocation3 + $0xc38] sm:$0xff] %v1762
    %1827 = vst [vmem:[#allocation3 + $0xc80] sm:$0xff] %v1763
    %1828 = vst [vmem:[#allocation3 + $0xcc8] sm:$0xff] %v1764
    %1829 = vst [vmem:[#allocation3 + $0xd10] sm:$0xff] %v1765
    %1830 = vst [vmem:[#allocation3 + $0xd58] sm:$0xff] %v1766
    %1831 = vst [vmem:[#allocation3 + $0xda0] sm:$0xff] %v1767
    %1832 = vst [vmem:[#allocation3 + $0xde8] sm:$0xff] %v1768
    %1833 = vst [vmem:[#allocation3 + $0xe30] sm:$0xff] %v1769
    %1834 = vst [vmem:[#allocation3 + $0xe78] sm:$0xff] %v1770
    %1835 = vst [vmem:[#allocation3 + $0xec0] sm:$0xff] %v1771
    %1836 = vst [vmem:[#allocation3 + $0xf08] sm:$0xff] %v1772
    %1837 = vst [vmem:[#allocation3 + $0xf50] sm:$0xff] %v1773
    %1838 = vst [vmem:[#allocation3 + $0xf98] sm:$0xff] %v1774
    %1839 = vst [vmem:[#allocation3 + $0xfe0] sm:$0xff] %v1775
    %1840 = vst [vmem:[#allocation3 + $0x1028] sm:$0xff] %v1776
    %1841 = vst [vmem:[#allocation3 + $0x1070] sm:$0xff] %v1777
    %1842 = vst [vmem:[#allocation3 + $0x10b8] sm:$0xff] %v1778
    %1843 = vst [vmem:[#allocation3 + $0x1100] sm:$0xff] %v1779
    %1844 = vst [vmem:[#allocation3 + $0x1148] sm:$0xff] %v1780
    %1845 = vst [vmem:[#allocation3 + $0x1190] sm:$0xff] %v1781
    %1846 = vst [vmem:[#allocation3 + $0x11d8] sm:$0xff] %v1782
    %v1847 = vld [vmem:[%s1078 + $0x2] sm:$0xff]
    %v1848 = vld [vmem:[%s1078 + $0xa] sm:$0xff]
    %v1849 = vld [vmem:[%s1078 + $0x1a] sm:$0xff]
    %v1850 = vld [vmem:[%s1078 + $0x22] sm:$0xff]
    %v1851 = vld [vmem:[%s1078 + $0x32] sm:$0xff]
    %v1852 = vld [vmem:[%s1078 + $0x3a] sm:$0xff]
    %v1853 = vld [vmem:[%s1078 + $0x4a] sm:$0xff]
    %v1854 = vld [vmem:[%s1078 + $0x52] sm:$0xff]
    %v1855 = vld [vmem:[%s1078 + $0x62] sm:$0xff]
    %v1856 = vld [vmem:[%s1078 + $0x6a] sm:$0xff]
    %v1857 = vld [vmem:[%s1078 + $0x7a] sm:$0xff]
    %v1858 = vld [vmem:[%s1078 + $0x82] sm:$0xff]
    %v1859 = vld [vmem:[%s1078 + $0x92] sm:$0xff]
    %v1860 = vld [vmem:[%s1078 + $0x9a] sm:$0xff]
    %v1861 = vld [vmem:[%s1078 + $0xaa] sm:$0xff]
    %v1862 = vld [vmem:[%s1078 + $0xb2] sm:$0xff]
    %v1863 = vld [vmem:[%s1078 + $0xc2] sm:$0xff]
    %v1864 = vld [vmem:[%s1078 + $0xca] sm:$0xff]
    %v1865 = vld [vmem:[%s1078 + $0xda] sm:$0xff]
    %v1866 = vld [vmem:[%s1078 + $0xe2] sm:$0xff]
    %v1867 = vld [vmem:[%s1078 + $0xf2] sm:$0xff]
    %v1868 = vld [vmem:[%s1078 + $0xfa] sm:$0xff]
    %v1869 = vld [vmem:[%s1078 + $0x10a] sm:$0xff]
    %v1870 = vld [vmem:[%s1078 + $0x112] sm:$0xff]
    %v1871 = vld [vmem:[%s1078 + $0x122] sm:$0xff]
    %v1872 = vld [vmem:[%s1078 + $0x12a] sm:$0xff]
    %v1873 = vld [vmem:[%s1078 + $0x13a] sm:$0xff]
    %v1874 = vld [vmem:[%s1078 + $0x142] sm:$0xff]
    %v1875 = vld [vmem:[%s1078 + $0x152] sm:$0xff]
    %v1876 = vld [vmem:[%s1078 + $0x15a] sm:$0xff]
    %v1877 = vld [vmem:[%s1078 + $0x16a] sm:$0xff]
    %v1878 = vld [vmem:[%s1078 + $0x172] sm:$0xff]
    %v1879 = vld [vmem:[%s1078 + $0x1b2] sm:$0xff]
    %v1880 = vld [vmem:[%s1078 + $0x1ba] sm:$0xff]
    %v1881 = vld [vmem:[%s1078 + $0x1ca] sm:$0xff]
    %v1882 = vld [vmem:[%s1078 + $0x1d2] sm:$0xff]
    %v1883 = vld [vmem:[%s1078 + $0x1e2] sm:$0xff]
    %v1884 = vld [vmem:[%s1078 + $0x1ea] sm:$0xff]
    %v1885 = vld [vmem:[%s1078 + $0x1fa] sm:$0xff]
    %v1886 = vld [vmem:[%s1078 + $0x202] sm:$0xff]
    %v1887 = vld [vmem:[%s1078 + $0x212] sm:$0xff]
    %v1888 = vld [vmem:[%s1078 + $0x21a] sm:$0xff]
    %v1889 = vld [vmem:[%s1078 + $0x22a] sm:$0xff]
    %v1890 = vld [vmem:[%s1078 + $0x232] sm:$0xff]
    %v1891 = vld [vmem:[%s1078 + $0x242] sm:$0xff]
    %v1892 = vld [vmem:[%s1078 + $0x24a] sm:$0xff]
    %v1893 = vld [vmem:[%s1078 + $0x25a] sm:$0xff]
    %v1894 = vld [vmem:[%s1078 + $0x262] sm:$0xff]
    %v1895 = vld [vmem:[%s1078 + $0x272] sm:$0xff]
    %v1896 = vld [vmem:[%s1078 + $0x27a] sm:$0xff]
    %v1897 = vld [vmem:[%s1078 + $0x28a] sm:$0xff]
    %v1898 = vld [vmem:[%s1078 + $0x292] sm:$0xff]
    %v1899 = vld [vmem:[%s1078 + $0x2a2] sm:$0xff]
    %v1900 = vld [vmem:[%s1078 + $0x2aa] sm:$0xff]
    %v1901 = vld [vmem:[%s1078 + $0x2ba] sm:$0xff]
    %v1902 = vld [vmem:[%s1078 + $0x2c2] sm:$0xff]
    %v1903 = vld [vmem:[%s1078 + $0x2d2] sm:$0xff]
    %v1904 = vld [vmem:[%s1078 + $0x2da] sm:$0xff]
    %v1905 = vld [vmem:[%s1078 + $0x2ea] sm:$0xff]
    %v1906 = vld [vmem:[%s1078 + $0x2f2] sm:$0xff]
    %v1907 = vld [vmem:[%s1078 + $0x302] sm:$0xff]
    %v1908 = vld [vmem:[%s1078 + $0x30a] sm:$0xff]
    %v1909 = vld [vmem:[%s1078 + $0x31a] sm:$0xff]
    %v1910 = vld [vmem:[%s1078 + $0x322] sm:$0xff]
    %1911 = vst [vmem:[#allocation3 + $0x28] sm:$0xff] %v1847
    %1912 = vst [vmem:[#allocation3 + $0x70] sm:$0xff] %v1848
    %1913 = vst [vmem:[#allocation3 + $0xb8] sm:$0xff] %v1849
    %1914 = vst [vmem:[#allocation3 + $0x100] sm:$0xff] %v1850
    %1915 = vst [vmem:[#allocation3 + $0x148] sm:$0xff] %v1851
    %1916 = vst [vmem:[#allocation3 + $0x190] sm:$0xff] %v1852
    %1917 = vst [vmem:[#allocation3 + $0x1d8] sm:$0xff] %v1853
    %1918 = vst [vmem:[#allocation3 + $0x220] sm:$0xff] %v1854
    %1919 = vst [vmem:[#allocation3 + $0x268] sm:$0xff] %v1855
    %1920 = vst [vmem:[#allocation3 + $0x2b0] sm:$0xff] %v1856
    %1921 = vst [vmem:[#allocation3 + $0x2f8] sm:$0xff] %v1857
    %1922 = vst [vmem:[#allocation3 + $0x340] sm:$0xff] %v1858
    %1923 = vst [vmem:[#allocation3 + $0x388] sm:$0xff] %v1859
    %1924 = vst [vmem:[#allocation3 + $0x3d0] sm:$0xff] %v1860
    %1925 = vst [vmem:[#allocation3 + $0x418] sm:$0xff] %v1861
    %1926 = vst [vmem:[#allocation3 + $0x460] sm:$0xff] %v1862
    %1927 = vst [vmem:[#allocation3 + $0x4a8] sm:$0xff] %v1863
    %1928 = vst [vmem:[#allocation3 + $0x4f0] sm:$0xff] %v1864
    %1929 = vst [vmem:[#allocation3 + $0x538] sm:$0xff] %v1865
    %1930 = vst [vmem:[#allocation3 + $0x580] sm:$0xff] %v1866
    %1931 = vst [vmem:[#allocation3 + $0x5c8] sm:$0xff] %v1867
    %1932 = vst [vmem:[#allocation3 + $0x610] sm:$0xff] %v1868
    %1933 = vst [vmem:[#allocation3 + $0x658] sm:$0xff] %v1869
    %1934 = vst [vmem:[#allocation3 + $0x6a0] sm:$0xff] %v1870
    %1935 = vst [vmem:[#allocation3 + $0x6e8] sm:$0xff] %v1871
    %1936 = vst [vmem:[#allocation3 + $0x730] sm:$0xff] %v1872
    %1937 = vst [vmem:[#allocation3 + $0x778] sm:$0xff] %v1873
    %1938 = vst [vmem:[#allocation3 + $0x7c0] sm:$0xff] %v1874
    %1939 = vst [vmem:[#allocation3 + $0x808] sm:$0xff] %v1875
    %1940 = vst [vmem:[#allocation3 + $0x850] sm:$0xff] %v1876
    %1941 = vst [vmem:[#allocation3 + $0x898] sm:$0xff] %v1877
    %1942 = vst [vmem:[#allocation3 + $0x8e0] sm:$0xff] %v1878
    %1943 = vst [vmem:[#allocation3 + $0x928] sm:$0xff] %v1879
    %1944 = vst [vmem:[#allocation3 + $0x970] sm:$0xff] %v1880
    %1945 = vst [vmem:[#allocation3 + $0x9b8] sm:$0xff] %v1881
    %1946 = vst [vmem:[#allocation3 + $0xa00] sm:$0xff] %v1882
    %1947 = vst [vmem:[#allocation3 + $0xa48] sm:$0xff] %v1883
    %1948 = vst [vmem:[#allocation3 + $0xa90] sm:$0xff] %v1884
    %1949 = vst [vmem:[#allocation3 + $0xad8] sm:$0xff] %v1885
    %1950 = vst [vmem:[#allocation3 + $0xb20] sm:$0xff] %v1886
    %1951 = vst [vmem:[#allocation3 + $0xb68] sm:$0xff] %v1887
    %1952 = vst [vmem:[#allocation3 + $0xbb0] sm:$0xff] %v1888
    %1953 = vst [vmem:[#allocation3 + $0xbf8] sm:$0xff] %v1889
    %1954 = vst [vmem:[#allocation3 + $0xc40] sm:$0xff] %v1890
    %1955 = vst [vmem:[#allocation3 + $0xc88] sm:$0xff] %v1891
    %1956 = vst [vmem:[#allocation3 + $0xcd0] sm:$0xff] %v1892
    %1957 = vst [vmem:[#allocation3 + $0xd18] sm:$0xff] %v1893
    %1958 = vst [vmem:[#allocation3 + $0xd60] sm:$0xff] %v1894
    %1959 = vst [vmem:[#allocation3 + $0xda8] sm:$0xff] %v1895
    %1960 = vst [vmem:[#allocation3 + $0xdf0] sm:$0xff] %v1896
    %1961 = vst [vmem:[#allocation3 + $0xe38] sm:$0xff] %v1897
    %1962 = vst [vmem:[#allocation3 + $0xe80] sm:$0xff] %v1898
    %1963 = vst [vmem:[#allocation3 + $0xec8] sm:$0xff] %v1899
    %1964 = vst [vmem:[#allocation3 + $0xf10] sm:$0xff] %v1900
    %1965 = vst [vmem:[#allocation3 + $0xf58] sm:$0xff] %v1901
    %1966 = vst [vmem:[#allocation3 + $0xfa0] sm:$0xff] %v1902
    %1967 = vst [vmem:[#allocation3 + $0xfe8] sm:$0xff] %v1903
    %1968 = vst [vmem:[#allocation3 + $0x1030] sm:$0xff] %v1904
    %1969 = vst [vmem:[#allocation3 + $0x1078] sm:$0xff] %v1905
    %1970 = vst [vmem:[#allocation3 + $0x10c0] sm:$0xff] %v1906
    %1971 = vst [vmem:[#allocation3 + $0x1108] sm:$0xff] %v1907
    %1972 = vst [vmem:[#allocation3 + $0x1150] sm:$0xff] %v1908
    %1973 = vst [vmem:[#allocation3 + $0x1198] sm:$0xff] %v1909
    %1974 = vst [vmem:[#allocation3 + $0x11e0] sm:$0xff] %v1910
    %s1975 = scalar_lea.vmem [#allocation2], 48
    %v1976 = vld [vmem:[%s1975] sm:$0xff]
    %v1977 = vld [vmem:[%s1975 + $0x8] sm:$0xff]
    %v1978 = vld [vmem:[%s1975 + $0x18] sm:$0xff]
    %v1979 = vld [vmem:[%s1975 + $0x20] sm:$0xff]
    %v1980 = vld [vmem:[%s1975 + $0x30] sm:$0xff]
    %v1981 = vld [vmem:[%s1975 + $0x38] sm:$0xff]
    %v1982 = vld [vmem:[%s1975 + $0x48] sm:$0xff]
    %v1983 = vld [vmem:[%s1975 + $0x50] sm:$0xff]
    %v1984 = vld [vmem:[%s1975 + $0x60] sm:$0xff]
    %v1985 = vld [vmem:[%s1975 + $0x68] sm:$0xff]
    %v1986 = vld [vmem:[%s1975 + $0x78] sm:$0xff]
    %v1987 = vld [vmem:[%s1975 + $0x80] sm:$0xff]
    %v1988 = vld [vmem:[%s1975 + $0x90] sm:$0xff]
    %v1989 = vld [vmem:[%s1975 + $0x98] sm:$0xff]
    %v1990 = vld [vmem:[%s1975 + $0xa8] sm:$0xff]
    %v1991 = vld [vmem:[%s1975 + $0xb0] sm:$0xff]
    %v1992 = vld [vmem:[%s1975 + $0xc0] sm:$0xff]
    %v1993 = vld [vmem:[%s1975 + $0xc8] sm:$0xff]
    %v1994 = vld [vmem:[%s1975 + $0xd8] sm:$0xff]
    %v1995 = vld [vmem:[%s1975 + $0xe0] sm:$0xff]
    %v1996 = vld [vmem:[%s1975 + $0xf0] sm:$0xff]
    %v1997 = vld [vmem:[%s1975 + $0xf8] sm:$0xff]
    %v1998 = vld [vmem:[%s1975 + $0x108] sm:$0xff]
    %v1999 = vld [vmem:[%s1975 + $0x110] sm:$0xff]
    %v2000 = vld [vmem:[%s1975 + $0x120] sm:$0xff]
    %v2001 = vld [vmem:[%s1975 + $0x128] sm:$0xff]
    %v2002 = vld [vmem:[%s1975 + $0x138] sm:$0xff]
    %v2003 = vld [vmem:[%s1975 + $0x140] sm:$0xff]
    %v2004 = vld [vmem:[%s1975 + $0x150] sm:$0xff]
    %v2005 = vld [vmem:[%s1975 + $0x158] sm:$0xff]
    %v2006 = vld [vmem:[%s1975 + $0x168] sm:$0xff]
    %v2007 = vld [vmem:[%s1975 + $0x170] sm:$0xff]
    %v2008 = vld [vmem:[%s1975 + $0x1b0] sm:$0xff]
    %v2009 = vld [vmem:[%s1975 + $0x1b8] sm:$0xff]
    %v2010 = vld [vmem:[%s1975 + $0x1c8] sm:$0xff]
    %v2011 = vld [vmem:[%s1975 + $0x1d0] sm:$0xff]
    %v2012 = vld [vmem:[%s1975 + $0x1e0] sm:$0xff]
    %v2013 = vld [vmem:[%s1975 + $0x1e8] sm:$0xff]
    %v2014 = vld [vmem:[%s1975 + $0x1f8] sm:$0xff]
    %v2015 = vld [vmem:[%s1975 + $0x200] sm:$0xff]
    %v2016 = vld [vmem:[%s1975 + $0x210] sm:$0xff]
    %v2017 = vld [vmem:[%s1975 + $0x218] sm:$0xff]
    %v2018 = vld [vmem:[%s1975 + $0x228] sm:$0xff]
    %v2019 = vld [vmem:[%s1975 + $0x230] sm:$0xff]
    %v2020 = vld [vmem:[%s1975 + $0x240] sm:$0xff]
    %v2021 = vld [vmem:[%s1975 + $0x248] sm:$0xff]
    %v2022 = vld [vmem:[%s1975 + $0x258] sm:$0xff]
    %v2023 = vld [vmem:[%s1975 + $0x260] sm:$0xff]
    %v2024 = vld [vmem:[%s1975 + $0x270] sm:$0xff]
    %v2025 = vld [vmem:[%s1975 + $0x278] sm:$0xff]
    %v2026 = vld [vmem:[%s1975 + $0x288] sm:$0xff]
    %v2027 = vld [vmem:[%s1975 + $0x290] sm:$0xff]
    %v2028 = vld [vmem:[%s1975 + $0x2a0] sm:$0xff]
    %v2029 = vld [vmem:[%s1975 + $0x2a8] sm:$0xff]
    %v2030 = vld [vmem:[%s1975 + $0x2b8] sm:$0xff]
    %v2031 = vld [vmem:[%s1975 + $0x2c0] sm:$0xff]
    %v2032 = vld [vmem:[%s1975 + $0x2d0] sm:$0xff]
    %v2033 = vld [vmem:[%s1975 + $0x2d8] sm:$0xff]
    %v2034 = vld [vmem:[%s1975 + $0x2e8] sm:$0xff]
    %v2035 = vld [vmem:[%s1975 + $0x2f0] sm:$0xff]
    %v2036 = vld [vmem:[%s1975 + $0x300] sm:$0xff]
    %v2037 = vld [vmem:[%s1975 + $0x308] sm:$0xff]
    %v2038 = vld [vmem:[%s1975 + $0x318] sm:$0xff]
    %v2039 = vld [vmem:[%s1975 + $0x320] sm:$0xff]
    %2040 = vst [vmem:[#allocation3 + $0x30] sm:$0xff] %v1976
    %2041 = vst [vmem:[#allocation3 + $0x78] sm:$0xff] %v1977
    %2042 = vst [vmem:[#allocation3 + $0xc0] sm:$0xff] %v1978
    %2043 = vst [vmem:[#allocation3 + $0x108] sm:$0xff] %v1979
    %2044 = vst [vmem:[#allocation3 + $0x150] sm:$0xff] %v1980
    %2045 = vst [vmem:[#allocation3 + $0x198] sm:$0xff] %v1981
    %2046 = vst [vmem:[#allocation3 + $0x1e0] sm:$0xff] %v1982
    %2047 = vst [vmem:[#allocation3 + $0x228] sm:$0xff] %v1983
    %2048 = vst [vmem:[#allocation3 + $0x270] sm:$0xff] %v1984
    %2049 = vst [vmem:[#allocation3 + $0x2b8] sm:$0xff] %v1985
    %2050 = vst [vmem:[#allocation3 + $0x300] sm:$0xff] %v1986
    %2051 = vst [vmem:[#allocation3 + $0x348] sm:$0xff] %v1987
    %2052 = vst [vmem:[#allocation3 + $0x390] sm:$0xff] %v1988
    %2053 = vst [vmem:[#allocation3 + $0x3d8] sm:$0xff] %v1989
    %2054 = vst [vmem:[#allocation3 + $0x420] sm:$0xff] %v1990
    %2055 = vst [vmem:[#allocation3 + $0x468] sm:$0xff] %v1991
    %2056 = vst [vmem:[#allocation3 + $0x4b0] sm:$0xff] %v1992
    %2057 = vst [vmem:[#allocation3 + $0x4f8] sm:$0xff] %v1993
    %2058 = vst [vmem:[#allocation3 + $0x540] sm:$0xff] %v1994
    %2059 = vst [vmem:[#allocation3 + $0x588] sm:$0xff] %v1995
    %2060 = vst [vmem:[#allocation3 + $0x5d0] sm:$0xff] %v1996
    %2061 = vst [vmem:[#allocation3 + $0x618] sm:$0xff] %v1997
    %2062 = vst [vmem:[#allocation3 + $0x660] sm:$0xff] %v1998
    %2063 = vst [vmem:[#allocation3 + $0x6a8] sm:$0xff] %v1999
    %2064 = vst [vmem:[#allocation3 + $0x6f0] sm:$0xff] %v2000
    %2065 = vst [vmem:[#allocation3 + $0x738] sm:$0xff] %v2001
    %2066 = vst [vmem:[#allocation3 + $0x780] sm:$0xff] %v2002
    %2067 = vst [vmem:[#allocation3 + $0x7c8] sm:$0xff] %v2003
    %2068 = vst [vmem:[#allocation3 + $0x810] sm:$0xff] %v2004
    %2069 = vst [vmem:[#allocation3 + $0x858] sm:$0xff] %v2005
    %2070 = vst [vmem:[#allocation3 + $0x8a0] sm:$0xff] %v2006
    %2071 = vst [vmem:[#allocation3 + $0x8e8] sm:$0xff] %v2007
    %2072 = vst [vmem:[#allocation3 + $0x930] sm:$0xff] %v2008
    %2073 = vst [vmem:[#allocation3 + $0x978] sm:$0xff] %v2009
    %2074 = vst [vmem:[#allocation3 + $0x9c0] sm:$0xff] %v2010
    %2075 = vst [vmem:[#allocation3 + $0xa08] sm:$0xff] %v2011
    %2076 = vst [vmem:[#allocation3 + $0xa50] sm:$0xff] %v2012
    %2077 = vst [vmem:[#allocation3 + $0xa98] sm:$0xff] %v2013
    %2078 = vst [vmem:[#allocation3 + $0xae0] sm:$0xff] %v2014
    %2079 = vst [vmem:[#allocation3 + $0xb28] sm:$0xff] %v2015
    %2080 = vst [vmem:[#allocation3 + $0xb70] sm:$0xff] %v2016
    %2081 = vst [vmem:[#allocation3 + $0xbb8] sm:$0xff] %v2017
    %2082 = vst [vmem:[#allocation3 + $0xc00] sm:$0xff] %v2018
    %2083 = vst [vmem:[#allocation3 + $0xc48] sm:$0xff] %v2019
    %2084 = vst [vmem:[#allocation3 + $0xc90] sm:$0xff] %v2020
    %2085 = vst [vmem:[#allocation3 + $0xcd8] sm:$0xff] %v2021
    %2086 = vst [vmem:[#allocation3 + $0xd20] sm:$0xff] %v2022
    %2087 = vst [vmem:[#allocation3 + $0xd68] sm:$0xff] %v2023
    %2088 = vst [vmem:[#allocation3 + $0xdb0] sm:$0xff] %v2024
    %2089 = vst [vmem:[#allocation3 + $0xdf8] sm:$0xff] %v2025
    %2090 = vst [vmem:[#allocation3 + $0xe40] sm:$0xff] %v2026
    %2091 = vst [vmem:[#allocation3 + $0xe88] sm:$0xff] %v2027
    %2092 = vst [vmem:[#allocation3 + $0xed0] sm:$0xff] %v2028
    %2093 = vst [vmem:[#allocation3 + $0xf18] sm:$0xff] %v2029
    %2094 = vst [vmem:[#allocation3 + $0xf60] sm:$0xff] %v2030
    %2095 = vst [vmem:[#allocation3 + $0xfa8] sm:$0xff] %v2031
    %2096 = vst [vmem:[#allocation3 + $0xff0] sm:$0xff] %v2032
    %2097 = vst [vmem:[#allocation3 + $0x1038] sm:$0xff] %v2033
    %2098 = vst [vmem:[#allocation3 + $0x1080] sm:$0xff] %v2034
    %2099 = vst [vmem:[#allocation3 + $0x10c8] sm:$0xff] %v2035
    %2100 = vst [vmem:[#allocation3 + $0x1110] sm:$0xff] %v2036
    %2101 = vst [vmem:[#allocation3 + $0x1158] sm:$0xff] %v2037
    %2102 = vst [vmem:[#allocation3 + $0x11a0] sm:$0xff] %v2038
    %2103 = vst [vmem:[#allocation3 + $0x11e8] sm:$0xff] %v2039
    %v2104 = vld [vmem:[%s1975 + $0x1] sm:$0xff]
    %v2105 = vld [vmem:[%s1975 + $0x9] sm:$0xff]
    %v2106 = vld [vmem:[%s1975 + $0x19] sm:$0xff]
    %v2107 = vld [vmem:[%s1975 + $0x21] sm:$0xff]
    %v2108 = vld [vmem:[%s1975 + $0x31] sm:$0xff]
    %v2109 = vld [vmem:[%s1975 + $0x39] sm:$0xff]
    %v2110 = vld [vmem:[%s1975 + $0x49] sm:$0xff]
    %v2111 = vld [vmem:[%s1975 + $0x51] sm:$0xff]
    %v2112 = vld [vmem:[%s1975 + $0x61] sm:$0xff]
    %v2113 = vld [vmem:[%s1975 + $0x69] sm:$0xff]
    %v2114 = vld [vmem:[%s1975 + $0x79] sm:$0xff]
    %v2115 = vld [vmem:[%s1975 + $0x81] sm:$0xff]
    %v2116 = vld [vmem:[%s1975 + $0x91] sm:$0xff]
    %v2117 = vld [vmem:[%s1975 + $0x99] sm:$0xff]
    %v2118 = vld [vmem:[%s1975 + $0xa9] sm:$0xff]
    %v2119 = vld [vmem:[%s1975 + $0xb1] sm:$0xff]
    %v2120 = vld [vmem:[%s1975 + $0xc1] sm:$0xff]
    %v2121 = vld [vmem:[%s1975 + $0xc9] sm:$0xff]
    %v2122 = vld [vmem:[%s1975 + $0xd9] sm:$0xff]
    %v2123 = vld [vmem:[%s1975 + $0xe1] sm:$0xff]
    %v2124 = vld [vmem:[%s1975 + $0xf1] sm:$0xff]
    %v2125 = vld [vmem:[%s1975 + $0xf9] sm:$0xff]
    %v2126 = vld [vmem:[%s1975 + $0x109] sm:$0xff]
    %v2127 = vld [vmem:[%s1975 + $0x111] sm:$0xff]
    %v2128 = vld [vmem:[%s1975 + $0x121] sm:$0xff]
    %v2129 = vld [vmem:[%s1975 + $0x129] sm:$0xff]
    %v2130 = vld [vmem:[%s1975 + $0x139] sm:$0xff]
    %v2131 = vld [vmem:[%s1975 + $0x141] sm:$0xff]
    %v2132 = vld [vmem:[%s1975 + $0x151] sm:$0xff]
    %v2133 = vld [vmem:[%s1975 + $0x159] sm:$0xff]
    %v2134 = vld [vmem:[%s1975 + $0x169] sm:$0xff]
    %v2135 = vld [vmem:[%s1975 + $0x171] sm:$0xff]
    %v2136 = vld [vmem:[%s1975 + $0x1b1] sm:$0xff]
    %v2137 = vld [vmem:[%s1975 + $0x1b9] sm:$0xff]
    %v2138 = vld [vmem:[%s1975 + $0x1c9] sm:$0xff]
    %v2139 = vld [vmem:[%s1975 + $0x1d1] sm:$0xff]
    %v2140 = vld [vmem:[%s1975 + $0x1e1] sm:$0xff]
    %v2141 = vld [vmem:[%s1975 + $0x1e9] sm:$0xff]
    %v2142 = vld [vmem:[%s1975 + $0x1f9] sm:$0xff]
    %v2143 = vld [vmem:[%s1975 + $0x201] sm:$0xff]
    %v2144 = vld [vmem:[%s1975 + $0x211] sm:$0xff]
    %v2145 = vld [vmem:[%s1975 + $0x219] sm:$0xff]
    %v2146 = vld [vmem:[%s1975 + $0x229] sm:$0xff]
    %v2147 = vld [vmem:[%s1975 + $0x231] sm:$0xff]
    %v2148 = vld [vmem:[%s1975 + $0x241] sm:$0xff]
    %v2149 = vld [vmem:[%s1975 + $0x249] sm:$0xff]
    %v2150 = vld [vmem:[%s1975 + $0x259] sm:$0xff]
    %v2151 = vld [vmem:[%s1975 + $0x261] sm:$0xff]
    %v2152 = vld [vmem:[%s1975 + $0x271] sm:$0xff]
    %v2153 = vld [vmem:[%s1975 + $0x279] sm:$0xff]
    %v2154 = vld [vmem:[%s1975 + $0x289] sm:$0xff]
    %v2155 = vld [vmem:[%s1975 + $0x291] sm:$0xff]
    %v2156 = vld [vmem:[%s1975 + $0x2a1] sm:$0xff]
    %v2157 = vld [vmem:[%s1975 + $0x2a9] sm:$0xff]
    %v2158 = vld [vmem:[%s1975 + $0x2b9] sm:$0xff]
    %v2159 = vld [vmem:[%s1975 + $0x2c1] sm:$0xff]
    %v2160 = vld [vmem:[%s1975 + $0x2d1] sm:$0xff]
    %v2161 = vld [vmem:[%s1975 + $0x2d9] sm:$0xff]
    %v2162 = vld [vmem:[%s1975 + $0x2e9] sm:$0xff]
    %v2163 = vld [vmem:[%s1975 + $0x2f1] sm:$0xff]
    %v2164 = vld [vmem:[%s1975 + $0x301] sm:$0xff]
    %v2165 = vld [vmem:[%s1975 + $0x309] sm:$0xff]
    %v2166 = vld [vmem:[%s1975 + $0x319] sm:$0xff]
    %v2167 = vld [vmem:[%s1975 + $0x321] sm:$0xff]
    %2168 = vst [vmem:[#allocation3 + $0x38] sm:$0xff] %v2104
    %2169 = vst [vmem:[#allocation3 + $0x80] sm:$0xff] %v2105
    %2170 = vst [vmem:[#allocation3 + $0xc8] sm:$0xff] %v2106
    %2171 = vst [vmem:[#allocation3 + $0x110] sm:$0xff] %v2107
    %2172 = vst [vmem:[#allocation3 + $0x158] sm:$0xff] %v2108
    %2173 = vst [vmem:[#allocation3 + $0x1a0] sm:$0xff] %v2109
    %2174 = vst [vmem:[#allocation3 + $0x1e8] sm:$0xff] %v2110
    %2175 = vst [vmem:[#allocation3 + $0x230] sm:$0xff] %v2111
    %2176 = vst [vmem:[#allocation3 + $0x278] sm:$0xff] %v2112
    %2177 = vst [vmem:[#allocation3 + $0x2c0] sm:$0xff] %v2113
    %2178 = vst [vmem:[#allocation3 + $0x308] sm:$0xff] %v2114
    %2179 = vst [vmem:[#allocation3 + $0x350] sm:$0xff] %v2115
    %2180 = vst [vmem:[#allocation3 + $0x398] sm:$0xff] %v2116
    %2181 = vst [vmem:[#allocation3 + $0x3e0] sm:$0xff] %v2117
    %2182 = vst [vmem:[#allocation3 + $0x428] sm:$0xff] %v2118
    %2183 = vst [vmem:[#allocation3 + $0x470] sm:$0xff] %v2119
    %2184 = vst [vmem:[#allocation3 + $0x4b8] sm:$0xff] %v2120
    %2185 = vst [vmem:[#allocation3 + $0x500] sm:$0xff] %v2121
    %2186 = vst [vmem:[#allocation3 + $0x548] sm:$0xff] %v2122
    %2187 = vst [vmem:[#allocation3 + $0x590] sm:$0xff] %v2123
    %2188 = vst [vmem:[#allocation3 + $0x5d8] sm:$0xff] %v2124
    %2189 = vst [vmem:[#allocation3 + $0x620] sm:$0xff] %v2125
    %2190 = vst [vmem:[#allocation3 + $0x668] sm:$0xff] %v2126
    %2191 = vst [vmem:[#allocation3 + $0x6b0] sm:$0xff] %v2127
    %2192 = vst [vmem:[#allocation3 + $0x6f8] sm:$0xff] %v2128
    %2193 = vst [vmem:[#allocation3 + $0x740] sm:$0xff] %v2129
    %2194 = vst [vmem:[#allocation3 + $0x788] sm:$0xff] %v2130
    %2195 = vst [vmem:[#allocation3 + $0x7d0] sm:$0xff] %v2131
    %2196 = vst [vmem:[#allocation3 + $0x818] sm:$0xff] %v2132
    %2197 = vst [vmem:[#allocation3 + $0x860] sm:$0xff] %v2133
    %2198 = vst [vmem:[#allocation3 + $0x8a8] sm:$0xff] %v2134
    %2199 = vst [vmem:[#allocation3 + $0x8f0] sm:$0xff] %v2135
    %2200 = vst [vmem:[#allocation3 + $0x938] sm:$0xff] %v2136
    %2201 = vst [vmem:[#allocation3 + $0x980] sm:$0xff] %v2137
    %2202 = vst [vmem:[#allocation3 + $0x9c8] sm:$0xff] %v2138
    %2203 = vst [vmem:[#allocation3 + $0xa10] sm:$0xff] %v2139
    %2204 = vst [vmem:[#allocation3 + $0xa58] sm:$0xff] %v2140
    %2205 = vst [vmem:[#allocation3 + $0xaa0] sm:$0xff] %v2141
    %2206 = vst [vmem:[#allocation3 + $0xae8] sm:$0xff] %v2142
    %2207 = vst [vmem:[#allocation3 + $0xb30] sm:$0xff] %v2143
    %2208 = vst [vmem:[#allocation3 + $0xb78] sm:$0xff] %v2144
    %2209 = vst [vmem:[#allocation3 + $0xbc0] sm:$0xff] %v2145
    %2210 = vst [vmem:[#allocation3 + $0xc08] sm:$0xff] %v2146
    %2211 = vst [vmem:[#allocation3 + $0xc50] sm:$0xff] %v2147
    %2212 = vst [vmem:[#allocation3 + $0xc98] sm:$0xff] %v2148
    %2213 = vst [vmem:[#allocation3 + $0xce0] sm:$0xff] %v2149
    %2214 = vst [vmem:[#allocation3 + $0xd28] sm:$0xff] %v2150
    %2215 = vst [vmem:[#allocation3 + $0xd70] sm:$0xff] %v2151
    %2216 = vst [vmem:[#allocation3 + $0xdb8] sm:$0xff] %v2152
    %2217 = vst [vmem:[#allocation3 + $0xe00] sm:$0xff] %v2153
    %2218 = vst [vmem:[#allocation3 + $0xe48] sm:$0xff] %v2154
    %2219 = vst [vmem:[#allocation3 + $0xe90] sm:$0xff] %v2155
    %2220 = vst [vmem:[#allocation3 + $0xed8] sm:$0xff] %v2156
    %2221 = vst [vmem:[#allocation3 + $0xf20] sm:$0xff] %v2157
    %2222 = vst [vmem:[#allocation3 + $0xf68] sm:$0xff] %v2158
    %2223 = vst [vmem:[#allocation3 + $0xfb0] sm:$0xff] %v2159
    %2224 = vst [vmem:[#allocation3 + $0xff8] sm:$0xff] %v2160
    %2225 = vst [vmem:[#allocation3 + $0x1040] sm:$0xff] %v2161
    %2226 = vst [vmem:[#allocation3 + $0x1088] sm:$0xff] %v2162
    %2227 = vst [vmem:[#allocation3 + $0x10d0] sm:$0xff] %v2163
    %2228 = vst [vmem:[#allocation3 + $0x1118] sm:$0xff] %v2164
    %2229 = vst [vmem:[#allocation3 + $0x1160] sm:$0xff] %v2165
    %2230 = vst [vmem:[#allocation3 + $0x11a8] sm:$0xff] %v2166
    %2231 = vst [vmem:[#allocation3 + $0x11f0] sm:$0xff] %v2167
    %v2232 = vld [vmem:[%s1975 + $0x2] sm:$0xff]
    %v2233 = vld [vmem:[%s1975 + $0xa] sm:$0xff]
    %v2234 = vld [vmem:[%s1975 + $0x1a] sm:$0xff]
    %v2235 = vld [vmem:[%s1975 + $0x22] sm:$0xff]
    %v2236 = vld [vmem:[%s1975 + $0x32] sm:$0xff]
    %v2237 = vld [vmem:[%s1975 + $0x3a] sm:$0xff]
    %v2238 = vld [vmem:[%s1975 + $0x4a] sm:$0xff]
    %v2239 = vld [vmem:[%s1975 + $0x52] sm:$0xff]
    %v2240 = vld [vmem:[%s1975 + $0x62] sm:$0xff]
    %v2241 = vld [vmem:[%s1975 + $0x6a] sm:$0xff]
    %v2242 = vld [vmem:[%s1975 + $0x7a] sm:$0xff]
    %v2243 = vld [vmem:[%s1975 + $0x82] sm:$0xff]
    %v2244 = vld [vmem:[%s1975 + $0x92] sm:$0xff]
    %v2245 = vld [vmem:[%s1975 + $0x9a] sm:$0xff]
    %v2246 = vld [vmem:[%s1975 + $0xaa] sm:$0xff]
    %v2247 = vld [vmem:[%s1975 + $0xb2] sm:$0xff]
    %v2248 = vld [vmem:[%s1975 + $0xc2] sm:$0xff]
    %v2249 = vld [vmem:[%s1975 + $0xca] sm:$0xff]
    %v2250 = vld [vmem:[%s1975 + $0xda] sm:$0xff]
    %v2251 = vld [vmem:[%s1975 + $0xe2] sm:$0xff]
    %v2252 = vld [vmem:[%s1975 + $0xf2] sm:$0xff]
    %v2253 = vld [vmem:[%s1975 + $0xfa] sm:$0xff]
    %v2254 = vld [vmem:[%s1975 + $0x10a] sm:$0xff]
    %v2255 = vld [vmem:[%s1975 + $0x112] sm:$0xff]
    %v2256 = vld [vmem:[%s1975 + $0x122] sm:$0xff]
    %v2257 = vld [vmem:[%s1975 + $0x12a] sm:$0xff]
    %v2258 = vld [vmem:[%s1975 + $0x13a] sm:$0xff]
    %v2259 = vld [vmem:[%s1975 + $0x142] sm:$0xff]
    %v2260 = vld [vmem:[%s1975 + $0x152] sm:$0xff]
    %v2261 = vld [vmem:[%s1975 + $0x15a] sm:$0xff]
    %v2262 = vld [vmem:[%s1975 + $0x16a] sm:$0xff]
    %v2263 = vld [vmem:[%s1975 + $0x172] sm:$0xff]
    %v2264 = vld [vmem:[%s1975 + $0x1b2] sm:$0xff]
    %v2265 = vld [vmem:[%s1975 + $0x1ba] sm:$0xff]
    %v2266 = vld [vmem:[%s1975 + $0x1ca] sm:$0xff]
    %v2267 = vld [vmem:[%s1975 + $0x1d2] sm:$0xff]
    %v2268 = vld [vmem:[%s1975 + $0x1e2] sm:$0xff]
    %v2269 = vld [vmem:[%s1975 + $0x1ea] sm:$0xff]
    %v2270 = vld [vmem:[%s1975 + $0x1fa] sm:$0xff]
    %v2271 = vld [vmem:[%s1975 + $0x202] sm:$0xff]
    %v2272 = vld [vmem:[%s1975 + $0x212] sm:$0xff]
    %v2273 = vld [vmem:[%s1975 + $0x21a] sm:$0xff]
    %v2274 = vld [vmem:[%s1975 + $0x22a] sm:$0xff]
    %v2275 = vld [vmem:[%s1975 + $0x232] sm:$0xff]
    %v2276 = vld [vmem:[%s1975 + $0x242] sm:$0xff]
    %v2277 = vld [vmem:[%s1975 + $0x24a] sm:$0xff]
    %v2278 = vld [vmem:[%s1975 + $0x25a] sm:$0xff]
    %v2279 = vld [vmem:[%s1975 + $0x262] sm:$0xff]
    %v2280 = vld [vmem:[%s1975 + $0x272] sm:$0xff]
    %v2281 = vld [vmem:[%s1975 + $0x27a] sm:$0xff]
    %v2282 = vld [vmem:[%s1975 + $0x28a] sm:$0xff]
    %v2283 = vld [vmem:[%s1975 + $0x292] sm:$0xff]
    %v2284 = vld [vmem:[%s1975 + $0x2a2] sm:$0xff]
    %v2285 = vld [vmem:[%s1975 + $0x2aa] sm:$0xff]
    %v2286 = vld [vmem:[%s1975 + $0x2ba] sm:$0xff]
    %v2287 = vld [vmem:[%s1975 + $0x2c2] sm:$0xff]
    %v2288 = vld [vmem:[%s1975 + $0x2d2] sm:$0xff]
    %v2289 = vld [vmem:[%s1975 + $0x2da] sm:$0xff]
    %v2290 = vld [vmem:[%s1975 + $0x2ea] sm:$0xff]
    %v2291 = vld [vmem:[%s1975 + $0x2f2] sm:$0xff]
    %v2292 = vld [vmem:[%s1975 + $0x302] sm:$0xff]
    %v2293 = vld [vmem:[%s1975 + $0x30a] sm:$0xff]
    %v2294 = vld [vmem:[%s1975 + $0x31a] sm:$0xff]
    %v2295 = vld [vmem:[%s1975 + $0x322] sm:$0xff]
    %2296 = vst [vmem:[#allocation3 + $0x40] sm:$0xff] %v2232
    %2297 = vst [vmem:[#allocation3 + $0x88] sm:$0xff] %v2233
    %2298 = vst [vmem:[#allocation3 + $0xd0] sm:$0xff] %v2234
    %2299 = vst [vmem:[#allocation3 + $0x118] sm:$0xff] %v2235
    %2300 = vst [vmem:[#allocation3 + $0x160] sm:$0xff] %v2236
    %2301 = vst [vmem:[#allocation3 + $0x1a8] sm:$0xff] %v2237
    %2302 = vst [vmem:[#allocation3 + $0x1f0] sm:$0xff] %v2238
    %2303 = vst [vmem:[#allocation3 + $0x238] sm:$0xff] %v2239
    %2304 = vst [vmem:[#allocation3 + $0x280] sm:$0xff] %v2240
    %2305 = vst [vmem:[#allocation3 + $0x2c8] sm:$0xff] %v2241
    %2306 = vst [vmem:[#allocation3 + $0x310] sm:$0xff] %v2242
    %2307 = vst [vmem:[#allocation3 + $0x358] sm:$0xff] %v2243
    %2308 = vst [vmem:[#allocation3 + $0x3a0] sm:$0xff] %v2244
    %2309 = vst [vmem:[#allocation3 + $0x3e8] sm:$0xff] %v2245
    %2310 = vst [vmem:[#allocation3 + $0x430] sm:$0xff] %v2246
    %2311 = vst [vmem:[#allocation3 + $0x478] sm:$0xff] %v2247
    %2312 = vst [vmem:[#allocation3 + $0x4c0] sm:$0xff] %v2248
    %2313 = vst [vmem:[#allocation3 + $0x508] sm:$0xff] %v2249
    %2314 = vst [vmem:[#allocation3 + $0x550] sm:$0xff] %v2250
    %2315 = vst [vmem:[#allocation3 + $0x598] sm:$0xff] %v2251
    %2316 = vst [vmem:[#allocation3 + $0x5e0] sm:$0xff] %v2252
    %2317 = vst [vmem:[#allocation3 + $0x628] sm:$0xff] %v2253
    %2318 = vst [vmem:[#allocation3 + $0x670] sm:$0xff] %v2254
    %2319 = vst [vmem:[#allocation3 + $0x6b8] sm:$0xff] %v2255
    %2320 = vst [vmem:[#allocation3 + $0x700] sm:$0xff] %v2256
    %2321 = vst [vmem:[#allocation3 + $0x748] sm:$0xff] %v2257
    %2322 = vst [vmem:[#allocation3 + $0x790] sm:$0xff] %v2258
    %2323 = vst [vmem:[#allocation3 + $0x7d8] sm:$0xff] %v2259
    %2324 = vst [vmem:[#allocation3 + $0x820] sm:$0xff] %v2260
    %2325 = vst [vmem:[#allocation3 + $0x868] sm:$0xff] %v2261
    %2326 = vst [vmem:[#allocation3 + $0x8b0] sm:$0xff] %v2262
    %2327 = vst [vmem:[#allocation3 + $0x8f8] sm:$0xff] %v2263
    %2328 = vst [vmem:[#allocation3 + $0x940] sm:$0xff] %v2264
    %2329 = vst [vmem:[#allocation3 + $0x988] sm:$0xff] %v2265
    %2330 = vst [vmem:[#allocation3 + $0x9d0] sm:$0xff] %v2266
    %2331 = vst [vmem:[#allocation3 + $0xa18] sm:$0xff] %v2267
    %2332 = vst [vmem:[#allocation3 + $0xa60] sm:$0xff] %v2268
    %2333 = vst [vmem:[#allocation3 + $0xaa8] sm:$0xff] %v2269
    %2334 = vst [vmem:[#allocation3 + $0xaf0] sm:$0xff] %v2270
    %2335 = vst [vmem:[#allocation3 + $0xb38] sm:$0xff] %v2271
    %2336 = vst [vmem:[#allocation3 + $0xb80] sm:$0xff] %v2272
    %2337 = vst [vmem:[#allocation3 + $0xbc8] sm:$0xff] %v2273
    %2338 = vst [vmem:[#allocation3 + $0xc10] sm:$0xff] %v2274
    %2339 = vst [vmem:[#allocation3 + $0xc58] sm:$0xff] %v2275
    %2340 = vst [vmem:[#allocation3 + $0xca0] sm:$0xff] %v2276
    %2341 = vst [vmem:[#allocation3 + $0xce8] sm:$0xff] %v2277
    %2342 = vst [vmem:[#allocation3 + $0xd30] sm:$0xff] %v2278
    %2343 = vst [vmem:[#allocation3 + $0xd78] sm:$0xff] %v2279
    %2344 = vst [vmem:[#allocation3 + $0xdc0] sm:$0xff] %v2280
    %2345 = vst [vmem:[#allocation3 + $0xe08] sm:$0xff] %v2281
    %2346 = vst [vmem:[#allocation3 + $0xe50] sm:$0xff] %v2282
    %2347 = vst [vmem:[#allocation3 + $0xe98] sm:$0xff] %v2283
    %2348 = vst [vmem:[#allocation3 + $0xee0] sm:$0xff] %v2284
    %2349 = vst [vmem:[#allocation3 + $0xf28] sm:$0xff] %v2285
    %2350 = vst [vmem:[#allocation3 + $0xf70] sm:$0xff] %v2286
    %2351 = vst [vmem:[#allocation3 + $0xfb8] sm:$0xff] %v2287
    %2352 = vst [vmem:[#allocation3 + $0x1000] sm:$0xff] %v2288
    %2353 = vst [vmem:[#allocation3 + $0x1048] sm:$0xff] %v2289
    %2354 = vst [vmem:[#allocation3 + $0x1090] sm:$0xff] %v2290
    %2355 = vst [vmem:[#allocation3 + $0x10d8] sm:$0xff] %v2291
    %2356 = vst [vmem:[#allocation3 + $0x1120] sm:$0xff] %v2292
    %2357 = vst [vmem:[#allocation3 + $0x1168] sm:$0xff] %v2293
    %2358 = vst [vmem:[#allocation3 + $0x11b0] sm:$0xff] %v2294
    %2359 = vst [vmem:[#allocation3 + $0x11f8] sm:$0xff] %v2295
    %v2360 = vld [vmem:[#allocation3] sm:$0xff]
    %v2361 = vld [vmem:[#allocation3 + $0x8] sm:$0xff]
    %v2362 = vld [vmem:[#allocation3 + $0x10] sm:$0xff]
    %v2363 = vld [vmem:[#allocation3 + $0x18] sm:$0xff]
    %v2364 = vld [vmem:[#allocation3 + $0x20] sm:$0xff]
    %v2365 = vld [vmem:[#allocation3 + $0x28] sm:$0xff]
    %v2366 = vld [vmem:[#allocation3 + $0x30] sm:$0xff]
    %v2367 = vld [vmem:[#allocation3 + $0x38] sm:$0xff]
    %v2368 = vld [vmem:[#allocation3 + $0x40] sm:$0xff]
    %v2369 = vld [vmem:[#allocation3 + $0x48] sm:$0xff]
    %v2370 = vld [vmem:[#allocation3 + $0x50] sm:$0xff]
    %v2371 = vld [vmem:[#allocation3 + $0x58] sm:$0xff]
    %v2372 = vld [vmem:[#allocation3 + $0x60] sm:$0xff]
    %v2373 = vld [vmem:[#allocation3 + $0x68] sm:$0xff]
    %v2374 = vld [vmem:[#allocation3 + $0x70] sm:$0xff]
    %v2375 = vld [vmem:[#allocation3 + $0x78] sm:$0xff]
    %v2376 = vld [vmem:[#allocation3 + $0x80] sm:$0xff]
    %v2377 = vld [vmem:[#allocation3 + $0x88] sm:$0xff]
    %v2378 = vld [vmem:[#allocation3 + $0x90] sm:$0xff]
    %v2379 = vld [vmem:[#allocation3 + $0x98] sm:$0xff]
    %v2380 = vld [vmem:[#allocation3 + $0xa0] sm:$0xff]
    %v2381 = vld [vmem:[#allocation3 + $0xa8] sm:$0xff]
    %v2382 = vld [vmem:[#allocation3 + $0xb0] sm:$0xff]
    %v2383 = vld [vmem:[#allocation3 + $0xb8] sm:$0xff]
    %v2384 = vld [vmem:[#allocation3 + $0xc0] sm:$0xff]
    %v2385 = vld [vmem:[#allocation3 + $0xc8] sm:$0xff]
    %v2386 = vld [vmem:[#allocation3 + $0xd0] sm:$0xff]
    %v2387 = vld [vmem:[#allocation3 + $0xd8] sm:$0xff]
    %v2388 = vld [vmem:[#allocation3 + $0xe0] sm:$0xff]
    %v2389 = vld [vmem:[#allocation3 + $0xe8] sm:$0xff]
    %v2390 = vld [vmem:[#allocation3 + $0xf0] sm:$0xff]
    %v2391 = vld [vmem:[#allocation3 + $0xf8] sm:$0xff]
    %v2392 = vld [vmem:[#allocation3 + $0x100] sm:$0xff]
    %v2393 = vld [vmem:[#allocation3 + $0x108] sm:$0xff]
    %v2394 = vld [vmem:[#allocation3 + $0x110] sm:$0xff]
    %v2395 = vld [vmem:[#allocation3 + $0x118] sm:$0xff]
    %v2396 = vld [vmem:[#allocation3 + $0x120] sm:$0xff]
    %v2397 = vld [vmem:[#allocation3 + $0x128] sm:$0xff]
    %v2398 = vld [vmem:[#allocation3 + $0x130] sm:$0xff]
    %v2399 = vld [vmem:[#allocation3 + $0x138] sm:$0xff]
    %v2400 = vld [vmem:[#allocation3 + $0x140] sm:$0xff]
    %v2401 = vld [vmem:[#allocation3 + $0x148] sm:$0xff]
    %v2402 = vld [vmem:[#allocation3 + $0x150] sm:$0xff]
    %v2403 = vld [vmem:[#allocation3 + $0x158] sm:$0xff]
    %v2404 = vld [vmem:[#allocation3 + $0x160] sm:$0xff]
    %v2405 = vld [vmem:[#allocation3 + $0x168] sm:$0xff]
    %v2406 = vld [vmem:[#allocation3 + $0x170] sm:$0xff]
    %v2407 = vld [vmem:[#allocation3 + $0x178] sm:$0xff]
    %v2408 = vld [vmem:[#allocation3 + $0x180] sm:$0xff]
    %v2409 = vld [vmem:[#allocation3 + $0x188] sm:$0xff]
    %v2410 = vld [vmem:[#allocation3 + $0x190] sm:$0xff]
    %v2411 = vld [vmem:[#allocation3 + $0x198] sm:$0xff]
    %v2412 = vld [vmem:[#allocation3 + $0x1a0] sm:$0xff]
    %v2413 = vld [vmem:[#allocation3 + $0x1a8] sm:$0xff]
    %v2414 = vld [vmem:[#allocation3 + $0x1b0] sm:$0xff]
    %v2415 = vld [vmem:[#allocation3 + $0x1b8] sm:$0xff]
    %v2416 = vld [vmem:[#allocation3 + $0x1c0] sm:$0xff]
    %v2417 = vld [vmem:[#allocation3 + $0x1c8] sm:$0xff]
    %v2418 = vld [vmem:[#allocation3 + $0x1d0] sm:$0xff]
    %v2419 = vld [vmem:[#allocation3 + $0x1d8] sm:$0xff]
    %v2420 = vld [vmem:[#allocation3 + $0x1e0] sm:$0xff]
    %v2421 = vld [vmem:[#allocation3 + $0x1e8] sm:$0xff]
    %v2422 = vld [vmem:[#allocation3 + $0x1f0] sm:$0xff]
    %v2423 = vld [vmem:[#allocation3 + $0x1f8] sm:$0xff]
    %v2424 = vld [vmem:[#allocation3 + $0x200] sm:$0xff]
    %v2425 = vld [vmem:[#allocation3 + $0x208] sm:$0xff]
    %v2426 = vld [vmem:[#allocation3 + $0x210] sm:$0xff]
    %v2427 = vld [vmem:[#allocation3 + $0x218] sm:$0xff]
    %v2428 = vld [vmem:[#allocation3 + $0x220] sm:$0xff]
    %v2429 = vld [vmem:[#allocation3 + $0x228] sm:$0xff]
    %v2430 = vld [vmem:[#allocation3 + $0x230] sm:$0xff]
    %v2431 = vld [vmem:[#allocation3 + $0x238] sm:$0xff]
    %v2432 = vld [vmem:[#allocation3 + $0x240] sm:$0xff]
    %v2433 = vld [vmem:[#allocation3 + $0x248] sm:$0xff]
    %v2434 = vld [vmem:[#allocation3 + $0x250] sm:$0xff]
    %v2435 = vld [vmem:[#allocation3 + $0x258] sm:$0xff]
    %v2436 = vld [vmem:[#allocation3 + $0x260] sm:$0xff]
    %v2437 = vld [vmem:[#allocation3 + $0x268] sm:$0xff]
    %v2438 = vld [vmem:[#allocation3 + $0x270] sm:$0xff]
    %v2439 = vld [vmem:[#allocation3 + $0x278] sm:$0xff]
    %v2440 = vld [vmem:[#allocation3 + $0x280] sm:$0xff]
    %v2441 = vld [vmem:[#allocation3 + $0x288] sm:$0xff]
    %v2442 = vld [vmem:[#allocation3 + $0x290] sm:$0xff]
    %v2443 = vld [vmem:[#allocation3 + $0x298] sm:$0xff]
    %v2444 = vld [vmem:[#allocation3 + $0x2a0] sm:$0xff]
    %v2445 = vld [vmem:[#allocation3 + $0x2a8] sm:$0xff]
    %v2446 = vld [vmem:[#allocation3 + $0x2b0] sm:$0xff]
    %v2447 = vld [vmem:[#allocation3 + $0x2b8] sm:$0xff]
    %v2448 = vld [vmem:[#allocation3 + $0x2c0] sm:$0xff]
    %v2449 = vld [vmem:[#allocation3 + $0x2c8] sm:$0xff]
    %v2450 = vld [vmem:[#allocation3 + $0x2d0] sm:$0xff]
    %v2451 = vld [vmem:[#allocation3 + $0x2d8] sm:$0xff]
    %v2452 = vld [vmem:[#allocation3 + $0x2e0] sm:$0xff]
    %v2453 = vld [vmem:[#allocation3 + $0x2e8] sm:$0xff]
    %v2454 = vld [vmem:[#allocation3 + $0x2f0] sm:$0xff]
    %v2455 = vld [vmem:[#allocation3 + $0x2f8] sm:$0xff]
    %v2456 = vld [vmem:[#allocation3 + $0x300] sm:$0xff]
    %v2457 = vld [vmem:[#allocation3 + $0x308] sm:$0xff]
    %v2458 = vld [vmem:[#allocation3 + $0x310] sm:$0xff]
    %v2459 = vld [vmem:[#allocation3 + $0x318] sm:$0xff]
    %v2460 = vld [vmem:[#allocation3 + $0x320] sm:$0xff]
    %v2461 = vld [vmem:[#allocation3 + $0x328] sm:$0xff]
    %v2462 = vld [vmem:[#allocation3 + $0x330] sm:$0xff]
    %v2463 = vld [vmem:[#allocation3 + $0x338] sm:$0xff]
    %v2464 = vld [vmem:[#allocation3 + $0x340] sm:$0xff]
    %v2465 = vld [vmem:[#allocation3 + $0x348] sm:$0xff]
    %v2466 = vld [vmem:[#allocation3 + $0x350] sm:$0xff]
    %v2467 = vld [vmem:[#allocation3 + $0x358] sm:$0xff]
    %v2468 = vld [vmem:[#allocation3 + $0x360] sm:$0xff]
    %v2469 = vld [vmem:[#allocation3 + $0x368] sm:$0xff]
    %v2470 = vld [vmem:[#allocation3 + $0x370] sm:$0xff]
    %v2471 = vld [vmem:[#allocation3 + $0x378] sm:$0xff]
    %v2472 = vld [vmem:[#allocation3 + $0x380] sm:$0xff]
    %v2473 = vld [vmem:[#allocation3 + $0x388] sm:$0xff]
    %v2474 = vld [vmem:[#allocation3 + $0x390] sm:$0xff]
    %v2475 = vld [vmem:[#allocation3 + $0x398] sm:$0xff]
    %v2476 = vld [vmem:[#allocation3 + $0x3a0] sm:$0xff]
    %v2477 = vld [vmem:[#allocation3 + $0x3a8] sm:$0xff]
    %v2478 = vld [vmem:[#allocation3 + $0x3b0] sm:$0xff]
    %v2479 = vld [vmem:[#allocation3 + $0x3b8] sm:$0xff]
    %v2480 = vld [vmem:[#allocation3 + $0x3c0] sm:$0xff]
    %v2481 = vld [vmem:[#allocation3 + $0x3c8] sm:$0xff]
    %v2482 = vld [vmem:[#allocation3 + $0x3d0] sm:$0xff]
    %v2483 = vld [vmem:[#allocation3 + $0x3d8] sm:$0xff]
    %v2484 = vld [vmem:[#allocation3 + $0x3e0] sm:$0xff]
    %v2485 = vld [vmem:[#allocation3 + $0x3e8] sm:$0xff]
    %v2486 = vld [vmem:[#allocation3 + $0x3f0] sm:$0xff]
    %v2487 = vld [vmem:[#allocation3 + $0x3f8] sm:$0xff]
    %v2488 = vld [vmem:[#allocation3 + $0x400] sm:$0xff]
    %v2489 = vld [vmem:[#allocation3 + $0x408] sm:$0xff]
    %v2490 = vld [vmem:[#allocation3 + $0x410] sm:$0xff]
    %v2491 = vld [vmem:[#allocation3 + $0x418] sm:$0xff]
    %v2492 = vld [vmem:[#allocation3 + $0x420] sm:$0xff]
    %v2493 = vld [vmem:[#allocation3 + $0x428] sm:$0xff]
    %v2494 = vld [vmem:[#allocation3 + $0x430] sm:$0xff]
    %v2495 = vld [vmem:[#allocation3 + $0x438] sm:$0xff]
    %v2496 = vld [vmem:[#allocation3 + $0x440] sm:$0xff]
    %v2497 = vld [vmem:[#allocation3 + $0x448] sm:$0xff]
    %v2498 = vld [vmem:[#allocation3 + $0x450] sm:$0xff]
    %v2499 = vld [vmem:[#allocation3 + $0x458] sm:$0xff]
    %v2500 = vld [vmem:[#allocation3 + $0x460] sm:$0xff]
    %v2501 = vld [vmem:[#allocation3 + $0x468] sm:$0xff]
    %v2502 = vld [vmem:[#allocation3 + $0x470] sm:$0xff]
    %v2503 = vld [vmem:[#allocation3 + $0x478] sm:$0xff]
    %v2504 = vld [vmem:[#allocation3 + $0x480] sm:$0xff]
    %v2505 = vld [vmem:[#allocation3 + $0x488] sm:$0xff]
    %v2506 = vld [vmem:[#allocation3 + $0x490] sm:$0xff]
    %v2507 = vld [vmem:[#allocation3 + $0x498] sm:$0xff]
    %v2508 = vld [vmem:[#allocation3 + $0x4a0] sm:$0xff]
    %v2509 = vld [vmem:[#allocation3 + $0x4a8] sm:$0xff]
    %v2510 = vld [vmem:[#allocation3 + $0x4b0] sm:$0xff]
    %v2511 = vld [vmem:[#allocation3 + $0x4b8] sm:$0xff]
    %v2512 = vld [vmem:[#allocation3 + $0x4c0] sm:$0xff]
    %v2513 = vld [vmem:[#allocation3 + $0x4c8] sm:$0xff]
    %v2514 = vld [vmem:[#allocation3 + $0x4d0] sm:$0xff]
    %v2515 = vld [vmem:[#allocation3 + $0x4d8] sm:$0xff]
    %v2516 = vld [vmem:[#allocation3 + $0x4e0] sm:$0xff]
    %v2517 = vld [vmem:[#allocation3 + $0x4e8] sm:$0xff]
    %v2518 = vld [vmem:[#allocation3 + $0x4f0] sm:$0xff]
    %v2519 = vld [vmem:[#allocation3 + $0x4f8] sm:$0xff]
    %v2520 = vld [vmem:[#allocation3 + $0x500] sm:$0xff]
    %v2521 = vld [vmem:[#allocation3 + $0x508] sm:$0xff]
    %v2522 = vld [vmem:[#allocation3 + $0x510] sm:$0xff]
    %v2523 = vld [vmem:[#allocation3 + $0x518] sm:$0xff]
    %v2524 = vld [vmem:[#allocation3 + $0x520] sm:$0xff]
    %v2525 = vld [vmem:[#allocation3 + $0x528] sm:$0xff]
    %v2526 = vld [vmem:[#allocation3 + $0x530] sm:$0xff]
    %v2527 = vld [vmem:[#allocation3 + $0x538] sm:$0xff]
    %v2528 = vld [vmem:[#allocation3 + $0x540] sm:$0xff]
    %v2529 = vld [vmem:[#allocation3 + $0x548] sm:$0xff]
    %v2530 = vld [vmem:[#allocation3 + $0x550] sm:$0xff]
    %v2531 = vld [vmem:[#allocation3 + $0x558] sm:$0xff]
    %v2532 = vld [vmem:[#allocation3 + $0x560] sm:$0xff]
    %v2533 = vld [vmem:[#allocation3 + $0x568] sm:$0xff]
    %v2534 = vld [vmem:[#allocation3 + $0x570] sm:$0xff]
    %v2535 = vld [vmem:[#allocation3 + $0x578] sm:$0xff]
    %v2536 = vld [vmem:[#allocation3 + $0x580] sm:$0xff]
    %v2537 = vld [vmem:[#allocation3 + $0x588] sm:$0xff]
    %v2538 = vld [vmem:[#allocation3 + $0x590] sm:$0xff]
    %v2539 = vld [vmem:[#allocation3 + $0x598] sm:$0xff]
    %v2540 = vld [vmem:[#allocation3 + $0x5a0] sm:$0xff]
    %v2541 = vld [vmem:[#allocation3 + $0x5a8] sm:$0xff]
    %v2542 = vld [vmem:[#allocation3 + $0x5b0] sm:$0xff]
    %v2543 = vld [vmem:[#allocation3 + $0x5b8] sm:$0xff]
    %v2544 = vld [vmem:[#allocation3 + $0x5c0] sm:$0xff]
    %v2545 = vld [vmem:[#allocation3 + $0x5c8] sm:$0xff]
    %v2546 = vld [vmem:[#allocation3 + $0x5d0] sm:$0xff]
    %v2547 = vld [vmem:[#allocation3 + $0x5d8] sm:$0xff]
    %v2548 = vld [vmem:[#allocation3 + $0x5e0] sm:$0xff]
    %v2549 = vld [vmem:[#allocation3 + $0x5e8] sm:$0xff]
    %v2550 = vld [vmem:[#allocation3 + $0x5f0] sm:$0xff]
    %v2551 = vld [vmem:[#allocation3 + $0x5f8] sm:$0xff]
    %v2552 = vld [vmem:[#allocation3 + $0x600] sm:$0xff]
    %v2553 = vld [vmem:[#allocation3 + $0x608] sm:$0xff]
    %v2554 = vld [vmem:[#allocation3 + $0x610] sm:$0xff]
    %v2555 = vld [vmem:[#allocation3 + $0x618] sm:$0xff]
    %v2556 = vld [vmem:[#allocation3 + $0x620] sm:$0xff]
    %v2557 = vld [vmem:[#allocation3 + $0x628] sm:$0xff]
    %v2558 = vld [vmem:[#allocation3 + $0x630] sm:$0xff]
    %v2559 = vld [vmem:[#allocation3 + $0x638] sm:$0xff]
    %v2560 = vld [vmem:[#allocation3 + $0x640] sm:$0xff]
    %v2561 = vld [vmem:[#allocation3 + $0x648] sm:$0xff]
    %v2562 = vld [vmem:[#allocation3 + $0x650] sm:$0xff]
    %v2563 = vld [vmem:[#allocation3 + $0x658] sm:$0xff]
    %v2564 = vld [vmem:[#allocation3 + $0x660] sm:$0xff]
    %v2565 = vld [vmem:[#allocation3 + $0x668] sm:$0xff]
    %v2566 = vld [vmem:[#allocation3 + $0x670] sm:$0xff]
    %v2567 = vld [vmem:[#allocation3 + $0x678] sm:$0xff]
    %v2568 = vld [vmem:[#allocation3 + $0x680] sm:$0xff]
    %v2569 = vld [vmem:[#allocation3 + $0x688] sm:$0xff]
    %v2570 = vld [vmem:[#allocation3 + $0x690] sm:$0xff]
    %v2571 = vld [vmem:[#allocation3 + $0x698] sm:$0xff]
    %v2572 = vld [vmem:[#allocation3 + $0x6a0] sm:$0xff]
    %v2573 = vld [vmem:[#allocation3 + $0x6a8] sm:$0xff]
    %v2574 = vld [vmem:[#allocation3 + $0x6b0] sm:$0xff]
    %v2575 = vld [vmem:[#allocation3 + $0x6b8] sm:$0xff]
    %v2576 = vld [vmem:[#allocation3 + $0x6c0] sm:$0xff]
    %v2577 = vld [vmem:[#allocation3 + $0x6c8] sm:$0xff]
    %v2578 = vld [vmem:[#allocation3 + $0x6d0] sm:$0xff]
    %v2579 = vld [vmem:[#allocation3 + $0x6d8] sm:$0xff]
    %v2580 = vld [vmem:[#allocation3 + $0x6e0] sm:$0xff]
    %v2581 = vld [vmem:[#allocation3 + $0x6e8] sm:$0xff]
    %v2582 = vld [vmem:[#allocation3 + $0x6f0] sm:$0xff]
    %v2583 = vld [vmem:[#allocation3 + $0x6f8] sm:$0xff]
    %v2584 = vld [vmem:[#allocation3 + $0x700] sm:$0xff]
    %v2585 = vld [vmem:[#allocation3 + $0x708] sm:$0xff]
    %v2586 = vld [vmem:[#allocation3 + $0x710] sm:$0xff]
    %v2587 = vld [vmem:[#allocation3 + $0x718] sm:$0xff]
    %v2588 = vld [vmem:[#allocation3 + $0x720] sm:$0xff]
    %v2589 = vld [vmem:[#allocation3 + $0x728] sm:$0xff]
    %v2590 = vld [vmem:[#allocation3 + $0x730] sm:$0xff]
    %v2591 = vld [vmem:[#allocation3 + $0x738] sm:$0xff]
    %v2592 = vld [vmem:[#allocation3 + $0x740] sm:$0xff]
    %v2593 = vld [vmem:[#allocation3 + $0x748] sm:$0xff]
    %v2594 = vld [vmem:[#allocation3 + $0x750] sm:$0xff]
    %v2595 = vld [vmem:[#allocation3 + $0x758] sm:$0xff]
    %v2596 = vld [vmem:[#allocation3 + $0x760] sm:$0xff]
    %v2597 = vld [vmem:[#allocation3 + $0x768] sm:$0xff]
    %v2598 = vld [vmem:[#allocation3 + $0x770] sm:$0xff]
    %v2599 = vld [vmem:[#allocation3 + $0x778] sm:$0xff]
    %v2600 = vld [vmem:[#allocation3 + $0x780] sm:$0xff]
    %v2601 = vld [vmem:[#allocation3 + $0x788] sm:$0xff]
    %v2602 = vld [vmem:[#allocation3 + $0x790] sm:$0xff]
    %v2603 = vld [vmem:[#allocation3 + $0x798] sm:$0xff]
    %v2604 = vld [vmem:[#allocation3 + $0x7a0] sm:$0xff]
    %v2605 = vld [vmem:[#allocation3 + $0x7a8] sm:$0xff]
    %v2606 = vld [vmem:[#allocation3 + $0x7b0] sm:$0xff]
    %v2607 = vld [vmem:[#allocation3 + $0x7b8] sm:$0xff]
    %v2608 = vld [vmem:[#allocation3 + $0x7c0] sm:$0xff]
    %v2609 = vld [vmem:[#allocation3 + $0x7c8] sm:$0xff]
    %v2610 = vld [vmem:[#allocation3 + $0x7d0] sm:$0xff]
    %v2611 = vld [vmem:[#allocation3 + $0x7d8] sm:$0xff]
    %v2612 = vld [vmem:[#allocation3 + $0x7e0] sm:$0xff]
    %v2613 = vld [vmem:[#allocation3 + $0x7e8] sm:$0xff]
    %v2614 = vld [vmem:[#allocation3 + $0x7f0] sm:$0xff]
    %v2615 = vld [vmem:[#allocation3 + $0x7f8] sm:$0xff]
    %v2616 = vld [vmem:[#allocation3 + $0x800] sm:$0xff]
    %v2617 = vld [vmem:[#allocation3 + $0x808] sm:$0xff]
    %v2618 = vld [vmem:[#allocation3 + $0x810] sm:$0xff]
    %v2619 = vld [vmem:[#allocation3 + $0x818] sm:$0xff]
    %v2620 = vld [vmem:[#allocation3 + $0x820] sm:$0xff]
    %v2621 = vld [vmem:[#allocation3 + $0x828] sm:$0xff]
    %v2622 = vld [vmem:[#allocation3 + $0x830] sm:$0xff]
    %v2623 = vld [vmem:[#allocation3 + $0x838] sm:$0xff]
    %v2624 = vld [vmem:[#allocation3 + $0x840] sm:$0xff]
    %v2625 = vld [vmem:[#allocation3 + $0x848] sm:$0xff]
    %v2626 = vld [vmem:[#allocation3 + $0x850] sm:$0xff]
    %v2627 = vld [vmem:[#allocation3 + $0x858] sm:$0xff]
    %v2628 = vld [vmem:[#allocation3 + $0x860] sm:$0xff]
    %v2629 = vld [vmem:[#allocation3 + $0x868] sm:$0xff]
    %v2630 = vld [vmem:[#allocation3 + $0x870] sm:$0xff]
    %v2631 = vld [vmem:[#allocation3 + $0x878] sm:$0xff]
    %v2632 = vld [vmem:[#allocation3 + $0x880] sm:$0xff]
    %v2633 = vld [vmem:[#allocation3 + $0x888] sm:$0xff]
    %v2634 = vld [vmem:[#allocation3 + $0x890] sm:$0xff]
    %v2635 = vld [vmem:[#allocation3 + $0x898] sm:$0xff]
    %v2636 = vld [vmem:[#allocation3 + $0x8a0] sm:$0xff]
    %v2637 = vld [vmem:[#allocation3 + $0x8a8] sm:$0xff]
    %v2638 = vld [vmem:[#allocation3 + $0x8b0] sm:$0xff]
    %v2639 = vld [vmem:[#allocation3 + $0x8b8] sm:$0xff]
    %v2640 = vld [vmem:[#allocation3 + $0x8c0] sm:$0xff]
    %v2641 = vld [vmem:[#allocation3 + $0x8c8] sm:$0xff]
    %v2642 = vld [vmem:[#allocation3 + $0x8d0] sm:$0xff]
    %v2643 = vld [vmem:[#allocation3 + $0x8d8] sm:$0xff]
    %v2644 = vld [vmem:[#allocation3 + $0x8e0] sm:$0xff]
    %v2645 = vld [vmem:[#allocation3 + $0x8e8] sm:$0xff]
    %v2646 = vld [vmem:[#allocation3 + $0x8f0] sm:$0xff]
    %v2647 = vld [vmem:[#allocation3 + $0x8f8] sm:$0xff]
    %v2648 = vld [vmem:[#allocation3 + $0x900] sm:$0xff]
    %v2649 = vld [vmem:[#allocation3 + $0x908] sm:$0xff]
    %v2650 = vld [vmem:[#allocation3 + $0x910] sm:$0xff]
    %v2651 = vld [vmem:[#allocation3 + $0x918] sm:$0xff]
    %v2652 = vld [vmem:[#allocation3 + $0x920] sm:$0xff]
    %v2653 = vld [vmem:[#allocation3 + $0x928] sm:$0xff]
    %v2654 = vld [vmem:[#allocation3 + $0x930] sm:$0xff]
    %v2655 = vld [vmem:[#allocation3 + $0x938] sm:$0xff]
    %v2656 = vld [vmem:[#allocation3 + $0x940] sm:$0xff]
    %v2657 = vld [vmem:[#allocation3 + $0x948] sm:$0xff]
    %v2658 = vld [vmem:[#allocation3 + $0x950] sm:$0xff]
    %v2659 = vld [vmem:[#allocation3 + $0x958] sm:$0xff]
    %v2660 = vld [vmem:[#allocation3 + $0x960] sm:$0xff]
    %v2661 = vld [vmem:[#allocation3 + $0x968] sm:$0xff]
    %v2662 = vld [vmem:[#allocation3 + $0x970] sm:$0xff]
    %v2663 = vld [vmem:[#allocation3 + $0x978] sm:$0xff]
    %v2664 = vld [vmem:[#allocation3 + $0x980] sm:$0xff]
    %v2665 = vld [vmem:[#allocation3 + $0x988] sm:$0xff]
    %v2666 = vld [vmem:[#allocation3 + $0x990] sm:$0xff]
    %v2667 = vld [vmem:[#allocation3 + $0x998] sm:$0xff]
    %v2668 = vld [vmem:[#allocation3 + $0x9a0] sm:$0xff]
    %v2669 = vld [vmem:[#allocation3 + $0x9a8] sm:$0xff]
    %v2670 = vld [vmem:[#allocation3 + $0x9b0] sm:$0xff]
    %v2671 = vld [vmem:[#allocation3 + $0x9b8] sm:$0xff]
    %v2672 = vld [vmem:[#allocation3 + $0x9c0] sm:$0xff]
    %v2673 = vld [vmem:[#allocation3 + $0x9c8] sm:$0xff]
    %v2674 = vld [vmem:[#allocation3 + $0x9d0] sm:$0xff]
    %v2675 = vld [vmem:[#allocation3 + $0x9d8] sm:$0xff]
    %v2676 = vld [vmem:[#allocation3 + $0x9e0] sm:$0xff]
    %v2677 = vld [vmem:[#allocation3 + $0x9e8] sm:$0xff]
    %v2678 = vld [vmem:[#allocation3 + $0x9f0] sm:$0xff]
    %v2679 = vld [vmem:[#allocation3 + $0x9f8] sm:$0xff]
    %v2680 = vld [vmem:[#allocation3 + $0xa00] sm:$0xff]
    %v2681 = vld [vmem:[#allocation3 + $0xa08] sm:$0xff]
    %v2682 = vld [vmem:[#allocation3 + $0xa10] sm:$0xff]
    %v2683 = vld [vmem:[#allocation3 + $0xa18] sm:$0xff]
    %v2684 = vld [vmem:[#allocation3 + $0xa20] sm:$0xff]
    %v2685 = vld [vmem:[#allocation3 + $0xa28] sm:$0xff]
    %v2686 = vld [vmem:[#allocation3 + $0xa30] sm:$0xff]
    %v2687 = vld [vmem:[#allocation3 + $0xa38] sm:$0xff]
    %v2688 = vld [vmem:[#allocation3 + $0xa40] sm:$0xff]
    %v2689 = vld [vmem:[#allocation3 + $0xa48] sm:$0xff]
    %v2690 = vld [vmem:[#allocation3 + $0xa50] sm:$0xff]
    %v2691 = vld [vmem:[#allocation3 + $0xa58] sm:$0xff]
    %v2692 = vld [vmem:[#allocation3 + $0xa60] sm:$0xff]
    %v2693 = vld [vmem:[#allocation3 + $0xa68] sm:$0xff]
    %v2694 = vld [vmem:[#allocation3 + $0xa70] sm:$0xff]
    %v2695 = vld [vmem:[#allocation3 + $0xa78] sm:$0xff]
    %v2696 = vld [vmem:[#allocation3 + $0xa80] sm:$0xff]
    %v2697 = vld [vmem:[#allocation3 + $0xa88] sm:$0xff]
    %v2698 = vld [vmem:[#allocation3 + $0xa90] sm:$0xff]
    %v2699 = vld [vmem:[#allocation3 + $0xa98] sm:$0xff]
    %v2700 = vld [vmem:[#allocation3 + $0xaa0] sm:$0xff]
    %v2701 = vld [vmem:[#allocation3 + $0xaa8] sm:$0xff]
    %v2702 = vld [vmem:[#allocation3 + $0xab0] sm:$0xff]
    %v2703 = vld [vmem:[#allocation3 + $0xab8] sm:$0xff]
    %v2704 = vld [vmem:[#allocation3 + $0xac0] sm:$0xff]
    %v2705 = vld [vmem:[#allocation3 + $0xac8] sm:$0xff]
    %v2706 = vld [vmem:[#allocation3 + $0xad0] sm:$0xff]
    %v2707 = vld [vmem:[#allocation3 + $0xad8] sm:$0xff]
    %v2708 = vld [vmem:[#allocation3 + $0xae0] sm:$0xff]
    %v2709 = vld [vmem:[#allocation3 + $0xae8] sm:$0xff]
    %v2710 = vld [vmem:[#allocation3 + $0xaf0] sm:$0xff]
    %v2711 = vld [vmem:[#allocation3 + $0xaf8] sm:$0xff]
    %v2712 = vld [vmem:[#allocation3 + $0xb00] sm:$0xff]
    %v2713 = vld [vmem:[#allocation3 + $0xb08] sm:$0xff]
    %v2714 = vld [vmem:[#allocation3 + $0xb10] sm:$0xff]
    %v2715 = vld [vmem:[#allocation3 + $0xb18] sm:$0xff]
    %v2716 = vld [vmem:[#allocation3 + $0xb20] sm:$0xff]
    %v2717 = vld [vmem:[#allocation3 + $0xb28] sm:$0xff]
    %v2718 = vld [vmem:[#allocation3 + $0xb30] sm:$0xff]
    %v2719 = vld [vmem:[#allocation3 + $0xb38] sm:$0xff]
    %v2720 = vld [vmem:[#allocation3 + $0xb40] sm:$0xff]
    %v2721 = vld [vmem:[#allocation3 + $0xb48] sm:$0xff]
    %v2722 = vld [vmem:[#allocation3 + $0xb50] sm:$0xff]
    %v2723 = vld [vmem:[#allocation3 + $0xb58] sm:$0xff]
    %v2724 = vld [vmem:[#allocation3 + $0xb60] sm:$0xff]
    %v2725 = vld [vmem:[#allocation3 + $0xb68] sm:$0xff]
    %v2726 = vld [vmem:[#allocation3 + $0xb70] sm:$0xff]
    %v2727 = vld [vmem:[#allocation3 + $0xb78] sm:$0xff]
    %v2728 = vld [vmem:[#allocation3 + $0xb80] sm:$0xff]
    %v2729 = vld [vmem:[#allocation3 + $0xb88] sm:$0xff]
    %v2730 = vld [vmem:[#allocation3 + $0xb90] sm:$0xff]
    %v2731 = vld [vmem:[#allocation3 + $0xb98] sm:$0xff]
    %v2732 = vld [vmem:[#allocation3 + $0xba0] sm:$0xff]
    %v2733 = vld [vmem:[#allocation3 + $0xba8] sm:$0xff]
    %v2734 = vld [vmem:[#allocation3 + $0xbb0] sm:$0xff]
    %v2735 = vld [vmem:[#allocation3 + $0xbb8] sm:$0xff]
    %v2736 = vld [vmem:[#allocation3 + $0xbc0] sm:$0xff]
    %v2737 = vld [vmem:[#allocation3 + $0xbc8] sm:$0xff]
    %v2738 = vld [vmem:[#allocation3 + $0xbd0] sm:$0xff]
    %v2739 = vld [vmem:[#allocation3 + $0xbd8] sm:$0xff]
    %v2740 = vld [vmem:[#allocation3 + $0xbe0] sm:$0xff]
    %v2741 = vld [vmem:[#allocation3 + $0xbe8] sm:$0xff]
    %v2742 = vld [vmem:[#allocation3 + $0xbf0] sm:$0xff]
    %v2743 = vld [vmem:[#allocation3 + $0xbf8] sm:$0xff]
    %v2744 = vld [vmem:[#allocation3 + $0xc00] sm:$0xff]
    %v2745 = vld [vmem:[#allocation3 + $0xc08] sm:$0xff]
    %v2746 = vld [vmem:[#allocation3 + $0xc10] sm:$0xff]
    %v2747 = vld [vmem:[#allocation3 + $0xc18] sm:$0xff]
    %v2748 = vld [vmem:[#allocation3 + $0xc20] sm:$0xff]
    %v2749 = vld [vmem:[#allocation3 + $0xc28] sm:$0xff]
    %v2750 = vld [vmem:[#allocation3 + $0xc30] sm:$0xff]
    %v2751 = vld [vmem:[#allocation3 + $0xc38] sm:$0xff]
    %v2752 = vld [vmem:[#allocation3 + $0xc40] sm:$0xff]
    %v2753 = vld [vmem:[#allocation3 + $0xc48] sm:$0xff]
    %v2754 = vld [vmem:[#allocation3 + $0xc50] sm:$0xff]
    %v2755 = vld [vmem:[#allocation3 + $0xc58] sm:$0xff]
    %v2756 = vld [vmem:[#allocation3 + $0xc60] sm:$0xff]
    %v2757 = vld [vmem:[#allocation3 + $0xc68] sm:$0xff]
    %v2758 = vld [vmem:[#allocation3 + $0xc70] sm:$0xff]
    %v2759 = vld [vmem:[#allocation3 + $0xc78] sm:$0xff]
    %v2760 = vld [vmem:[#allocation3 + $0xc80] sm:$0xff]
    %v2761 = vld [vmem:[#allocation3 + $0xc88] sm:$0xff]
    %v2762 = vld [vmem:[#allocation3 + $0xc90] sm:$0xff]
    %v2763 = vld [vmem:[#allocation3 + $0xc98] sm:$0xff]
    %v2764 = vld [vmem:[#allocation3 + $0xca0] sm:$0xff]
    %v2765 = vld [vmem:[#allocation3 + $0xca8] sm:$0xff]
    %v2766 = vld [vmem:[#allocation3 + $0xcb0] sm:$0xff]
    %v2767 = vld [vmem:[#allocation3 + $0xcb8] sm:$0xff]
    %v2768 = vld [vmem:[#allocation3 + $0xcc0] sm:$0xff]
    %v2769 = vld [vmem:[#allocation3 + $0xcc8] sm:$0xff]
    %v2770 = vld [vmem:[#allocation3 + $0xcd0] sm:$0xff]
    %v2771 = vld [vmem:[#allocation3 + $0xcd8] sm:$0xff]
    %v2772 = vld [vmem:[#allocation3 + $0xce0] sm:$0xff]
    %v2773 = vld [vmem:[#allocation3 + $0xce8] sm:$0xff]
    %v2774 = vld [vmem:[#allocation3 + $0xcf0] sm:$0xff]
    %v2775 = vld [vmem:[#allocation3 + $0xcf8] sm:$0xff]
    %v2776 = vld [vmem:[#allocation3 + $0xd00] sm:$0xff]
    %v2777 = vld [vmem:[#allocation3 + $0xd08] sm:$0xff]
    %v2778 = vld [vmem:[#allocation3 + $0xd10] sm:$0xff]
    %v2779 = vld [vmem:[#allocation3 + $0xd18] sm:$0xff]
    %v2780 = vld [vmem:[#allocation3 + $0xd20] sm:$0xff]
    %v2781 = vld [vmem:[#allocation3 + $0xd28] sm:$0xff]
    %v2782 = vld [vmem:[#allocation3 + $0xd30] sm:$0xff]
    %v2783 = vld [vmem:[#allocation3 + $0xd38] sm:$0xff]
    %v2784 = vld [vmem:[#allocation3 + $0xd40] sm:$0xff]
    %v2785 = vld [vmem:[#allocation3 + $0xd48] sm:$0xff]
    %v2786 = vld [vmem:[#allocation3 + $0xd50] sm:$0xff]
    %v2787 = vld [vmem:[#allocation3 + $0xd58] sm:$0xff]
    %v2788 = vld [vmem:[#allocation3 + $0xd60] sm:$0xff]
    %v2789 = vld [vmem:[#allocation3 + $0xd68] sm:$0xff]
    %v2790 = vld [vmem:[#allocation3 + $0xd70] sm:$0xff]
    %v2791 = vld [vmem:[#allocation3 + $0xd78] sm:$0xff]
    %v2792 = vld [vmem:[#allocation3 + $0xd80] sm:$0xff]
    %v2793 = vld [vmem:[#allocation3 + $0xd88] sm:$0xff]
    %v2794 = vld [vmem:[#allocation3 + $0xd90] sm:$0xff]
    %v2795 = vld [vmem:[#allocation3 + $0xd98] sm:$0xff]
    %v2796 = vld [vmem:[#allocation3 + $0xda0] sm:$0xff]
    %v2797 = vld [vmem:[#allocation3 + $0xda8] sm:$0xff]
    %v2798 = vld [vmem:[#allocation3 + $0xdb0] sm:$0xff]
    %v2799 = vld [vmem:[#allocation3 + $0xdb8] sm:$0xff]
    %v2800 = vld [vmem:[#allocation3 + $0xdc0] sm:$0xff]
    %v2801 = vld [vmem:[#allocation3 + $0xdc8] sm:$0xff]
    %v2802 = vld [vmem:[#allocation3 + $0xdd0] sm:$0xff]
    %v2803 = vld [vmem:[#allocation3 + $0xdd8] sm:$0xff]
    %v2804 = vld [vmem:[#allocation3 + $0xde0] sm:$0xff]
    %v2805 = vld [vmem:[#allocation3 + $0xde8] sm:$0xff]
    %v2806 = vld [vmem:[#allocation3 + $0xdf0] sm:$0xff]
    %v2807 = vld [vmem:[#allocation3 + $0xdf8] sm:$0xff]
    %v2808 = vld [vmem:[#allocation3 + $0xe00] sm:$0xff]
    %v2809 = vld [vmem:[#allocation3 + $0xe08] sm:$0xff]
    %v2810 = vld [vmem:[#allocation3 + $0xe10] sm:$0xff]
    %v2811 = vld [vmem:[#allocation3 + $0xe18] sm:$0xff]
    %v2812 = vld [vmem:[#allocation3 + $0xe20] sm:$0xff]
    %v2813 = vld [vmem:[#allocation3 + $0xe28] sm:$0xff]
    %v2814 = vld [vmem:[#allocation3 + $0xe30] sm:$0xff]
    %v2815 = vld [vmem:[#allocation3 + $0xe38] sm:$0xff]
    %v2816 = vld [vmem:[#allocation3 + $0xe40] sm:$0xff]
    %v2817 = vld [vmem:[#allocation3 + $0xe48] sm:$0xff]
    %v2818 = vld [vmem:[#allocation3 + $0xe50] sm:$0xff]
    %v2819 = vld [vmem:[#allocation3 + $0xe58] sm:$0xff]
    %v2820 = vld [vmem:[#allocation3 + $0xe60] sm:$0xff]
    %v2821 = vld [vmem:[#allocation3 + $0xe68] sm:$0xff]
    %v2822 = vld [vmem:[#allocation3 + $0xe70] sm:$0xff]
    %v2823 = vld [vmem:[#allocation3 + $0xe78] sm:$0xff]
    %v2824 = vld [vmem:[#allocation3 + $0xe80] sm:$0xff]
    %v2825 = vld [vmem:[#allocation3 + $0xe88] sm:$0xff]
    %v2826 = vld [vmem:[#allocation3 + $0xe90] sm:$0xff]
    %v2827 = vld [vmem:[#allocation3 + $0xe98] sm:$0xff]
    %v2828 = vld [vmem:[#allocation3 + $0xea0] sm:$0xff]
    %v2829 = vld [vmem:[#allocation3 + $0xea8] sm:$0xff]
    %v2830 = vld [vmem:[#allocation3 + $0xeb0] sm:$0xff]
    %v2831 = vld [vmem:[#allocation3 + $0xeb8] sm:$0xff]
    %v2832 = vld [vmem:[#allocation3 + $0xec0] sm:$0xff]
    %v2833 = vld [vmem:[#allocation3 + $0xec8] sm:$0xff]
    %v2834 = vld [vmem:[#allocation3 + $0xed0] sm:$0xff]
    %v2835 = vld [vmem:[#allocation3 + $0xed8] sm:$0xff]
    %v2836 = vld [vmem:[#allocation3 + $0xee0] sm:$0xff]
    %v2837 = vld [vmem:[#allocation3 + $0xee8] sm:$0xff]
    %v2838 = vld [vmem:[#allocation3 + $0xef0] sm:$0xff]
    %v2839 = vld [vmem:[#allocation3 + $0xef8] sm:$0xff]
    %v2840 = vld [vmem:[#allocation3 + $0xf00] sm:$0xff]
    %v2841 = vld [vmem:[#allocation3 + $0xf08] sm:$0xff]
    %v2842 = vld [vmem:[#allocation3 + $0xf10] sm:$0xff]
    %v2843 = vld [vmem:[#allocation3 + $0xf18] sm:$0xff]
    %v2844 = vld [vmem:[#allocation3 + $0xf20] sm:$0xff]
    %v2845 = vld [vmem:[#allocation3 + $0xf28] sm:$0xff]
    %v2846 = vld [vmem:[#allocation3 + $0xf30] sm:$0xff]
    %v2847 = vld [vmem:[#allocation3 + $0xf38] sm:$0xff]
    %v2848 = vld [vmem:[#allocation3 + $0xf40] sm:$0xff]
    %v2849 = vld [vmem:[#allocation3 + $0xf48] sm:$0xff]
    %v2850 = vld [vmem:[#allocation3 + $0xf50] sm:$0xff]
    %v2851 = vld [vmem:[#allocation3 + $0xf58] sm:$0xff]
    %v2852 = vld [vmem:[#allocation3 + $0xf60] sm:$0xff]
    %v2853 = vld [vmem:[#allocation3 + $0xf68] sm:$0xff]
    %v2854 = vld [vmem:[#allocation3 + $0xf70] sm:$0xff]
    %v2855 = vld [vmem:[#allocation3 + $0xf78] sm:$0xff]
    %v2856 = vld [vmem:[#allocation3 + $0xf80] sm:$0xff]
    %v2857 = vld [vmem:[#allocation3 + $0xf88] sm:$0xff]
    %v2858 = vld [vmem:[#allocation3 + $0xf90] sm:$0xff]
    %v2859 = vld [vmem:[#allocation3 + $0xf98] sm:$0xff]
    %v2860 = vld [vmem:[#allocation3 + $0xfa0] sm:$0xff]
    %v2861 = vld [vmem:[#allocation3 + $0xfa8] sm:$0xff]
    %v2862 = vld [vmem:[#allocation3 + $0xfb0] sm:$0xff]
    %v2863 = vld [vmem:[#allocation3 + $0xfb8] sm:$0xff]
    %v2864 = vld [vmem:[#allocation3 + $0xfc0] sm:$0xff]
    %v2865 = vld [vmem:[#allocation3 + $0xfc8] sm:$0xff]
    %v2866 = vld [vmem:[#allocation3 + $0xfd0] sm:$0xff]
    %v2867 = vld [vmem:[#allocation3 + $0xfd8] sm:$0xff]
    %v2868 = vld [vmem:[#allocation3 + $0xfe0] sm:$0xff]
    %v2869 = vld [vmem:[#allocation3 + $0xfe8] sm:$0xff]
    %v2870 = vld [vmem:[#allocation3 + $0xff0] sm:$0xff]
    %v2871 = vld [vmem:[#allocation3 + $0xff8] sm:$0xff]
    %v2872 = vld [vmem:[#allocation3 + $0x1000] sm:$0xff]
    %v2873 = vld [vmem:[#allocation3 + $0x1008] sm:$0xff]
    %v2874 = vld [vmem:[#allocation3 + $0x1010] sm:$0xff]
    %v2875 = vld [vmem:[#allocation3 + $0x1018] sm:$0xff]
    %v2876 = vld [vmem:[#allocation3 + $0x1020] sm:$0xff]
    %v2877 = vld [vmem:[#allocation3 + $0x1028] sm:$0xff]
    %v2878 = vld [vmem:[#allocation3 + $0x1030] sm:$0xff]
    %v2879 = vld [vmem:[#allocation3 + $0x1038] sm:$0xff]
    %v2880 = vld [vmem:[#allocation3 + $0x1040] sm:$0xff]
    %v2881 = vld [vmem:[#allocation3 + $0x1048] sm:$0xff]
    %v2882 = vld [vmem:[#allocation3 + $0x1050] sm:$0xff]
    %v2883 = vld [vmem:[#allocation3 + $0x1058] sm:$0xff]
    %v2884 = vld [vmem:[#allocation3 + $0x1060] sm:$0xff]
    %v2885 = vld [vmem:[#allocation3 + $0x1068] sm:$0xff]
    %v2886 = vld [vmem:[#allocation3 + $0x1070] sm:$0xff]
    %v2887 = vld [vmem:[#allocation3 + $0x1078] sm:$0xff]
    %v2888 = vld [vmem:[#allocation3 + $0x1080] sm:$0xff]
    %v2889 = vld [vmem:[#allocation3 + $0x1088] sm:$0xff]
    %v2890 = vld [vmem:[#allocation3 + $0x1090] sm:$0xff]
    %v2891 = vld [vmem:[#allocation3 + $0x1098] sm:$0xff]
    %v2892 = vld [vmem:[#allocation3 + $0x10a0] sm:$0xff]
    %v2893 = vld [vmem:[#allocation3 + $0x10a8] sm:$0xff]
    %v2894 = vld [vmem:[#allocation3 + $0x10b0] sm:$0xff]
    %v2895 = vld [vmem:[#allocation3 + $0x10b8] sm:$0xff]
    %v2896 = vld [vmem:[#allocation3 + $0x10c0] sm:$0xff]
    %v2897 = vld [vmem:[#allocation3 + $0x10c8] sm:$0xff]
    %v2898 = vld [vmem:[#allocation3 + $0x10d0] sm:$0xff]
    %v2899 = vld [vmem:[#allocation3 + $0x10d8] sm:$0xff]
    %v2900 = vld [vmem:[#allocation3 + $0x10e0] sm:$0xff]
    %v2901 = vld [vmem:[#allocation3 + $0x10e8] sm:$0xff]
    %v2902 = vld [vmem:[#allocation3 + $0x10f0] sm:$0xff]
    %v2903 = vld [vmem:[#allocation3 + $0x10f8] sm:$0xff]
    %v2904 = vld [vmem:[#allocation3 + $0x1100] sm:$0xff]
    %v2905 = vld [vmem:[#allocation3 + $0x1108] sm:$0xff]
    %v2906 = vld [vmem:[#allocation3 + $0x1110] sm:$0xff]
    %v2907 = vld [vmem:[#allocation3 + $0x1118] sm:$0xff]
    %v2908 = vld [vmem:[#allocation3 + $0x1120] sm:$0xff]
    %v2909 = vld [vmem:[#allocation3 + $0x1128] sm:$0xff]
    %v2910 = vld [vmem:[#allocation3 + $0x1130] sm:$0xff]
    %v2911 = vld [vmem:[#allocation3 + $0x1138] sm:$0xff]
    %v2912 = vld [vmem:[#allocation3 + $0x1140] sm:$0xff]
    %v2913 = vld [vmem:[#allocation3 + $0x1148] sm:$0xff]
    %v2914 = vld [vmem:[#allocation3 + $0x1150] sm:$0xff]
    %v2915 = vld [vmem:[#allocation3 + $0x1158] sm:$0xff]
    %v2916 = vld [vmem:[#allocation3 + $0x1160] sm:$0xff]
    %v2917 = vld [vmem:[#allocation3 + $0x1168] sm:$0xff]
    %v2918 = vld [vmem:[#allocation3 + $0x1170] sm:$0xff]
    %v2919 = vld [vmem:[#allocation3 + $0x1178] sm:$0xff]
    %v2920 = vld [vmem:[#allocation3 + $0x1180] sm:$0xff]
    %v2921 = vld [vmem:[#allocation3 + $0x1188] sm:$0xff]
    %v2922 = vld [vmem:[#allocation3 + $0x1190] sm:$0xff]
    %v2923 = vld [vmem:[#allocation3 + $0x1198] sm:$0xff]
    %v2924 = vld [vmem:[#allocation3 + $0x11a0] sm:$0xff]
    %v2925 = vld [vmem:[#allocation3 + $0x11a8] sm:$0xff]
    %v2926 = vld [vmem:[#allocation3 + $0x11b0] sm:$0xff]
    %v2927 = vld [vmem:[#allocation3 + $0x11b8] sm:$0xff]
    %v2928 = vld [vmem:[#allocation3 + $0x11c0] sm:$0xff]
    %v2929 = vld [vmem:[#allocation3 + $0x11c8] sm:$0xff]
    %v2930 = vld [vmem:[#allocation3 + $0x11d0] sm:$0xff]
    %v2931 = vld [vmem:[#allocation3 + $0x11d8] sm:$0xff]
    %v2932 = vld [vmem:[#allocation3 + $0x11e0] sm:$0xff]
    %v2933 = vld [vmem:[#allocation3 + $0x11e8] sm:$0xff]
    %v2934 = vld [vmem:[#allocation3 + $0x11f0] sm:$0xff]
    %v2935 = vld [vmem:[#allocation3 + $0x11f8] sm:$0xff]
    %v2936 = vld [vmem:[#allocation10] sm:$0xff]
    %v2937 = vld [vmem:[#allocation10 + $0x8] sm:$0xff]
    %v2938 = vld [vmem:[#allocation10 + $0x10] sm:$0xff]
    %v2939 = vld [vmem:[#allocation10 + $0x18] sm:$0xff]
    %v2940 = vld [vmem:[#allocation10 + $0x20] sm:$0xff]
    %v2941 = vld [vmem:[#allocation10 + $0x28] sm:$0xff]
    %v2942 = vld [vmem:[#allocation10 + $0x30] sm:$0xff]
    %v2943 = vld [vmem:[#allocation10 + $0x38] sm:$0xff]
    %v2944 = vld [vmem:[#allocation10 + $0x40] sm:$0xff]
    %v2945 = vld [vmem:[#allocation10 + $0x48] sm:$0xff]
    %v2946 = vld [vmem:[#allocation10 + $0x50] sm:$0xff]
    %v2947 = vld [vmem:[#allocation10 + $0x58] sm:$0xff]
    %v2948 = vld [vmem:[#allocation10 + $0x60] sm:$0xff]
    %v2949 = vld [vmem:[#allocation10 + $0x68] sm:$0xff]
    %v2950 = vld [vmem:[#allocation10 + $0x70] sm:$0xff]
    %v2951 = vld [vmem:[#allocation10 + $0x78] sm:$0xff]
    %v2952 = vld [vmem:[#allocation10 + $0x80] sm:$0xff]
    %v2953 = vld [vmem:[#allocation10 + $0x88] sm:$0xff]
    %v2954 = vld [vmem:[#allocation10 + $0x90] sm:$0xff]
    %v2955 = vld [vmem:[#allocation10 + $0x98] sm:$0xff]
    %v2956 = vld [vmem:[#allocation10 + $0xa0] sm:$0xff]
    %v2957 = vld [vmem:[#allocation10 + $0xa8] sm:$0xff]
    %v2958 = vld [vmem:[#allocation10 + $0xb0] sm:$0xff]
    %v2959 = vld [vmem:[#allocation10 + $0xb8] sm:$0xff]
    %v2960 = vld [vmem:[#allocation10 + $0xc0] sm:$0xff]
    %v2961 = vld [vmem:[#allocation10 + $0xc8] sm:$0xff]
    %v2962 = vld [vmem:[#allocation10 + $0xd0] sm:$0xff]
    %v2963 = vld [vmem:[#allocation10 + $0xd8] sm:$0xff]
    %v2964 = vld [vmem:[#allocation10 + $0xe0] sm:$0xff]
    %v2965 = vld [vmem:[#allocation10 + $0xe8] sm:$0xff]
    %v2966 = vld [vmem:[#allocation10 + $0xf0] sm:$0xff]
    %v2967 = vld [vmem:[#allocation10 + $0xf8] sm:$0xff]
    %v2968 = vld [vmem:[#allocation10 + $0x100] sm:$0xff]
    %v2969 = vld [vmem:[#allocation10 + $0x108] sm:$0xff]
    %v2970 = vld [vmem:[#allocation10 + $0x110] sm:$0xff]
    %v2971 = vld [vmem:[#allocation10 + $0x118] sm:$0xff]
    %v2972 = vld [vmem:[#allocation10 + $0x120] sm:$0xff]
    %v2973 = vld [vmem:[#allocation10 + $0x128] sm:$0xff]
    %v2974 = vld [vmem:[#allocation10 + $0x130] sm:$0xff]
    %v2975 = vld [vmem:[#allocation10 + $0x138] sm:$0xff]
    %v2976 = vld [vmem:[#allocation10 + $0x140] sm:$0xff]
    %v2977 = vld [vmem:[#allocation10 + $0x148] sm:$0xff]
    %v2978 = vld [vmem:[#allocation10 + $0x150] sm:$0xff]
    %v2979 = vld [vmem:[#allocation10 + $0x158] sm:$0xff]
    %v2980 = vld [vmem:[#allocation10 + $0x160] sm:$0xff]
    %v2981 = vld [vmem:[#allocation10 + $0x168] sm:$0xff]
    %v2982 = vld [vmem:[#allocation10 + $0x170] sm:$0xff]
    %v2983 = vld [vmem:[#allocation10 + $0x178] sm:$0xff]
    %v2984 = vld [vmem:[#allocation10 + $0x180] sm:$0xff]
    %v2985 = vld [vmem:[#allocation10 + $0x188] sm:$0xff]
    %v2986 = vld [vmem:[#allocation10 + $0x190] sm:$0xff]
    %v2987 = vld [vmem:[#allocation10 + $0x198] sm:$0xff]
    %v2988 = vld [vmem:[#allocation10 + $0x1a0] sm:$0xff]
    %v2989 = vld [vmem:[#allocation10 + $0x1a8] sm:$0xff]
    %v2990 = vld [vmem:[#allocation10 + $0x1b0] sm:$0xff]
    %v2991 = vld [vmem:[#allocation10 + $0x1b8] sm:$0xff]
    %v2992 = vld [vmem:[#allocation10 + $0x1c0] sm:$0xff]
    %v2993 = vld [vmem:[#allocation10 + $0x1c8] sm:$0xff]
    %v2994 = vld [vmem:[#allocation10 + $0x1d0] sm:$0xff]
    %v2995 = vld [vmem:[#allocation10 + $0x1d8] sm:$0xff]
    %v2996 = vld [vmem:[#allocation10 + $0x1e0] sm:$0xff]
    %v2997 = vld [vmem:[#allocation10 + $0x1e8] sm:$0xff]
    %v2998 = vld [vmem:[#allocation10 + $0x1f0] sm:$0xff]
    %v2999 = vld [vmem:[#allocation10 + $0x1f8] sm:$0xff]
    %v3000 = vld [vmem:[#allocation10 + $0x200] sm:$0xff]
    %v3001 = vld [vmem:[#allocation10 + $0x208] sm:$0xff]
    %v3002 = vld [vmem:[#allocation10 + $0x210] sm:$0xff]
    %v3003 = vld [vmem:[#allocation10 + $0x218] sm:$0xff]
    %v3004 = vld [vmem:[#allocation10 + $0x220] sm:$0xff]
    %v3005 = vld [vmem:[#allocation10 + $0x228] sm:$0xff]
    %v3006 = vld [vmem:[#allocation10 + $0x230] sm:$0xff]
    %v3007 = vld [vmem:[#allocation10 + $0x238] sm:$0xff]
    %v3008 = vld [vmem:[#allocation10 + $0x240] sm:$0xff]
    %v3009 = vld [vmem:[#allocation10 + $0x248] sm:$0xff]
    %v3010 = vld [vmem:[#allocation10 + $0x250] sm:$0xff]
    %v3011 = vld [vmem:[#allocation10 + $0x258] sm:$0xff]
    %v3012 = vld [vmem:[#allocation10 + $0x260] sm:$0xff]
    %v3013 = vld [vmem:[#allocation10 + $0x268] sm:$0xff]
    %v3014 = vld [vmem:[#allocation10 + $0x270] sm:$0xff]
    %v3015 = vld [vmem:[#allocation10 + $0x278] sm:$0xff]
    %v3016 = vld [vmem:[#allocation10 + $0x280] sm:$0xff]
    %v3017 = vld [vmem:[#allocation10 + $0x288] sm:$0xff]
    %v3018 = vld [vmem:[#allocation10 + $0x290] sm:$0xff]
    %v3019 = vld [vmem:[#allocation10 + $0x298] sm:$0xff]
    %v3020 = vld [vmem:[#allocation10 + $0x2a0] sm:$0xff]
    %v3021 = vld [vmem:[#allocation10 + $0x2a8] sm:$0xff]
    %v3022 = vld [vmem:[#allocation10 + $0x2b0] sm:$0xff]
    %v3023 = vld [vmem:[#allocation10 + $0x2b8] sm:$0xff]
    %v3024 = vld [vmem:[#allocation10 + $0x2c0] sm:$0xff]
    %v3025 = vld [vmem:[#allocation10 + $0x2c8] sm:$0xff]
    %v3026 = vld [vmem:[#allocation10 + $0x2d0] sm:$0xff]
    %v3027 = vld [vmem:[#allocation10 + $0x2d8] sm:$0xff]
    %v3028 = vld [vmem:[#allocation10 + $0x2e0] sm:$0xff]
    %v3029 = vld [vmem:[#allocation10 + $0x2e8] sm:$0xff]
    %v3030 = vld [vmem:[#allocation10 + $0x2f0] sm:$0xff]
    %v3031 = vld [vmem:[#allocation10 + $0x2f8] sm:$0xff]
    %v3032 = vld [vmem:[#allocation10 + $0x300] sm:$0xff]
    %v3033 = vld [vmem:[#allocation10 + $0x308] sm:$0xff]
    %v3034 = vld [vmem:[#allocation10 + $0x310] sm:$0xff]
    %v3035 = vld [vmem:[#allocation10 + $0x318] sm:$0xff]
    %v3036 = vld [vmem:[#allocation10 + $0x320] sm:$0xff]
    %v3037 = vld [vmem:[#allocation10 + $0x328] sm:$0xff]
    %v3038 = vld [vmem:[#allocation10 + $0x330] sm:$0xff]
    %v3039 = vld [vmem:[#allocation10 + $0x338] sm:$0xff]
    %v3040 = vld [vmem:[#allocation10 + $0x340] sm:$0xff]
    %v3041 = vld [vmem:[#allocation10 + $0x348] sm:$0xff]
    %v3042 = vld [vmem:[#allocation10 + $0x350] sm:$0xff]
    %v3043 = vld [vmem:[#allocation10 + $0x358] sm:$0xff]
    %v3044 = vld [vmem:[#allocation10 + $0x360] sm:$0xff]
    %v3045 = vld [vmem:[#allocation10 + $0x368] sm:$0xff]
    %v3046 = vld [vmem:[#allocation10 + $0x370] sm:$0xff]
    %v3047 = vld [vmem:[#allocation10 + $0x378] sm:$0xff]
    %v3048 = vld [vmem:[#allocation10 + $0x380] sm:$0xff]
    %v3049 = vld [vmem:[#allocation10 + $0x388] sm:$0xff]
    %v3050 = vld [vmem:[#allocation10 + $0x390] sm:$0xff]
    %v3051 = vld [vmem:[#allocation10 + $0x398] sm:$0xff]
    %v3052 = vld [vmem:[#allocation10 + $0x3a0] sm:$0xff]
    %v3053 = vld [vmem:[#allocation10 + $0x3a8] sm:$0xff]
    %v3054 = vld [vmem:[#allocation10 + $0x3b0] sm:$0xff]
    %v3055 = vld [vmem:[#allocation10 + $0x3b8] sm:$0xff]
    %v3056 = vld [vmem:[#allocation10 + $0x3c0] sm:$0xff]
    %v3057 = vld [vmem:[#allocation10 + $0x3c8] sm:$0xff]
    %v3058 = vld [vmem:[#allocation10 + $0x3d0] sm:$0xff]
    %v3059 = vld [vmem:[#allocation10 + $0x3d8] sm:$0xff]
    %v3060 = vld [vmem:[#allocation10 + $0x3e0] sm:$0xff]
    %v3061 = vld [vmem:[#allocation10 + $0x3e8] sm:$0xff]
    %v3062 = vld [vmem:[#allocation10 + $0x3f0] sm:$0xff]
    %v3063 = vld [vmem:[#allocation10 + $0x3f8] sm:$0xff]
    %v3064 = vld [vmem:[#allocation10 + $0x400] sm:$0xff]
    %v3065 = vld [vmem:[#allocation10 + $0x408] sm:$0xff]
    %v3066 = vld [vmem:[#allocation10 + $0x410] sm:$0xff]
    %v3067 = vld [vmem:[#allocation10 + $0x418] sm:$0xff]
    %v3068 = vld [vmem:[#allocation10 + $0x420] sm:$0xff]
    %v3069 = vld [vmem:[#allocation10 + $0x428] sm:$0xff]
    %v3070 = vld [vmem:[#allocation10 + $0x430] sm:$0xff]
    %v3071 = vld [vmem:[#allocation10 + $0x438] sm:$0xff]
    %v3072 = vld [vmem:[#allocation10 + $0x440] sm:$0xff]
    %v3073 = vld [vmem:[#allocation10 + $0x448] sm:$0xff]
    %v3074 = vld [vmem:[#allocation10 + $0x450] sm:$0xff]
    %v3075 = vld [vmem:[#allocation10 + $0x458] sm:$0xff]
    %v3076 = vld [vmem:[#allocation10 + $0x460] sm:$0xff]
    %v3077 = vld [vmem:[#allocation10 + $0x468] sm:$0xff]
    %v3078 = vld [vmem:[#allocation10 + $0x470] sm:$0xff]
    %v3079 = vld [vmem:[#allocation10 + $0x478] sm:$0xff]
    %3080 = vmatprep.subr.mxu0 0.0
    %3081 = vmatpush1.msra.mxu0 %v2951
    %3082 = vmatprep.subr.mxu0 0.0
    %3083 = vmatpush1.msra.mxu0 %v2950
    %3084 = vmatprep.subr.mxu0 0.0
    %3085 = vmatpush1.msra.mxu0 %v2949
    %3086 = vmatprep.subr.mxu0 0.0
    %3087 = vmatpush1.msra.mxu0 %v2948
    %3088 = vmatprep.subr.mxu0 0.0
    %3089 = vmatpush1.msra.mxu0 %v2947
    %3090 = vmatprep.subr.mxu0 0.0
    %3091 = vmatpush1.msra.mxu0 %v2946
    %3092 = vmatprep.subr.mxu0 0.0
    %3093 = vmatpush1.msra.mxu0 %v2945
    %3094 = vmatprep.subr.mxu0 0.0
    %3095 = vmatpush1.msra.mxu0 %v2944
    %3096 = vmatprep.subr.mxu0 0.0
    %3097 = vmatpush1.msra.mxu0 %v2943
    %3098 = vmatprep.subr.mxu0 0.0
    %3099 = vmatpush1.msra.mxu0 %v2942
    %3100 = vmatprep.subr.mxu0 0.0
    %3101 = vmatpush1.msra.mxu0 %v2941
    %3102 = vmatprep.subr.mxu0 0.0
    %3103 = vmatpush1.msra.mxu0 %v2940
    %3104 = vmatprep.subr.mxu0 0.0
    %3105 = vmatpush1.msra.mxu0 %v2939
    %3106 = vmatprep.subr.mxu0 0.0
    %3107 = vmatpush1.msra.mxu0 %v2938
    %3108 = vmatprep.subr.mxu0 0.0
    %3109 = vmatpush1.msra.mxu0 %v2937
    %3110 = vmatprep.subr.mxu0 0.0
    %3111 = vmatpush1.msra.mxu0 %v2936
    %3112 = vmatprep.subr.mxu0 0.0
    %3113 = vmatpush2.msra.mxu0 %v2967
    %3114 = vmatprep.subr.mxu0 0.0
    %3115 = vmatpush2.msra.mxu0 %v2966
    %3116 = vmatprep.subr.mxu0 0.0
    %3117 = vmatpush2.msra.mxu0 %v2965
    %3118 = vmatprep.subr.mxu0 0.0
    %3119 = vmatpush2.msra.mxu0 %v2964
    %3120 = vmatprep.subr.mxu0 0.0
    %3121 = vmatpush2.msra.mxu0 %v2963
    %3122 = vmatprep.subr.mxu0 0.0
    %3123 = vmatpush2.msra.mxu0 %v2962
    %3124 = vmatprep.subr.mxu0 0.0
    %3125 = vmatpush2.msra.mxu0 %v2961
    %3126 = vmatprep.subr.mxu0 0.0
    %3127 = vmatpush2.msra.mxu0 %v2960
    %3128 = vmatprep.subr.mxu0 0.0
    %3129 = vmatpush2.msra.mxu0 %v2959
    %3130 = vmatprep.subr.mxu0 0.0
    %3131 = vmatpush2.msra.mxu0 %v2958
    %3132 = vmatprep.subr.mxu0 0.0
    %3133 = vmatpush2.msra.mxu0 %v2957
    %3134 = vmatprep.subr.mxu0 0.0
    %3135 = vmatpush2.msra.mxu0 %v2956
    %3136 = vmatprep.subr.mxu0 0.0
    %3137 = vmatpush2.msra.mxu0 %v2955
    %3138 = vmatprep.subr.mxu0 0.0
    %3139 = vmatpush2.msra.mxu0 %v2954
    %3140 = vmatprep.subr.mxu0 0.0
    %3141 = vmatpush2.msra.mxu0 %v2953
    %3142 = vmatprep.subr.mxu0 0.0
    %3143 = vmatpush2.msra.mxu0 %v2952
    %3144 = vmatprep.mubr.f32.mxu0 %v2361
    %3145 = vmatmul.mubr.f32.gmra.mxu0 %v2360
    %v3146 = vpop.f32.mrf.mxu0
    %v3147 = vadd.f32 0.0, %v3146
    %v3148 = vpop.f32.mrf.mxu0
    %3149 = vmatprep.mubr.f32.mxu0 %v2370
    %3150 = vmatmul.mubr.f32.gmra.mxu0 %v2369
    %v3151 = vpop.f32.mrf.mxu0
    %v3152 = vadd.f32 0.0, %v3151
    %v3153 = vpop.f32.mrf.mxu0
    %3154 = vmatprep.mubr.f32.mxu0 %v2379
    %3155 = vmatmul.mubr.f32.gmra.mxu0 %v2378
    %v3156 = vpop.f32.mrf.mxu0
    %v3157 = vadd.f32 0.0, %v3156
    %v3158 = vpop.f32.mrf.mxu0
    %3159 = vmatprep.mubr.f32.mxu0 %v2388
    %3160 = vmatmul.mubr.f32.gmra.mxu0 %v2387
    %v3161 = vpop.f32.mrf.mxu0
    %v3162 = vadd.f32 0.0, %v3161
    %v3163 = vpop.f32.mrf.mxu0
    %3164 = vmatprep.mubr.f32.mxu0 %v2397
    %3165 = vmatmul.mubr.f32.gmra.mxu0 %v2396
    %v3166 = vpop.f32.mrf.mxu0
    %v3167 = vadd.f32 0.0, %v3166
    %v3168 = vpop.f32.mrf.mxu0
    %3169 = vmatprep.mubr.f32.mxu0 %v2406
    %3170 = vmatmul.mubr.f32.gmra.mxu0 %v2405
    %v3171 = vpop.f32.mrf.mxu0
    %v3172 = vadd.f32 0.0, %v3171
    %v3173 = vpop.f32.mrf.mxu0
    %3174 = vmatprep.mubr.f32.mxu0 %v2415
    %3175 = vmatmul.mubr.f32.gmra.mxu0 %v2414
    %v3176 = vpop.f32.mrf.mxu0
    %v3177 = vadd.f32 0.0, %v3176
    %v3178 = vpop.f32.mrf.mxu0
    %3179 = vmatprep.mubr.f32.mxu0 %v2424
    %3180 = vmatmul.mubr.f32.gmra.mxu0 %v2423
    %v3181 = vpop.f32.mrf.mxu0
    %v3182 = vadd.f32 0.0, %v3181
    %v3183 = vpop.f32.mrf.mxu0
    %3184 = vmatprep.mubr.f32.mxu0 %v2433
    %3185 = vmatmul.mubr.f32.gmra.mxu0 %v2432
    %v3186 = vpop.f32.mrf.mxu0
    %v3187 = vadd.f32 0.0, %v3186
    %v3188 = vpop.f32.mrf.mxu0
    %3189 = vmatprep.mubr.f32.mxu0 %v2442
    %3190 = vmatmul.mubr.f32.gmra.mxu0 %v2441
    %v3191 = vpop.f32.mrf.mxu0
    %v3192 = vadd.f32 0.0, %v3191
    %v3193 = vpop.f32.mrf.mxu0
    %3194 = vmatprep.mubr.f32.mxu0 %v2451
    %3195 = vmatmul.mubr.f32.gmra.mxu0 %v2450
    %v3196 = vpop.f32.mrf.mxu0
    %v3197 = vadd.f32 0.0, %v3196
    %v3198 = vpop.f32.mrf.mxu0
    %3199 = vmatprep.mubr.f32.mxu0 %v2460
    %3200 = vmatmul.mubr.f32.gmra.mxu0 %v2459
    %v3201 = vpop.f32.mrf.mxu0
    %v3202 = vadd.f32 0.0, %v3201
    %v3203 = vpop.f32.mrf.mxu0
    %3204 = vmatprep.mubr.f32.mxu0 %v2469
    %3205 = vmatmul.mubr.f32.gmra.mxu0 %v2468
    %v3206 = vpop.f32.mrf.mxu0
    %v3207 = vadd.f32 0.0, %v3206
    %v3208 = vpop.f32.mrf.mxu0
    %3209 = vmatprep.mubr.f32.mxu0 %v2478
    %3210 = vmatmul.mubr.f32.gmra.mxu0 %v2477
    %v3211 = vpop.f32.mrf.mxu0
    %v3212 = vadd.f32 0.0, %v3211
    %v3213 = vpop.f32.mrf.mxu0
    %3214 = vmatprep.mubr.f32.mxu0 %v2487
    %3215 = vmatmul.mubr.f32.gmra.mxu0 %v2486
    %v3216 = vpop.f32.mrf.mxu0
    %v3217 = vadd.f32 0.0, %v3216
    %v3218 = vpop.f32.mrf.mxu0
    %3219 = vmatprep.mubr.f32.mxu0 %v2496
    %3220 = vmatmul.mubr.f32.gmra.mxu0 %v2495
    %v3221 = vpop.f32.mrf.mxu0
    %v3222 = vadd.f32 0.0, %v3221
    %v3223 = vpop.f32.mrf.mxu0
    %3224 = vmatprep.mubr.f32.mxu0 %v2505
    %3225 = vmatmul.mubr.f32.gmra.mxu0 %v2504
    %v3226 = vpop.f32.mrf.mxu0
    %v3227 = vadd.f32 0.0, %v3226
    %v3228 = vpop.f32.mrf.mxu0
    %3229 = vmatprep.mubr.f32.mxu0 %v2514
    %3230 = vmatmul.mubr.f32.gmra.mxu0 %v2513
    %v3231 = vpop.f32.mrf.mxu0
    %v3232 = vadd.f32 0.0, %v3231
    %v3233 = vpop.f32.mrf.mxu0
    %3234 = vmatprep.mubr.f32.mxu0 %v2523
    %3235 = vmatmul.mubr.f32.gmra.mxu0 %v2522
    %v3236 = vpop.f32.mrf.mxu0
    %v3237 = vadd.f32 0.0, %v3236
    %v3238 = vpop.f32.mrf.mxu0
    %3239 = vmatprep.mubr.f32.mxu0 %v2532
    %3240 = vmatmul.mubr.f32.gmra.mxu0 %v2531
    %v3241 = vpop.f32.mrf.mxu0
    %v3242 = vadd.f32 0.0, %v3241
    %v3243 = vpop.f32.mrf.mxu0
    %3244 = vmatprep.mubr.f32.mxu0 %v2541
    %3245 = vmatmul.mubr.f32.gmra.mxu0 %v2540
    %v3246 = vpop.f32.mrf.mxu0
    %v3247 = vadd.f32 0.0, %v3246
    %v3248 = vpop.f32.mrf.mxu0
    %3249 = vmatprep.mubr.f32.mxu0 %v2550
    %3250 = vmatmul.mubr.f32.gmra.mxu0 %v2549
    %v3251 = vpop.f32.mrf.mxu0
    %v3252 = vadd.f32 0.0, %v3251
    %v3253 = vpop.f32.mrf.mxu0
    %3254 = vmatprep.mubr.f32.mxu0 %v2559
    %3255 = vmatmul.mubr.f32.gmra.mxu0 %v2558
    %v3256 = vpop.f32.mrf.mxu0
    %v3257 = vadd.f32 0.0, %v3256
    %v3258 = vpop.f32.mrf.mxu0
    %3259 = vmatprep.mubr.f32.mxu0 %v2568
    %3260 = vmatmul.mubr.f32.gmra.mxu0 %v2567
    %v3261 = vpop.f32.mrf.mxu0
    %v3262 = vadd.f32 0.0, %v3261
    %v3263 = vpop.f32.mrf.mxu0
    %3264 = vmatprep.mubr.f32.mxu0 %v2577
    %3265 = vmatmul.mubr.f32.gmra.mxu0 %v2576
    %v3266 = vpop.f32.mrf.mxu0
    %v3267 = vadd.f32 0.0, %v3266
    %v3268 = vpop.f32.mrf.mxu0
    %3269 = vmatprep.mubr.f32.mxu0 %v2586
    %3270 = vmatmul.mubr.f32.gmra.mxu0 %v2585
    %v3271 = vpop.f32.mrf.mxu0
    %v3272 = vadd.f32 0.0, %v3271
    %v3273 = vpop.f32.mrf.mxu0
    %3274 = vmatprep.mubr.f32.mxu0 %v2595
    %3275 = vmatmul.mubr.f32.gmra.mxu0 %v2594
    %v3276 = vpop.f32.mrf.mxu0
    %v3277 = vadd.f32 0.0, %v3276
    %v3278 = vpop.f32.mrf.mxu0
    %3279 = vmatprep.mubr.f32.mxu0 %v2604
    %3280 = vmatmul.mubr.f32.gmra.mxu0 %v2603
    %v3281 = vpop.f32.mrf.mxu0
    %v3282 = vadd.f32 0.0, %v3281
    %v3283 = vpop.f32.mrf.mxu0
    %3284 = vmatprep.mubr.f32.mxu0 %v2613
    %3285 = vmatmul.mubr.f32.gmra.mxu0 %v2612
    %v3286 = vpop.f32.mrf.mxu0
    %v3287 = vadd.f32 0.0, %v3286
    %v3288 = vpop.f32.mrf.mxu0
    %3289 = vmatprep.mubr.f32.mxu0 %v2622
    %3290 = vmatmul.mubr.f32.gmra.mxu0 %v2621
    %v3291 = vpop.f32.mrf.mxu0
    %v3292 = vadd.f32 0.0, %v3291
    %v3293 = vpop.f32.mrf.mxu0
    %3294 = vmatprep.mubr.f32.mxu0 %v2631
    %3295 = vmatmul.mubr.f32.gmra.mxu0 %v2630
    %v3296 = vpop.f32.mrf.mxu0
    %v3297 = vadd.f32 0.0, %v3296
    %v3298 = vpop.f32.mrf.mxu0
    %3299 = vmatprep.mubr.f32.mxu0 %v2640
    %3300 = vmatmul.mubr.f32.gmra.mxu0 %v2639
    %v3301 = vpop.f32.mrf.mxu0
    %v3302 = vadd.f32 0.0, %v3301
    %v3303 = vpop.f32.mrf.mxu0
    %3304 = vmatprep.mubr.f32.mxu0 %v2649
    %3305 = vmatmul.mubr.f32.gmra.mxu0 %v2648
    %v3306 = vpop.f32.mrf.mxu0
    %v3307 = vadd.f32 0.0, %v3306
    %v3308 = vpop.f32.mrf.mxu0
    %3309 = vmatprep.mubr.f32.mxu0 %v2658
    %3310 = vmatmul.mubr.f32.gmra.mxu0 %v2657
    %v3311 = vpop.f32.mrf.mxu0
    %v3312 = vadd.f32 0.0, %v3311
    %v3313 = vpop.f32.mrf.mxu0
    %3314 = vmatprep.mubr.f32.mxu0 %v2667
    %3315 = vmatmul.mubr.f32.gmra.mxu0 %v2666
    %v3316 = vpop.f32.mrf.mxu0
    %v3317 = vadd.f32 0.0, %v3316
    %v3318 = vpop.f32.mrf.mxu0
    %3319 = vmatprep.mubr.f32.mxu0 %v2676
    %3320 = vmatmul.mubr.f32.gmra.mxu0 %v2675
    %v3321 = vpop.f32.mrf.mxu0
    %v3322 = vadd.f32 0.0, %v3321
    %v3323 = vpop.f32.mrf.mxu0
    %3324 = vmatprep.mubr.f32.mxu0 %v2685
    %3325 = vmatmul.mubr.f32.gmra.mxu0 %v2684
    %v3326 = vpop.f32.mrf.mxu0
    %v3327 = vadd.f32 0.0, %v3326
    %v3328 = vpop.f32.mrf.mxu0
    %3329 = vmatprep.mubr.f32.mxu0 %v2694
    %3330 = vmatmul.mubr.f32.gmra.mxu0 %v2693
    %v3331 = vpop.f32.mrf.mxu0
    %v3332 = vadd.f32 0.0, %v3331
    %v3333 = vpop.f32.mrf.mxu0
    %3334 = vmatprep.mubr.f32.mxu0 %v2703
    %3335 = vmatmul.mubr.f32.gmra.mxu0 %v2702
    %v3336 = vpop.f32.mrf.mxu0
    %v3337 = vadd.f32 0.0, %v3336
    %v3338 = vpop.f32.mrf.mxu0
    %3339 = vmatprep.mubr.f32.mxu0 %v2712
    %3340 = vmatmul.mubr.f32.gmra.mxu0 %v2711
    %v3341 = vpop.f32.mrf.mxu0
    %v3342 = vadd.f32 0.0, %v3341
    %v3343 = vpop.f32.mrf.mxu0
    %3344 = vmatprep.mubr.f32.mxu0 %v2721
    %3345 = vmatmul.mubr.f32.gmra.mxu0 %v2720
    %v3346 = vpop.f32.mrf.mxu0
    %v3347 = vadd.f32 0.0, %v3346
    %v3348 = vpop.f32.mrf.mxu0
    %3349 = vmatprep.mubr.f32.mxu0 %v2730
    %3350 = vmatmul.mubr.f32.gmra.mxu0 %v2729
    %v3351 = vpop.f32.mrf.mxu0
    %v3352 = vadd.f32 0.0, %v3351
    %v3353 = vpop.f32.mrf.mxu0
    %3354 = vmatprep.mubr.f32.mxu0 %v2739
    %3355 = vmatmul.mubr.f32.gmra.mxu0 %v2738
    %v3356 = vpop.f32.mrf.mxu0
    %v3357 = vadd.f32 0.0, %v3356
    %v3358 = vpop.f32.mrf.mxu0
    %3359 = vmatprep.mubr.f32.mxu0 %v2748
    %3360 = vmatmul.mubr.f32.gmra.mxu0 %v2747
    %v3361 = vpop.f32.mrf.mxu0
    %v3362 = vadd.f32 0.0, %v3361
    %v3363 = vpop.f32.mrf.mxu0
    %3364 = vmatprep.mubr.f32.mxu0 %v2757
    %3365 = vmatmul.mubr.f32.gmra.mxu0 %v2756
    %v3366 = vpop.f32.mrf.mxu0
    %v3367 = vadd.f32 0.0, %v3366
    %v3368 = vpop.f32.mrf.mxu0
    %3369 = vmatprep.mubr.f32.mxu0 %v2766
    %3370 = vmatmul.mubr.f32.gmra.mxu0 %v2765
    %v3371 = vpop.f32.mrf.mxu0
    %v3372 = vadd.f32 0.0, %v3371
    %v3373 = vpop.f32.mrf.mxu0
    %3374 = vmatprep.mubr.f32.mxu0 %v2775
    %3375 = vmatmul.mubr.f32.gmra.mxu0 %v2774
    %v3376 = vpop.f32.mrf.mxu0
    %v3377 = vadd.f32 0.0, %v3376
    %v3378 = vpop.f32.mrf.mxu0
    %3379 = vmatprep.mubr.f32.mxu0 %v2784
    %3380 = vmatmul.mubr.f32.gmra.mxu0 %v2783
    %v3381 = vpop.f32.mrf.mxu0
    %v3382 = vadd.f32 0.0, %v3381
    %v3383 = vpop.f32.mrf.mxu0
    %3384 = vmatprep.mubr.f32.mxu0 %v2793
    %3385 = vmatmul.mubr.f32.gmra.mxu0 %v2792
    %v3386 = vpop.f32.mrf.mxu0
    %v3387 = vadd.f32 0.0, %v3386
    %v3388 = vpop.f32.mrf.mxu0
    %3389 = vmatprep.mubr.f32.mxu0 %v2802
    %3390 = vmatmul.mubr.f32.gmra.mxu0 %v2801
    %v3391 = vpop.f32.mrf.mxu0
    %v3392 = vadd.f32 0.0, %v3391
    %v3393 = vpop.f32.mrf.mxu0
    %3394 = vmatprep.mubr.f32.mxu0 %v2811
    %3395 = vmatmul.mubr.f32.gmra.mxu0 %v2810
    %v3396 = vpop.f32.mrf.mxu0
    %v3397 = vadd.f32 0.0, %v3396
    %v3398 = vpop.f32.mrf.mxu0
    %3399 = vmatprep.mubr.f32.mxu0 %v2820
    %3400 = vmatmul.mubr.f32.gmra.mxu0 %v2819
    %v3401 = vpop.f32.mrf.mxu0
    %v3402 = vadd.f32 0.0, %v3401
    %v3403 = vpop.f32.mrf.mxu0
    %3404 = vmatprep.mubr.f32.mxu0 %v2829
    %3405 = vmatmul.mubr.f32.gmra.mxu0 %v2828
    %v3406 = vpop.f32.mrf.mxu0
    %v3407 = vadd.f32 0.0, %v3406
    %v3408 = vpop.f32.mrf.mxu0
    %3409 = vmatprep.mubr.f32.mxu0 %v2838
    %3410 = vmatmul.mubr.f32.gmra.mxu0 %v2837
    %v3411 = vpop.f32.mrf.mxu0
    %v3412 = vadd.f32 0.0, %v3411
    %v3413 = vpop.f32.mrf.mxu0
    %3414 = vmatprep.mubr.f32.mxu0 %v2847
    %3415 = vmatmul.mubr.f32.gmra.mxu0 %v2846
    %v3416 = vpop.f32.mrf.mxu0
    %v3417 = vadd.f32 0.0, %v3416
    %v3418 = vpop.f32.mrf.mxu0
    %3419 = vmatprep.mubr.f32.mxu0 %v2856
    %3420 = vmatmul.mubr.f32.gmra.mxu0 %v2855
    %v3421 = vpop.f32.mrf.mxu0
    %v3422 = vadd.f32 0.0, %v3421
    %v3423 = vpop.f32.mrf.mxu0
    %3424 = vmatprep.mubr.f32.mxu0 %v2865
    %3425 = vmatmul.mubr.f32.gmra.mxu0 %v2864
    %v3426 = vpop.f32.mrf.mxu0
    %v3427 = vadd.f32 0.0, %v3426
    %v3428 = vpop.f32.mrf.mxu0
    %3429 = vmatprep.mubr.f32.mxu0 %v2874
    %3430 = vmatmul.mubr.f32.gmra.mxu0 %v2873
    %v3431 = vpop.f32.mrf.mxu0
    %v3432 = vadd.f32 0.0, %v3431
    %v3433 = vpop.f32.mrf.mxu0
    %3434 = vmatprep.mubr.f32.mxu0 %v2883
    %3435 = vmatmul.mubr.f32.gmra.mxu0 %v2882
    %v3436 = vpop.f32.mrf.mxu0
    %v3437 = vadd.f32 0.0, %v3436
    %v3438 = vpop.f32.mrf.mxu0
    %3439 = vmatprep.mubr.f32.mxu0 %v2892
    %3440 = vmatmul.mubr.f32.gmra.mxu0 %v2891
    %v3441 = vpop.f32.mrf.mxu0
    %v3442 = vadd.f32 0.0, %v3441
    %v3443 = vpop.f32.mrf.mxu0
    %3444 = vmatprep.mubr.f32.mxu0 %v2901
    %3445 = vmatmul.mubr.f32.gmra.mxu0 %v2900
    %v3446 = vpop.f32.mrf.mxu0
    %v3447 = vadd.f32 0.0, %v3446
    %v3448 = vpop.f32.mrf.mxu0
    %3449 = vmatprep.mubr.f32.mxu0 %v2910
    %3450 = vmatmul.mubr.f32.gmra.mxu0 %v2909
    %v3451 = vpop.f32.mrf.mxu0
    %v3452 = vadd.f32 0.0, %v3451
    %v3453 = vpop.f32.mrf.mxu0
    %3454 = vmatprep.mubr.f32.mxu0 %v2919
    %3455 = vmatmul.mubr.f32.gmra.mxu0 %v2918
    %v3456 = vpop.f32.mrf.mxu0
    %v3457 = vadd.f32 0.0, %v3456
    %v3458 = vpop.f32.mrf.mxu0
    %3459 = vmatprep.mubr.f32.mxu0 %v2928
    %3460 = vmatmul.mubr.f32.gmra.mxu0 %v2927
    %v3461 = vpop.f32.mrf.mxu0
    %v3462 = vadd.f32 0.0, %v3461
    %v3463 = vpop.f32.mrf.mxu0
    %3464 = vdwg.mxu0
    %3465 = vmatprep.subr.mxu0 0.0
    %3466 = vmatpush1.msra.mxu0 %v2983
    %3467 = vmatprep.subr.mxu0 0.0
    %3468 = vmatpush1.msra.mxu0 %v2982
    %3469 = vmatprep.subr.mxu0 0.0
    %3470 = vmatpush1.msra.mxu0 %v2981
    %3471 = vmatprep.subr.mxu0 0.0
    %3472 = vmatpush1.msra.mxu0 %v2980
    %3473 = vmatprep.subr.mxu0 0.0
    %3474 = vmatpush1.msra.mxu0 %v2979
    %3475 = vmatprep.subr.mxu0 0.0
    %3476 = vmatpush1.msra.mxu0 %v2978
    %3477 = vmatprep.subr.mxu0 0.0
    %3478 = vmatpush1.msra.mxu0 %v2977
    %3479 = vmatprep.subr.mxu0 0.0
    %3480 = vmatpush1.msra.mxu0 %v2976
    %3481 = vmatprep.subr.mxu0 0.0
    %3482 = vmatpush1.msra.mxu0 %v2975
    %3483 = vmatprep.subr.mxu0 0.0
    %3484 = vmatpush1.msra.mxu0 %v2974
    %3485 = vmatprep.subr.mxu0 0.0
    %3486 = vmatpush1.msra.mxu0 %v2973
    %3487 = vmatprep.subr.mxu0 0.0
    %3488 = vmatpush1.msra.mxu0 %v2972
    %3489 = vmatprep.subr.mxu0 0.0
    %3490 = vmatpush1.msra.mxu0 %v2971
    %3491 = vmatprep.subr.mxu0 0.0
    %3492 = vmatpush1.msra.mxu0 %v2970
    %3493 = vmatprep.subr.mxu0 0.0
    %3494 = vmatpush1.msra.mxu0 %v2969
    %3495 = vmatprep.subr.mxu0 0.0
    %3496 = vmatpush1.msra.mxu0 %v2968
    %3497 = vmatprep.subr.mxu0 0.0
    %3498 = vmatpush2.msra.mxu0 %v2999
    %3499 = vmatprep.subr.mxu0 0.0
    %3500 = vmatpush2.msra.mxu0 %v2998
    %3501 = vmatprep.subr.mxu0 0.0
    %3502 = vmatpush2.msra.mxu0 %v2997
    %3503 = vmatprep.subr.mxu0 0.0
    %3504 = vmatpush2.msra.mxu0 %v2996
    %3505 = vmatprep.subr.mxu0 0.0
    %3506 = vmatpush2.msra.mxu0 %v2995
    %3507 = vmatprep.subr.mxu0 0.0
    %3508 = vmatpush2.msra.mxu0 %v2994
    %3509 = vmatprep.subr.mxu0 0.0
    %3510 = vmatpush2.msra.mxu0 %v2993
    %3511 = vmatprep.subr.mxu0 0.0
    %3512 = vmatpush2.msra.mxu0 %v2992
    %3513 = vmatprep.subr.mxu0 0.0
    %3514 = vmatpush2.msra.mxu0 %v2991
    %3515 = vmatprep.subr.mxu0 0.0
    %3516 = vmatpush2.msra.mxu0 %v2990
    %3517 = vmatprep.subr.mxu0 0.0
    %3518 = vmatpush2.msra.mxu0 %v2989
    %3519 = vmatprep.subr.mxu0 0.0
    %3520 = vmatpush2.msra.mxu0 %v2988
    %3521 = vmatprep.subr.mxu0 0.0
    %3522 = vmatpush2.msra.mxu0 %v2987
    %3523 = vmatprep.subr.mxu0 0.0
    %3524 = vmatpush2.msra.mxu0 %v2986
    %3525 = vmatprep.subr.mxu0 0.0
    %3526 = vmatpush2.msra.mxu0 %v2985
    %3527 = vmatprep.subr.mxu0 0.0
    %3528 = vmatpush2.msra.mxu0 %v2984
    %3529 = vmatprep.mubr.f32.mxu0 %v2363
    %3530 = vmatmul.mubr.f32.gmra.mxu0 %v2362
    %v3531 = vpop.f32.mrf.mxu0
    %v3532 = vadd.f32 %v3147, %v3531
    %v3533 = vpop.f32.mrf.mxu0
    %3534 = vmatprep.mubr.f32.mxu0 %v2372
    %3535 = vmatmul.mubr.f32.gmra.mxu0 %v2371
    %v3536 = vpop.f32.mrf.mxu0
    %v3537 = vadd.f32 %v3152, %v3536
    %v3538 = vpop.f32.mrf.mxu0
    %3539 = vmatprep.mubr.f32.mxu0 %v2381
    %3540 = vmatmul.mubr.f32.gmra.mxu0 %v2380
    %v3541 = vpop.f32.mrf.mxu0
    %v3542 = vadd.f32 %v3157, %v3541
    %v3543 = vpop.f32.mrf.mxu0
    %3544 = vmatprep.mubr.f32.mxu0 %v2390
    %3545 = vmatmul.mubr.f32.gmra.mxu0 %v2389
    %v3546 = vpop.f32.mrf.mxu0
    %v3547 = vadd.f32 %v3162, %v3546
    %v3548 = vpop.f32.mrf.mxu0
    %3549 = vmatprep.mubr.f32.mxu0 %v2399
    %3550 = vmatmul.mubr.f32.gmra.mxu0 %v2398
    %v3551 = vpop.f32.mrf.mxu0
    %v3552 = vadd.f32 %v3167, %v3551
    %v3553 = vpop.f32.mrf.mxu0
    %3554 = vmatprep.mubr.f32.mxu0 %v2408
    %3555 = vmatmul.mubr.f32.gmra.mxu0 %v2407
    %v3556 = vpop.f32.mrf.mxu0
    %v3557 = vadd.f32 %v3172, %v3556
    %v3558 = vpop.f32.mrf.mxu0
    %3559 = vmatprep.mubr.f32.mxu0 %v2417
    %3560 = vmatmul.mubr.f32.gmra.mxu0 %v2416
    %v3561 = vpop.f32.mrf.mxu0
    %v3562 = vadd.f32 %v3177, %v3561
    %v3563 = vpop.f32.mrf.mxu0
    %3564 = vmatprep.mubr.f32.mxu0 %v2426
    %3565 = vmatmul.mubr.f32.gmra.mxu0 %v2425
    %v3566 = vpop.f32.mrf.mxu0
    %v3567 = vadd.f32 %v3182, %v3566
    %v3568 = vpop.f32.mrf.mxu0
    %3569 = vmatprep.mubr.f32.mxu0 %v2435
    %3570 = vmatmul.mubr.f32.gmra.mxu0 %v2434
    %v3571 = vpop.f32.mrf.mxu0
    %v3572 = vadd.f32 %v3187, %v3571
    %v3573 = vpop.f32.mrf.mxu0
    %3574 = vmatprep.mubr.f32.mxu0 %v2444
    %3575 = vmatmul.mubr.f32.gmra.mxu0 %v2443
    %v3576 = vpop.f32.mrf.mxu0
    %v3577 = vadd.f32 %v3192, %v3576
    %v3578 = vpop.f32.mrf.mxu0
    %3579 = vmatprep.mubr.f32.mxu0 %v2453
    %3580 = vmatmul.mubr.f32.gmra.mxu0 %v2452
    %v3581 = vpop.f32.mrf.mxu0
    %v3582 = vadd.f32 %v3197, %v3581
    %v3583 = vpop.f32.mrf.mxu0
    %3584 = vmatprep.mubr.f32.mxu0 %v2462
    %3585 = vmatmul.mubr.f32.gmra.mxu0 %v2461
    %v3586 = vpop.f32.mrf.mxu0
    %v3587 = vadd.f32 %v3202, %v3586
    %v3588 = vpop.f32.mrf.mxu0
    %3589 = vmatprep.mubr.f32.mxu0 %v2471
    %3590 = vmatmul.mubr.f32.gmra.mxu0 %v2470
    %v3591 = vpop.f32.mrf.mxu0
    %v3592 = vadd.f32 %v3207, %v3591
    %v3593 = vpop.f32.mrf.mxu0
    %3594 = vmatprep.mubr.f32.mxu0 %v2480
    %3595 = vmatmul.mubr.f32.gmra.mxu0 %v2479
    %v3596 = vpop.f32.mrf.mxu0
    %v3597 = vadd.f32 %v3212, %v3596
    %v3598 = vpop.f32.mrf.mxu0
    %3599 = vmatprep.mubr.f32.mxu0 %v2489
    %3600 = vmatmul.mubr.f32.gmra.mxu0 %v2488
    %v3601 = vpop.f32.mrf.mxu0
    %v3602 = vadd.f32 %v3217, %v3601
    %v3603 = vpop.f32.mrf.mxu0
    %3604 = vmatprep.mubr.f32.mxu0 %v2498
    %3605 = vmatmul.mubr.f32.gmra.mxu0 %v2497
    %v3606 = vpop.f32.mrf.mxu0
    %v3607 = vadd.f32 %v3222, %v3606
    %v3608 = vpop.f32.mrf.mxu0
    %3609 = vmatprep.mubr.f32.mxu0 %v2507
    %3610 = vmatmul.mubr.f32.gmra.mxu0 %v2506
    %v3611 = vpop.f32.mrf.mxu0
    %v3612 = vadd.f32 %v3227, %v3611
    %v3613 = vpop.f32.mrf.mxu0
    %3614 = vmatprep.mubr.f32.mxu0 %v2516
    %3615 = vmatmul.mubr.f32.gmra.mxu0 %v2515
    %v3616 = vpop.f32.mrf.mxu0
    %v3617 = vadd.f32 %v3232, %v3616
    %v3618 = vpop.f32.mrf.mxu0
    %3619 = vmatprep.mubr.f32.mxu0 %v2525
    %3620 = vmatmul.mubr.f32.gmra.mxu0 %v2524
    %v3621 = vpop.f32.mrf.mxu0
    %v3622 = vadd.f32 %v3237, %v3621
    %v3623 = vpop.f32.mrf.mxu0
    %3624 = vmatprep.mubr.f32.mxu0 %v2534
    %3625 = vmatmul.mubr.f32.gmra.mxu0 %v2533
    %v3626 = vpop.f32.mrf.mxu0
    %v3627 = vadd.f32 %v3242, %v3626
    %v3628 = vpop.f32.mrf.mxu0
    %3629 = vmatprep.mubr.f32.mxu0 %v2543
    %3630 = vmatmul.mubr.f32.gmra.mxu0 %v2542
    %v3631 = vpop.f32.mrf.mxu0
    %v3632 = vadd.f32 %v3247, %v3631
    %v3633 = vpop.f32.mrf.mxu0
    %3634 = vmatprep.mubr.f32.mxu0 %v2552
    %3635 = vmatmul.mubr.f32.gmra.mxu0 %v2551
    %v3636 = vpop.f32.mrf.mxu0
    %v3637 = vadd.f32 %v3252, %v3636
    %v3638 = vpop.f32.mrf.mxu0
    %3639 = vmatprep.mubr.f32.mxu0 %v2561
    %3640 = vmatmul.mubr.f32.gmra.mxu0 %v2560
    %v3641 = vpop.f32.mrf.mxu0
    %v3642 = vadd.f32 %v3257, %v3641
    %v3643 = vpop.f32.mrf.mxu0
    %3644 = vmatprep.mubr.f32.mxu0 %v2570
    %3645 = vmatmul.mubr.f32.gmra.mxu0 %v2569
    %v3646 = vpop.f32.mrf.mxu0
    %v3647 = vadd.f32 %v3262, %v3646
    %v3648 = vpop.f32.mrf.mxu0
    %3649 = vmatprep.mubr.f32.mxu0 %v2579
    %3650 = vmatmul.mubr.f32.gmra.mxu0 %v2578
    %v3651 = vpop.f32.mrf.mxu0
    %v3652 = vadd.f32 %v3267, %v3651
    %v3653 = vpop.f32.mrf.mxu0
    %3654 = vmatprep.mubr.f32.mxu0 %v2588
    %3655 = vmatmul.mubr.f32.gmra.mxu0 %v2587
    %v3656 = vpop.f32.mrf.mxu0
    %v3657 = vadd.f32 %v3272, %v3656
    %v3658 = vpop.f32.mrf.mxu0
    %3659 = vmatprep.mubr.f32.mxu0 %v2597
    %3660 = vmatmul.mubr.f32.gmra.mxu0 %v2596
    %v3661 = vpop.f32.mrf.mxu0
    %v3662 = vadd.f32 %v3277, %v3661
    %v3663 = vpop.f32.mrf.mxu0
    %3664 = vmatprep.mubr.f32.mxu0 %v2606
    %3665 = vmatmul.mubr.f32.gmra.mxu0 %v2605
    %v3666 = vpop.f32.mrf.mxu0
    %v3667 = vadd.f32 %v3282, %v3666
    %v3668 = vpop.f32.mrf.mxu0
    %3669 = vmatprep.mubr.f32.mxu0 %v2615
    %3670 = vmatmul.mubr.f32.gmra.mxu0 %v2614
    %v3671 = vpop.f32.mrf.mxu0
    %v3672 = vadd.f32 %v3287, %v3671
    %v3673 = vpop.f32.mrf.mxu0
    %3674 = vmatprep.mubr.f32.mxu0 %v2624
    %3675 = vmatmul.mubr.f32.gmra.mxu0 %v2623
    %v3676 = vpop.f32.mrf.mxu0
    %v3677 = vadd.f32 %v3292, %v3676
    %v3678 = vpop.f32.mrf.mxu0
    %3679 = vmatprep.mubr.f32.mxu0 %v2633
    %3680 = vmatmul.mubr.f32.gmra.mxu0 %v2632
    %v3681 = vpop.f32.mrf.mxu0
    %v3682 = vadd.f32 %v3297, %v3681
    %v3683 = vpop.f32.mrf.mxu0
    %3684 = vmatprep.mubr.f32.mxu0 %v2642
    %3685 = vmatmul.mubr.f32.gmra.mxu0 %v2641
    %v3686 = vpop.f32.mrf.mxu0
    %v3687 = vadd.f32 %v3302, %v3686
    %v3688 = vpop.f32.mrf.mxu0
    %3689 = vmatprep.mubr.f32.mxu0 %v2651
    %3690 = vmatmul.mubr.f32.gmra.mxu0 %v2650
    %v3691 = vpop.f32.mrf.mxu0
    %v3692 = vadd.f32 %v3307, %v3691
    %v3693 = vpop.f32.mrf.mxu0
    %3694 = vmatprep.mubr.f32.mxu0 %v2660
    %3695 = vmatmul.mubr.f32.gmra.mxu0 %v2659
    %v3696 = vpop.f32.mrf.mxu0
    %v3697 = vadd.f32 %v3312, %v3696
    %v3698 = vpop.f32.mrf.mxu0
    %3699 = vmatprep.mubr.f32.mxu0 %v2669
    %3700 = vmatmul.mubr.f32.gmra.mxu0 %v2668
    %v3701 = vpop.f32.mrf.mxu0
    %v3702 = vadd.f32 %v3317, %v3701
    %v3703 = vpop.f32.mrf.mxu0
    %3704 = vmatprep.mubr.f32.mxu0 %v2678
    %3705 = vmatmul.mubr.f32.gmra.mxu0 %v2677
    %v3706 = vpop.f32.mrf.mxu0
    %v3707 = vadd.f32 %v3322, %v3706
    %v3708 = vpop.f32.mrf.mxu0
    %3709 = vmatprep.mubr.f32.mxu0 %v2687
    %3710 = vmatmul.mubr.f32.gmra.mxu0 %v2686
    %v3711 = vpop.f32.mrf.mxu0
    %v3712 = vadd.f32 %v3327, %v3711
    %v3713 = vpop.f32.mrf.mxu0
    %3714 = vmatprep.mubr.f32.mxu0 %v2696
    %3715 = vmatmul.mubr.f32.gmra.mxu0 %v2695
    %v3716 = vpop.f32.mrf.mxu0
    %v3717 = vadd.f32 %v3332, %v3716
    %v3718 = vpop.f32.mrf.mxu0
    %3719 = vmatprep.mubr.f32.mxu0 %v2705
    %3720 = vmatmul.mubr.f32.gmra.mxu0 %v2704
    %v3721 = vpop.f32.mrf.mxu0
    %v3722 = vadd.f32 %v3337, %v3721
    %v3723 = vpop.f32.mrf.mxu0
    %3724 = vmatprep.mubr.f32.mxu0 %v2714
    %3725 = vmatmul.mubr.f32.gmra.mxu0 %v2713
    %v3726 = vpop.f32.mrf.mxu0
    %v3727 = vadd.f32 %v3342, %v3726
    %v3728 = vpop.f32.mrf.mxu0
    %3729 = vmatprep.mubr.f32.mxu0 %v2723
    %3730 = vmatmul.mubr.f32.gmra.mxu0 %v2722
    %v3731 = vpop.f32.mrf.mxu0
    %v3732 = vadd.f32 %v3347, %v3731
    %v3733 = vpop.f32.mrf.mxu0
    %3734 = vmatprep.mubr.f32.mxu0 %v2732
    %3735 = vmatmul.mubr.f32.gmra.mxu0 %v2731
    %v3736 = vpop.f32.mrf.mxu0
    %v3737 = vadd.f32 %v3352, %v3736
    %v3738 = vpop.f32.mrf.mxu0
    %3739 = vmatprep.mubr.f32.mxu0 %v2741
    %3740 = vmatmul.mubr.f32.gmra.mxu0 %v2740
    %v3741 = vpop.f32.mrf.mxu0
    %v3742 = vadd.f32 %v3357, %v3741
    %v3743 = vpop.f32.mrf.mxu0
    %3744 = vmatprep.mubr.f32.mxu0 %v2750
    %3745 = vmatmul.mubr.f32.gmra.mxu0 %v2749
    %v3746 = vpop.f32.mrf.mxu0
    %v3747 = vadd.f32 %v3362, %v3746
    %v3748 = vpop.f32.mrf.mxu0
    %3749 = vmatprep.mubr.f32.mxu0 %v2759
    %3750 = vmatmul.mubr.f32.gmra.mxu0 %v2758
    %v3751 = vpop.f32.mrf.mxu0
    %v3752 = vadd.f32 %v3367, %v3751
    %v3753 = vpop.f32.mrf.mxu0
    %3754 = vmatprep.mubr.f32.mxu0 %v2768
    %3755 = vmatmul.mubr.f32.gmra.mxu0 %v2767
    %v3756 = vpop.f32.mrf.mxu0
    %v3757 = vadd.f32 %v3372, %v3756
    %v3758 = vpop.f32.mrf.mxu0
    %3759 = vmatprep.mubr.f32.mxu0 %v2777
    %3760 = vmatmul.mubr.f32.gmra.mxu0 %v2776
    %v3761 = vpop.f32.mrf.mxu0
    %v3762 = vadd.f32 %v3377, %v3761
    %v3763 = vpop.f32.mrf.mxu0
    %3764 = vmatprep.mubr.f32.mxu0 %v2786
    %3765 = vmatmul.mubr.f32.gmra.mxu0 %v2785
    %v3766 = vpop.f32.mrf.mxu0
    %v3767 = vadd.f32 %v3382, %v3766
    %v3768 = vpop.f32.mrf.mxu0
    %3769 = vmatprep.mubr.f32.mxu0 %v2795
    %3770 = vmatmul.mubr.f32.gmra.mxu0 %v2794
    %v3771 = vpop.f32.mrf.mxu0
    %v3772 = vadd.f32 %v3387, %v3771
    %v3773 = vpop.f32.mrf.mxu0
    %3774 = vmatprep.mubr.f32.mxu0 %v2804
    %3775 = vmatmul.mubr.f32.gmra.mxu0 %v2803
    %v3776 = vpop.f32.mrf.mxu0
    %v3777 = vadd.f32 %v3392, %v3776
    %v3778 = vpop.f32.mrf.mxu0
    %3779 = vmatprep.mubr.f32.mxu0 %v2813
    %3780 = vmatmul.mubr.f32.gmra.mxu0 %v2812
    %v3781 = vpop.f32.mrf.mxu0
    %v3782 = vadd.f32 %v3397, %v3781
    %v3783 = vpop.f32.mrf.mxu0
    %3784 = vmatprep.mubr.f32.mxu0 %v2822
    %3785 = vmatmul.mubr.f32.gmra.mxu0 %v2821
    %v3786 = vpop.f32.mrf.mxu0
    %v3787 = vadd.f32 %v3402, %v3786
    %v3788 = vpop.f32.mrf.mxu0
    %3789 = vmatprep.mubr.f32.mxu0 %v2831
    %3790 = vmatmul.mubr.f32.gmra.mxu0 %v2830
    %v3791 = vpop.f32.mrf.mxu0
    %v3792 = vadd.f32 %v3407, %v3791
    %v3793 = vpop.f32.mrf.mxu0
    %3794 = vmatprep.mubr.f32.mxu0 %v2840
    %3795 = vmatmul.mubr.f32.gmra.mxu0 %v2839
    %v3796 = vpop.f32.mrf.mxu0
    %v3797 = vadd.f32 %v3412, %v3796
    %v3798 = vpop.f32.mrf.mxu0
    %3799 = vmatprep.mubr.f32.mxu0 %v2849
    %3800 = vmatmul.mubr.f32.gmra.mxu0 %v2848
    %v3801 = vpop.f32.mrf.mxu0
    %v3802 = vadd.f32 %v3417, %v3801
    %v3803 = vpop.f32.mrf.mxu0
    %3804 = vmatprep.mubr.f32.mxu0 %v2858
    %3805 = vmatmul.mubr.f32.gmra.mxu0 %v2857
    %v3806 = vpop.f32.mrf.mxu0
    %v3807 = vadd.f32 %v3422, %v3806
    %v3808 = vpop.f32.mrf.mxu0
    %3809 = vmatprep.mubr.f32.mxu0 %v2867
    %3810 = vmatmul.mubr.f32.gmra.mxu0 %v2866
    %v3811 = vpop.f32.mrf.mxu0
    %v3812 = vadd.f32 %v3427, %v3811
    %v3813 = vpop.f32.mrf.mxu0
    %3814 = vmatprep.mubr.f32.mxu0 %v2876
    %3815 = vmatmul.mubr.f32.gmra.mxu0 %v2875
    %v3816 = vpop.f32.mrf.mxu0
    %v3817 = vadd.f32 %v3432, %v3816
    %v3818 = vpop.f32.mrf.mxu0
    %3819 = vmatprep.mubr.f32.mxu0 %v2885
    %3820 = vmatmul.mubr.f32.gmra.mxu0 %v2884
    %v3821 = vpop.f32.mrf.mxu0
    %v3822 = vadd.f32 %v3437, %v3821
    %v3823 = vpop.f32.mrf.mxu0
    %3824 = vmatprep.mubr.f32.mxu0 %v2894
    %3825 = vmatmul.mubr.f32.gmra.mxu0 %v2893
    %v3826 = vpop.f32.mrf.mxu0
    %v3827 = vadd.f32 %v3442, %v3826
    %v3828 = vpop.f32.mrf.mxu0
    %3829 = vmatprep.mubr.f32.mxu0 %v2903
    %3830 = vmatmul.mubr.f32.gmra.mxu0 %v2902
    %v3831 = vpop.f32.mrf.mxu0
    %v3832 = vadd.f32 %v3447, %v3831
    %v3833 = vpop.f32.mrf.mxu0
    %3834 = vmatprep.mubr.f32.mxu0 %v2912
    %3835 = vmatmul.mubr.f32.gmra.mxu0 %v2911
    %v3836 = vpop.f32.mrf.mxu0
    %v3837 = vadd.f32 %v3452, %v3836
    %v3838 = vpop.f32.mrf.mxu0
    %3839 = vmatprep.mubr.f32.mxu0 %v2921
    %3840 = vmatmul.mubr.f32.gmra.mxu0 %v2920
    %v3841 = vpop.f32.mrf.mxu0
    %v3842 = vadd.f32 %v3457, %v3841
    %v3843 = vpop.f32.mrf.mxu0
    %3844 = vmatprep.mubr.f32.mxu0 %v2930
    %3845 = vmatmul.mubr.f32.gmra.mxu0 %v2929
    %v3846 = vpop.f32.mrf.mxu0
    %v3847 = vadd.f32 %v3462, %v3846
    %v3848 = vpop.f32.mrf.mxu0
    %3849 = vdwg.mxu0
    %3850 = vmatprep.subr.mxu0 0.0
    %3851 = vmatpush1.msra.mxu0 %v3015
    %3852 = vmatprep.subr.mxu0 0.0
    %3853 = vmatpush1.msra.mxu0 %v3014
    %3854 = vmatprep.subr.mxu0 0.0
    %3855 = vmatpush1.msra.mxu0 %v3013
    %3856 = vmatprep.subr.mxu0 0.0
    %3857 = vmatpush1.msra.mxu0 %v3012
    %3858 = vmatprep.subr.mxu0 0.0
    %3859 = vmatpush1.msra.mxu0 %v3011
    %3860 = vmatprep.subr.mxu0 0.0
    %3861 = vmatpush1.msra.mxu0 %v3010
    %3862 = vmatprep.subr.mxu0 0.0
    %3863 = vmatpush1.msra.mxu0 %v3009
    %3864 = vmatprep.subr.mxu0 0.0
    %3865 = vmatpush1.msra.mxu0 %v3008
    %3866 = vmatprep.subr.mxu0 0.0
    %3867 = vmatpush1.msra.mxu0 %v3007
    %3868 = vmatprep.subr.mxu0 0.0
    %3869 = vmatpush1.msra.mxu0 %v3006
    %3870 = vmatprep.subr.mxu0 0.0
    %3871 = vmatpush1.msra.mxu0 %v3005
    %3872 = vmatprep.subr.mxu0 0.0
    %3873 = vmatpush1.msra.mxu0 %v3004
    %3874 = vmatprep.subr.mxu0 0.0
    %3875 = vmatpush1.msra.mxu0 %v3003
    %3876 = vmatprep.subr.mxu0 0.0
    %3877 = vmatpush1.msra.mxu0 %v3002
    %3878 = vmatprep.subr.mxu0 0.0
    %3879 = vmatpush1.msra.mxu0 %v3001
    %3880 = vmatprep.subr.mxu0 0.0
    %3881 = vmatpush1.msra.mxu0 %v3000
    %3882 = vmatprep.subr.mxu0 0.0
    %3883 = vmatpush2.msra.mxu0 %v3031
    %3884 = vmatprep.subr.mxu0 0.0
    %3885 = vmatpush2.msra.mxu0 %v3030
    %3886 = vmatprep.subr.mxu0 0.0
    %3887 = vmatpush2.msra.mxu0 %v3029
    %3888 = vmatprep.subr.mxu0 0.0
    %3889 = vmatpush2.msra.mxu0 %v3028
    %3890 = vmatprep.subr.mxu0 0.0
    %3891 = vmatpush2.msra.mxu0 %v3027
    %3892 = vmatprep.subr.mxu0 0.0
    %3893 = vmatpush2.msra.mxu0 %v3026
    %3894 = vmatprep.subr.mxu0 0.0
    %3895 = vmatpush2.msra.mxu0 %v3025
    %3896 = vmatprep.subr.mxu0 0.0
    %3897 = vmatpush2.msra.mxu0 %v3024
    %3898 = vmatprep.subr.mxu0 0.0
    %3899 = vmatpush2.msra.mxu0 %v3023
    %3900 = vmatprep.subr.mxu0 0.0
    %3901 = vmatpush2.msra.mxu0 %v3022
    %3902 = vmatprep.subr.mxu0 0.0
    %3903 = vmatpush2.msra.mxu0 %v3021
    %3904 = vmatprep.subr.mxu0 0.0
    %3905 = vmatpush2.msra.mxu0 %v3020
    %3906 = vmatprep.subr.mxu0 0.0
    %3907 = vmatpush2.msra.mxu0 %v3019
    %3908 = vmatprep.subr.mxu0 0.0
    %3909 = vmatpush2.msra.mxu0 %v3018
    %3910 = vmatprep.subr.mxu0 0.0
    %3911 = vmatpush2.msra.mxu0 %v3017
    %3912 = vmatprep.subr.mxu0 0.0
    %3913 = vmatpush2.msra.mxu0 %v3016
    %3914 = vmatprep.mubr.f32.mxu0 %v2365
    %3915 = vmatmul.mubr.f32.gmra.mxu0 %v2364
    %v3916 = vpop.f32.mrf.mxu0
    %v3917 = vadd.f32 %v3532, %v3916
    %v3918 = vpop.f32.mrf.mxu0
    %3919 = vmatprep.mubr.f32.mxu0 %v2374
    %3920 = vmatmul.mubr.f32.gmra.mxu0 %v2373
    %v3921 = vpop.f32.mrf.mxu0
    %v3922 = vadd.f32 %v3537, %v3921
    %v3923 = vpop.f32.mrf.mxu0
    %3924 = vmatprep.mubr.f32.mxu0 %v2383
    %3925 = vmatmul.mubr.f32.gmra.mxu0 %v2382
    %v3926 = vpop.f32.mrf.mxu0
    %v3927 = vadd.f32 %v3542, %v3926
    %v3928 = vpop.f32.mrf.mxu0
    %3929 = vmatprep.mubr.f32.mxu0 %v2392
    %3930 = vmatmul.mubr.f32.gmra.mxu0 %v2391
    %v3931 = vpop.f32.mrf.mxu0
    %v3932 = vadd.f32 %v3547, %v3931
    %v3933 = vpop.f32.mrf.mxu0
    %3934 = vmatprep.mubr.f32.mxu0 %v2401
    %3935 = vmatmul.mubr.f32.gmra.mxu0 %v2400
    %v3936 = vpop.f32.mrf.mxu0
    %v3937 = vadd.f32 %v3552, %v3936
    %v3938 = vpop.f32.mrf.mxu0
    %3939 = vmatprep.mubr.f32.mxu0 %v2410
    %3940 = vmatmul.mubr.f32.gmra.mxu0 %v2409
    %v3941 = vpop.f32.mrf.mxu0
    %v3942 = vadd.f32 %v3557, %v3941
    %v3943 = vpop.f32.mrf.mxu0
    %3944 = vmatprep.mubr.f32.mxu0 %v2419
    %3945 = vmatmul.mubr.f32.gmra.mxu0 %v2418
    %v3946 = vpop.f32.mrf.mxu0
    %v3947 = vadd.f32 %v3562, %v3946
    %v3948 = vpop.f32.mrf.mxu0
    %3949 = vmatprep.mubr.f32.mxu0 %v2428
    %3950 = vmatmul.mubr.f32.gmra.mxu0 %v2427
    %v3951 = vpop.f32.mrf.mxu0
    %v3952 = vadd.f32 %v3567, %v3951
    %v3953 = vpop.f32.mrf.mxu0
    %3954 = vmatprep.mubr.f32.mxu0 %v2437
    %3955 = vmatmul.mubr.f32.gmra.mxu0 %v2436
    %v3956 = vpop.f32.mrf.mxu0
    %v3957 = vadd.f32 %v3572, %v3956
    %v3958 = vpop.f32.mrf.mxu0
    %3959 = vmatprep.mubr.f32.mxu0 %v2446
    %3960 = vmatmul.mubr.f32.gmra.mxu0 %v2445
    %v3961 = vpop.f32.mrf.mxu0
    %v3962 = vadd.f32 %v3577, %v3961
    %v3963 = vpop.f32.mrf.mxu0
    %3964 = vmatprep.mubr.f32.mxu0 %v2455
    %3965 = vmatmul.mubr.f32.gmra.mxu0 %v2454
    %v3966 = vpop.f32.mrf.mxu0
    %v3967 = vadd.f32 %v3582, %v3966
    %v3968 = vpop.f32.mrf.mxu0
    %3969 = vmatprep.mubr.f32.mxu0 %v2464
    %3970 = vmatmul.mubr.f32.gmra.mxu0 %v2463
    %v3971 = vpop.f32.mrf.mxu0
    %v3972 = vadd.f32 %v3587, %v3971
    %v3973 = vpop.f32.mrf.mxu0
    %3974 = vmatprep.mubr.f32.mxu0 %v2473
    %3975 = vmatmul.mubr.f32.gmra.mxu0 %v2472
    %v3976 = vpop.f32.mrf.mxu0
    %v3977 = vadd.f32 %v3592, %v3976
    %v3978 = vpop.f32.mrf.mxu0
    %3979 = vmatprep.mubr.f32.mxu0 %v2482
    %3980 = vmatmul.mubr.f32.gmra.mxu0 %v2481
    %v3981 = vpop.f32.mrf.mxu0
    %v3982 = vadd.f32 %v3597, %v3981
    %v3983 = vpop.f32.mrf.mxu0
    %3984 = vmatprep.mubr.f32.mxu0 %v2491
    %3985 = vmatmul.mubr.f32.gmra.mxu0 %v2490
    %v3986 = vpop.f32.mrf.mxu0
    %v3987 = vadd.f32 %v3602, %v3986
    %v3988 = vpop.f32.mrf.mxu0
    %3989 = vmatprep.mubr.f32.mxu0 %v2500
    %3990 = vmatmul.mubr.f32.gmra.mxu0 %v2499
    %v3991 = vpop.f32.mrf.mxu0
    %v3992 = vadd.f32 %v3607, %v3991
    %v3993 = vpop.f32.mrf.mxu0
    %3994 = vmatprep.mubr.f32.mxu0 %v2509
    %3995 = vmatmul.mubr.f32.gmra.mxu0 %v2508
    %v3996 = vpop.f32.mrf.mxu0
    %v3997 = vadd.f32 %v3612, %v3996
    %v3998 = vpop.f32.mrf.mxu0
    %3999 = vmatprep.mubr.f32.mxu0 %v2518
    %4000 = vmatmul.mubr.f32.gmra.mxu0 %v2517
    %v4001 = vpop.f32.mrf.mxu0
    %v4002 = vadd.f32 %v3617, %v4001
    %v4003 = vpop.f32.mrf.mxu0
    %4004 = vmatprep.mubr.f32.mxu0 %v2527
    %4005 = vmatmul.mubr.f32.gmra.mxu0 %v2526
    %v4006 = vpop.f32.mrf.mxu0
    %v4007 = vadd.f32 %v3622, %v4006
    %v4008 = vpop.f32.mrf.mxu0
    %4009 = vmatprep.mubr.f32.mxu0 %v2536
    %4010 = vmatmul.mubr.f32.gmra.mxu0 %v2535
    %v4011 = vpop.f32.mrf.mxu0
    %v4012 = vadd.f32 %v3627, %v4011
    %v4013 = vpop.f32.mrf.mxu0
    %4014 = vmatprep.mubr.f32.mxu0 %v2545
    %4015 = vmatmul.mubr.f32.gmra.mxu0 %v2544
    %v4016 = vpop.f32.mrf.mxu0
    %v4017 = vadd.f32 %v3632, %v4016
    %v4018 = vpop.f32.mrf.mxu0
    %4019 = vmatprep.mubr.f32.mxu0 %v2554
    %4020 = vmatmul.mubr.f32.gmra.mxu0 %v2553
    %v4021 = vpop.f32.mrf.mxu0
    %v4022 = vadd.f32 %v3637, %v4021
    %v4023 = vpop.f32.mrf.mxu0
    %4024 = vmatprep.mubr.f32.mxu0 %v2563
    %4025 = vmatmul.mubr.f32.gmra.mxu0 %v2562
    %v4026 = vpop.f32.mrf.mxu0
    %v4027 = vadd.f32 %v3642, %v4026
    %v4028 = vpop.f32.mrf.mxu0
    %4029 = vmatprep.mubr.f32.mxu0 %v2572
    %4030 = vmatmul.mubr.f32.gmra.mxu0 %v2571
    %v4031 = vpop.f32.mrf.mxu0
    %v4032 = vadd.f32 %v3647, %v4031
    %v4033 = vpop.f32.mrf.mxu0
    %4034 = vmatprep.mubr.f32.mxu0 %v2581
    %4035 = vmatmul.mubr.f32.gmra.mxu0 %v2580
    %v4036 = vpop.f32.mrf.mxu0
    %v4037 = vadd.f32 %v3652, %v4036
    %v4038 = vpop.f32.mrf.mxu0
    %4039 = vmatprep.mubr.f32.mxu0 %v2590
    %4040 = vmatmul.mubr.f32.gmra.mxu0 %v2589
    %v4041 = vpop.f32.mrf.mxu0
    %v4042 = vadd.f32 %v3657, %v4041
    %v4043 = vpop.f32.mrf.mxu0
    %4044 = vmatprep.mubr.f32.mxu0 %v2599
    %4045 = vmatmul.mubr.f32.gmra.mxu0 %v2598
    %v4046 = vpop.f32.mrf.mxu0
    %v4047 = vadd.f32 %v3662, %v4046
    %v4048 = vpop.f32.mrf.mxu0
    %4049 = vmatprep.mubr.f32.mxu0 %v2608
    %4050 = vmatmul.mubr.f32.gmra.mxu0 %v2607
    %v4051 = vpop.f32.mrf.mxu0
    %v4052 = vadd.f32 %v3667, %v4051
    %v4053 = vpop.f32.mrf.mxu0
    %4054 = vmatprep.mubr.f32.mxu0 %v2617
    %4055 = vmatmul.mubr.f32.gmra.mxu0 %v2616
    %v4056 = vpop.f32.mrf.mxu0
    %v4057 = vadd.f32 %v3672, %v4056
    %v4058 = vpop.f32.mrf.mxu0
    %4059 = vmatprep.mubr.f32.mxu0 %v2626
    %4060 = vmatmul.mubr.f32.gmra.mxu0 %v2625
    %v4061 = vpop.f32.mrf.mxu0
    %v4062 = vadd.f32 %v3677, %v4061
    %v4063 = vpop.f32.mrf.mxu0
    %4064 = vmatprep.mubr.f32.mxu0 %v2635
    %4065 = vmatmul.mubr.f32.gmra.mxu0 %v2634
    %v4066 = vpop.f32.mrf.mxu0
    %v4067 = vadd.f32 %v3682, %v4066
    %v4068 = vpop.f32.mrf.mxu0
    %4069 = vmatprep.mubr.f32.mxu0 %v2644
    %4070 = vmatmul.mubr.f32.gmra.mxu0 %v2643
    %v4071 = vpop.f32.mrf.mxu0
    %v4072 = vadd.f32 %v3687, %v4071
    %v4073 = vpop.f32.mrf.mxu0
    %4074 = vmatprep.mubr.f32.mxu0 %v2653
    %4075 = vmatmul.mubr.f32.gmra.mxu0 %v2652
    %v4076 = vpop.f32.mrf.mxu0
    %v4077 = vadd.f32 %v3692, %v4076
    %v4078 = vpop.f32.mrf.mxu0
    %4079 = vmatprep.mubr.f32.mxu0 %v2662
    %4080 = vmatmul.mubr.f32.gmra.mxu0 %v2661
    %v4081 = vpop.f32.mrf.mxu0
    %v4082 = vadd.f32 %v3697, %v4081
    %v4083 = vpop.f32.mrf.mxu0
    %4084 = vmatprep.mubr.f32.mxu0 %v2671
    %4085 = vmatmul.mubr.f32.gmra.mxu0 %v2670
    %v4086 = vpop.f32.mrf.mxu0
    %v4087 = vadd.f32 %v3702, %v4086
    %v4088 = vpop.f32.mrf.mxu0
    %4089 = vmatprep.mubr.f32.mxu0 %v2680
    %4090 = vmatmul.mubr.f32.gmra.mxu0 %v2679
    %v4091 = vpop.f32.mrf.mxu0
    %v4092 = vadd.f32 %v3707, %v4091
    %v4093 = vpop.f32.mrf.mxu0
    %4094 = vmatprep.mubr.f32.mxu0 %v2689
    %4095 = vmatmul.mubr.f32.gmra.mxu0 %v2688
    %v4096 = vpop.f32.mrf.mxu0
    %v4097 = vadd.f32 %v3712, %v4096
    %v4098 = vpop.f32.mrf.mxu0
    %4099 = vmatprep.mubr.f32.mxu0 %v2698
    %4100 = vmatmul.mubr.f32.gmra.mxu0 %v2697
    %v4101 = vpop.f32.mrf.mxu0
    %v4102 = vadd.f32 %v3717, %v4101
    %v4103 = vpop.f32.mrf.mxu0
    %4104 = vmatprep.mubr.f32.mxu0 %v2707
    %4105 = vmatmul.mubr.f32.gmra.mxu0 %v2706
    %v4106 = vpop.f32.mrf.mxu0
    %v4107 = vadd.f32 %v3722, %v4106
    %v4108 = vpop.f32.mrf.mxu0
    %4109 = vmatprep.mubr.f32.mxu0 %v2716
    %4110 = vmatmul.mubr.f32.gmra.mxu0 %v2715
    %v4111 = vpop.f32.mrf.mxu0
    %v4112 = vadd.f32 %v3727, %v4111
    %v4113 = vpop.f32.mrf.mxu0
    %4114 = vmatprep.mubr.f32.mxu0 %v2725
    %4115 = vmatmul.mubr.f32.gmra.mxu0 %v2724
    %v4116 = vpop.f32.mrf.mxu0
    %v4117 = vadd.f32 %v3732, %v4116
    %v4118 = vpop.f32.mrf.mxu0
    %4119 = vmatprep.mubr.f32.mxu0 %v2734
    %4120 = vmatmul.mubr.f32.gmra.mxu0 %v2733
    %v4121 = vpop.f32.mrf.mxu0
    %v4122 = vadd.f32 %v3737, %v4121
    %v4123 = vpop.f32.mrf.mxu0
    %4124 = vmatprep.mubr.f32.mxu0 %v2743
    %4125 = vmatmul.mubr.f32.gmra.mxu0 %v2742
    %v4126 = vpop.f32.mrf.mxu0
    %v4127 = vadd.f32 %v3742, %v4126
    %v4128 = vpop.f32.mrf.mxu0
    %4129 = vmatprep.mubr.f32.mxu0 %v2752
    %4130 = vmatmul.mubr.f32.gmra.mxu0 %v2751
    %v4131 = vpop.f32.mrf.mxu0
    %v4132 = vadd.f32 %v3747, %v4131
    %v4133 = vpop.f32.mrf.mxu0
    %4134 = vmatprep.mubr.f32.mxu0 %v2761
    %4135 = vmatmul.mubr.f32.gmra.mxu0 %v2760
    %v4136 = vpop.f32.mrf.mxu0
    %v4137 = vadd.f32 %v3752, %v4136
    %v4138 = vpop.f32.mrf.mxu0
    %4139 = vmatprep.mubr.f32.mxu0 %v2770
    %4140 = vmatmul.mubr.f32.gmra.mxu0 %v2769
    %v4141 = vpop.f32.mrf.mxu0
    %v4142 = vadd.f32 %v3757, %v4141
    %v4143 = vpop.f32.mrf.mxu0
    %4144 = vmatprep.mubr.f32.mxu0 %v2779
    %4145 = vmatmul.mubr.f32.gmra.mxu0 %v2778
    %v4146 = vpop.f32.mrf.mxu0
    %v4147 = vadd.f32 %v3762, %v4146
    %v4148 = vpop.f32.mrf.mxu0
    %4149 = vmatprep.mubr.f32.mxu0 %v2788
    %4150 = vmatmul.mubr.f32.gmra.mxu0 %v2787
    %v4151 = vpop.f32.mrf.mxu0
    %v4152 = vadd.f32 %v3767, %v4151
    %v4153 = vpop.f32.mrf.mxu0
    %4154 = vmatprep.mubr.f32.mxu0 %v2797
    %4155 = vmatmul.mubr.f32.gmra.mxu0 %v2796
    %v4156 = vpop.f32.mrf.mxu0
    %v4157 = vadd.f32 %v3772, %v4156
    %v4158 = vpop.f32.mrf.mxu0
    %4159 = vmatprep.mubr.f32.mxu0 %v2806
    %4160 = vmatmul.mubr.f32.gmra.mxu0 %v2805
    %v4161 = vpop.f32.mrf.mxu0
    %v4162 = vadd.f32 %v3777, %v4161
    %v4163 = vpop.f32.mrf.mxu0
    %4164 = vmatprep.mubr.f32.mxu0 %v2815
    %4165 = vmatmul.mubr.f32.gmra.mxu0 %v2814
    %v4166 = vpop.f32.mrf.mxu0
    %v4167 = vadd.f32 %v3782, %v4166
    %v4168 = vpop.f32.mrf.mxu0
    %4169 = vmatprep.mubr.f32.mxu0 %v2824
    %4170 = vmatmul.mubr.f32.gmra.mxu0 %v2823
    %v4171 = vpop.f32.mrf.mxu0
    %v4172 = vadd.f32 %v3787, %v4171
    %v4173 = vpop.f32.mrf.mxu0
    %4174 = vmatprep.mubr.f32.mxu0 %v2833
    %4175 = vmatmul.mubr.f32.gmra.mxu0 %v2832
    %v4176 = vpop.f32.mrf.mxu0
    %v4177 = vadd.f32 %v3792, %v4176
    %v4178 = vpop.f32.mrf.mxu0
    %4179 = vmatprep.mubr.f32.mxu0 %v2842
    %4180 = vmatmul.mubr.f32.gmra.mxu0 %v2841
    %v4181 = vpop.f32.mrf.mxu0
    %v4182 = vadd.f32 %v3797, %v4181
    %v4183 = vpop.f32.mrf.mxu0
    %4184 = vmatprep.mubr.f32.mxu0 %v2851
    %4185 = vmatmul.mubr.f32.gmra.mxu0 %v2850
    %v4186 = vpop.f32.mrf.mxu0
    %v4187 = vadd.f32 %v3802, %v4186
    %v4188 = vpop.f32.mrf.mxu0
    %4189 = vmatprep.mubr.f32.mxu0 %v2860
    %4190 = vmatmul.mubr.f32.gmra.mxu0 %v2859
    %v4191 = vpop.f32.mrf.mxu0
    %v4192 = vadd.f32 %v3807, %v4191
    %v4193 = vpop.f32.mrf.mxu0
    %4194 = vmatprep.mubr.f32.mxu0 %v2869
    %4195 = vmatmul.mubr.f32.gmra.mxu0 %v2868
    %v4196 = vpop.f32.mrf.mxu0
    %v4197 = vadd.f32 %v3812, %v4196
    %v4198 = vpop.f32.mrf.mxu0
    %4199 = vmatprep.mubr.f32.mxu0 %v2878
    %4200 = vmatmul.mubr.f32.gmra.mxu0 %v2877
    %v4201 = vpop.f32.mrf.mxu0
    %v4202 = vadd.f32 %v3817, %v4201
    %v4203 = vpop.f32.mrf.mxu0
    %4204 = vmatprep.mubr.f32.mxu0 %v2887
    %4205 = vmatmul.mubr.f32.gmra.mxu0 %v2886
    %v4206 = vpop.f32.mrf.mxu0
    %v4207 = vadd.f32 %v3822, %v4206
    %v4208 = vpop.f32.mrf.mxu0
    %4209 = vmatprep.mubr.f32.mxu0 %v2896
    %4210 = vmatmul.mubr.f32.gmra.mxu0 %v2895
    %v4211 = vpop.f32.mrf.mxu0
    %v4212 = vadd.f32 %v3827, %v4211
    %v4213 = vpop.f32.mrf.mxu0
    %4214 = vmatprep.mubr.f32.mxu0 %v2905
    %4215 = vmatmul.mubr.f32.gmra.mxu0 %v2904
    %v4216 = vpop.f32.mrf.mxu0
    %v4217 = vadd.f32 %v3832, %v4216
    %v4218 = vpop.f32.mrf.mxu0
    %4219 = vmatprep.mubr.f32.mxu0 %v2914
    %4220 = vmatmul.mubr.f32.gmra.mxu0 %v2913
    %v4221 = vpop.f32.mrf.mxu0
    %v4222 = vadd.f32 %v3837, %v4221
    %v4223 = vpop.f32.mrf.mxu0
    %4224 = vmatprep.mubr.f32.mxu0 %v2923
    %4225 = vmatmul.mubr.f32.gmra.mxu0 %v2922
    %v4226 = vpop.f32.mrf.mxu0
    %v4227 = vadd.f32 %v3842, %v4226
    %v4228 = vpop.f32.mrf.mxu0
    %4229 = vmatprep.mubr.f32.mxu0 %v2932
    %4230 = vmatmul.mubr.f32.gmra.mxu0 %v2931
    %v4231 = vpop.f32.mrf.mxu0
    %v4232 = vadd.f32 %v3847, %v4231
    %v4233 = vpop.f32.mrf.mxu0
    %4234 = vdwg.mxu0
    %4235 = vmatprep.subr.mxu0 0.0
    %4236 = vmatpush1.msra.mxu0 %v3047
    %4237 = vmatprep.subr.mxu0 0.0
    %4238 = vmatpush1.msra.mxu0 %v3046
    %4239 = vmatprep.subr.mxu0 0.0
    %4240 = vmatpush1.msra.mxu0 %v3045
    %4241 = vmatprep.subr.mxu0 0.0
    %4242 = vmatpush1.msra.mxu0 %v3044
    %4243 = vmatprep.subr.mxu0 0.0
    %4244 = vmatpush1.msra.mxu0 %v3043
    %4245 = vmatprep.subr.mxu0 0.0
    %4246 = vmatpush1.msra.mxu0 %v3042
    %4247 = vmatprep.subr.mxu0 0.0
    %4248 = vmatpush1.msra.mxu0 %v3041
    %4249 = vmatprep.subr.mxu0 0.0
    %4250 = vmatpush1.msra.mxu0 %v3040
    %4251 = vmatprep.subr.mxu0 0.0
    %4252 = vmatpush1.msra.mxu0 %v3039
    %4253 = vmatprep.subr.mxu0 0.0
    %4254 = vmatpush1.msra.mxu0 %v3038
    %4255 = vmatprep.subr.mxu0 0.0
    %4256 = vmatpush1.msra.mxu0 %v3037
    %4257 = vmatprep.subr.mxu0 0.0
    %4258 = vmatpush1.msra.mxu0 %v3036
    %4259 = vmatprep.subr.mxu0 0.0
    %4260 = vmatpush1.msra.mxu0 %v3035
    %4261 = vmatprep.subr.mxu0 0.0
    %4262 = vmatpush1.msra.mxu0 %v3034
    %4263 = vmatprep.subr.mxu0 0.0
    %4264 = vmatpush1.msra.mxu0 %v3033
    %4265 = vmatprep.subr.mxu0 0.0
    %4266 = vmatpush1.msra.mxu0 %v3032
    %4267 = vmatprep.subr.mxu0 0.0
    %4268 = vmatpush2.msra.mxu0 %v3063
    %4269 = vmatprep.subr.mxu0 0.0
    %4270 = vmatpush2.msra.mxu0 %v3062
    %4271 = vmatprep.subr.mxu0 0.0
    %4272 = vmatpush2.msra.mxu0 %v3061
    %4273 = vmatprep.subr.mxu0 0.0
    %4274 = vmatpush2.msra.mxu0 %v3060
    %4275 = vmatprep.subr.mxu0 0.0
    %4276 = vmatpush2.msra.mxu0 %v3059
    %4277 = vmatprep.subr.mxu0 0.0
    %4278 = vmatpush2.msra.mxu0 %v3058
    %4279 = vmatprep.subr.mxu0 0.0
    %4280 = vmatpush2.msra.mxu0 %v3057
    %4281 = vmatprep.subr.mxu0 0.0
    %4282 = vmatpush2.msra.mxu0 %v3056
    %4283 = vmatprep.subr.mxu0 0.0
    %4284 = vmatpush2.msra.mxu0 %v3055
    %4285 = vmatprep.subr.mxu0 0.0
    %4286 = vmatpush2.msra.mxu0 %v3054
    %4287 = vmatprep.subr.mxu0 0.0
    %4288 = vmatpush2.msra.mxu0 %v3053
    %4289 = vmatprep.subr.mxu0 0.0
    %4290 = vmatpush2.msra.mxu0 %v3052
    %4291 = vmatprep.subr.mxu0 0.0
    %4292 = vmatpush2.msra.mxu0 %v3051
    %4293 = vmatprep.subr.mxu0 0.0
    %4294 = vmatpush2.msra.mxu0 %v3050
    %4295 = vmatprep.subr.mxu0 0.0
    %4296 = vmatpush2.msra.mxu0 %v3049
    %4297 = vmatprep.subr.mxu0 0.0
    %4298 = vmatpush2.msra.mxu0 %v3048
    %4299 = vmatprep.mubr.f32.mxu0 %v2367
    %4300 = vmatmul.mubr.f32.gmra.mxu0 %v2366
    %v4301 = vpop.f32.mrf.mxu0
    %v4302 = vadd.f32 %v3917, %v4301
    %v4303 = vpop.f32.mrf.mxu0
    %4304 = vmatprep.mubr.f32.mxu0 %v2376
    %4305 = vmatmul.mubr.f32.gmra.mxu0 %v2375
    %v4306 = vpop.f32.mrf.mxu0
    %v4307 = vadd.f32 %v3922, %v4306
    %v4308 = vpop.f32.mrf.mxu0
    %4309 = vmatprep.mubr.f32.mxu0 %v2385
    %4310 = vmatmul.mubr.f32.gmra.mxu0 %v2384
    %v4311 = vpop.f32.mrf.mxu0
    %v4312 = vadd.f32 %v3927, %v4311
    %v4313 = vpop.f32.mrf.mxu0
    %4314 = vmatprep.mubr.f32.mxu0 %v2394
    %4315 = vmatmul.mubr.f32.gmra.mxu0 %v2393
    %v4316 = vpop.f32.mrf.mxu0
    %v4317 = vadd.f32 %v3932, %v4316
    %v4318 = vpop.f32.mrf.mxu0
    %4319 = vmatprep.mubr.f32.mxu0 %v2403
    %4320 = vmatmul.mubr.f32.gmra.mxu0 %v2402
    %v4321 = vpop.f32.mrf.mxu0
    %v4322 = vadd.f32 %v3937, %v4321
    %v4323 = vpop.f32.mrf.mxu0
    %4324 = vmatprep.mubr.f32.mxu0 %v2412
    %4325 = vmatmul.mubr.f32.gmra.mxu0 %v2411
    %v4326 = vpop.f32.mrf.mxu0
    %v4327 = vadd.f32 %v3942, %v4326
    %v4328 = vpop.f32.mrf.mxu0
    %4329 = vmatprep.mubr.f32.mxu0 %v2421
    %4330 = vmatmul.mubr.f32.gmra.mxu0 %v2420
    %v4331 = vpop.f32.mrf.mxu0
    %v4332 = vadd.f32 %v3947, %v4331
    %v4333 = vpop.f32.mrf.mxu0
    %4334 = vmatprep.mubr.f32.mxu0 %v2430
    %4335 = vmatmul.mubr.f32.gmra.mxu0 %v2429
    %v4336 = vpop.f32.mrf.mxu0
    %v4337 = vadd.f32 %v3952, %v4336
    %v4338 = vpop.f32.mrf.mxu0
    %4339 = vmatprep.mubr.f32.mxu0 %v2439
    %4340 = vmatmul.mubr.f32.gmra.mxu0 %v2438
    %v4341 = vpop.f32.mrf.mxu0
    %v4342 = vadd.f32 %v3957, %v4341
    %v4343 = vpop.f32.mrf.mxu0
    %4344 = vmatprep.mubr.f32.mxu0 %v2448
    %4345 = vmatmul.mubr.f32.gmra.mxu0 %v2447
    %v4346 = vpop.f32.mrf.mxu0
    %v4347 = vadd.f32 %v3962, %v4346
    %v4348 = vpop.f32.mrf.mxu0
    %4349 = vmatprep.mubr.f32.mxu0 %v2457
    %4350 = vmatmul.mubr.f32.gmra.mxu0 %v2456
    %v4351 = vpop.f32.mrf.mxu0
    %v4352 = vadd.f32 %v3967, %v4351
    %v4353 = vpop.f32.mrf.mxu0
    %4354 = vmatprep.mubr.f32.mxu0 %v2466
    %4355 = vmatmul.mubr.f32.gmra.mxu0 %v2465
    %v4356 = vpop.f32.mrf.mxu0
    %v4357 = vadd.f32 %v3972, %v4356
    %v4358 = vpop.f32.mrf.mxu0
    %4359 = vmatprep.mubr.f32.mxu0 %v2475
    %4360 = vmatmul.mubr.f32.gmra.mxu0 %v2474
    %v4361 = vpop.f32.mrf.mxu0
    %v4362 = vadd.f32 %v3977, %v4361
    %v4363 = vpop.f32.mrf.mxu0
    %4364 = vmatprep.mubr.f32.mxu0 %v2484
    %4365 = vmatmul.mubr.f32.gmra.mxu0 %v2483
    %v4366 = vpop.f32.mrf.mxu0
    %v4367 = vadd.f32 %v3982, %v4366
    %v4368 = vpop.f32.mrf.mxu0
    %4369 = vmatprep.mubr.f32.mxu0 %v2493
    %4370 = vmatmul.mubr.f32.gmra.mxu0 %v2492
    %v4371 = vpop.f32.mrf.mxu0
    %v4372 = vadd.f32 %v3987, %v4371
    %v4373 = vpop.f32.mrf.mxu0
    %4374 = vmatprep.mubr.f32.mxu0 %v2502
    %4375 = vmatmul.mubr.f32.gmra.mxu0 %v2501
    %v4376 = vpop.f32.mrf.mxu0
    %v4377 = vadd.f32 %v3992, %v4376
    %v4378 = vpop.f32.mrf.mxu0
    %4379 = vmatprep.mubr.f32.mxu0 %v2511
    %4380 = vmatmul.mubr.f32.gmra.mxu0 %v2510
    %v4381 = vpop.f32.mrf.mxu0
    %v4382 = vadd.f32 %v3997, %v4381
    %v4383 = vpop.f32.mrf.mxu0
    %4384 = vmatprep.mubr.f32.mxu0 %v2520
    %4385 = vmatmul.mubr.f32.gmra.mxu0 %v2519
    %v4386 = vpop.f32.mrf.mxu0
    %v4387 = vadd.f32 %v4002, %v4386
    %v4388 = vpop.f32.mrf.mxu0
    %4389 = vmatprep.mubr.f32.mxu0 %v2529
    %4390 = vmatmul.mubr.f32.gmra.mxu0 %v2528
    %v4391 = vpop.f32.mrf.mxu0
    %v4392 = vadd.f32 %v4007, %v4391
    %v4393 = vpop.f32.mrf.mxu0
    %4394 = vmatprep.mubr.f32.mxu0 %v2538
    %4395 = vmatmul.mubr.f32.gmra.mxu0 %v2537
    %v4396 = vpop.f32.mrf.mxu0
    %v4397 = vadd.f32 %v4012, %v4396
    %v4398 = vpop.f32.mrf.mxu0
    %4399 = vmatprep.mubr.f32.mxu0 %v2547
    %4400 = vmatmul.mubr.f32.gmra.mxu0 %v2546
    %v4401 = vpop.f32.mrf.mxu0
    %v4402 = vadd.f32 %v4017, %v4401
    %v4403 = vpop.f32.mrf.mxu0
    %4404 = vmatprep.mubr.f32.mxu0 %v2556
    %4405 = vmatmul.mubr.f32.gmra.mxu0 %v2555
    %v4406 = vpop.f32.mrf.mxu0
    %v4407 = vadd.f32 %v4022, %v4406
    %v4408 = vpop.f32.mrf.mxu0
    %4409 = vmatprep.mubr.f32.mxu0 %v2565
    %4410 = vmatmul.mubr.f32.gmra.mxu0 %v2564
    %v4411 = vpop.f32.mrf.mxu0
    %v4412 = vadd.f32 %v4027, %v4411
    %v4413 = vpop.f32.mrf.mxu0
    %4414 = vmatprep.mubr.f32.mxu0 %v2574
    %4415 = vmatmul.mubr.f32.gmra.mxu0 %v2573
    %v4416 = vpop.f32.mrf.mxu0
    %v4417 = vadd.f32 %v4032, %v4416
    %v4418 = vpop.f32.mrf.mxu0
    %4419 = vmatprep.mubr.f32.mxu0 %v2583
    %4420 = vmatmul.mubr.f32.gmra.mxu0 %v2582
    %v4421 = vpop.f32.mrf.mxu0
    %v4422 = vadd.f32 %v4037, %v4421
    %v4423 = vpop.f32.mrf.mxu0
    %4424 = vmatprep.mubr.f32.mxu0 %v2592
    %4425 = vmatmul.mubr.f32.gmra.mxu0 %v2591
    %v4426 = vpop.f32.mrf.mxu0
    %v4427 = vadd.f32 %v4042, %v4426
    %v4428 = vpop.f32.mrf.mxu0
    %4429 = vmatprep.mubr.f32.mxu0 %v2601
    %4430 = vmatmul.mubr.f32.gmra.mxu0 %v2600
    %v4431 = vpop.f32.mrf.mxu0
    %v4432 = vadd.f32 %v4047, %v4431
    %v4433 = vpop.f32.mrf.mxu0
    %4434 = vmatprep.mubr.f32.mxu0 %v2610
    %4435 = vmatmul.mubr.f32.gmra.mxu0 %v2609
    %v4436 = vpop.f32.mrf.mxu0
    %v4437 = vadd.f32 %v4052, %v4436
    %v4438 = vpop.f32.mrf.mxu0
    %4439 = vmatprep.mubr.f32.mxu0 %v2619
    %4440 = vmatmul.mubr.f32.gmra.mxu0 %v2618
    %v4441 = vpop.f32.mrf.mxu0
    %v4442 = vadd.f32 %v4057, %v4441
    %v4443 = vpop.f32.mrf.mxu0
    %4444 = vmatprep.mubr.f32.mxu0 %v2628
    %4445 = vmatmul.mubr.f32.gmra.mxu0 %v2627
    %v4446 = vpop.f32.mrf.mxu0
    %v4447 = vadd.f32 %v4062, %v4446
    %v4448 = vpop.f32.mrf.mxu0
    %4449 = vmatprep.mubr.f32.mxu0 %v2637
    %4450 = vmatmul.mubr.f32.gmra.mxu0 %v2636
    %v4451 = vpop.f32.mrf.mxu0
    %v4452 = vadd.f32 %v4067, %v4451
    %v4453 = vpop.f32.mrf.mxu0
    %4454 = vmatprep.mubr.f32.mxu0 %v2646
    %4455 = vmatmul.mubr.f32.gmra.mxu0 %v2645
    %v4456 = vpop.f32.mrf.mxu0
    %v4457 = vadd.f32 %v4072, %v4456
    %v4458 = vpop.f32.mrf.mxu0
    %4459 = vmatprep.mubr.f32.mxu0 %v2655
    %4460 = vmatmul.mubr.f32.gmra.mxu0 %v2654
    %v4461 = vpop.f32.mrf.mxu0
    %v4462 = vadd.f32 %v4077, %v4461
    %v4463 = vpop.f32.mrf.mxu0
    %4464 = vmatprep.mubr.f32.mxu0 %v2664
    %4465 = vmatmul.mubr.f32.gmra.mxu0 %v2663
    %v4466 = vpop.f32.mrf.mxu0
    %v4467 = vadd.f32 %v4082, %v4466
    %v4468 = vpop.f32.mrf.mxu0
    %4469 = vmatprep.mubr.f32.mxu0 %v2673
    %4470 = vmatmul.mubr.f32.gmra.mxu0 %v2672
    %v4471 = vpop.f32.mrf.mxu0
    %v4472 = vadd.f32 %v4087, %v4471
    %v4473 = vpop.f32.mrf.mxu0
    %4474 = vmatprep.mubr.f32.mxu0 %v2682
    %4475 = vmatmul.mubr.f32.gmra.mxu0 %v2681
    %v4476 = vpop.f32.mrf.mxu0
    %v4477 = vadd.f32 %v4092, %v4476
    %v4478 = vpop.f32.mrf.mxu0
    %4479 = vmatprep.mubr.f32.mxu0 %v2691
    %4480 = vmatmul.mubr.f32.gmra.mxu0 %v2690
    %v4481 = vpop.f32.mrf.mxu0
    %v4482 = vadd.f32 %v4097, %v4481
    %v4483 = vpop.f32.mrf.mxu0
    %4484 = vmatprep.mubr.f32.mxu0 %v2700
    %4485 = vmatmul.mubr.f32.gmra.mxu0 %v2699
    %v4486 = vpop.f32.mrf.mxu0
    %v4487 = vadd.f32 %v4102, %v4486
    %v4488 = vpop.f32.mrf.mxu0
    %4489 = vmatprep.mubr.f32.mxu0 %v2709
    %4490 = vmatmul.mubr.f32.gmra.mxu0 %v2708
    %v4491 = vpop.f32.mrf.mxu0
    %v4492 = vadd.f32 %v4107, %v4491
    %v4493 = vpop.f32.mrf.mxu0
    %4494 = vmatprep.mubr.f32.mxu0 %v2718
    %4495 = vmatmul.mubr.f32.gmra.mxu0 %v2717
    %v4496 = vpop.f32.mrf.mxu0
    %v4497 = vadd.f32 %v4112, %v4496
    %v4498 = vpop.f32.mrf.mxu0
    %4499 = vmatprep.mubr.f32.mxu0 %v2727
    %4500 = vmatmul.mubr.f32.gmra.mxu0 %v2726
    %v4501 = vpop.f32.mrf.mxu0
    %v4502 = vadd.f32 %v4117, %v4501
    %v4503 = vpop.f32.mrf.mxu0
    %4504 = vmatprep.mubr.f32.mxu0 %v2736
    %4505 = vmatmul.mubr.f32.gmra.mxu0 %v2735
    %v4506 = vpop.f32.mrf.mxu0
    %v4507 = vadd.f32 %v4122, %v4506
    %v4508 = vpop.f32.mrf.mxu0
    %4509 = vmatprep.mubr.f32.mxu0 %v2745
    %4510 = vmatmul.mubr.f32.gmra.mxu0 %v2744
    %v4511 = vpop.f32.mrf.mxu0
    %v4512 = vadd.f32 %v4127, %v4511
    %v4513 = vpop.f32.mrf.mxu0
    %4514 = vmatprep.mubr.f32.mxu0 %v2754
    %4515 = vmatmul.mubr.f32.gmra.mxu0 %v2753
    %v4516 = vpop.f32.mrf.mxu0
    %v4517 = vadd.f32 %v4132, %v4516
    %v4518 = vpop.f32.mrf.mxu0
    %4519 = vmatprep.mubr.f32.mxu0 %v2763
    %4520 = vmatmul.mubr.f32.gmra.mxu0 %v2762
    %v4521 = vpop.f32.mrf.mxu0
    %v4522 = vadd.f32 %v4137, %v4521
    %v4523 = vpop.f32.mrf.mxu0
    %4524 = vmatprep.mubr.f32.mxu0 %v2772
    %4525 = vmatmul.mubr.f32.gmra.mxu0 %v2771
    %v4526 = vpop.f32.mrf.mxu0
    %v4527 = vadd.f32 %v4142, %v4526
    %v4528 = vpop.f32.mrf.mxu0
    %4529 = vmatprep.mubr.f32.mxu0 %v2781
    %4530 = vmatmul.mubr.f32.gmra.mxu0 %v2780
    %v4531 = vpop.f32.mrf.mxu0
    %v4532 = vadd.f32 %v4147, %v4531
    %v4533 = vpop.f32.mrf.mxu0
    %4534 = vmatprep.mubr.f32.mxu0 %v2790
    %4535 = vmatmul.mubr.f32.gmra.mxu0 %v2789
    %v4536 = vpop.f32.mrf.mxu0
    %v4537 = vadd.f32 %v4152, %v4536
    %v4538 = vpop.f32.mrf.mxu0
    %4539 = vmatprep.mubr.f32.mxu0 %v2799
    %4540 = vmatmul.mubr.f32.gmra.mxu0 %v2798
    %v4541 = vpop.f32.mrf.mxu0
    %v4542 = vadd.f32 %v4157, %v4541
    %v4543 = vpop.f32.mrf.mxu0
    %4544 = vmatprep.mubr.f32.mxu0 %v2808
    %4545 = vmatmul.mubr.f32.gmra.mxu0 %v2807
    %v4546 = vpop.f32.mrf.mxu0
    %v4547 = vadd.f32 %v4162, %v4546
    %v4548 = vpop.f32.mrf.mxu0
    %4549 = vmatprep.mubr.f32.mxu0 %v2817
    %4550 = vmatmul.mubr.f32.gmra.mxu0 %v2816
    %v4551 = vpop.f32.mrf.mxu0
    %v4552 = vadd.f32 %v4167, %v4551
    %v4553 = vpop.f32.mrf.mxu0
    %4554 = vmatprep.mubr.f32.mxu0 %v2826
    %4555 = vmatmul.mubr.f32.gmra.mxu0 %v2825
    %v4556 = vpop.f32.mrf.mxu0
    %v4557 = vadd.f32 %v4172, %v4556
    %v4558 = vpop.f32.mrf.mxu0
    %4559 = vmatprep.mubr.f32.mxu0 %v2835
    %4560 = vmatmul.mubr.f32.gmra.mxu0 %v2834
    %v4561 = vpop.f32.mrf.mxu0
    %v4562 = vadd.f32 %v4177, %v4561
    %v4563 = vpop.f32.mrf.mxu0
    %4564 = vmatprep.mubr.f32.mxu0 %v2844
    %4565 = vmatmul.mubr.f32.gmra.mxu0 %v2843
    %v4566 = vpop.f32.mrf.mxu0
    %v4567 = vadd.f32 %v4182, %v4566
    %v4568 = vpop.f32.mrf.mxu0
    %4569 = vmatprep.mubr.f32.mxu0 %v2853
    %4570 = vmatmul.mubr.f32.gmra.mxu0 %v2852
    %v4571 = vpop.f32.mrf.mxu0
    %v4572 = vadd.f32 %v4187, %v4571
    %v4573 = vpop.f32.mrf.mxu0
    %4574 = vmatprep.mubr.f32.mxu0 %v2862
    %4575 = vmatmul.mubr.f32.gmra.mxu0 %v2861
    %v4576 = vpop.f32.mrf.mxu0
    %v4577 = vadd.f32 %v4192, %v4576
    %v4578 = vpop.f32.mrf.mxu0
    %4579 = vmatprep.mubr.f32.mxu0 %v2871
    %4580 = vmatmul.mubr.f32.gmra.mxu0 %v2870
    %v4581 = vpop.f32.mrf.mxu0
    %v4582 = vadd.f32 %v4197, %v4581
    %v4583 = vpop.f32.mrf.mxu0
    %4584 = vmatprep.mubr.f32.mxu0 %v2880
    %4585 = vmatmul.mubr.f32.gmra.mxu0 %v2879
    %v4586 = vpop.f32.mrf.mxu0
    %v4587 = vadd.f32 %v4202, %v4586
    %v4588 = vpop.f32.mrf.mxu0
    %4589 = vmatprep.mubr.f32.mxu0 %v2889
    %4590 = vmatmul.mubr.f32.gmra.mxu0 %v2888
    %v4591 = vpop.f32.mrf.mxu0
    %v4592 = vadd.f32 %v4207, %v4591
    %v4593 = vpop.f32.mrf.mxu0
    %4594 = vmatprep.mubr.f32.mxu0 %v2898
    %4595 = vmatmul.mubr.f32.gmra.mxu0 %v2897
    %v4596 = vpop.f32.mrf.mxu0
    %v4597 = vadd.f32 %v4212, %v4596
    %v4598 = vpop.f32.mrf.mxu0
    %4599 = vmatprep.mubr.f32.mxu0 %v2907
    %4600 = vmatmul.mubr.f32.gmra.mxu0 %v2906
    %v4601 = vpop.f32.mrf.mxu0
    %v4602 = vadd.f32 %v4217, %v4601
    %v4603 = vpop.f32.mrf.mxu0
    %4604 = vmatprep.mubr.f32.mxu0 %v2916
    %4605 = vmatmul.mubr.f32.gmra.mxu0 %v2915
    %v4606 = vpop.f32.mrf.mxu0
    %v4607 = vadd.f32 %v4222, %v4606
    %v4608 = vpop.f32.mrf.mxu0
    %4609 = vmatprep.mubr.f32.mxu0 %v2925
    %4610 = vmatmul.mubr.f32.gmra.mxu0 %v2924
    %v4611 = vpop.f32.mrf.mxu0
    %v4612 = vadd.f32 %v4227, %v4611
    %v4613 = vpop.f32.mrf.mxu0
    %4614 = vmatprep.mubr.f32.mxu0 %v2934
    %4615 = vmatmul.mubr.f32.gmra.mxu0 %v2933
    %v4616 = vpop.f32.mrf.mxu0
    %v4617 = vadd.f32 %v4232, %v4616
    %v4618 = vpop.f32.mrf.mxu0
    %4619 = vdwg.mxu0
    %4620 = vmatprep.subr.mxu0 0.0
    %4621 = vmatpush1.msra.mxu0 %v3079
    %4622 = vmatprep.subr.mxu0 0.0
    %4623 = vmatpush1.msra.mxu0 %v3078
    %4624 = vmatprep.subr.mxu0 0.0
    %4625 = vmatpush1.msra.mxu0 %v3077
    %4626 = vmatprep.subr.mxu0 0.0
    %4627 = vmatpush1.msra.mxu0 %v3076
    %4628 = vmatprep.subr.mxu0 0.0
    %4629 = vmatpush1.msra.mxu0 %v3075
    %4630 = vmatprep.subr.mxu0 0.0
    %4631 = vmatpush1.msra.mxu0 %v3074
    %4632 = vmatprep.subr.mxu0 0.0
    %4633 = vmatpush1.msra.mxu0 %v3073
    %4634 = vmatprep.subr.mxu0 0.0
    %4635 = vmatpush1.msra.mxu0 %v3072
    %4636 = vmatprep.subr.mxu0 0.0
    %4637 = vmatpush1.msra.mxu0 %v3071
    %4638 = vmatprep.subr.mxu0 0.0
    %4639 = vmatpush1.msra.mxu0 %v3070
    %4640 = vmatprep.subr.mxu0 0.0
    %4641 = vmatpush1.msra.mxu0 %v3069
    %4642 = vmatprep.subr.mxu0 0.0
    %4643 = vmatpush1.msra.mxu0 %v3068
    %4644 = vmatprep.subr.mxu0 0.0
    %4645 = vmatpush1.msra.mxu0 %v3067
    %4646 = vmatprep.subr.mxu0 0.0
    %4647 = vmatpush1.msra.mxu0 %v3066
    %4648 = vmatprep.subr.mxu0 0.0
    %4649 = vmatpush1.msra.mxu0 %v3065
    %4650 = vmatprep.subr.mxu0 0.0
    %4651 = vmatpush1.msra.mxu0 %v3064
    %4652 = vmatprep.subr.mxu0 0.0
    %4653 = vmatpush2.msra.mxu0 0.0
    %4654 = vmatprep.subr.mxu0 0.0
    %4655 = vmatpush2.msra.mxu0 0.0
    %4656 = vmatprep.subr.mxu0 0.0
    %4657 = vmatpush2.msra.mxu0 0.0
    %4658 = vmatprep.subr.mxu0 0.0
    %4659 = vmatpush2.msra.mxu0 0.0
    %4660 = vmatprep.subr.mxu0 0.0
    %4661 = vmatpush2.msra.mxu0 0.0
    %4662 = vmatprep.subr.mxu0 0.0
    %4663 = vmatpush2.msra.mxu0 0.0
    %4664 = vmatprep.subr.mxu0 0.0
    %4665 = vmatpush2.msra.mxu0 0.0
    %4666 = vmatprep.subr.mxu0 0.0
    %4667 = vmatpush2.msra.mxu0 0.0
    %4668 = vmatprep.subr.mxu0 0.0
    %4669 = vmatpush2.msra.mxu0 0.0
    %4670 = vmatprep.subr.mxu0 0.0
    %4671 = vmatpush2.msra.mxu0 0.0
    %4672 = vmatprep.subr.mxu0 0.0
    %4673 = vmatpush2.msra.mxu0 0.0
    %4674 = vmatprep.subr.mxu0 0.0
    %4675 = vmatpush2.msra.mxu0 0.0
    %4676 = vmatprep.subr.mxu0 0.0
    %4677 = vmatpush2.msra.mxu0 0.0
    %4678 = vmatprep.subr.mxu0 0.0
    %4679 = vmatpush2.msra.mxu0 0.0
    %4680 = vmatprep.subr.mxu0 0.0
    %4681 = vmatpush2.msra.mxu0 0.0
    %4682 = vmatprep.subr.mxu0 0.0
    %4683 = vmatpush2.msra.mxu0 0.0
    %4684 = vmatprep.mubr.f32.mxu0 0.0
    %4685 = vmatmul.mubr.f32.gmra.mxu0 %v2368
    %v4686 = vpop.f32.mrf.mxu0
    %v4687 = vadd.f32 %v4302, %v4686
    %v4688 = vpop.f32.mrf.mxu0
    %4689 = vmatprep.mubr.f32.mxu0 0.0
    %4690 = vmatmul.mubr.f32.gmra.mxu0 %v2377
    %v4691 = vpop.f32.mrf.mxu0
    %v4692 = vadd.f32 %v4307, %v4691
    %v4693 = vpop.f32.mrf.mxu0
    %4694 = vmatprep.mubr.f32.mxu0 0.0
    %4695 = vmatmul.mubr.f32.gmra.mxu0 %v2386
    %v4696 = vpop.f32.mrf.mxu0
    %v4697 = vadd.f32 %v4312, %v4696
    %v4698 = vpop.f32.mrf.mxu0
    %4699 = vmatprep.mubr.f32.mxu0 0.0
    %4700 = vmatmul.mubr.f32.gmra.mxu0 %v2395
    %v4701 = vpop.f32.mrf.mxu0
    %v4702 = vadd.f32 %v4317, %v4701
    %v4703 = vpop.f32.mrf.mxu0
    %4704 = vmatprep.mubr.f32.mxu0 0.0
    %4705 = vmatmul.mubr.f32.gmra.mxu0 %v2404
    %v4706 = vpop.f32.mrf.mxu0
    %v4707 = vadd.f32 %v4322, %v4706
    %v4708 = vpop.f32.mrf.mxu0
    %4709 = vmatprep.mubr.f32.mxu0 0.0
    %4710 = vmatmul.mubr.f32.gmra.mxu0 %v2413
    %v4711 = vpop.f32.mrf.mxu0
    %v4712 = vadd.f32 %v4327, %v4711
    %v4713 = vpop.f32.mrf.mxu0
    %4714 = vmatprep.mubr.f32.mxu0 0.0
    %4715 = vmatmul.mubr.f32.gmra.mxu0 %v2422
    %v4716 = vpop.f32.mrf.mxu0
    %v4717 = vadd.f32 %v4332, %v4716
    %v4718 = vpop.f32.mrf.mxu0
    %4719 = vmatprep.mubr.f32.mxu0 0.0
    %4720 = vmatmul.mubr.f32.gmra.mxu0 %v2431
    %v4721 = vpop.f32.mrf.mxu0
    %v4722 = vadd.f32 %v4337, %v4721
    %v4723 = vpop.f32.mrf.mxu0
    %4724 = vmatprep.mubr.f32.mxu0 0.0
    %4725 = vmatmul.mubr.f32.gmra.mxu0 %v2440
    %v4726 = vpop.f32.mrf.mxu0
    %v4727 = vadd.f32 %v4342, %v4726
    %v4728 = vpop.f32.mrf.mxu0
    %4729 = vmatprep.mubr.f32.mxu0 0.0
    %4730 = vmatmul.mubr.f32.gmra.mxu0 %v2449
    %v4731 = vpop.f32.mrf.mxu0
    %v4732 = vadd.f32 %v4347, %v4731
    %v4733 = vpop.f32.mrf.mxu0
    %4734 = vmatprep.mubr.f32.mxu0 0.0
    %4735 = vmatmul.mubr.f32.gmra.mxu0 %v2458
    %v4736 = vpop.f32.mrf.mxu0
    %v4737 = vadd.f32 %v4352, %v4736
    %v4738 = vpop.f32.mrf.mxu0
    %4739 = vmatprep.mubr.f32.mxu0 0.0
    %4740 = vmatmul.mubr.f32.gmra.mxu0 %v2467
    %v4741 = vpop.f32.mrf.mxu0
    %v4742 = vadd.f32 %v4357, %v4741
    %v4743 = vpop.f32.mrf.mxu0
    %4744 = vmatprep.mubr.f32.mxu0 0.0
    %4745 = vmatmul.mubr.f32.gmra.mxu0 %v2476
    %v4746 = vpop.f32.mrf.mxu0
    %v4747 = vadd.f32 %v4362, %v4746
    %v4748 = vpop.f32.mrf.mxu0
    %4749 = vmatprep.mubr.f32.mxu0 0.0
    %4750 = vmatmul.mubr.f32.gmra.mxu0 %v2485
    %v4751 = vpop.f32.mrf.mxu0
    %v4752 = vadd.f32 %v4367, %v4751
    %v4753 = vpop.f32.mrf.mxu0
    %4754 = vmatprep.mubr.f32.mxu0 0.0
    %4755 = vmatmul.mubr.f32.gmra.mxu0 %v2494
    %v4756 = vpop.f32.mrf.mxu0
    %v4757 = vadd.f32 %v4372, %v4756
    %v4758 = vpop.f32.mrf.mxu0
    %4759 = vmatprep.mubr.f32.mxu0 0.0
    %4760 = vmatmul.mubr.f32.gmra.mxu0 %v2503
    %v4761 = vpop.f32.mrf.mxu0
    %v4762 = vadd.f32 %v4377, %v4761
    %v4763 = vpop.f32.mrf.mxu0
    %4764 = vmatprep.mubr.f32.mxu0 0.0
    %4765 = vmatmul.mubr.f32.gmra.mxu0 %v2512
    %v4766 = vpop.f32.mrf.mxu0
    %v4767 = vadd.f32 %v4382, %v4766
    %v4768 = vpop.f32.mrf.mxu0
    %4769 = vmatprep.mubr.f32.mxu0 0.0
    %4770 = vmatmul.mubr.f32.gmra.mxu0 %v2521
    %v4771 = vpop.f32.mrf.mxu0
    %v4772 = vadd.f32 %v4387, %v4771
    %v4773 = vpop.f32.mrf.mxu0
    %4774 = vmatprep.mubr.f32.mxu0 0.0
    %4775 = vmatmul.mubr.f32.gmra.mxu0 %v2530
    %v4776 = vpop.f32.mrf.mxu0
    %v4777 = vadd.f32 %v4392, %v4776
    %v4778 = vpop.f32.mrf.mxu0
    %4779 = vmatprep.mubr.f32.mxu0 0.0
    %4780 = vmatmul.mubr.f32.gmra.mxu0 %v2539
    %v4781 = vpop.f32.mrf.mxu0
    %v4782 = vadd.f32 %v4397, %v4781
    %v4783 = vpop.f32.mrf.mxu0
    %4784 = vmatprep.mubr.f32.mxu0 0.0
    %4785 = vmatmul.mubr.f32.gmra.mxu0 %v2548
    %v4786 = vpop.f32.mrf.mxu0
    %v4787 = vadd.f32 %v4402, %v4786
    %v4788 = vpop.f32.mrf.mxu0
    %4789 = vmatprep.mubr.f32.mxu0 0.0
    %4790 = vmatmul.mubr.f32.gmra.mxu0 %v2557
    %v4791 = vpop.f32.mrf.mxu0
    %v4792 = vadd.f32 %v4407, %v4791
    %v4793 = vpop.f32.mrf.mxu0
    %4794 = vmatprep.mubr.f32.mxu0 0.0
    %4795 = vmatmul.mubr.f32.gmra.mxu0 %v2566
    %v4796 = vpop.f32.mrf.mxu0
    %v4797 = vadd.f32 %v4412, %v4796
    %v4798 = vpop.f32.mrf.mxu0
    %4799 = vmatprep.mubr.f32.mxu0 0.0
    %4800 = vmatmul.mubr.f32.gmra.mxu0 %v2575
    %v4801 = vpop.f32.mrf.mxu0
    %v4802 = vadd.f32 %v4417, %v4801
    %v4803 = vpop.f32.mrf.mxu0
    %4804 = vmatprep.mubr.f32.mxu0 0.0
    %4805 = vmatmul.mubr.f32.gmra.mxu0 %v2584
    %v4806 = vpop.f32.mrf.mxu0
    %v4807 = vadd.f32 %v4422, %v4806
    %v4808 = vpop.f32.mrf.mxu0
    %4809 = vmatprep.mubr.f32.mxu0 0.0
    %4810 = vmatmul.mubr.f32.gmra.mxu0 %v2593
    %v4811 = vpop.f32.mrf.mxu0
    %v4812 = vadd.f32 %v4427, %v4811
    %v4813 = vpop.f32.mrf.mxu0
    %4814 = vmatprep.mubr.f32.mxu0 0.0
    %4815 = vmatmul.mubr.f32.gmra.mxu0 %v2602
    %v4816 = vpop.f32.mrf.mxu0
    %v4817 = vadd.f32 %v4432, %v4816
    %v4818 = vpop.f32.mrf.mxu0
    %4819 = vmatprep.mubr.f32.mxu0 0.0
    %4820 = vmatmul.mubr.f32.gmra.mxu0 %v2611
    %v4821 = vpop.f32.mrf.mxu0
    %v4822 = vadd.f32 %v4437, %v4821
    %v4823 = vpop.f32.mrf.mxu0
    %4824 = vmatprep.mubr.f32.mxu0 0.0
    %4825 = vmatmul.mubr.f32.gmra.mxu0 %v2620
    %v4826 = vpop.f32.mrf.mxu0
    %v4827 = vadd.f32 %v4442, %v4826
    %v4828 = vpop.f32.mrf.mxu0
    %4829 = vmatprep.mubr.f32.mxu0 0.0
    %4830 = vmatmul.mubr.f32.gmra.mxu0 %v2629
    %v4831 = vpop.f32.mrf.mxu0
    %v4832 = vadd.f32 %v4447, %v4831
    %v4833 = vpop.f32.mrf.mxu0
    %4834 = vmatprep.mubr.f32.mxu0 0.0
    %4835 = vmatmul.mubr.f32.gmra.mxu0 %v2638
    %v4836 = vpop.f32.mrf.mxu0
    %v4837 = vadd.f32 %v4452, %v4836
    %v4838 = vpop.f32.mrf.mxu0
    %4839 = vmatprep.mubr.f32.mxu0 0.0
    %4840 = vmatmul.mubr.f32.gmra.mxu0 %v2647
    %v4841 = vpop.f32.mrf.mxu0
    %v4842 = vadd.f32 %v4457, %v4841
    %v4843 = vpop.f32.mrf.mxu0
    %4844 = vmatprep.mubr.f32.mxu0 0.0
    %4845 = vmatmul.mubr.f32.gmra.mxu0 %v2656
    %v4846 = vpop.f32.mrf.mxu0
    %v4847 = vadd.f32 %v4462, %v4846
    %v4848 = vpop.f32.mrf.mxu0
    %4849 = vmatprep.mubr.f32.mxu0 0.0
    %4850 = vmatmul.mubr.f32.gmra.mxu0 %v2665
    %v4851 = vpop.f32.mrf.mxu0
    %v4852 = vadd.f32 %v4467, %v4851
    %v4853 = vpop.f32.mrf.mxu0
    %4854 = vmatprep.mubr.f32.mxu0 0.0
    %4855 = vmatmul.mubr.f32.gmra.mxu0 %v2674
    %v4856 = vpop.f32.mrf.mxu0
    %v4857 = vadd.f32 %v4472, %v4856
    %v4858 = vpop.f32.mrf.mxu0
    %4859 = vmatprep.mubr.f32.mxu0 0.0
    %4860 = vmatmul.mubr.f32.gmra.mxu0 %v2683
    %v4861 = vpop.f32.mrf.mxu0
    %v4862 = vadd.f32 %v4477, %v4861
    %v4863 = vpop.f32.mrf.mxu0
    %4864 = vmatprep.mubr.f32.mxu0 0.0
    %4865 = vmatmul.mubr.f32.gmra.mxu0 %v2692
    %v4866 = vpop.f32.mrf.mxu0
    %v4867 = vadd.f32 %v4482, %v4866
    %v4868 = vpop.f32.mrf.mxu0
    %4869 = vmatprep.mubr.f32.mxu0 0.0
    %4870 = vmatmul.mubr.f32.gmra.mxu0 %v2701
    %v4871 = vpop.f32.mrf.mxu0
    %v4872 = vadd.f32 %v4487, %v4871
    %v4873 = vpop.f32.mrf.mxu0
    %4874 = vmatprep.mubr.f32.mxu0 0.0
    %4875 = vmatmul.mubr.f32.gmra.mxu0 %v2710
    %v4876 = vpop.f32.mrf.mxu0
    %v4877 = vadd.f32 %v4492, %v4876
    %v4878 = vpop.f32.mrf.mxu0
    %4879 = vmatprep.mubr.f32.mxu0 0.0
    %4880 = vmatmul.mubr.f32.gmra.mxu0 %v2719
    %v4881 = vpop.f32.mrf.mxu0
    %v4882 = vadd.f32 %v4497, %v4881
    %v4883 = vpop.f32.mrf.mxu0
    %4884 = vmatprep.mubr.f32.mxu0 0.0
    %4885 = vmatmul.mubr.f32.gmra.mxu0 %v2728
    %v4886 = vpop.f32.mrf.mxu0
    %v4887 = vadd.f32 %v4502, %v4886
    %v4888 = vpop.f32.mrf.mxu0
    %4889 = vmatprep.mubr.f32.mxu0 0.0
    %4890 = vmatmul.mubr.f32.gmra.mxu0 %v2737
    %v4891 = vpop.f32.mrf.mxu0
    %v4892 = vadd.f32 %v4507, %v4891
    %v4893 = vpop.f32.mrf.mxu0
    %4894 = vmatprep.mubr.f32.mxu0 0.0
    %4895 = vmatmul.mubr.f32.gmra.mxu0 %v2746
    %v4896 = vpop.f32.mrf.mxu0
    %v4897 = vadd.f32 %v4512, %v4896
    %v4898 = vpop.f32.mrf.mxu0
    %4899 = vmatprep.mubr.f32.mxu0 0.0
    %4900 = vmatmul.mubr.f32.gmra.mxu0 %v2755
    %v4901 = vpop.f32.mrf.mxu0
    %v4902 = vadd.f32 %v4517, %v4901
    %v4903 = vpop.f32.mrf.mxu0
    %4904 = vmatprep.mubr.f32.mxu0 0.0
    %4905 = vmatmul.mubr.f32.gmra.mxu0 %v2764
    %v4906 = vpop.f32.mrf.mxu0
    %v4907 = vadd.f32 %v4522, %v4906
    %v4908 = vpop.f32.mrf.mxu0
    %4909 = vmatprep.mubr.f32.mxu0 0.0
    %4910 = vmatmul.mubr.f32.gmra.mxu0 %v2773
    %v4911 = vpop.f32.mrf.mxu0
    %v4912 = vadd.f32 %v4527, %v4911
    %v4913 = vpop.f32.mrf.mxu0
    %4914 = vmatprep.mubr.f32.mxu0 0.0
    %4915 = vmatmul.mubr.f32.gmra.mxu0 %v2782
    %v4916 = vpop.f32.mrf.mxu0
    %v4917 = vadd.f32 %v4532, %v4916
    %v4918 = vpop.f32.mrf.mxu0
    %4919 = vmatprep.mubr.f32.mxu0 0.0
    %4920 = vmatmul.mubr.f32.gmra.mxu0 %v2791
    %v4921 = vpop.f32.mrf.mxu0
    %v4922 = vadd.f32 %v4537, %v4921
    %v4923 = vpop.f32.mrf.mxu0
    %4924 = vmatprep.mubr.f32.mxu0 0.0
    %4925 = vmatmul.mubr.f32.gmra.mxu0 %v2800
    %v4926 = vpop.f32.mrf.mxu0
    %v4927 = vadd.f32 %v4542, %v4926
    %v4928 = vpop.f32.mrf.mxu0
    %4929 = vmatprep.mubr.f32.mxu0 0.0
    %4930 = vmatmul.mubr.f32.gmra.mxu0 %v2809
    %v4931 = vpop.f32.mrf.mxu0
    %v4932 = vadd.f32 %v4547, %v4931
    %v4933 = vpop.f32.mrf.mxu0
    %4934 = vmatprep.mubr.f32.mxu0 0.0
    %4935 = vmatmul.mubr.f32.gmra.mxu0 %v2818
    %v4936 = vpop.f32.mrf.mxu0
    %v4937 = vadd.f32 %v4552, %v4936
    %v4938 = vpop.f32.mrf.mxu0
    %4939 = vmatprep.mubr.f32.mxu0 0.0
    %4940 = vmatmul.mubr.f32.gmra.mxu0 %v2827
    %v4941 = vpop.f32.mrf.mxu0
    %v4942 = vadd.f32 %v4557, %v4941
    %v4943 = vpop.f32.mrf.mxu0
    %4944 = vmatprep.mubr.f32.mxu0 0.0
    %4945 = vmatmul.mubr.f32.gmra.mxu0 %v2836
    %v4946 = vpop.f32.mrf.mxu0
    %v4947 = vadd.f32 %v4562, %v4946
    %v4948 = vpop.f32.mrf.mxu0
    %4949 = vmatprep.mubr.f32.mxu0 0.0
    %4950 = vmatmul.mubr.f32.gmra.mxu0 %v2845
    %v4951 = vpop.f32.mrf.mxu0
    %v4952 = vadd.f32 %v4567, %v4951
    %v4953 = vpop.f32.mrf.mxu0
    %4954 = vmatprep.mubr.f32.mxu0 0.0
    %4955 = vmatmul.mubr.f32.gmra.mxu0 %v2854
    %v4956 = vpop.f32.mrf.mxu0
    %v4957 = vadd.f32 %v4572, %v4956
    %v4958 = vpop.f32.mrf.mxu0
    %4959 = vmatprep.mubr.f32.mxu0 0.0
    %4960 = vmatmul.mubr.f32.gmra.mxu0 %v2863
    %v4961 = vpop.f32.mrf.mxu0
    %v4962 = vadd.f32 %v4577, %v4961
    %v4963 = vpop.f32.mrf.mxu0
    %4964 = vmatprep.mubr.f32.mxu0 0.0
    %4965 = vmatmul.mubr.f32.gmra.mxu0 %v2872
    %v4966 = vpop.f32.mrf.mxu0
    %v4967 = vadd.f32 %v4582, %v4966
    %v4968 = vpop.f32.mrf.mxu0
    %4969 = vmatprep.mubr.f32.mxu0 0.0
    %4970 = vmatmul.mubr.f32.gmra.mxu0 %v2881
    %v4971 = vpop.f32.mrf.mxu0
    %v4972 = vadd.f32 %v4587, %v4971
    %v4973 = vpop.f32.mrf.mxu0
    %4974 = vmatprep.mubr.f32.mxu0 0.0
    %4975 = vmatmul.mubr.f32.gmra.mxu0 %v2890
    %v4976 = vpop.f32.mrf.mxu0
    %v4977 = vadd.f32 %v4592, %v4976
    %v4978 = vpop.f32.mrf.mxu0
    %4979 = vmatprep.mubr.f32.mxu0 0.0
    %4980 = vmatmul.mubr.f32.gmra.mxu0 %v2899
    %v4981 = vpop.f32.mrf.mxu0
    %v4982 = vadd.f32 %v4597, %v4981
    %v4983 = vpop.f32.mrf.mxu0
    %4984 = vmatprep.mubr.f32.mxu0 0.0
    %4985 = vmatmul.mubr.f32.gmra.mxu0 %v2908
    %v4986 = vpop.f32.mrf.mxu0
    %v4987 = vadd.f32 %v4602, %v4986
    %v4988 = vpop.f32.mrf.mxu0
    %4989 = vmatprep.mubr.f32.mxu0 0.0
    %4990 = vmatmul.mubr.f32.gmra.mxu0 %v2917
    %v4991 = vpop.f32.mrf.mxu0
    %v4992 = vadd.f32 %v4607, %v4991
    %v4993 = vpop.f32.mrf.mxu0
    %4994 = vmatprep.mubr.f32.mxu0 0.0
    %4995 = vmatmul.mubr.f32.gmra.mxu0 %v2926
    %v4996 = vpop.f32.mrf.mxu0
    %v4997 = vadd.f32 %v4612, %v4996
    %v4998 = vpop.f32.mrf.mxu0
    %4999 = vmatprep.mubr.f32.mxu0 0.0
    %5000 = vmatmul.mubr.f32.gmra.mxu0 %v2935
    %v5001 = vpop.f32.mrf.mxu0
    %v5002 = vadd.f32 %v4617, %v5001
    %v5003 = vpop.f32.mrf.mxu0
    %5004 = vdwg.mxu0
    %v5005 = vld [vmem:[%s5] sm:$0x1]
    %v5006 = vld [vmem:[%s6] sm:$0x1]
    %v5007 = vadd.f32 %v4687, %v4692
    %v5008 = vadd.f32 %v5007, %v4697
    %v5009 = vadd.f32 %v5008, %v4702
    %v5010 = vadd.f32 %v5009, %v4707
    %v5011 = vadd.f32 %v5010, %v4712
    %v5012 = vadd.f32 %v5011, %v4717
    %v5013 = vadd.f32 %v5012, %v4722
    %v5014 = vadd.f32 %v5013, %v4727
    %v5015 = vadd.f32 %v5014, %v4732
    %v5016 = vadd.f32 %v5015, %v4737
    %v5017 = vadd.f32 %v5016, %v4742
    %v5018 = vadd.f32 %v5017, %v4747
    %v5019 = vadd.f32 %v5018, %v4752
    %v5020 = vadd.f32 %v5019, %v4757
    %v5021 = vadd.f32 %v5020, %v4762
    %v5022 = vadd.f32 %v5021, %v4767
    %v5023 = vadd.f32 %v5022, %v4772
    %v5024 = vadd.f32 %v5023, %v4777
    %v5025 = vadd.f32 %v5024, %v4782
    %v5026 = vadd.f32 %v5025, %v4787
    %v5027 = vadd.f32 %v5026, %v4792
    %v5028 = vadd.f32 %v5027, %v4797
    %v5029 = vadd.f32 %v5028, %v4802
    %v5030 = vadd.f32 %v5029, %v4807
    %v5031 = vadd.f32 %v5030, %v4812
    %v5032 = vadd.f32 %v5031, %v4817
    %v5033 = vadd.f32 %v5032, %v4822
    %v5034 = vadd.f32 %v5033, %v4827
    %v5035 = vadd.f32 %v5034, %v4832
    %v5036 = vadd.f32 %v5035, %v4837
    %v5037 = vadd.f32 %v5036, %v4842
    %v5038 = vadd.f32 %v5037, %v4847
    %v5039 = vadd.f32 %v5038, %v4852
    %v5040 = vadd.f32 %v5039, %v4857
    %v5041 = vadd.f32 %v5040, %v4862
    %v5042 = vadd.f32 %v5041, %v4867
    %v5043 = vadd.f32 %v5042, %v4872
    %v5044 = vadd.f32 %v5043, %v4877
    %v5045 = vadd.f32 %v5044, %v4882
    %v5046 = vadd.f32 %v5045, %v4887
    %v5047 = vadd.f32 %v5046, %v4892
    %v5048 = vadd.f32 %v5047, %v4897
    %v5049 = vadd.f32 %v5048, %v4902
    %v5050 = vadd.f32 %v5049, %v4907
    %v5051 = vadd.f32 %v5050, %v4912
    %v5052 = vadd.f32 %v5051, %v4917
    %v5053 = vadd.f32 %v5052, %v4922
    %v5054 = vadd.f32 %v5053, %v4927
    %v5055 = vadd.f32 %v5054, %v4932
    %v5056 = vadd.f32 %v5055, %v4937
    %v5057 = vadd.f32 %v5056, %v4942
    %v5058 = vadd.f32 %v5057, %v4947
    %v5059 = vadd.f32 %v5058, %v4952
    %v5060 = vadd.f32 %v5059, %v4957
    %v5061 = vadd.f32 %v5060, %v4962
    %v5062 = vadd.f32 %v5061, %v4967
    %v5063 = vadd.f32 %v5062, %v4972
    %v5064 = vadd.f32 %v5063, %v4977
    %v5065 = vadd.f32 %v5064, %v4982
    %v5066 = vadd.f32 %v5065, %v4987
    %v5067 = vadd.f32 %v5066, %v4992
    %v5068 = vadd.f32 %v5067, %v4997
    %v5069 = vadd.f32 %v5068, %v5002
    %v5070 = vrot.slane %v5069, 4
    %v5071 = vadd.f32 %v5069, %v5070
    %v5072 = vrot.slane %v5071, 2
    %v5073 = vadd.f32 %v5071, %v5072
    %v5074 = vrot.slane %v5073, 1
    %v5075 = vadd.f32 %v5073, %v5074
    %v5076 = vmul.f32 %v5075, %v718
    %v5077 = vmul.f32 %v4687, %v4687
    %v5078 = vmul.f32 %v4692, %v4692
    %v5079 = vmul.f32 %v4697, %v4697
    %v5080 = vmul.f32 %v4702, %v4702
    %v5081 = vmul.f32 %v4707, %v4707
    %v5082 = vmul.f32 %v4712, %v4712
    %v5083 = vmul.f32 %v4717, %v4717
    %v5084 = vmul.f32 %v4722, %v4722
    %v5085 = vmul.f32 %v4727, %v4727
    %v5086 = vmul.f32 %v4732, %v4732
    %v5087 = vmul.f32 %v4737, %v4737
    %v5088 = vmul.f32 %v4742, %v4742
    %v5089 = vmul.f32 %v4747, %v4747
    %v5090 = vmul.f32 %v4752, %v4752
    %v5091 = vmul.f32 %v4757, %v4757
    %v5092 = vmul.f32 %v4762, %v4762
    %v5093 = vmul.f32 %v4767, %v4767
    %v5094 = vmul.f32 %v4772, %v4772
    %v5095 = vmul.f32 %v4777, %v4777
    %v5096 = vmul.f32 %v4782, %v4782
    %v5097 = vmul.f32 %v4787, %v4787
    %v5098 = vmul.f32 %v4792, %v4792
    %v5099 = vmul.f32 %v4797, %v4797
    %v5100 = vmul.f32 %v4802, %v4802
    %v5101 = vmul.f32 %v4807, %v4807
    %v5102 = vmul.f32 %v4812, %v4812
    %v5103 = vmul.f32 %v4817, %v4817
    %v5104 = vmul.f32 %v4822, %v4822
    %v5105 = vmul.f32 %v4827, %v4827
    %v5106 = vmul.f32 %v4832, %v4832
    %v5107 = vmul.f32 %v4837, %v4837
    %v5108 = vmul.f32 %v4842, %v4842
    %v5109 = vmul.f32 %v4847, %v4847
    %v5110 = vmul.f32 %v4852, %v4852
    %v5111 = vmul.f32 %v4857, %v4857
    %v5112 = vmul.f32 %v4862, %v4862
    %v5113 = vmul.f32 %v4867, %v4867
    %v5114 = vmul.f32 %v4872, %v4872
    %v5115 = vmul.f32 %v4877, %v4877
    %v5116 = vmul.f32 %v4882, %v4882
    %v5117 = vmul.f32 %v4887, %v4887
    %v5118 = vmul.f32 %v4892, %v4892
    %v5119 = vmul.f32 %v4897, %v4897
    %v5120 = vmul.f32 %v4902, %v4902
    %v5121 = vmul.f32 %v4907, %v4907
    %v5122 = vmul.f32 %v4912, %v4912
    %v5123 = vmul.f32 %v4917, %v4917
    %v5124 = vmul.f32 %v4922, %v4922
    %v5125 = vmul.f32 %v4927, %v4927
    %v5126 = vmul.f32 %v4932, %v4932
    %v5127 = vmul.f32 %v4937, %v4937
    %v5128 = vmul.f32 %v4942, %v4942
    %v5129 = vmul.f32 %v4947, %v4947
    %v5130 = vmul.f32 %v4952, %v4952
    %v5131 = vmul.f32 %v4957, %v4957
    %v5132 = vmul.f32 %v4962, %v4962
    %v5133 = vmul.f32 %v4967, %v4967
    %v5134 = vmul.f32 %v4972, %v4972
    %v5135 = vmul.f32 %v4977, %v4977
    %v5136 = vmul.f32 %v4982, %v4982
    %v5137 = vmul.f32 %v4987, %v4987
    %v5138 = vmul.f32 %v4992, %v4992
    %v5139 = vmul.f32 %v4997, %v4997
    %v5140 = vmul.f32 %v5002, %v5002
    %v5141 = vadd.f32 %v5077, %v5078
    %v5142 = vadd.f32 %v5141, %v5079
    %v5143 = vadd.f32 %v5142, %v5080
    %v5144 = vadd.f32 %v5143, %v5081
    %v5145 = vadd.f32 %v5144, %v5082
    %v5146 = vadd.f32 %v5145, %v5083
    %v5147 = vadd.f32 %v5146, %v5084
    %v5148 = vadd.f32 %v5147, %v5085
    %v5149 = vadd.f32 %v5148, %v5086
    %v5150 = vadd.f32 %v5149, %v5087
    %v5151 = vadd.f32 %v5150, %v5088
    %v5152 = vadd.f32 %v5151, %v5089
    %v5153 = vadd.f32 %v5152, %v5090
    %v5154 = vadd.f32 %v5153, %v5091
    %v5155 = vadd.f32 %v5154, %v5092
    %v5156 = vadd.f32 %v5155, %v5093
    %v5157 = vadd.f32 %v5156, %v5094
    %v5158 = vadd.f32 %v5157, %v5095
    %v5159 = vadd.f32 %v5158, %v5096
    %v5160 = vadd.f32 %v5159, %v5097
    %v5161 = vadd.f32 %v5160, %v5098
    %v5162 = vadd.f32 %v5161, %v5099
    %v5163 = vadd.f32 %v5162, %v5100
    %v5164 = vadd.f32 %v5163, %v5101
    %v5165 = vadd.f32 %v5164, %v5102
    %v5166 = vadd.f32 %v5165, %v5103
    %v5167 = vadd.f32 %v5166, %v5104
    %v5168 = vadd.f32 %v5167, %v5105
    %v5169 = vadd.f32 %v5168, %v5106
    %v5170 = vadd.f32 %v5169, %v5107
    %v5171 = vadd.f32 %v5170, %v5108
    %v5172 = vadd.f32 %v5171, %v5109
    %v5173 = vadd.f32 %v5172, %v5110
    %v5174 = vadd.f32 %v5173, %v5111
    %v5175 = vadd.f32 %v5174, %v5112
    %v5176 = vadd.f32 %v5175, %v5113
    %v5177 = vadd.f32 %v5176, %v5114
    %v5178 = vadd.f32 %v5177, %v5115
    %v5179 = vadd.f32 %v5178, %v5116
    %v5180 = vadd.f32 %v5179, %v5117
    %v5181 = vadd.f32 %v5180, %v5118
    %v5182 = vadd.f32 %v5181, %v5119
    %v5183 = vadd.f32 %v5182, %v5120
    %v5184 = vadd.f32 %v5183, %v5121
    %v5185 = vadd.f32 %v5184, %v5122
    %v5186 = vadd.f32 %v5185, %v5123
    %v5187 = vadd.f32 %v5186, %v5124
    %v5188 = vadd.f32 %v5187, %v5125
    %v5189 = vadd.f32 %v5188, %v5126
    %v5190 = vadd.f32 %v5189, %v5127
    %v5191 = vadd.f32 %v5190, %v5128
    %v5192 = vadd.f32 %v5191, %v5129
    %v5193 = vadd.f32 %v5192, %v5130
    %v5194 = vadd.f32 %v5193, %v5131
    %v5195 = vadd.f32 %v5194, %v5132
    %v5196 = vadd.f32 %v5195, %v5133
    %v5197 = vadd.f32 %v5196, %v5134
    %v5198 = vadd.f32 %v5197, %v5135
    %v5199 = vadd.f32 %v5198, %v5136
    %v5200 = vadd.f32 %v5199, %v5137
    %v5201 = vadd.f32 %v5200, %v5138
    %v5202 = vadd.f32 %v5201, %v5139
    %v5203 = vadd.f32 %v5202, %v5140
    %v5204 = vrot.slane %v5203, 4
    %v5205 = vadd.f32 %v5203, %v5204
    %v5206 = vrot.slane %v5205, 2
    %v5207 = vadd.f32 %v5205, %v5206
    %v5208 = vrot.slane %v5207, 1
    %v5209 = vadd.f32 %v5207, %v5208
    %v5210 = vmul.f32 %v5209, %v718
    %v5211 = vmul.f32 %v5076, %v5076
    %v5212 = vsub.f32 %v5210, %v5211
    %v5213 = vadd.f32 %v5212, 1e-05
    %v5214 = vrsqrt.pop %v5213
    %v5215 = vmul.f32 %v5005, %v5214
    %v5216 = vmul.f32 %v5076, %v5215
    %v5217 = vsub.f32 %v5006, %v5216
    %v5219 = vlaneseq
    %v5220 = vshrl.u32 %v5219, 7
    %v5221 = vsub.s32 0, %v5220
    %v5222 = vrot.slane %v5215, %v5221
    %v5224 = vmul.f32 %v4687, %v5222
    %v5225 = vmul.f32 %v4692, %v5222
    %v5226 = vmul.f32 %v4697, %v5222
    %v5227 = vmul.f32 %v4702, %v5222
    %v5228 = vmul.f32 %v4707, %v5222
    %v5229 = vmul.f32 %v4712, %v5222
    %v5230 = vmul.f32 %v4717, %v5222
    %v5231 = vmul.f32 %v4722, %v5222
    %v5232 = vmul.f32 %v4727, %v5222
    %v5233 = vmul.f32 %v4732, %v5222
    %v5234 = vmul.f32 %v4737, %v5222
    %v5235 = vmul.f32 %v4742, %v5222
    %v5236 = vmul.f32 %v4747, %v5222
    %v5237 = vmul.f32 %v4752, %v5222
    %v5238 = vmul.f32 %v4757, %v5222
    %v5239 = vmul.f32 %v4762, %v5222
    %v5240 = vmul.f32 %v4767, %v5222
    %v5241 = vmul.f32 %v4772, %v5222
    %v5242 = vmul.f32 %v4777, %v5222
    %v5243 = vmul.f32 %v4782, %v5222
    %v5244 = vmul.f32 %v4787, %v5222
    %v5245 = vmul.f32 %v4792, %v5222
    %v5246 = vmul.f32 %v4797, %v5222
    %v5247 = vmul.f32 %v4802, %v5222
    %v5248 = vmul.f32 %v4807, %v5222
    %v5249 = vmul.f32 %v4812, %v5222
    %v5250 = vmul.f32 %v4817, %v5222
    %v5251 = vmul.f32 %v4822, %v5222
    %v5252 = vmul.f32 %v4827, %v5222
    %v5253 = vmul.f32 %v4832, %v5222
    %v5254 = vmul.f32 %v4837, %v5222
    %v5255 = vmul.f32 %v4842, %v5222
    %v5256 = vmul.f32 %v4847, %v5222
    %v5257 = vmul.f32 %v4852, %v5222
    %v5258 = vmul.f32 %v4857, %v5222
    %v5259 = vmul.f32 %v4862, %v5222
    %v5260 = vmul.f32 %v4867, %v5222
    %v5261 = vmul.f32 %v4872, %v5222
    %v5262 = vmul.f32 %v4877, %v5222
    %v5263 = vmul.f32 %v4882, %v5222
    %v5264 = vmul.f32 %v4887, %v5222
    %v5265 = vmul.f32 %v4892, %v5222
    %v5266 = vmul.f32 %v4897, %v5222
    %v5267 = vmul.f32 %v4902, %v5222
    %v5268 = vmul.f32 %v4907, %v5222
    %v5269 = vmul.f32 %v4912, %v5222
    %v5270 = vmul.f32 %v4917, %v5222
    %v5271 = vmul.f32 %v4922, %v5222
    %v5272 = vmul.f32 %v4927, %v5222
    %v5273 = vmul.f32 %v4932, %v5222
    %v5274 = vmul.f32 %v4937, %v5222
    %v5275 = vmul.f32 %v4942, %v5222
    %v5276 = vmul.f32 %v4947, %v5222
    %v5277 = vmul.f32 %v4952, %v5222
    %v5278 = vmul.f32 %v4957, %v5222
    %v5279 = vmul.f32 %v4962, %v5222
    %v5280 = vmul.f32 %v4967, %v5222
    %v5281 = vmul.f32 %v4972, %v5222
    %v5282 = vmul.f32 %v4977, %v5222
    %v5283 = vmul.f32 %v4982, %v5222
    %v5284 = vmul.f32 %v4987, %v5222
    %v5285 = vmul.f32 %v4992, %v5222
    %v5286 = vmul.f32 %v4997, %v5222
    %v5287 = vmul.f32 %v5002, %v5222
    %v5289 = vlaneseq
    %v5290 = vshrl.u32 %v5289, 7
    %v5291 = vsub.s32 0, %v5290
    %v5292 = vrot.slane %v5217, %v5291
    %v5294 = vadd.f32 %v5224, %v5292
    %v5295 = vadd.f32 %v5225, %v5292
    %v5296 = vadd.f32 %v5226, %v5292
    %v5297 = vadd.f32 %v5227, %v5292
    %v5298 = vadd.f32 %v5228, %v5292
    %v5299 = vadd.f32 %v5229, %v5292
    %v5300 = vadd.f32 %v5230, %v5292
    %v5301 = vadd.f32 %v5231, %v5292
    %v5302 = vadd.f32 %v5232, %v5292
    %v5303 = vadd.f32 %v5233, %v5292
    %v5304 = vadd.f32 %v5234, %v5292
    %v5305 = vadd.f32 %v5235, %v5292
    %v5306 = vadd.f32 %v5236, %v5292
    %v5307 = vadd.f32 %v5237, %v5292
    %v5308 = vadd.f32 %v5238, %v5292
    %v5309 = vadd.f32 %v5239, %v5292
    %v5310 = vadd.f32 %v5240, %v5292
    %v5311 = vadd.f32 %v5241, %v5292
    %v5312 = vadd.f32 %v5242, %v5292
    %v5313 = vadd.f32 %v5243, %v5292
    %v5314 = vadd.f32 %v5244, %v5292
    %v5315 = vadd.f32 %v5245, %v5292
    %v5316 = vadd.f32 %v5246, %v5292
    %v5317 = vadd.f32 %v5247, %v5292
    %v5318 = vadd.f32 %v5248, %v5292
    %v5319 = vadd.f32 %v5249, %v5292
    %v5320 = vadd.f32 %v5250, %v5292
    %v5321 = vadd.f32 %v5251, %v5292
    %v5322 = vadd.f32 %v5252, %v5292
    %v5323 = vadd.f32 %v5253, %v5292
    %v5324 = vadd.f32 %v5254, %v5292
    %v5325 = vadd.f32 %v5255, %v5292
    %v5326 = vadd.f32 %v5256, %v5292
    %v5327 = vadd.f32 %v5257, %v5292
    %v5328 = vadd.f32 %v5258, %v5292
    %v5329 = vadd.f32 %v5259, %v5292
    %v5330 = vadd.f32 %v5260, %v5292
    %v5331 = vadd.f32 %v5261, %v5292
    %v5332 = vadd.f32 %v5262, %v5292
    %v5333 = vadd.f32 %v5263, %v5292
    %v5334 = vadd.f32 %v5264, %v5292
    %v5335 = vadd.f32 %v5265, %v5292
    %v5336 = vadd.f32 %v5266, %v5292
    %v5337 = vadd.f32 %v5267, %v5292
    %v5338 = vadd.f32 %v5268, %v5292
    %v5339 = vadd.f32 %v5269, %v5292
    %v5340 = vadd.f32 %v5270, %v5292
    %v5341 = vadd.f32 %v5271, %v5292
    %v5342 = vadd.f32 %v5272, %v5292
    %v5343 = vadd.f32 %v5273, %v5292
    %v5344 = vadd.f32 %v5274, %v5292
    %v5345 = vadd.f32 %v5275, %v5292
    %v5346 = vadd.f32 %v5276, %v5292
    %v5347 = vadd.f32 %v5277, %v5292
    %v5348 = vadd.f32 %v5278, %v5292
    %v5349 = vadd.f32 %v5279, %v5292
    %v5350 = vadd.f32 %v5280, %v5292
    %v5351 = vadd.f32 %v5281, %v5292
    %v5352 = vadd.f32 %v5282, %v5292
    %v5353 = vadd.f32 %v5283, %v5292
    %v5354 = vadd.f32 %v5284, %v5292
    %v5355 = vadd.f32 %v5285, %v5292
    %v5356 = vadd.f32 %v5286, %v5292
    %v5357 = vadd.f32 %v5287, %v5292
    %v5358 = vmax.f32 %v5294, 0.0
    %v5359 = vmax.f32 %v5295, 0.0
    %v5360 = vmax.f32 %v5296, 0.0
    %v5361 = vmax.f32 %v5297, 0.0
    %v5362 = vmax.f32 %v5298, 0.0
    %v5363 = vmax.f32 %v5299, 0.0
    %v5364 = vmax.f32 %v5300, 0.0
    %v5365 = vmax.f32 %v5301, 0.0
    %v5366 = vmax.f32 %v5302, 0.0
    %v5367 = vmax.f32 %v5303, 0.0
    %v5368 = vmax.f32 %v5304, 0.0
    %v5369 = vmax.f32 %v5305, 0.0
    %v5370 = vmax.f32 %v5306, 0.0
    %v5371 = vmax.f32 %v5307, 0.0
    %v5372 = vmax.f32 %v5308, 0.0
    %v5373 = vmax.f32 %v5309, 0.0
    %v5374 = vmax.f32 %v5310, 0.0
    %v5375 = vmax.f32 %v5311, 0.0
    %v5376 = vmax.f32 %v5312, 0.0
    %v5377 = vmax.f32 %v5313, 0.0
    %v5378 = vmax.f32 %v5314, 0.0
    %v5379 = vmax.f32 %v5315, 0.0
    %v5380 = vmax.f32 %v5316, 0.0
    %v5381 = vmax.f32 %v5317, 0.0
    %v5382 = vmax.f32 %v5318, 0.0
    %v5383 = vmax.f32 %v5319, 0.0
    %v5384 = vmax.f32 %v5320, 0.0
    %v5385 = vmax.f32 %v5321, 0.0
    %v5386 = vmax.f32 %v5322, 0.0
    %v5387 = vmax.f32 %v5323, 0.0
    %v5388 = vmax.f32 %v5324, 0.0
    %v5389 = vmax.f32 %v5325, 0.0
    %v5390 = vmax.f32 %v5326, 0.0
    %v5391 = vmax.f32 %v5327, 0.0
    %v5392 = vmax.f32 %v5328, 0.0
    %v5393 = vmax.f32 %v5329, 0.0
    %v5394 = vmax.f32 %v5330, 0.0
    %v5395 = vmax.f32 %v5331, 0.0
    %v5396 = vmax.f32 %v5332, 0.0
    %v5397 = vmax.f32 %v5333, 0.0
    %v5398 = vmax.f32 %v5334, 0.0
    %v5399 = vmax.f32 %v5335, 0.0
    %v5400 = vmax.f32 %v5336, 0.0
    %v5401 = vmax.f32 %v5337, 0.0
    %v5402 = vmax.f32 %v5338, 0.0
    %v5403 = vmax.f32 %v5339, 0.0
    %v5404 = vmax.f32 %v5340, 0.0
    %v5405 = vmax.f32 %v5341, 0.0
    %v5406 = vmax.f32 %v5342, 0.0
    %v5407 = vmax.f32 %v5343, 0.0
    %v5408 = vmax.f32 %v5344, 0.0
    %v5409 = vmax.f32 %v5345, 0.0
    %v5410 = vmax.f32 %v5346, 0.0
    %v5411 = vmax.f32 %v5347, 0.0
    %v5412 = vmax.f32 %v5348, 0.0
    %v5413 = vmax.f32 %v5349, 0.0
    %v5414 = vmax.f32 %v5350, 0.0
    %v5415 = vmax.f32 %v5351, 0.0
    %v5416 = vmax.f32 %v5352, 0.0
    %v5417 = vmax.f32 %v5353, 0.0
    %v5418 = vmax.f32 %v5354, 0.0
    %v5419 = vmax.f32 %v5355, 0.0
    %v5420 = vmax.f32 %v5356, 0.0
    %v5421 = vmax.f32 %v5357, 0.0
    %v5422 = vld [vmem:[#allocation12] sm:$0xff]
    %v5423 = vld [vmem:[#allocation12 + $0x8] sm:$0xff]
    %v5424 = vld [vmem:[#allocation12 + $0x10] sm:$0xff]
    %v5425 = vld [vmem:[#allocation12 + $0x18] sm:$0xff]
    %v5426 = vld [vmem:[#allocation12 + $0x20] sm:$0xff]
    %v5427 = vld [vmem:[#allocation12 + $0x28] sm:$0xff]
    %v5428 = vld [vmem:[#allocation12 + $0x30] sm:$0xff]
    %v5429 = vld [vmem:[#allocation12 + $0x38] sm:$0xff]
    %v5430 = vld [vmem:[#allocation12 + $0x40] sm:$0xff]
    %v5431 = vld [vmem:[#allocation12 + $0x48] sm:$0xff]
    %v5432 = vld [vmem:[#allocation12 + $0x50] sm:$0xff]
    %v5433 = vld [vmem:[#allocation12 + $0x58] sm:$0xff]
    %v5434 = vld [vmem:[#allocation12 + $0x60] sm:$0xff]
    %v5435 = vld [vmem:[#allocation12 + $0x68] sm:$0xff]
    %v5436 = vld [vmem:[#allocation12 + $0x70] sm:$0xff]
    %v5437 = vld [vmem:[#allocation12 + $0x78] sm:$0xff]
    %v5438 = vld [vmem:[#allocation12 + $0x80] sm:$0xff]
    %v5439 = vld [vmem:[#allocation12 + $0x88] sm:$0xff]
    %v5440 = vld [vmem:[#allocation12 + $0x90] sm:$0xff]
    %v5441 = vld [vmem:[#allocation12 + $0x98] sm:$0xff]
    %v5442 = vld [vmem:[#allocation12 + $0xa0] sm:$0xff]
    %v5443 = vld [vmem:[#allocation12 + $0xa8] sm:$0xff]
    %v5444 = vld [vmem:[#allocation12 + $0xb0] sm:$0xff]
    %v5445 = vld [vmem:[#allocation12 + $0xb8] sm:$0xff]
    %v5446 = vld [vmem:[#allocation12 + $0xc0] sm:$0xff]
    %v5447 = vld [vmem:[#allocation12 + $0xc8] sm:$0xff]
    %v5448 = vld [vmem:[#allocation12 + $0xd0] sm:$0xff]
    %v5449 = vld [vmem:[#allocation12 + $0xd8] sm:$0xff]
    %v5450 = vld [vmem:[#allocation12 + $0xe0] sm:$0xff]
    %v5451 = vld [vmem:[#allocation12 + $0xe8] sm:$0xff]
    %v5452 = vld [vmem:[#allocation12 + $0xf0] sm:$0xff]
    %v5453 = vld [vmem:[#allocation12 + $0xf8] sm:$0xff]
    %5454 = vmatprep.subr.mxu0 %v5453
    %5455 = vmatpush1.msra.mxu0 %v5452
    %5456 = vmatprep.subr.mxu0 %v5451
    %5457 = vmatpush1.msra.mxu0 %v5450
    %5458 = vmatprep.subr.mxu0 %v5449
    %5459 = vmatpush1.msra.mxu0 %v5448
    %5460 = vmatprep.subr.mxu0 %v5447
    %5461 = vmatpush1.msra.mxu0 %v5446
    %5462 = vmatprep.subr.mxu0 %v5445
    %5463 = vmatpush1.msra.mxu0 %v5444
    %5464 = vmatprep.subr.mxu0 %v5443
    %5465 = vmatpush1.msra.mxu0 %v5442
    %5466 = vmatprep.subr.mxu0 %v5441
    %5467 = vmatpush1.msra.mxu0 %v5440
    %5468 = vmatprep.subr.mxu0 %v5439
    %5469 = vmatpush1.msra.mxu0 %v5438
    %5470 = vmatprep.subr.mxu0 %v5437
    %5471 = vmatpush1.msra.mxu0 %v5436
    %5472 = vmatprep.subr.mxu0 %v5435
    %5473 = vmatpush1.msra.mxu0 %v5434
    %5474 = vmatprep.subr.mxu0 %v5433
    %5475 = vmatpush1.msra.mxu0 %v5432
    %5476 = vmatprep.subr.mxu0 %v5431
    %5477 = vmatpush1.msra.mxu0 %v5430
    %5478 = vmatprep.subr.mxu0 %v5429
    %5479 = vmatpush1.msra.mxu0 %v5428
    %5480 = vmatprep.subr.mxu0 %v5427
    %5481 = vmatpush1.msra.mxu0 %v5426
    %5482 = vmatprep.subr.mxu0 %v5425
    %5483 = vmatpush1.msra.mxu0 %v5424
    %5484 = vmatprep.subr.mxu0 %v5423
    %5485 = vmatpush1.msra.mxu0 %v5422
    %5486 = vmatprep.subr.mxu0 0.0
    %5487 = vmatpush2.msra.mxu0 0.0
    %5488 = vmatprep.subr.mxu0 0.0
    %5489 = vmatpush2.msra.mxu0 0.0
    %5490 = vmatprep.subr.mxu0 0.0
    %5491 = vmatpush2.msra.mxu0 0.0
    %5492 = vmatprep.subr.mxu0 0.0
    %5493 = vmatpush2.msra.mxu0 0.0
    %5494 = vmatprep.subr.mxu0 0.0
    %5495 = vmatpush2.msra.mxu0 0.0
    %5496 = vmatprep.subr.mxu0 0.0
    %5497 = vmatpush2.msra.mxu0 0.0
    %5498 = vmatprep.subr.mxu0 0.0
    %5499 = vmatpush2.msra.mxu0 0.0
    %5500 = vmatprep.subr.mxu0 0.0
    %5501 = vmatpush2.msra.mxu0 0.0
    %5502 = vmatprep.subr.mxu0 0.0
    %5503 = vmatpush2.msra.mxu0 0.0
    %5504 = vmatprep.subr.mxu0 0.0
    %5505 = vmatpush2.msra.mxu0 0.0
    %5506 = vmatprep.subr.mxu0 0.0
    %5507 = vmatpush2.msra.mxu0 0.0
    %5508 = vmatprep.subr.mxu0 0.0
    %5509 = vmatpush2.msra.mxu0 0.0
    %5510 = vmatprep.subr.mxu0 0.0
    %5511 = vmatpush2.msra.mxu0 0.0
    %5512 = vmatprep.subr.mxu0 0.0
    %5513 = vmatpush2.msra.mxu0 0.0
    %5514 = vmatprep.subr.mxu0 0.0
    %5515 = vmatpush2.msra.mxu0 0.0
    %5516 = vmatprep.subr.mxu0 0.0
    %5517 = vmatpush2.msra.mxu0 0.0
    %5518 = vmatprep.mubr.f32.mxu0 0.0
    %5519 = vmatmul.mubr.f32.gmra.mxu0 %v5358
    %v5520 = vpop.f32.mrf.mxu0
    %v5521 = vadd.f32 0.0, %v5520
    %v5522 = vpop.f32.mrf.mxu0
    %v5523 = vadd.f32 0.0, %v5522
    %5524 = vmatprep.mubr.f32.mxu0 0.0
    %5525 = vmatmul.mubr.f32.gmra.mxu0 %v5359
    %v5526 = vpop.f32.mrf.mxu0
    %v5527 = vadd.f32 0.0, %v5526
    %v5528 = vpop.f32.mrf.mxu0
    %v5529 = vadd.f32 0.0, %v5528
    %5530 = vmatprep.mubr.f32.mxu0 0.0
    %5531 = vmatmul.mubr.f32.gmra.mxu0 %v5360
    %v5532 = vpop.f32.mrf.mxu0
    %v5533 = vadd.f32 0.0, %v5532
    %v5534 = vpop.f32.mrf.mxu0
    %v5535 = vadd.f32 0.0, %v5534
    %5536 = vmatprep.mubr.f32.mxu0 0.0
    %5537 = vmatmul.mubr.f32.gmra.mxu0 %v5361
    %v5538 = vpop.f32.mrf.mxu0
    %v5539 = vadd.f32 0.0, %v5538
    %v5540 = vpop.f32.mrf.mxu0
    %v5541 = vadd.f32 0.0, %v5540
    %5542 = vmatprep.mubr.f32.mxu0 0.0
    %5543 = vmatmul.mubr.f32.gmra.mxu0 %v5362
    %v5544 = vpop.f32.mrf.mxu0
    %v5545 = vadd.f32 0.0, %v5544
    %v5546 = vpop.f32.mrf.mxu0
    %v5547 = vadd.f32 0.0, %v5546
    %5548 = vmatprep.mubr.f32.mxu0 0.0
    %5549 = vmatmul.mubr.f32.gmra.mxu0 %v5363
    %v5550 = vpop.f32.mrf.mxu0
    %v5551 = vadd.f32 0.0, %v5550
    %v5552 = vpop.f32.mrf.mxu0
    %v5553 = vadd.f32 0.0, %v5552
    %5554 = vmatprep.mubr.f32.mxu0 0.0
    %5555 = vmatmul.mubr.f32.gmra.mxu0 %v5364
    %v5556 = vpop.f32.mrf.mxu0
    %v5557 = vadd.f32 0.0, %v5556
    %v5558 = vpop.f32.mrf.mxu0
    %v5559 = vadd.f32 0.0, %v5558
    %5560 = vmatprep.mubr.f32.mxu0 0.0
    %5561 = vmatmul.mubr.f32.gmra.mxu0 %v5365
    %v5562 = vpop.f32.mrf.mxu0
    %v5563 = vadd.f32 0.0, %v5562
    %v5564 = vpop.f32.mrf.mxu0
    %v5565 = vadd.f32 0.0, %v5564
    %5566 = vmatprep.mubr.f32.mxu0 0.0
    %5567 = vmatmul.mubr.f32.gmra.mxu0 %v5366
    %v5568 = vpop.f32.mrf.mxu0
    %v5569 = vadd.f32 0.0, %v5568
    %v5570 = vpop.f32.mrf.mxu0
    %v5571 = vadd.f32 0.0, %v5570
    %5572 = vmatprep.mubr.f32.mxu0 0.0
    %5573 = vmatmul.mubr.f32.gmra.mxu0 %v5367
    %v5574 = vpop.f32.mrf.mxu0
    %v5575 = vadd.f32 0.0, %v5574
    %v5576 = vpop.f32.mrf.mxu0
    %v5577 = vadd.f32 0.0, %v5576
    %5578 = vmatprep.mubr.f32.mxu0 0.0
    %5579 = vmatmul.mubr.f32.gmra.mxu0 %v5368
    %v5580 = vpop.f32.mrf.mxu0
    %v5581 = vadd.f32 0.0, %v5580
    %v5582 = vpop.f32.mrf.mxu0
    %v5583 = vadd.f32 0.0, %v5582
    %5584 = vmatprep.mubr.f32.mxu0 0.0
    %5585 = vmatmul.mubr.f32.gmra.mxu0 %v5369
    %v5586 = vpop.f32.mrf.mxu0
    %v5587 = vadd.f32 0.0, %v5586
    %v5588 = vpop.f32.mrf.mxu0
    %v5589 = vadd.f32 0.0, %v5588
    %5590 = vmatprep.mubr.f32.mxu0 0.0
    %5591 = vmatmul.mubr.f32.gmra.mxu0 %v5370
    %v5592 = vpop.f32.mrf.mxu0
    %v5593 = vadd.f32 0.0, %v5592
    %v5594 = vpop.f32.mrf.mxu0
    %v5595 = vadd.f32 0.0, %v5594
    %5596 = vmatprep.mubr.f32.mxu0 0.0
    %5597 = vmatmul.mubr.f32.gmra.mxu0 %v5371
    %v5598 = vpop.f32.mrf.mxu0
    %v5599 = vadd.f32 0.0, %v5598
    %v5600 = vpop.f32.mrf.mxu0
    %v5601 = vadd.f32 0.0, %v5600
    %5602 = vmatprep.mubr.f32.mxu0 0.0
    %5603 = vmatmul.mubr.f32.gmra.mxu0 %v5372
    %v5604 = vpop.f32.mrf.mxu0
    %v5605 = vadd.f32 0.0, %v5604
    %v5606 = vpop.f32.mrf.mxu0
    %v5607 = vadd.f32 0.0, %v5606
    %5608 = vmatprep.mubr.f32.mxu0 0.0
    %5609 = vmatmul.mubr.f32.gmra.mxu0 %v5373
    %v5610 = vpop.f32.mrf.mxu0
    %v5611 = vadd.f32 0.0, %v5610
    %v5612 = vpop.f32.mrf.mxu0
    %v5613 = vadd.f32 0.0, %v5612
    %5614 = vmatprep.mubr.f32.mxu0 0.0
    %5615 = vmatmul.mubr.f32.gmra.mxu0 %v5374
    %v5616 = vpop.f32.mrf.mxu0
    %v5617 = vadd.f32 0.0, %v5616
    %v5618 = vpop.f32.mrf.mxu0
    %v5619 = vadd.f32 0.0, %v5618
    %5620 = vmatprep.mubr.f32.mxu0 0.0
    %5621 = vmatmul.mubr.f32.gmra.mxu0 %v5375
    %v5622 = vpop.f32.mrf.mxu0
    %v5623 = vadd.f32 0.0, %v5622
    %v5624 = vpop.f32.mrf.mxu0
    %v5625 = vadd.f32 0.0, %v5624
    %5626 = vmatprep.mubr.f32.mxu0 0.0
    %5627 = vmatmul.mubr.f32.gmra.mxu0 %v5376
    %v5628 = vpop.f32.mrf.mxu0
    %v5629 = vadd.f32 0.0, %v5628
    %v5630 = vpop.f32.mrf.mxu0
    %v5631 = vadd.f32 0.0, %v5630
    %5632 = vmatprep.mubr.f32.mxu0 0.0
    %5633 = vmatmul.mubr.f32.gmra.mxu0 %v5377
    %v5634 = vpop.f32.mrf.mxu0
    %v5635 = vadd.f32 0.0, %v5634
    %v5636 = vpop.f32.mrf.mxu0
    %v5637 = vadd.f32 0.0, %v5636
    %5638 = vmatprep.mubr.f32.mxu0 0.0
    %5639 = vmatmul.mubr.f32.gmra.mxu0 %v5378
    %v5640 = vpop.f32.mrf.mxu0
    %v5641 = vadd.f32 0.0, %v5640
    %v5642 = vpop.f32.mrf.mxu0
    %v5643 = vadd.f32 0.0, %v5642
    %5644 = vmatprep.mubr.f32.mxu0 0.0
    %5645 = vmatmul.mubr.f32.gmra.mxu0 %v5379
    %v5646 = vpop.f32.mrf.mxu0
    %v5647 = vadd.f32 0.0, %v5646
    %v5648 = vpop.f32.mrf.mxu0
    %v5649 = vadd.f32 0.0, %v5648
    %5650 = vmatprep.mubr.f32.mxu0 0.0
    %5651 = vmatmul.mubr.f32.gmra.mxu0 %v5380
    %v5652 = vpop.f32.mrf.mxu0
    %v5653 = vadd.f32 0.0, %v5652
    %v5654 = vpop.f32.mrf.mxu0
    %v5655 = vadd.f32 0.0, %v5654
    %5656 = vmatprep.mubr.f32.mxu0 0.0
    %5657 = vmatmul.mubr.f32.gmra.mxu0 %v5381
    %v5658 = vpop.f32.mrf.mxu0
    %v5659 = vadd.f32 0.0, %v5658
    %v5660 = vpop.f32.mrf.mxu0
    %v5661 = vadd.f32 0.0, %v5660
    %5662 = vmatprep.mubr.f32.mxu0 0.0
    %5663 = vmatmul.mubr.f32.gmra.mxu0 %v5382
    %v5664 = vpop.f32.mrf.mxu0
    %v5665 = vadd.f32 0.0, %v5664
    %v5666 = vpop.f32.mrf.mxu0
    %v5667 = vadd.f32 0.0, %v5666
    %5668 = vmatprep.mubr.f32.mxu0 0.0
    %5669 = vmatmul.mubr.f32.gmra.mxu0 %v5383
    %v5670 = vpop.f32.mrf.mxu0
    %v5671 = vadd.f32 0.0, %v5670
    %v5672 = vpop.f32.mrf.mxu0
    %v5673 = vadd.f32 0.0, %v5672
    %5674 = vmatprep.mubr.f32.mxu0 0.0
    %5675 = vmatmul.mubr.f32.gmra.mxu0 %v5384
    %v5676 = vpop.f32.mrf.mxu0
    %v5677 = vadd.f32 0.0, %v5676
    %v5678 = vpop.f32.mrf.mxu0
    %v5679 = vadd.f32 0.0, %v5678
    %5680 = vmatprep.mubr.f32.mxu0 0.0
    %5681 = vmatmul.mubr.f32.gmra.mxu0 %v5385
    %v5682 = vpop.f32.mrf.mxu0
    %v5683 = vadd.f32 0.0, %v5682
    %v5684 = vpop.f32.mrf.mxu0
    %v5685 = vadd.f32 0.0, %v5684
    %5686 = vmatprep.mubr.f32.mxu0 0.0
    %5687 = vmatmul.mubr.f32.gmra.mxu0 %v5386
    %v5688 = vpop.f32.mrf.mxu0
    %v5689 = vadd.f32 0.0, %v5688
    %v5690 = vpop.f32.mrf.mxu0
    %v5691 = vadd.f32 0.0, %v5690
    %5692 = vmatprep.mubr.f32.mxu0 0.0
    %5693 = vmatmul.mubr.f32.gmra.mxu0 %v5387
    %v5694 = vpop.f32.mrf.mxu0
    %v5695 = vadd.f32 0.0, %v5694
    %v5696 = vpop.f32.mrf.mxu0
    %v5697 = vadd.f32 0.0, %v5696
    %5698 = vmatprep.mubr.f32.mxu0 0.0
    %5699 = vmatmul.mubr.f32.gmra.mxu0 %v5388
    %v5700 = vpop.f32.mrf.mxu0
    %v5701 = vadd.f32 0.0, %v5700
    %v5702 = vpop.f32.mrf.mxu0
    %v5703 = vadd.f32 0.0, %v5702
    %5704 = vmatprep.mubr.f32.mxu0 0.0
    %5705 = vmatmul.mubr.f32.gmra.mxu0 %v5389
    %v5706 = vpop.f32.mrf.mxu0
    %v5707 = vadd.f32 0.0, %v5706
    %v5708 = vpop.f32.mrf.mxu0
    %v5709 = vadd.f32 0.0, %v5708
    %5710 = vmatprep.mubr.f32.mxu0 0.0
    %5711 = vmatmul.mubr.f32.gmra.mxu0 %v5390
    %v5712 = vpop.f32.mrf.mxu0
    %v5713 = vadd.f32 0.0, %v5712
    %v5714 = vpop.f32.mrf.mxu0
    %v5715 = vadd.f32 0.0, %v5714
    %5716 = vmatprep.mubr.f32.mxu0 0.0
    %5717 = vmatmul.mubr.f32.gmra.mxu0 %v5391
    %v5718 = vpop.f32.mrf.mxu0
    %v5719 = vadd.f32 0.0, %v5718
    %v5720 = vpop.f32.mrf.mxu0
    %v5721 = vadd.f32 0.0, %v5720
    %5722 = vmatprep.mubr.f32.mxu0 0.0
    %5723 = vmatmul.mubr.f32.gmra.mxu0 %v5392
    %v5724 = vpop.f32.mrf.mxu0
    %v5725 = vadd.f32 0.0, %v5724
    %v5726 = vpop.f32.mrf.mxu0
    %v5727 = vadd.f32 0.0, %v5726
    %5728 = vmatprep.mubr.f32.mxu0 0.0
    %5729 = vmatmul.mubr.f32.gmra.mxu0 %v5393
    %v5730 = vpop.f32.mrf.mxu0
    %v5731 = vadd.f32 0.0, %v5730
    %v5732 = vpop.f32.mrf.mxu0
    %v5733 = vadd.f32 0.0, %v5732
    %5734 = vmatprep.mubr.f32.mxu0 0.0
    %5735 = vmatmul.mubr.f32.gmra.mxu0 %v5394
    %v5736 = vpop.f32.mrf.mxu0
    %v5737 = vadd.f32 0.0, %v5736
    %v5738 = vpop.f32.mrf.mxu0
    %v5739 = vadd.f32 0.0, %v5738
    %5740 = vmatprep.mubr.f32.mxu0 0.0
    %5741 = vmatmul.mubr.f32.gmra.mxu0 %v5395
    %v5742 = vpop.f32.mrf.mxu0
    %v5743 = vadd.f32 0.0, %v5742
    %v5744 = vpop.f32.mrf.mxu0
    %v5745 = vadd.f32 0.0, %v5744
    %5746 = vmatprep.mubr.f32.mxu0 0.0
    %5747 = vmatmul.mubr.f32.gmra.mxu0 %v5396
    %v5748 = vpop.f32.mrf.mxu0
    %v5749 = vadd.f32 0.0, %v5748
    %v5750 = vpop.f32.mrf.mxu0
    %v5751 = vadd.f32 0.0, %v5750
    %5752 = vmatprep.mubr.f32.mxu0 0.0
    %5753 = vmatmul.mubr.f32.gmra.mxu0 %v5397
    %v5754 = vpop.f32.mrf.mxu0
    %v5755 = vadd.f32 0.0, %v5754
    %v5756 = vpop.f32.mrf.mxu0
    %v5757 = vadd.f32 0.0, %v5756
    %5758 = vmatprep.mubr.f32.mxu0 0.0
    %5759 = vmatmul.mubr.f32.gmra.mxu0 %v5398
    %v5760 = vpop.f32.mrf.mxu0
    %v5761 = vadd.f32 0.0, %v5760
    %v5762 = vpop.f32.mrf.mxu0
    %v5763 = vadd.f32 0.0, %v5762
    %5764 = vmatprep.mubr.f32.mxu0 0.0
    %5765 = vmatmul.mubr.f32.gmra.mxu0 %v5399
    %v5766 = vpop.f32.mrf.mxu0
    %v5767 = vadd.f32 0.0, %v5766
    %v5768 = vpop.f32.mrf.mxu0
    %v5769 = vadd.f32 0.0, %v5768
    %5770 = vmatprep.mubr.f32.mxu0 0.0
    %5771 = vmatmul.mubr.f32.gmra.mxu0 %v5400
    %v5772 = vpop.f32.mrf.mxu0
    %v5773 = vadd.f32 0.0, %v5772
    %v5774 = vpop.f32.mrf.mxu0
    %v5775 = vadd.f32 0.0, %v5774
    %5776 = vmatprep.mubr.f32.mxu0 0.0
    %5777 = vmatmul.mubr.f32.gmra.mxu0 %v5401
    %v5778 = vpop.f32.mrf.mxu0
    %v5779 = vadd.f32 0.0, %v5778
    %v5780 = vpop.f32.mrf.mxu0
    %v5781 = vadd.f32 0.0, %v5780
    %5782 = vmatprep.mubr.f32.mxu0 0.0
    %5783 = vmatmul.mubr.f32.gmra.mxu0 %v5402
    %v5784 = vpop.f32.mrf.mxu0
    %v5785 = vadd.f32 0.0, %v5784
    %v5786 = vpop.f32.mrf.mxu0
    %v5787 = vadd.f32 0.0, %v5786
    %5788 = vmatprep.mubr.f32.mxu0 0.0
    %5789 = vmatmul.mubr.f32.gmra.mxu0 %v5403
    %v5790 = vpop.f32.mrf.mxu0
    %v5791 = vadd.f32 0.0, %v5790
    %v5792 = vpop.f32.mrf.mxu0
    %v5793 = vadd.f32 0.0, %v5792
    %5794 = vmatprep.mubr.f32.mxu0 0.0
    %5795 = vmatmul.mubr.f32.gmra.mxu0 %v5404
    %v5796 = vpop.f32.mrf.mxu0
    %v5797 = vadd.f32 0.0, %v5796
    %v5798 = vpop.f32.mrf.mxu0
    %v5799 = vadd.f32 0.0, %v5798
    %5800 = vmatprep.mubr.f32.mxu0 0.0
    %5801 = vmatmul.mubr.f32.gmra.mxu0 %v5405
    %v5802 = vpop.f32.mrf.mxu0
    %v5803 = vadd.f32 0.0, %v5802
    %v5804 = vpop.f32.mrf.mxu0
    %v5805 = vadd.f32 0.0, %v5804
    %5806 = vmatprep.mubr.f32.mxu0 0.0
    %5807 = vmatmul.mubr.f32.gmra.mxu0 %v5406
    %v5808 = vpop.f32.mrf.mxu0
    %v5809 = vadd.f32 0.0, %v5808
    %v5810 = vpop.f32.mrf.mxu0
    %v5811 = vadd.f32 0.0, %v5810
    %5812 = vmatprep.mubr.f32.mxu0 0.0
    %5813 = vmatmul.mubr.f32.gmra.mxu0 %v5407
    %v5814 = vpop.f32.mrf.mxu0
    %v5815 = vadd.f32 0.0, %v5814
    %v5816 = vpop.f32.mrf.mxu0
    %v5817 = vadd.f32 0.0, %v5816
    %5818 = vmatprep.mubr.f32.mxu0 0.0
    %5819 = vmatmul.mubr.f32.gmra.mxu0 %v5408
    %v5820 = vpop.f32.mrf.mxu0
    %v5821 = vadd.f32 0.0, %v5820
    %v5822 = vpop.f32.mrf.mxu0
    %v5823 = vadd.f32 0.0, %v5822
    %5824 = vmatprep.mubr.f32.mxu0 0.0
    %5825 = vmatmul.mubr.f32.gmra.mxu0 %v5409
    %v5826 = vpop.f32.mrf.mxu0
    %v5827 = vadd.f32 0.0, %v5826
    %v5828 = vpop.f32.mrf.mxu0
    %v5829 = vadd.f32 0.0, %v5828
    %5830 = vmatprep.mubr.f32.mxu0 0.0
    %5831 = vmatmul.mubr.f32.gmra.mxu0 %v5410
    %v5832 = vpop.f32.mrf.mxu0
    %v5833 = vadd.f32 0.0, %v5832
    %v5834 = vpop.f32.mrf.mxu0
    %v5835 = vadd.f32 0.0, %v5834
    %5836 = vmatprep.mubr.f32.mxu0 0.0
    %5837 = vmatmul.mubr.f32.gmra.mxu0 %v5411
    %v5838 = vpop.f32.mrf.mxu0
    %v5839 = vadd.f32 0.0, %v5838
    %v5840 = vpop.f32.mrf.mxu0
    %v5841 = vadd.f32 0.0, %v5840
    %5842 = vmatprep.mubr.f32.mxu0 0.0
    %5843 = vmatmul.mubr.f32.gmra.mxu0 %v5412
    %v5844 = vpop.f32.mrf.mxu0
    %v5845 = vadd.f32 0.0, %v5844
    %v5846 = vpop.f32.mrf.mxu0
    %v5847 = vadd.f32 0.0, %v5846
    %5848 = vmatprep.mubr.f32.mxu0 0.0
    %5849 = vmatmul.mubr.f32.gmra.mxu0 %v5413
    %v5850 = vpop.f32.mrf.mxu0
    %v5851 = vadd.f32 0.0, %v5850
    %v5852 = vpop.f32.mrf.mxu0
    %v5853 = vadd.f32 0.0, %v5852
    %5854 = vmatprep.mubr.f32.mxu0 0.0
    %5855 = vmatmul.mubr.f32.gmra.mxu0 %v5414
    %v5856 = vpop.f32.mrf.mxu0
    %v5857 = vadd.f32 0.0, %v5856
    %v5858 = vpop.f32.mrf.mxu0
    %v5859 = vadd.f32 0.0, %v5858
    %5860 = vmatprep.mubr.f32.mxu0 0.0
    %5861 = vmatmul.mubr.f32.gmra.mxu0 %v5415
    %v5862 = vpop.f32.mrf.mxu0
    %v5863 = vadd.f32 0.0, %v5862
    %v5864 = vpop.f32.mrf.mxu0
    %v5865 = vadd.f32 0.0, %v5864
    %5866 = vmatprep.mubr.f32.mxu0 0.0
    %5867 = vmatmul.mubr.f32.gmra.mxu0 %v5416
    %v5868 = vpop.f32.mrf.mxu0
    %v5869 = vadd.f32 0.0, %v5868
    %v5870 = vpop.f32.mrf.mxu0
    %v5871 = vadd.f32 0.0, %v5870
    %5872 = vmatprep.mubr.f32.mxu0 0.0
    %5873 = vmatmul.mubr.f32.gmra.mxu0 %v5417
    %v5874 = vpop.f32.mrf.mxu0
    %v5875 = vadd.f32 0.0, %v5874
    %v5876 = vpop.f32.mrf.mxu0
    %v5877 = vadd.f32 0.0, %v5876
    %5878 = vmatprep.mubr.f32.mxu0 0.0
    %5879 = vmatmul.mubr.f32.gmra.mxu0 %v5418
    %v5880 = vpop.f32.mrf.mxu0
    %v5881 = vadd.f32 0.0, %v5880
    %v5882 = vpop.f32.mrf.mxu0
    %v5883 = vadd.f32 0.0, %v5882
    %5884 = vmatprep.mubr.f32.mxu0 0.0
    %5885 = vmatmul.mubr.f32.gmra.mxu0 %v5419
    %v5886 = vpop.f32.mrf.mxu0
    %v5887 = vadd.f32 0.0, %v5886
    %v5888 = vpop.f32.mrf.mxu0
    %v5889 = vadd.f32 0.0, %v5888
    %5890 = vmatprep.mubr.f32.mxu0 0.0
    %5891 = vmatmul.mubr.f32.gmra.mxu0 %v5420
    %v5892 = vpop.f32.mrf.mxu0
    %v5893 = vadd.f32 0.0, %v5892
    %v5894 = vpop.f32.mrf.mxu0
    %v5895 = vadd.f32 0.0, %v5894
    %5896 = vmatprep.mubr.f32.mxu0 0.0
    %5897 = vmatmul.mubr.f32.gmra.mxu0 %v5421
    %v5898 = vpop.f32.mrf.mxu0
    %v5899 = vadd.f32 0.0, %v5898
    %v5900 = vpop.f32.mrf.mxu0
    %v5901 = vadd.f32 0.0, %v5900
    %5902 = vdwg.mxu0
    %v5903 = vld [vmem:[%s8] sm:$0x3]
    %v5904 = vld [vmem:[%s9] sm:$0x3]
    %v5905 = vadd.f32 %v5521, %v5527
    %v5906 = vadd.f32 %v5905, %v5533
    %v5907 = vadd.f32 %v5906, %v5539
    %v5908 = vadd.f32 %v5907, %v5545
    %v5909 = vadd.f32 %v5908, %v5551
    %v5910 = vadd.f32 %v5909, %v5557
    %v5911 = vadd.f32 %v5910, %v5563
    %v5912 = vadd.f32 %v5911, %v5569
    %v5913 = vadd.f32 %v5912, %v5575
    %v5914 = vadd.f32 %v5913, %v5581
    %v5915 = vadd.f32 %v5914, %v5587
    %v5916 = vadd.f32 %v5915, %v5593
    %v5917 = vadd.f32 %v5916, %v5599
    %v5918 = vadd.f32 %v5917, %v5605
    %v5919 = vadd.f32 %v5918, %v5611
    %v5920 = vadd.f32 %v5919, %v5617
    %v5921 = vadd.f32 %v5920, %v5623
    %v5922 = vadd.f32 %v5921, %v5629
    %v5923 = vadd.f32 %v5922, %v5635
    %v5924 = vadd.f32 %v5923, %v5641
    %v5925 = vadd.f32 %v5924, %v5647
    %v5926 = vadd.f32 %v5925, %v5653
    %v5927 = vadd.f32 %v5926, %v5659
    %v5928 = vadd.f32 %v5927, %v5665
    %v5929 = vadd.f32 %v5928, %v5671
    %v5930 = vadd.f32 %v5929, %v5677
    %v5931 = vadd.f32 %v5930, %v5683
    %v5932 = vadd.f32 %v5931, %v5689
    %v5933 = vadd.f32 %v5932, %v5695
    %v5934 = vadd.f32 %v5933, %v5701
    %v5935 = vadd.f32 %v5934, %v5707
    %v5936 = vadd.f32 %v5935, %v5713
    %v5937 = vadd.f32 %v5936, %v5719
    %v5938 = vadd.f32 %v5937, %v5725
    %v5939 = vadd.f32 %v5938, %v5731
    %v5940 = vadd.f32 %v5939, %v5737
    %v5941 = vadd.f32 %v5940, %v5743
    %v5942 = vadd.f32 %v5941, %v5749
    %v5943 = vadd.f32 %v5942, %v5755
    %v5944 = vadd.f32 %v5943, %v5761
    %v5945 = vadd.f32 %v5944, %v5767
    %v5946 = vadd.f32 %v5945, %v5773
    %v5947 = vadd.f32 %v5946, %v5779
    %v5948 = vadd.f32 %v5947, %v5785
    %v5949 = vadd.f32 %v5948, %v5791
    %v5950 = vadd.f32 %v5949, %v5797
    %v5951 = vadd.f32 %v5950, %v5803
    %v5952 = vadd.f32 %v5951, %v5809
    %v5953 = vadd.f32 %v5952, %v5815
    %v5954 = vadd.f32 %v5953, %v5821
    %v5955 = vadd.f32 %v5954, %v5827
    %v5956 = vadd.f32 %v5955, %v5833
    %v5957 = vadd.f32 %v5956, %v5839
    %v5958 = vadd.f32 %v5957, %v5845
    %v5959 = vadd.f32 %v5958, %v5851
    %v5960 = vadd.f32 %v5959, %v5857
    %v5961 = vadd.f32 %v5960, %v5863
    %v5962 = vadd.f32 %v5961, %v5869
    %v5963 = vadd.f32 %v5962, %v5875
    %v5964 = vadd.f32 %v5963, %v5881
    %v5965 = vadd.f32 %v5964, %v5887
    %v5966 = vadd.f32 %v5965, %v5893
    %v5967 = vadd.f32 %v5966, %v5899
    %v5968 = vrot.slane %v5967, 4
    %v5969 = vadd.f32 %v5967, %v5968
    %v5970 = vrot.slane %v5969, 2
    %v5971 = vadd.f32 %v5969, %v5970
    %v5972 = vrot.slane %v5971, 1
    %v5973 = vadd.f32 %v5971, %v5972
    %v5974 = vadd.f32 %v5523, %v5529
    %v5975 = vadd.f32 %v5974, %v5535
    %v5976 = vadd.f32 %v5975, %v5541
    %v5977 = vadd.f32 %v5976, %v5547
    %v5978 = vadd.f32 %v5977, %v5553
    %v5979 = vadd.f32 %v5978, %v5559
    %v5980 = vadd.f32 %v5979, %v5565
    %v5981 = vadd.f32 %v5980, %v5571
    %v5982 = vadd.f32 %v5981, %v5577
    %v5983 = vadd.f32 %v5982, %v5583
    %v5984 = vadd.f32 %v5983, %v5589
    %v5985 = vadd.f32 %v5984, %v5595
    %v5986 = vadd.f32 %v5985, %v5601
    %v5987 = vadd.f32 %v5986, %v5607
    %v5988 = vadd.f32 %v5987, %v5613
    %v5989 = vadd.f32 %v5988, %v5619
    %v5990 = vadd.f32 %v5989, %v5625
    %v5991 = vadd.f32 %v5990, %v5631
    %v5992 = vadd.f32 %v5991, %v5637
    %v5993 = vadd.f32 %v5992, %v5643
    %v5994 = vadd.f32 %v5993, %v5649
    %v5995 = vadd.f32 %v5994, %v5655
    %v5996 = vadd.f32 %v5995, %v5661
    %v5997 = vadd.f32 %v5996, %v5667
    %v5998 = vadd.f32 %v5997, %v5673
    %v5999 = vadd.f32 %v5998, %v5679
    %v6000 = vadd.f32 %v5999, %v5685
    %v6001 = vadd.f32 %v6000, %v5691
    %v6002 = vadd.f32 %v6001, %v5697
    %v6003 = vadd.f32 %v6002, %v5703
    %v6004 = vadd.f32 %v6003, %v5709
    %v6005 = vadd.f32 %v6004, %v5715
    %v6006 = vadd.f32 %v6005, %v5721
    %v6007 = vadd.f32 %v6006, %v5727
    %v6008 = vadd.f32 %v6007, %v5733
    %v6009 = vadd.f32 %v6008, %v5739
    %v6010 = vadd.f32 %v6009, %v5745
    %v6011 = vadd.f32 %v6010, %v5751
    %v6012 = vadd.f32 %v6011, %v5757
    %v6013 = vadd.f32 %v6012, %v5763
    %v6014 = vadd.f32 %v6013, %v5769
    %v6015 = vadd.f32 %v6014, %v5775
    %v6016 = vadd.f32 %v6015, %v5781
    %v6017 = vadd.f32 %v6016, %v5787
    %v6018 = vadd.f32 %v6017, %v5793
    %v6019 = vadd.f32 %v6018, %v5799
    %v6020 = vadd.f32 %v6019, %v5805
    %v6021 = vadd.f32 %v6020, %v5811
    %v6022 = vadd.f32 %v6021, %v5817
    %v6023 = vadd.f32 %v6022, %v5823
    %v6024 = vadd.f32 %v6023, %v5829
    %v6025 = vadd.f32 %v6024, %v5835
    %v6026 = vadd.f32 %v6025, %v5841
    %v6027 = vadd.f32 %v6026, %v5847
    %v6028 = vadd.f32 %v6027, %v5853
    %v6029 = vadd.f32 %v6028, %v5859
    %v6030 = vadd.f32 %v6029, %v5865
    %v6031 = vadd.f32 %v6030, %v5871
    %v6032 = vadd.f32 %v6031, %v5877
    %v6033 = vadd.f32 %v6032, %v5883
    %v6034 = vadd.f32 %v6033, %v5889
    %v6035 = vadd.f32 %v6034, %v5895
    %v6036 = vadd.f32 %v6035, %v5901
    %v6037 = vrot.slane %v6036, 4
    %v6038 = vadd.f32 %v6036, %v6037
    %v6039 = vrot.slane %v6038, 2
    %v6040 = vadd.f32 %v6038, %v6039
    %v6041 = vrot.slane %v6040, 1
    %v6042 = vadd.f32 %v6040, %v6041
    %v6043 = vmul.f32 %v5973, %v718
    %v6044 = vmul.f32 %v6042, %v718
    %v6045 = vmul.f32 %v5521, %v5521
    %v6046 = vmul.f32 %v5523, %v5523
    %v6047 = vmul.f32 %v5527, %v5527
    %v6048 = vmul.f32 %v5529, %v5529
    %v6049 = vmul.f32 %v5533, %v5533
    %v6050 = vmul.f32 %v5535, %v5535
    %v6051 = vmul.f32 %v5539, %v5539
    %v6052 = vmul.f32 %v5541, %v5541
    %v6053 = vmul.f32 %v5545, %v5545
    %v6054 = vmul.f32 %v5547, %v5547
    %v6055 = vmul.f32 %v5551, %v5551
    %v6056 = vmul.f32 %v5553, %v5553
    %v6057 = vmul.f32 %v5557, %v5557
    %v6058 = vmul.f32 %v5559, %v5559
    %v6059 = vmul.f32 %v5563, %v5563
    %v6060 = vmul.f32 %v5565, %v5565
    %v6061 = vmul.f32 %v5569, %v5569
    %v6062 = vmul.f32 %v5571, %v5571
    %v6063 = vmul.f32 %v5575, %v5575
    %v6064 = vmul.f32 %v5577, %v5577
    %v6065 = vmul.f32 %v5581, %v5581
    %v6066 = vmul.f32 %v5583, %v5583
    %v6067 = vmul.f32 %v5587, %v5587
    %v6068 = vmul.f32 %v5589, %v5589
    %v6069 = vmul.f32 %v5593, %v5593
    %v6070 = vmul.f32 %v5595, %v5595
    %v6071 = vmul.f32 %v5599, %v5599
    %v6072 = vmul.f32 %v5601, %v5601
    %v6073 = vmul.f32 %v5605, %v5605
    %v6074 = vmul.f32 %v5607, %v5607
    %v6075 = vmul.f32 %v5611, %v5611
    %v6076 = vmul.f32 %v5613, %v5613
    %v6077 = vmul.f32 %v5617, %v5617
    %v6078 = vmul.f32 %v5619, %v5619
    %v6079 = vmul.f32 %v5623, %v5623
    %v6080 = vmul.f32 %v5625, %v5625
    %v6081 = vmul.f32 %v5629, %v5629
    %v6082 = vmul.f32 %v5631, %v5631
    %v6083 = vmul.f32 %v5635, %v5635
    %v6084 = vmul.f32 %v5637, %v5637
    %v6085 = vmul.f32 %v5641, %v5641
    %v6086 = vmul.f32 %v5643, %v5643
    %v6087 = vmul.f32 %v5647, %v5647
    %v6088 = vmul.f32 %v5649, %v5649
    %v6089 = vmul.f32 %v5653, %v5653
    %v6090 = vmul.f32 %v5655, %v5655
    %v6091 = vmul.f32 %v5659, %v5659
    %v6092 = vmul.f32 %v5661, %v5661
    %v6093 = vmul.f32 %v5665, %v5665
    %v6094 = vmul.f32 %v5667, %v5667
    %v6095 = vmul.f32 %v5671, %v5671
    %v6096 = vmul.f32 %v5673, %v5673
    %v6097 = vmul.f32 %v5677, %v5677
    %v6098 = vmul.f32 %v5679, %v5679
    %v6099 = vmul.f32 %v5683, %v5683
    %v6100 = vmul.f32 %v5685, %v5685
    %v6101 = vmul.f32 %v5689, %v5689
    %v6102 = vmul.f32 %v5691, %v5691
    %v6103 = vmul.f32 %v5695, %v5695
    %v6104 = vmul.f32 %v5697, %v5697
    %v6105 = vmul.f32 %v5701, %v5701
    %v6106 = vmul.f32 %v5703, %v5703
    %v6107 = vmul.f32 %v5707, %v5707
    %v6108 = vmul.f32 %v5709, %v5709
    %v6109 = vmul.f32 %v5713, %v5713
    %v6110 = vmul.f32 %v5715, %v5715
    %v6111 = vmul.f32 %v5719, %v5719
    %v6112 = vmul.f32 %v5721, %v5721
    %v6113 = vmul.f32 %v5725, %v5725
    %v6114 = vmul.f32 %v5727, %v5727
    %v6115 = vmul.f32 %v5731, %v5731
    %v6116 = vmul.f32 %v5733, %v5733
    %v6117 = vmul.f32 %v5737, %v5737
    %v6118 = vmul.f32 %v5739, %v5739
    %v6119 = vmul.f32 %v5743, %v5743
    %v6120 = vmul.f32 %v5745, %v5745
    %v6121 = vmul.f32 %v5749, %v5749
    %v6122 = vmul.f32 %v5751, %v5751
    %v6123 = vmul.f32 %v5755, %v5755
    %v6124 = vmul.f32 %v5757, %v5757
    %v6125 = vmul.f32 %v5761, %v5761
    %v6126 = vmul.f32 %v5763, %v5763
    %v6127 = vmul.f32 %v5767, %v5767
    %v6128 = vmul.f32 %v5769, %v5769
    %v6129 = vmul.f32 %v5773, %v5773
    %v6130 = vmul.f32 %v5775, %v5775
    %v6131 = vmul.f32 %v5779, %v5779
    %v6132 = vmul.f32 %v5781, %v5781
    %v6133 = vmul.f32 %v5785, %v5785
    %v6134 = vmul.f32 %v5787, %v5787
    %v6135 = vmul.f32 %v5791, %v5791
    %v6136 = vmul.f32 %v5793, %v5793
    %v6137 = vmul.f32 %v5797, %v5797
    %v6138 = vmul.f32 %v5799, %v5799
    %v6139 = vmul.f32 %v5803, %v5803
    %v6140 = vmul.f32 %v5805, %v5805
    %v6141 = vmul.f32 %v5809, %v5809
    %v6142 = vmul.f32 %v5811, %v5811
    %v6143 = vmul.f32 %v5815, %v5815
    %v6144 = vmul.f32 %v5817, %v5817
    %v6145 = vmul.f32 %v5821, %v5821
    %v6146 = vmul.f32 %v5823, %v5823
    %v6147 = vmul.f32 %v5827, %v5827
    %v6148 = vmul.f32 %v5829, %v5829
    %v6149 = vmul.f32 %v5833, %v5833
    %v6150 = vmul.f32 %v5835, %v5835
    %v6151 = vmul.f32 %v5839, %v5839
    %v6152 = vmul.f32 %v5841, %v5841
    %v6153 = vmul.f32 %v5845, %v5845
    %v6154 = vmul.f32 %v5847, %v5847
    %v6155 = vmul.f32 %v5851, %v5851
    %v6156 = vmul.f32 %v5853, %v5853
    %v6157 = vmul.f32 %v5857, %v5857
    %v6158 = vmul.f32 %v5859, %v5859
    %v6159 = vmul.f32 %v5863, %v5863
    %v6160 = vmul.f32 %v5865, %v5865
    %v6161 = vmul.f32 %v5869, %v5869
    %v6162 = vmul.f32 %v5871, %v5871
    %v6163 = vmul.f32 %v5875, %v5875
    %v6164 = vmul.f32 %v5877, %v5877
    %v6165 = vmul.f32 %v5881, %v5881
    %v6166 = vmul.f32 %v5883, %v5883
    %v6167 = vmul.f32 %v5887, %v5887
    %v6168 = vmul.f32 %v5889, %v5889
    %v6169 = vmul.f32 %v5893, %v5893
    %v6170 = vmul.f32 %v5895, %v5895
    %v6171 = vmul.f32 %v5899, %v5899
    %v6172 = vmul.f32 %v5901, %v5901
    %v6173 = vadd.f32 %v6045, %v6047
    %v6174 = vadd.f32 %v6173, %v6049
    %v6175 = vadd.f32 %v6174, %v6051
    %v6176 = vadd.f32 %v6175, %v6053
    %v6177 = vadd.f32 %v6176, %v6055
    %v6178 = vadd.f32 %v6177, %v6057
    %v6179 = vadd.f32 %v6178, %v6059
    %v6180 = vadd.f32 %v6179, %v6061
    %v6181 = vadd.f32 %v6180, %v6063
    %v6182 = vadd.f32 %v6181, %v6065
    %v6183 = vadd.f32 %v6182, %v6067
    %v6184 = vadd.f32 %v6183, %v6069
    %v6185 = vadd.f32 %v6184, %v6071
    %v6186 = vadd.f32 %v6185, %v6073
    %v6187 = vadd.f32 %v6186, %v6075
    %v6188 = vadd.f32 %v6187, %v6077
    %v6189 = vadd.f32 %v6188, %v6079
    %v6190 = vadd.f32 %v6189, %v6081
    %v6191 = vadd.f32 %v6190, %v6083
    %v6192 = vadd.f32 %v6191, %v6085
    %v6193 = vadd.f32 %v6192, %v6087
    %v6194 = vadd.f32 %v6193, %v6089
    %v6195 = vadd.f32 %v6194, %v6091
    %v6196 = vadd.f32 %v6195, %v6093
    %v6197 = vadd.f32 %v6196, %v6095
    %v6198 = vadd.f32 %v6197, %v6097
    %v6199 = vadd.f32 %v6198, %v6099
    %v6200 = vadd.f32 %v6199, %v6101
    %v6201 = vadd.f32 %v6200, %v6103
    %v6202 = vadd.f32 %v6201, %v6105
    %v6203 = vadd.f32 %v6202, %v6107
    %v6204 = vadd.f32 %v6203, %v6109
    %v6205 = vadd.f32 %v6204, %v6111
    %v6206 = vadd.f32 %v6205, %v6113
    %v6207 = vadd.f32 %v6206, %v6115
    %v6208 = vadd.f32 %v6207, %v6117
    %v6209 = vadd.f32 %v6208, %v6119
    %v6210 = vadd.f32 %v6209, %v6121
    %v6211 = vadd.f32 %v6210, %v6123
    %v6212 = vadd.f32 %v6211, %v6125
    %v6213 = vadd.f32 %v6212, %v6127
    %v6214 = vadd.f32 %v6213, %v6129
    %v6215 = vadd.f32 %v6214, %v6131
    %v6216 = vadd.f32 %v6215, %v6133
    %v6217 = vadd.f32 %v6216, %v6135
    %v6218 = vadd.f32 %v6217, %v6137
    %v6219 = vadd.f32 %v6218, %v6139
    %v6220 = vadd.f32 %v6219, %v6141
    %v6221 = vadd.f32 %v6220, %v6143
    %v6222 = vadd.f32 %v6221, %v6145
    %v6223 = vadd.f32 %v6222, %v6147
    %v6224 = vadd.f32 %v6223, %v6149
    %v6225 = vadd.f32 %v6224, %v6151
    %v6226 = vadd.f32 %v6225, %v6153
    %v6227 = vadd.f32 %v6226, %v6155
    %v6228 = vadd.f32 %v6227, %v6157
    %v6229 = vadd.f32 %v6228, %v6159
    %v6230 = vadd.f32 %v6229, %v6161
    %v6231 = vadd.f32 %v6230, %v6163
    %v6232 = vadd.f32 %v6231, %v6165
    %v6233 = vadd.f32 %v6232, %v6167
    %v6234 = vadd.f32 %v6233, %v6169
    %v6235 = vadd.f32 %v6234, %v6171
    %v6236 = vrot.slane %v6235, 4
    %v6237 = vadd.f32 %v6235, %v6236
    %v6238 = vrot.slane %v6237, 2
    %v6239 = vadd.f32 %v6237, %v6238
    %v6240 = vrot.slane %v6239, 1
    %v6241 = vadd.f32 %v6239, %v6240
    %v6242 = vadd.f32 %v6046, %v6048
    %v6243 = vadd.f32 %v6242, %v6050
    %v6244 = vadd.f32 %v6243, %v6052
    %v6245 = vadd.f32 %v6244, %v6054
    %v6246 = vadd.f32 %v6245, %v6056
    %v6247 = vadd.f32 %v6246, %v6058
    %v6248 = vadd.f32 %v6247, %v6060
    %v6249 = vadd.f32 %v6248, %v6062
    %v6250 = vadd.f32 %v6249, %v6064
    %v6251 = vadd.f32 %v6250, %v6066
    %v6252 = vadd.f32 %v6251, %v6068
    %v6253 = vadd.f32 %v6252, %v6070
    %v6254 = vadd.f32 %v6253, %v6072
    %v6255 = vadd.f32 %v6254, %v6074
    %v6256 = vadd.f32 %v6255, %v6076
    %v6257 = vadd.f32 %v6256, %v6078
    %v6258 = vadd.f32 %v6257, %v6080
    %v6259 = vadd.f32 %v6258, %v6082
    %v6260 = vadd.f32 %v6259, %v6084
    %v6261 = vadd.f32 %v6260, %v6086
    %v6262 = vadd.f32 %v6261, %v6088
    %v6263 = vadd.f32 %v6262, %v6090
    %v6264 = vadd.f32 %v6263, %v6092
    %v6265 = vadd.f32 %v6264, %v6094
    %v6266 = vadd.f32 %v6265, %v6096
    %v6267 = vadd.f32 %v6266, %v6098
    %v6268 = vadd.f32 %v6267, %v6100
    %v6269 = vadd.f32 %v6268, %v6102
    %v6270 = vadd.f32 %v6269, %v6104
    %v6271 = vadd.f32 %v6270, %v6106
    %v6272 = vadd.f32 %v6271, %v6108
    %v6273 = vadd.f32 %v6272, %v6110
    %v6274 = vadd.f32 %v6273, %v6112
    %v6275 = vadd.f32 %v6274, %v6114
    %v6276 = vadd.f32 %v6275, %v6116
    %v6277 = vadd.f32 %v6276, %v6118
    %v6278 = vadd.f32 %v6277, %v6120
    %v6279 = vadd.f32 %v6278, %v6122
    %v6280 = vadd.f32 %v6279, %v6124
    %v6281 = vadd.f32 %v6280, %v6126
    %v6282 = vadd.f32 %v6281, %v6128
    %v6283 = vadd.f32 %v6282, %v6130
    %v6284 = vadd.f32 %v6283, %v6132
    %v6285 = vadd.f32 %v6284, %v6134
    %v6286 = vadd.f32 %v6285, %v6136
    %v6287 = vadd.f32 %v6286, %v6138
    %v6288 = vadd.f32 %v6287, %v6140
    %v6289 = vadd.f32 %v6288, %v6142
    %v6290 = vadd.f32 %v6289, %v6144
    %v6291 = vadd.f32 %v6290, %v6146
    %v6292 = vadd.f32 %v6291, %v6148
    %v6293 = vadd.f32 %v6292, %v6150
    %v6294 = vadd.f32 %v6293, %v6152
    %v6295 = vadd.f32 %v6294, %v6154
    %v6296 = vadd.f32 %v6295, %v6156
    %v6297 = vadd.f32 %v6296, %v6158
    %v6298 = vadd.f32 %v6297, %v6160
    %v6299 = vadd.f32 %v6298, %v6162
    %v6300 = vadd.f32 %v6299, %v6164
    %v6301 = vadd.f32 %v6300, %v6166
    %v6302 = vadd.f32 %v6301, %v6168
    %v6303 = vadd.f32 %v6302, %v6170
    %v6304 = vadd.f32 %v6303, %v6172
    %v6305 = vrot.slane %v6304, 4
    %v6306 = vadd.f32 %v6304, %v6305
    %v6307 = vrot.slane %v6306, 2
    %v6308 = vadd.f32 %v6306, %v6307
    %v6309 = vrot.slane %v6308, 1
    %v6310 = vadd.f32 %v6308, %v6309
    %v6311 = vmul.f32 %v6241, %v718
    %v6312 = vmul.f32 %v6310, %v718
    %v6313 = vmul.f32 %v6043, %v6043
    %v6314 = vmul.f32 %v6044, %v6044
    %v6315 = vsub.f32 %v6311, %v6313
    %v6316 = vsub.f32 %v6312, %v6314
    %v6317 = vadd.f32 %v6315, 1e-05
    %v6318 = vadd.f32 %v6316, 1e-05
    %v6319 = vrsqrt.pop %v6317
    %v6320 = vrsqrt.pop %v6318
    %v6323 = vcombine.low %v6319, %v6320
    %v6325 = vunpack.c.l.s4 1966171168
    %v6326 = vunpack.c.0.s8 %v6325
    %v6327 = vlaneseq
    %v6328 = vshrl.u32 %v6327, 7
    %v6329 = vsub.s32 %v6326, %v6328
    %v6330 = vrot.slane %v6323, %v6329
    %v6332 = vunpack.c.l.s4 1966171168
    %v6333 = vunpack.c.0.s8 %v6332
    %v6334 = vlaneseq
    %v6335 = vshrl.u32 %v6334, 7
    %v6336 = vsub.s32 %v6333, %v6335
    %v6337 = vrot.slane %v6330, %v6336
    %v6339 = vmul.f32 %v5903, %v6337
    %v6341 = vlaneseq
    %v6342 = vshrl.u32 %v6341, 7
    %v6343 = vsub.s32 0, %v6342
    %v6344 = vrot.slane %v6339, %v6343
    %v6345 = vlaneseq
    %v6346 = vshrl.u32 %v6345, 7
    %v6347 = vsub.s32 1, %v6346
    %v6348 = vrot.slane %v6339, %v6347
    %v6351 = vmul.f32 %v6043, %v6344
    %v6352 = vmul.f32 %v6044, %v6348
    %v6355 = vcombine.low %v6351, %v6352
    %v6357 = vunpack.c.l.s4 1966171168
    %v6358 = vunpack.c.0.s8 %v6357
    %v6359 = vlaneseq
    %v6360 = vshrl.u32 %v6359, 7
    %v6361 = vsub.s32 %v6358, %v6360
    %v6362 = vrot.slane %v6355, %v6361
    %v6364 = vunpack.c.l.s4 1966171168
    %v6365 = vunpack.c.0.s8 %v6364
    %v6366 = vlaneseq
    %v6367 = vshrl.u32 %v6366, 7
    %v6368 = vsub.s32 %v6365, %v6367
    %v6369 = vrot.slane %v6362, %v6368
    %v6371 = vsub.f32 %v5904, %v6369
    %v6372 = vmul.f32 %v5521, %v6344
    %v6373 = vmul.f32 %v5523, %v6348
    %v6374 = vmul.f32 %v5527, %v6344
    %v6375 = vmul.f32 %v5529, %v6348
    %v6376 = vmul.f32 %v5533, %v6344
    %v6377 = vmul.f32 %v5535, %v6348
    %v6378 = vmul.f32 %v5539, %v6344
    %v6379 = vmul.f32 %v5541, %v6348
    %v6380 = vmul.f32 %v5545, %v6344
    %v6381 = vmul.f32 %v5547, %v6348
    %v6382 = vmul.f32 %v5551, %v6344
    %v6383 = vmul.f32 %v5553, %v6348
    %v6384 = vmul.f32 %v5557, %v6344
    %v6385 = vmul.f32 %v5559, %v6348
    %v6386 = vmul.f32 %v5563, %v6344
    %v6387 = vmul.f32 %v5565, %v6348
    %v6388 = vmul.f32 %v5569, %v6344
    %v6389 = vmul.f32 %v5571, %v6348
    %v6390 = vmul.f32 %v5575, %v6344
    %v6391 = vmul.f32 %v5577, %v6348
    %v6392 = vmul.f32 %v5581, %v6344
    %v6393 = vmul.f32 %v5583, %v6348
    %v6394 = vmul.f32 %v5587, %v6344
    %v6395 = vmul.f32 %v5589, %v6348
    %v6396 = vmul.f32 %v5593, %v6344
    %v6397 = vmul.f32 %v5595, %v6348
    %v6398 = vmul.f32 %v5599, %v6344
    %v6399 = vmul.f32 %v5601, %v6348
    %v6400 = vmul.f32 %v5605, %v6344
    %v6401 = vmul.f32 %v5607, %v6348
    %v6402 = vmul.f32 %v5611, %v6344
    %v6403 = vmul.f32 %v5613, %v6348
    %v6404 = vmul.f32 %v5617, %v6344
    %v6405 = vmul.f32 %v5619, %v6348
    %v6406 = vmul.f32 %v5623, %v6344
    %v6407 = vmul.f32 %v5625, %v6348
    %v6408 = vmul.f32 %v5629, %v6344
    %v6409 = vmul.f32 %v5631, %v6348
    %v6410 = vmul.f32 %v5635, %v6344
    %v6411 = vmul.f32 %v5637, %v6348
    %v6412 = vmul.f32 %v5641, %v6344
    %v6413 = vmul.f32 %v5643, %v6348
    %v6414 = vmul.f32 %v5647, %v6344
    %v6415 = vmul.f32 %v5649, %v6348
    %v6416 = vmul.f32 %v5653, %v6344
    %v6417 = vmul.f32 %v5655, %v6348
    %v6418 = vmul.f32 %v5659, %v6344
    %v6419 = vmul.f32 %v5661, %v6348
    %v6420 = vmul.f32 %v5665, %v6344
    %v6421 = vmul.f32 %v5667, %v6348
    %v6422 = vmul.f32 %v5671, %v6344
    %v6423 = vmul.f32 %v5673, %v6348
    %v6424 = vmul.f32 %v5677, %v6344
    %v6425 = vmul.f32 %v5679, %v6348
    %v6426 = vmul.f32 %v5683, %v6344
    %v6427 = vmul.f32 %v5685, %v6348
    %v6428 = vmul.f32 %v5689, %v6344
    %v6429 = vmul.f32 %v5691, %v6348
    %v6430 = vmul.f32 %v5695, %v6344
    %v6431 = vmul.f32 %v5697, %v6348
    %v6432 = vmul.f32 %v5701, %v6344
    %v6433 = vmul.f32 %v5703, %v6348
    %v6434 = vmul.f32 %v5707, %v6344
    %v6435 = vmul.f32 %v5709, %v6348
    %v6436 = vmul.f32 %v5713, %v6344
    %v6437 = vmul.f32 %v5715, %v6348
    %v6438 = vmul.f32 %v5719, %v6344
    %v6439 = vmul.f32 %v5721, %v6348
    %v6440 = vmul.f32 %v5725, %v6344
    %v6441 = vmul.f32 %v5727, %v6348
    %v6442 = vmul.f32 %v5731, %v6344
    %v6443 = vmul.f32 %v5733, %v6348
    %v6444 = vmul.f32 %v5737, %v6344
    %v6445 = vmul.f32 %v5739, %v6348
    %v6446 = vmul.f32 %v5743, %v6344
    %v6447 = vmul.f32 %v5745, %v6348
    %v6448 = vmul.f32 %v5749, %v6344
    %v6449 = vmul.f32 %v5751, %v6348
    %v6450 = vmul.f32 %v5755, %v6344
    %v6451 = vmul.f32 %v5757, %v6348
    %v6452 = vmul.f32 %v5761, %v6344
    %v6453 = vmul.f32 %v5763, %v6348
    %v6454 = vmul.f32 %v5767, %v6344
    %v6455 = vmul.f32 %v5769, %v6348
    %v6456 = vmul.f32 %v5773, %v6344
    %v6457 = vmul.f32 %v5775, %v6348
    %v6458 = vmul.f32 %v5779, %v6344
    %v6459 = vmul.f32 %v5781, %v6348
    %v6460 = vmul.f32 %v5785, %v6344
    %v6461 = vmul.f32 %v5787, %v6348
    %v6462 = vmul.f32 %v5791, %v6344
    %v6463 = vmul.f32 %v5793, %v6348
    %v6464 = vmul.f32 %v5797, %v6344
    %v6465 = vmul.f32 %v5799, %v6348
    %v6466 = vmul.f32 %v5803, %v6344
    %v6467 = vmul.f32 %v5805, %v6348
    %v6468 = vmul.f32 %v5809, %v6344
    %v6469 = vmul.f32 %v5811, %v6348
    %v6470 = vmul.f32 %v5815, %v6344
    %v6471 = vmul.f32 %v5817, %v6348
    %v6472 = vmul.f32 %v5821, %v6344
    %v6473 = vmul.f32 %v5823, %v6348
    %v6474 = vmul.f32 %v5827, %v6344
    %v6475 = vmul.f32 %v5829, %v6348
    %v6476 = vmul.f32 %v5833, %v6344
    %v6477 = vmul.f32 %v5835, %v6348
    %v6478 = vmul.f32 %v5839, %v6344
    %v6479 = vmul.f32 %v5841, %v6348
    %v6480 = vmul.f32 %v5845, %v6344
    %v6481 = vmul.f32 %v5847, %v6348
    %v6482 = vmul.f32 %v5851, %v6344
    %v6483 = vmul.f32 %v5853, %v6348
    %v6484 = vmul.f32 %v5857, %v6344
    %v6485 = vmul.f32 %v5859, %v6348
    %v6486 = vmul.f32 %v5863, %v6344
    %v6487 = vmul.f32 %v5865, %v6348
    %v6488 = vmul.f32 %v5869, %v6344
    %v6489 = vmul.f32 %v5871, %v6348
    %v6490 = vmul.f32 %v5875, %v6344
    %v6491 = vmul.f32 %v5877, %v6348
    %v6492 = vmul.f32 %v5881, %v6344
    %v6493 = vmul.f32 %v5883, %v6348
    %v6494 = vmul.f32 %v5887, %v6344
    %v6495 = vmul.f32 %v5889, %v6348
    %v6496 = vmul.f32 %v5893, %v6344
    %v6497 = vmul.f32 %v5895, %v6348
    %v6498 = vmul.f32 %v5899, %v6344
    %v6499 = vmul.f32 %v5901, %v6348
    %v6501 = vlaneseq
    %v6502 = vshrl.u32 %v6501, 7
    %v6503 = vsub.s32 0, %v6502
    %v6504 = vrot.slane %v6371, %v6503
    %v6505 = vlaneseq
    %v6506 = vshrl.u32 %v6505, 7
    %v6507 = vsub.s32 1, %v6506
    %v6508 = vrot.slane %v6371, %v6507
    %v6511 = vadd.f32 %v6372, %v6504
    %v6512 = vadd.f32 %v6373, %v6508
    %v6513 = vadd.f32 %v6374, %v6504
    %v6514 = vadd.f32 %v6375, %v6508
    %v6515 = vadd.f32 %v6376, %v6504
    %v6516 = vadd.f32 %v6377, %v6508
    %v6517 = vadd.f32 %v6378, %v6504
    %v6518 = vadd.f32 %v6379, %v6508
    %v6519 = vadd.f32 %v6380, %v6504
    %v6520 = vadd.f32 %v6381, %v6508
    %v6521 = vadd.f32 %v6382, %v6504
    %v6522 = vadd.f32 %v6383, %v6508
    %v6523 = vadd.f32 %v6384, %v6504
    %v6524 = vadd.f32 %v6385, %v6508
    %v6525 = vadd.f32 %v6386, %v6504
    %v6526 = vadd.f32 %v6387, %v6508
    %v6527 = vadd.f32 %v6388, %v6504
    %v6528 = vadd.f32 %v6389, %v6508
    %v6529 = vadd.f32 %v6390, %v6504
    %v6530 = vadd.f32 %v6391, %v6508
    %v6531 = vadd.f32 %v6392, %v6504
    %v6532 = vadd.f32 %v6393, %v6508
    %v6533 = vadd.f32 %v6394, %v6504
    %v6534 = vadd.f32 %v6395, %v6508
    %v6535 = vadd.f32 %v6396, %v6504
    %v6536 = vadd.f32 %v6397, %v6508
    %v6537 = vadd.f32 %v6398, %v6504
    %v6538 = vadd.f32 %v6399, %v6508
    %v6539 = vadd.f32 %v6400, %v6504
    %v6540 = vadd.f32 %v6401, %v6508
    %v6541 = vadd.f32 %v6402, %v6504
    %v6542 = vadd.f32 %v6403, %v6508
    %v6543 = vadd.f32 %v6404, %v6504
    %v6544 = vadd.f32 %v6405, %v6508
    %v6545 = vadd.f32 %v6406, %v6504
    %v6546 = vadd.f32 %v6407, %v6508
    %v6547 = vadd.f32 %v6408, %v6504
    %v6548 = vadd.f32 %v6409, %v6508
    %v6549 = vadd.f32 %v6410, %v6504
    %v6550 = vadd.f32 %v6411, %v6508
    %v6551 = vadd.f32 %v6412, %v6504
    %v6552 = vadd.f32 %v6413, %v6508
    %v6553 = vadd.f32 %v6414, %v6504
    %v6554 = vadd.f32 %v6415, %v6508
    %v6555 = vadd.f32 %v6416, %v6504
    %v6556 = vadd.f32 %v6417, %v6508
    %v6557 = vadd.f32 %v6418, %v6504
    %v6558 = vadd.f32 %v6419, %v6508
    %v6559 = vadd.f32 %v6420, %v6504
    %v6560 = vadd.f32 %v6421, %v6508
    %v6561 = vadd.f32 %v6422, %v6504
    %v6562 = vadd.f32 %v6423, %v6508
    %v6563 = vadd.f32 %v6424, %v6504
    %v6564 = vadd.f32 %v6425, %v6508
    %v6565 = vadd.f32 %v6426, %v6504
    %v6566 = vadd.f32 %v6427, %v6508
    %v6567 = vadd.f32 %v6428, %v6504
    %v6568 = vadd.f32 %v6429, %v6508
    %v6569 = vadd.f32 %v6430, %v6504
    %v6570 = vadd.f32 %v6431, %v6508
    %v6571 = vadd.f32 %v6432, %v6504
    %v6572 = vadd.f32 %v6433, %v6508
    %v6573 = vadd.f32 %v6434, %v6504
    %v6574 = vadd.f32 %v6435, %v6508
    %v6575 = vadd.f32 %v6436, %v6504
    %v6576 = vadd.f32 %v6437, %v6508
    %v6577 = vadd.f32 %v6438, %v6504
    %v6578 = vadd.f32 %v6439, %v6508
    %v6579 = vadd.f32 %v6440, %v6504
    %v6580 = vadd.f32 %v6441, %v6508
    %v6581 = vadd.f32 %v6442, %v6504
    %v6582 = vadd.f32 %v6443, %v6508
    %v6583 = vadd.f32 %v6444, %v6504
    %v6584 = vadd.f32 %v6445, %v6508
    %v6585 = vadd.f32 %v6446, %v6504
    %v6586 = vadd.f32 %v6447, %v6508
    %v6587 = vadd.f32 %v6448, %v6504
    %v6588 = vadd.f32 %v6449, %v6508
    %v6589 = vadd.f32 %v6450, %v6504
    %v6590 = vadd.f32 %v6451, %v6508
    %v6591 = vadd.f32 %v6452, %v6504
    %v6592 = vadd.f32 %v6453, %v6508
    %v6593 = vadd.f32 %v6454, %v6504
    %v6594 = vadd.f32 %v6455, %v6508
    %v6595 = vadd.f32 %v6456, %v6504
    %v6596 = vadd.f32 %v6457, %v6508
    %v6597 = vadd.f32 %v6458, %v6504
    %v6598 = vadd.f32 %v6459, %v6508
    %v6599 = vadd.f32 %v6460, %v6504
    %v6600 = vadd.f32 %v6461, %v6508
    %v6601 = vadd.f32 %v6462, %v6504
    %v6602 = vadd.f32 %v6463, %v6508
    %v6603 = vadd.f32 %v6464, %v6504
    %v6604 = vadd.f32 %v6465, %v6508
    %v6605 = vadd.f32 %v6466, %v6504
    %v6606 = vadd.f32 %v6467, %v6508
    %v6607 = vadd.f32 %v6468, %v6504
    %v6608 = vadd.f32 %v6469, %v6508
    %v6609 = vadd.f32 %v6470, %v6504
    %v6610 = vadd.f32 %v6471, %v6508
    %v6611 = vadd.f32 %v6472, %v6504
    %v6612 = vadd.f32 %v6473, %v6508
    %v6613 = vadd.f32 %v6474, %v6504
    %v6614 = vadd.f32 %v6475, %v6508
    %v6615 = vadd.f32 %v6476, %v6504
    %v6616 = vadd.f32 %v6477, %v6508
    %v6617 = vadd.f32 %v6478, %v6504
    %v6618 = vadd.f32 %v6479, %v6508
    %v6619 = vadd.f32 %v6480, %v6504
    %v6620 = vadd.f32 %v6481, %v6508
    %v6621 = vadd.f32 %v6482, %v6504
    %v6622 = vadd.f32 %v6483, %v6508
    %v6623 = vadd.f32 %v6484, %v6504
    %v6624 = vadd.f32 %v6485, %v6508
    %v6625 = vadd.f32 %v6486, %v6504
    %v6626 = vadd.f32 %v6487, %v6508
    %v6627 = vadd.f32 %v6488, %v6504
    %v6628 = vadd.f32 %v6489, %v6508
    %v6629 = vadd.f32 %v6490, %v6504
    %v6630 = vadd.f32 %v6491, %v6508
    %v6631 = vadd.f32 %v6492, %v6504
    %v6632 = vadd.f32 %v6493, %v6508
    %v6633 = vadd.f32 %v6494, %v6504
    %v6634 = vadd.f32 %v6495, %v6508
    %v6635 = vadd.f32 %v6496, %v6504
    %v6636 = vadd.f32 %v6497, %v6508
    %v6637 = vadd.f32 %v6498, %v6504
    %v6638 = vadd.f32 %v6499, %v6508
    %v6639 = vadd.f32 %v6511, %v102
    %v6640 = vadd.f32 %v6512, %v103
    %v6641 = vadd.f32 %v6513, %v104
    %v6642 = vadd.f32 %v6514, %v105
    %v6643 = vadd.f32 %v6515, %v106
    %v6644 = vadd.f32 %v6516, %v107
    %v6645 = vadd.f32 %v6517, %v108
    %v6646 = vadd.f32 %v6518, %v109
    %v6647 = vadd.f32 %v6519, %v110
    %v6648 = vadd.f32 %v6520, %v111
    %v6649 = vadd.f32 %v6521, %v112
    %v6650 = vadd.f32 %v6522, %v113
    %v6651 = vadd.f32 %v6523, %v114
    %v6652 = vadd.f32 %v6524, %v115
    %v6653 = vadd.f32 %v6525, %v116
    %v6654 = vadd.f32 %v6526, %v117
    %v6655 = vadd.f32 %v6527, %v118
    %v6656 = vadd.f32 %v6528, %v119
    %v6657 = vadd.f32 %v6529, %v120
    %v6658 = vadd.f32 %v6530, %v121
    %v6659 = vadd.f32 %v6531, %v122
    %v6660 = vadd.f32 %v6532, %v123
    %v6661 = vadd.f32 %v6533, %v124
    %v6662 = vadd.f32 %v6534, %v125
    %v6663 = vadd.f32 %v6535, %v126
    %v6664 = vadd.f32 %v6536, %v127
    %v6665 = vadd.f32 %v6537, %v128
    %v6666 = vadd.f32 %v6538, %v129
    %v6667 = vadd.f32 %v6539, %v130
    %v6668 = vadd.f32 %v6540, %v131
    %v6669 = vadd.f32 %v6541, %v132
    %v6670 = vadd.f32 %v6542, %v133
    %v6671 = vadd.f32 %v6543, %v134
    %v6672 = vadd.f32 %v6544, %v135
    %v6673 = vadd.f32 %v6545, %v136
    %v6674 = vadd.f32 %v6546, %v137
    %v6675 = vadd.f32 %v6547, %v138
    %v6676 = vadd.f32 %v6548, %v139
    %v6677 = vadd.f32 %v6549, %v140
    %v6678 = vadd.f32 %v6550, %v141
    %v6679 = vadd.f32 %v6551, %v142
    %v6680 = vadd.f32 %v6552, %v143
    %v6681 = vadd.f32 %v6553, %v144
    %v6682 = vadd.f32 %v6554, %v145
    %v6683 = vadd.f32 %v6555, %v146
    %v6684 = vadd.f32 %v6556, %v147
    %v6685 = vadd.f32 %v6557, %v148
    %v6686 = vadd.f32 %v6558, %v149
    %v6687 = vadd.f32 %v6559, %v150
    %v6688 = vadd.f32 %v6560, %v151
    %v6689 = vadd.f32 %v6561, %v152
    %v6690 = vadd.f32 %v6562, %v153
    %v6691 = vadd.f32 %v6563, %v154
    %v6692 = vadd.f32 %v6564, %v155
    %v6693 = vadd.f32 %v6565, %v156
    %v6694 = vadd.f32 %v6566, %v157
    %v6695 = vadd.f32 %v6567, %v158
    %v6696 = vadd.f32 %v6568, %v159
    %v6697 = vadd.f32 %v6569, %v160
    %v6698 = vadd.f32 %v6570, %v161
    %v6699 = vadd.f32 %v6571, %v162
    %v6700 = vadd.f32 %v6572, %v163
    %v6701 = vadd.f32 %v6573, %v164
    %v6702 = vadd.f32 %v6574, %v165
    %v6703 = vadd.f32 %v6575, %v166
    %v6704 = vadd.f32 %v6576, %v167
    %v6705 = vadd.f32 %v6577, %v168
    %v6706 = vadd.f32 %v6578, %v169
    %v6707 = vadd.f32 %v6579, %v170
    %v6708 = vadd.f32 %v6580, %v171
    %v6709 = vadd.f32 %v6581, %v172
    %v6710 = vadd.f32 %v6582, %v173
    %v6711 = vadd.f32 %v6583, %v174
    %v6712 = vadd.f32 %v6584, %v175
    %v6713 = vadd.f32 %v6585, %v176
    %v6714 = vadd.f32 %v6586, %v177
    %v6715 = vadd.f32 %v6587, %v178
    %v6716 = vadd.f32 %v6588, %v179
    %v6717 = vadd.f32 %v6589, %v180
    %v6718 = vadd.f32 %v6590, %v181
    %v6719 = vadd.f32 %v6591, %v182
    %v6720 = vadd.f32 %v6592, %v183
    %v6721 = vadd.f32 %v6593, %v184
    %v6722 = vadd.f32 %v6594, %v185
    %v6723 = vadd.f32 %v6595, %v186
    %v6724 = vadd.f32 %v6596, %v187
    %v6725 = vadd.f32 %v6597, %v188
    %v6726 = vadd.f32 %v6598, %v189
    %v6727 = vadd.f32 %v6599, %v190
    %v6728 = vadd.f32 %v6600, %v191
    %v6729 = vadd.f32 %v6601, %v192
    %v6730 = vadd.f32 %v6602, %v193
    %v6731 = vadd.f32 %v6603, %v194
    %v6732 = vadd.f32 %v6604, %v195
    %v6733 = vadd.f32 %v6605, %v196
    %v6734 = vadd.f32 %v6606, %v197
    %v6735 = vadd.f32 %v6607, %v198
    %v6736 = vadd.f32 %v6608, %v199
    %v6737 = vadd.f32 %v6609, %v200
    %v6738 = vadd.f32 %v6610, %v201
    %v6739 = vadd.f32 %v6611, %v202
    %v6740 = vadd.f32 %v6612, %v203
    %v6741 = vadd.f32 %v6613, %v204
    %v6742 = vadd.f32 %v6614, %v205
    %v6743 = vadd.f32 %v6615, %v206
    %v6744 = vadd.f32 %v6616, %v207
    %v6745 = vadd.f32 %v6617, %v208
    %v6746 = vadd.f32 %v6618, %v209
    %v6747 = vadd.f32 %v6619, %v210
    %v6748 = vadd.f32 %v6620, %v211
    %v6749 = vadd.f32 %v6621, %v212
    %v6750 = vadd.f32 %v6622, %v213
    %v6751 = vadd.f32 %v6623, %v214
    %v6752 = vadd.f32 %v6624, %v215
    %v6753 = vadd.f32 %v6625, %v216
    %v6754 = vadd.f32 %v6626, %v217
    %v6755 = vadd.f32 %v6627, %v218
    %v6756 = vadd.f32 %v6628, %v219
    %v6757 = vadd.f32 %v6629, %v220
    %v6758 = vadd.f32 %v6630, %v221
    %v6759 = vadd.f32 %v6631, %v222
    %v6760 = vadd.f32 %v6632, %v223
    %v6761 = vadd.f32 %v6633, %v224
    %v6762 = vadd.f32 %v6634, %v225
    %v6763 = vadd.f32 %v6635, %v226
    %v6764 = vadd.f32 %v6636, %v227
    %v6765 = vadd.f32 %v6637, %v228
    %v6766 = vadd.f32 %v6638, %v229
    %v6767 = vmax.f32 %v6639, 0.0
    %v6768 = vmax.f32 %v6640, 0.0
    %v6769 = vmax.f32 %v6641, 0.0
    %v6770 = vmax.f32 %v6642, 0.0
    %v6771 = vmax.f32 %v6643, 0.0
    %v6772 = vmax.f32 %v6644, 0.0
    %v6773 = vmax.f32 %v6645, 0.0
    %v6774 = vmax.f32 %v6646, 0.0
    %v6775 = vmax.f32 %v6647, 0.0
    %v6776 = vmax.f32 %v6648, 0.0
    %v6777 = vmax.f32 %v6649, 0.0
    %v6778 = vmax.f32 %v6650, 0.0
    %v6779 = vmax.f32 %v6651, 0.0
    %v6780 = vmax.f32 %v6652, 0.0
    %v6781 = vmax.f32 %v6653, 0.0
    %v6782 = vmax.f32 %v6654, 0.0
    %v6783 = vmax.f32 %v6655, 0.0
    %v6784 = vmax.f32 %v6656, 0.0
    %v6785 = vmax.f32 %v6657, 0.0
    %v6786 = vmax.f32 %v6658, 0.0
    %v6787 = vmax.f32 %v6659, 0.0
    %v6788 = vmax.f32 %v6660, 0.0
    %v6789 = vmax.f32 %v6661, 0.0
    %v6790 = vmax.f32 %v6662, 0.0
    %v6791 = vmax.f32 %v6663, 0.0
    %v6792 = vmax.f32 %v6664, 0.0
    %v6793 = vmax.f32 %v6665, 0.0
    %v6794 = vmax.f32 %v6666, 0.0
    %v6795 = vmax.f32 %v6667, 0.0
    %v6796 = vmax.f32 %v6668, 0.0
    %v6797 = vmax.f32 %v6669, 0.0
    %v6798 = vmax.f32 %v6670, 0.0
    %v6799 = vmax.f32 %v6671, 0.0
    %v6800 = vmax.f32 %v6672, 0.0
    %v6801 = vmax.f32 %v6673, 0.0
    %v6802 = vmax.f32 %v6674, 0.0
    %v6803 = vmax.f32 %v6675, 0.0
    %v6804 = vmax.f32 %v6676, 0.0
    %v6805 = vmax.f32 %v6677, 0.0
    %v6806 = vmax.f32 %v6678, 0.0
    %v6807 = vmax.f32 %v6679, 0.0
    %v6808 = vmax.f32 %v6680, 0.0
    %v6809 = vmax.f32 %v6681, 0.0
    %v6810 = vmax.f32 %v6682, 0.0
    %v6811 = vmax.f32 %v6683, 0.0
    %v6812 = vmax.f32 %v6684, 0.0
    %v6813 = vmax.f32 %v6685, 0.0
    %v6814 = vmax.f32 %v6686, 0.0
    %v6815 = vmax.f32 %v6687, 0.0
    %v6816 = vmax.f32 %v6688, 0.0
    %v6817 = vmax.f32 %v6689, 0.0
    %v6818 = vmax.f32 %v6690, 0.0
    %v6819 = vmax.f32 %v6691, 0.0
    %v6820 = vmax.f32 %v6692, 0.0
    %v6821 = vmax.f32 %v6693, 0.0
    %v6822 = vmax.f32 %v6694, 0.0
    %v6823 = vmax.f32 %v6695, 0.0
    %v6824 = vmax.f32 %v6696, 0.0
    %v6825 = vmax.f32 %v6697, 0.0
    %v6826 = vmax.f32 %v6698, 0.0
    %v6827 = vmax.f32 %v6699, 0.0
    %v6828 = vmax.f32 %v6700, 0.0
    %v6829 = vmax.f32 %v6701, 0.0
    %v6830 = vmax.f32 %v6702, 0.0
    %v6831 = vmax.f32 %v6703, 0.0
    %v6832 = vmax.f32 %v6704, 0.0
    %v6833 = vmax.f32 %v6705, 0.0
    %v6834 = vmax.f32 %v6706, 0.0
    %v6835 = vmax.f32 %v6707, 0.0
    %v6836 = vmax.f32 %v6708, 0.0
    %v6837 = vmax.f32 %v6709, 0.0
    %v6838 = vmax.f32 %v6710, 0.0
    %v6839 = vmax.f32 %v6711, 0.0
    %v6840 = vmax.f32 %v6712, 0.0
    %v6841 = vmax.f32 %v6713, 0.0
    %v6842 = vmax.f32 %v6714, 0.0
    %v6843 = vmax.f32 %v6715, 0.0
    %v6844 = vmax.f32 %v6716, 0.0
    %v6845 = vmax.f32 %v6717, 0.0
    %v6846 = vmax.f32 %v6718, 0.0
    %v6847 = vmax.f32 %v6719, 0.0
    %v6848 = vmax.f32 %v6720, 0.0
    %v6849 = vmax.f32 %v6721, 0.0
    %v6850 = vmax.f32 %v6722, 0.0
    %v6851 = vmax.f32 %v6723, 0.0
    %v6852 = vmax.f32 %v6724, 0.0
    %v6853 = vmax.f32 %v6725, 0.0
    %v6854 = vmax.f32 %v6726, 0.0
    %v6855 = vmax.f32 %v6727, 0.0
    %v6856 = vmax.f32 %v6728, 0.0
    %v6857 = vmax.f32 %v6729, 0.0
    %v6858 = vmax.f32 %v6730, 0.0
    %v6859 = vmax.f32 %v6731, 0.0
    %v6860 = vmax.f32 %v6732, 0.0
    %v6861 = vmax.f32 %v6733, 0.0
    %v6862 = vmax.f32 %v6734, 0.0
    %v6863 = vmax.f32 %v6735, 0.0
    %v6864 = vmax.f32 %v6736, 0.0
    %v6865 = vmax.f32 %v6737, 0.0
    %v6866 = vmax.f32 %v6738, 0.0
    %v6867 = vmax.f32 %v6739, 0.0
    %v6868 = vmax.f32 %v6740, 0.0
    %v6869 = vmax.f32 %v6741, 0.0
    %v6870 = vmax.f32 %v6742, 0.0
    %v6871 = vmax.f32 %v6743, 0.0
    %v6872 = vmax.f32 %v6744, 0.0
    %v6873 = vmax.f32 %v6745, 0.0
    %v6874 = vmax.f32 %v6746, 0.0
    %v6875 = vmax.f32 %v6747, 0.0
    %v6876 = vmax.f32 %v6748, 0.0
    %v6877 = vmax.f32 %v6749, 0.0
    %v6878 = vmax.f32 %v6750, 0.0
    %v6879 = vmax.f32 %v6751, 0.0
    %v6880 = vmax.f32 %v6752, 0.0
    %v6881 = vmax.f32 %v6753, 0.0
    %v6882 = vmax.f32 %v6754, 0.0
    %v6883 = vmax.f32 %v6755, 0.0
    %v6884 = vmax.f32 %v6756, 0.0
    %v6885 = vmax.f32 %v6757, 0.0
    %v6886 = vmax.f32 %v6758, 0.0
    %v6887 = vmax.f32 %v6759, 0.0
    %v6888 = vmax.f32 %v6760, 0.0
    %v6889 = vmax.f32 %v6761, 0.0
    %v6890 = vmax.f32 %v6762, 0.0
    %v6891 = vmax.f32 %v6763, 0.0
    %v6892 = vmax.f32 %v6764, 0.0
    %v6893 = vmax.f32 %v6765, 0.0
    %v6894 = vmax.f32 %v6766, 0.0
    %6895 = vst [vmem:[#allocation13] sm:$0xff] %v6767
    %6896 = vst [vmem:[#allocation13 + $0x8] sm:$0xff] %v6768
    %6897 = vst [vmem:[#allocation13 + $0x10] sm:$0xff] %v6769
    %6898 = vst [vmem:[#allocation13 + $0x18] sm:$0xff] %v6770
    %6899 = vst [vmem:[#allocation13 + $0x20] sm:$0xff] %v6771
    %6900 = vst [vmem:[#allocation13 + $0x28] sm:$0xff] %v6772
    %6901 = vst [vmem:[#allocation13 + $0x30] sm:$0xff] %v6773
    %6902 = vst [vmem:[#allocation13 + $0x38] sm:$0xff] %v6774
    %6903 = vst [vmem:[#allocation13 + $0x40] sm:$0xff] %v6775
    %6904 = vst [vmem:[#allocation13 + $0x48] sm:$0xff] %v6776
    %6905 = vst [vmem:[#allocation13 + $0x50] sm:$0xff] %v6777
    %6906 = vst [vmem:[#allocation13 + $0x58] sm:$0xff] %v6778
    %6907 = vst [vmem:[#allocation13 + $0x60] sm:$0xff] %v6779
    %6908 = vst [vmem:[#allocation13 + $0x68] sm:$0xff] %v6780
    %6909 = vst [vmem:[#allocation13 + $0x70] sm:$0xff] %v6781
    %6910 = vst [vmem:[#allocation13 + $0x78] sm:$0xff] %v6782
    %6911 = vst [vmem:[#allocation13 + $0x80] sm:$0xff] %v6783
    %6912 = vst [vmem:[#allocation13 + $0x88] sm:$0xff] %v6784
    %6913 = vst [vmem:[#allocation13 + $0x90] sm:$0xff] %v6785
    %6914 = vst [vmem:[#allocation13 + $0x98] sm:$0xff] %v6786
    %6915 = vst [vmem:[#allocation13 + $0xa0] sm:$0xff] %v6787
    %6916 = vst [vmem:[#allocation13 + $0xa8] sm:$0xff] %v6788
    %6917 = vst [vmem:[#allocation13 + $0xb0] sm:$0xff] %v6789
    %6918 = vst [vmem:[#allocation13 + $0xb8] sm:$0xff] %v6790
    %6919 = vst [vmem:[#allocation13 + $0xc0] sm:$0xff] %v6791
    %6920 = vst [vmem:[#allocation13 + $0xc8] sm:$0xff] %v6792
    %6921 = vst [vmem:[#allocation13 + $0xd0] sm:$0xff] %v6793
    %6922 = vst [vmem:[#allocation13 + $0xd8] sm:$0xff] %v6794
    %6923 = vst [vmem:[#allocation13 + $0xe0] sm:$0xff] %v6795
    %6924 = vst [vmem:[#allocation13 + $0xe8] sm:$0xff] %v6796
    %6925 = vst [vmem:[#allocation13 + $0xf0] sm:$0xff] %v6797
    %6926 = vst [vmem:[#allocation13 + $0xf8] sm:$0xff] %v6798
    %6927 = vst [vmem:[#allocation13 + $0x100] sm:$0xff] %v6799
    %6928 = vst [vmem:[#allocation13 + $0x108] sm:$0xff] %v6800
    %6929 = vst [vmem:[#allocation13 + $0x110] sm:$0xff] %v6801
    %6930 = vst [vmem:[#allocation13 + $0x118] sm:$0xff] %v6802
    %6931 = vst [vmem:[#allocation13 + $0x120] sm:$0xff] %v6803
    %6932 = vst [vmem:[#allocation13 + $0x128] sm:$0xff] %v6804
    %6933 = vst [vmem:[#allocation13 + $0x130] sm:$0xff] %v6805
    %6934 = vst [vmem:[#allocation13 + $0x138] sm:$0xff] %v6806
    %6935 = vst [vmem:[#allocation13 + $0x140] sm:$0xff] %v6807
    %6936 = vst [vmem:[#allocation13 + $0x148] sm:$0xff] %v6808
    %6937 = vst [vmem:[#allocation13 + $0x150] sm:$0xff] %v6809
    %6938 = vst [vmem:[#allocation13 + $0x158] sm:$0xff] %v6810
    %6939 = vst [vmem:[#allocation13 + $0x160] sm:$0xff] %v6811
    %6940 = vst [vmem:[#allocation13 + $0x168] sm:$0xff] %v6812
    %6941 = vst [vmem:[#allocation13 + $0x170] sm:$0xff] %v6813
    %6942 = vst [vmem:[#allocation13 + $0x178] sm:$0xff] %v6814
    %6943 = vst [vmem:[#allocation13 + $0x180] sm:$0xff] %v6815
    %6944 = vst [vmem:[#allocation13 + $0x188] sm:$0xff] %v6816
    %6945 = vst [vmem:[#allocation13 + $0x190] sm:$0xff] %v6817
    %6946 = vst [vmem:[#allocation13 + $0x198] sm:$0xff] %v6818
    %6947 = vst [vmem:[#allocation13 + $0x1a0] sm:$0xff] %v6819
    %6948 = vst [vmem:[#allocation13 + $0x1a8] sm:$0xff] %v6820
    %6949 = vst [vmem:[#allocation13 + $0x1b0] sm:$0xff] %v6821
    %6950 = vst [vmem:[#allocation13 + $0x1b8] sm:$0xff] %v6822
    %6951 = vst [vmem:[#allocation13 + $0x1c0] sm:$0xff] %v6823
    %6952 = vst [vmem:[#allocation13 + $0x1c8] sm:$0xff] %v6824
    %6953 = vst [vmem:[#allocation13 + $0x1d0] sm:$0xff] %v6825
    %6954 = vst [vmem:[#allocation13 + $0x1d8] sm:$0xff] %v6826
    %6955 = vst [vmem:[#allocation13 + $0x1e0] sm:$0xff] %v6827
    %6956 = vst [vmem:[#allocation13 + $0x1e8] sm:$0xff] %v6828
    %6957 = vst [vmem:[#allocation13 + $0x1f0] sm:$0xff] %v6829
    %6958 = vst [vmem:[#allocation13 + $0x1f8] sm:$0xff] %v6830
    %6959 = vst [vmem:[#allocation13 + $0x200] sm:$0xff] %v6831
    %6960 = vst [vmem:[#allocation13 + $0x208] sm:$0xff] %v6832
    %6961 = vst [vmem:[#allocation13 + $0x210] sm:$0xff] %v6833
    %6962 = vst [vmem:[#allocation13 + $0x218] sm:$0xff] %v6834
    %6963 = vst [vmem:[#allocation13 + $0x220] sm:$0xff] %v6835
    %6964 = vst [vmem:[#allocation13 + $0x228] sm:$0xff] %v6836
    %6965 = vst [vmem:[#allocation13 + $0x230] sm:$0xff] %v6837
    %6966 = vst [vmem:[#allocation13 + $0x238] sm:$0xff] %v6838
    %6967 = vst [vmem:[#allocation13 + $0x240] sm:$0xff] %v6839
    %6968 = vst [vmem:[#allocation13 + $0x248] sm:$0xff] %v6840
    %6969 = vst [vmem:[#allocation13 + $0x250] sm:$0xff] %v6841
    %6970 = vst [vmem:[#allocation13 + $0x258] sm:$0xff] %v6842
    %6971 = vst [vmem:[#allocation13 + $0x260] sm:$0xff] %v6843
    %6972 = vst [vmem:[#allocation13 + $0x268] sm:$0xff] %v6844
    %6973 = vst [vmem:[#allocation13 + $0x270] sm:$0xff] %v6845
    %6974 = vst [vmem:[#allocation13 + $0x278] sm:$0xff] %v6846
    %6975 = vst [vmem:[#allocation13 + $0x280] sm:$0xff] %v6847
    %6976 = vst [vmem:[#allocation13 + $0x288] sm:$0xff] %v6848
    %6977 = vst [vmem:[#allocation13 + $0x290] sm:$0xff] %v6849
    %6978 = vst [vmem:[#allocation13 + $0x298] sm:$0xff] %v6850
    %6979 = vst [vmem:[#allocation13 + $0x2a0] sm:$0xff] %v6851
    %6980 = vst [vmem:[#allocation13 + $0x2a8] sm:$0xff] %v6852
    %6981 = vst [vmem:[#allocation13 + $0x2b0] sm:$0xff] %v6853
    %6982 = vst [vmem:[#allocation13 + $0x2b8] sm:$0xff] %v6854
    %6983 = vst [vmem:[#allocation13 + $0x2c0] sm:$0xff] %v6855
    %6984 = vst [vmem:[#allocation13 + $0x2c8] sm:$0xff] %v6856
    %6985 = vst [vmem:[#allocation13 + $0x2d0] sm:$0xff] %v6857
    %6986 = vst [vmem:[#allocation13 + $0x2d8] sm:$0xff] %v6858
    %6987 = vst [vmem:[#allocation13 + $0x2e0] sm:$0xff] %v6859
    %6988 = vst [vmem:[#allocation13 + $0x2e8] sm:$0xff] %v6860
    %6989 = vst [vmem:[#allocation13 + $0x2f0] sm:$0xff] %v6861
    %6990 = vst [vmem:[#allocation13 + $0x2f8] sm:$0xff] %v6862
    %6991 = vst [vmem:[#allocation13 + $0x300] sm:$0xff] %v6863
    %6992 = vst [vmem:[#allocation13 + $0x308] sm:$0xff] %v6864
    %6993 = vst [vmem:[#allocation13 + $0x310] sm:$0xff] %v6865
    %6994 = vst [vmem:[#allocation13 + $0x318] sm:$0xff] %v6866
    %6995 = vst [vmem:[#allocation13 + $0x320] sm:$0xff] %v6867
    %6996 = vst [vmem:[#allocation13 + $0x328] sm:$0xff] %v6868
    %6997 = vst [vmem:[#allocation13 + $0x330] sm:$0xff] %v6869
    %6998 = vst [vmem:[#allocation13 + $0x338] sm:$0xff] %v6870
    %6999 = vst [vmem:[#allocation13 + $0x340] sm:$0xff] %v6871
    %7000 = vst [vmem:[#allocation13 + $0x348] sm:$0xff] %v6872
    %7001 = vst [vmem:[#allocation13 + $0x350] sm:$0xff] %v6873
    %7002 = vst [vmem:[#allocation13 + $0x358] sm:$0xff] %v6874
    %7003 = vst [vmem:[#allocation13 + $0x360] sm:$0xff] %v6875
    %7004 = vst [vmem:[#allocation13 + $0x368] sm:$0xff] %v6876
    %7005 = vst [vmem:[#allocation13 + $0x370] sm:$0xff] %v6877
    %7006 = vst [vmem:[#allocation13 + $0x378] sm:$0xff] %v6878
    %7007 = vst [vmem:[#allocation13 + $0x380] sm:$0xff] %v6879
    %7008 = vst [vmem:[#allocation13 + $0x388] sm:$0xff] %v6880
    %7009 = vst [vmem:[#allocation13 + $0x390] sm:$0xff] %v6881
    %7010 = vst [vmem:[#allocation13 + $0x398] sm:$0xff] %v6882
    %7011 = vst [vmem:[#allocation13 + $0x3a0] sm:$0xff] %v6883
    %7012 = vst [vmem:[#allocation13 + $0x3a8] sm:$0xff] %v6884
    %7013 = vst [vmem:[#allocation13 + $0x3b0] sm:$0xff] %v6885
    %7014 = vst [vmem:[#allocation13 + $0x3b8] sm:$0xff] %v6886
    %7015 = vst [vmem:[#allocation13 + $0x3c0] sm:$0xff] %v6887
    %7016 = vst [vmem:[#allocation13 + $0x3c8] sm:$0xff] %v6888
    %7017 = vst [vmem:[#allocation13 + $0x3d0] sm:$0xff] %v6889
    %7018 = vst [vmem:[#allocation13 + $0x3d8] sm:$0xff] %v6890
    %7019 = vst [vmem:[#allocation13 + $0x3e0] sm:$0xff] %v6891
    %7020 = vst [vmem:[#allocation13 + $0x3e8] sm:$0xff] %v6892
    %7021 = vst [vmem:[#allocation13 + $0x3f0] sm:$0xff] %v6893
    %7022 = vst [vmem:[#allocation13 + $0x3f8] sm:$0xff] %v6894
    // Predicated region
    $region62: #{tpu_custom_call.1} parent=1 // pred_check
      _
    $region63: #{tpu_custom_call.1} parent=1 // pred_check_branch
      %7024 = sbr.rel (0) target = $region65
    $region64: #{tpu_custom_call.1} parent=1 // pred_region
      %s7026 = ssub.s32 16384, 16384
      %7027 = vsyncadd [#allocation6], %s7026
      %s7028 = sshll.u32 [#allocation13], 4
      %s7029 = int_to_ptr.vmem [resolvable:$true] %s7028
      %7034 = dma.vmem_to_hbm [thread:$0]  %s7029, 16384, %s10, [#allocation6], 256, 256, 16
    $region65: #{tpu_custom_call.1} parent=1 // pred_fallthru
      _
    // Predicated region
    $region66: #{tpu_custom_call.1} parent=1 // pred_check
      _
    $region67: #{tpu_custom_call.1} parent=1 // pred_check_branch
      %7036 = sbr.rel (0) target = $region69
    $region68: #{tpu_custom_call.1} parent=1 // pred_region
      %7037 = dma.done [#allocation6], 16384
    $region69: #{tpu_custom_call.1} parent=1 // pred_fallthru
      _
    %7038 = vsyncpa [#allocation5], 1
    %7039 = vsyncpa [#allocation8], 1
    %7040 = vsyncpa [#allocation11], 1
    %7041 = vsyncpa [#allocation6], 1

</llo_original>
